<compile_context>
chip_gen: v6e
topology: v6e:2x2x1
jax: 0.10.0
libtpu: 0.0.40
codegen_flags: <defaults>
</compile_context>

<pallas_src>
import jax
import jax.numpy as jnp
from jax.experimental import pallas as pl
from jax.experimental.pallas import tpu as pltpu

EPS = 1e-5  # nn.BatchNorm2d default eps


# ---------------------------------------------------------------------------
# In-kernel helpers (traced inside the Pallas body)
# ---------------------------------------------------------------------------
def _mm(a, w):
    """2-D (M, Cin) x (Cin, Cout) channel GEMM on the MXU, f32 accumulation."""
    return jax.lax.dot_general(
        a, w, (((1,), (0,)), ((), ())), preferred_element_type=jnp.float32)


def _bn(y, gamma, beta):
    """BatchNorm2d forward (training-mode biased batch stats) on a (M, C) slab.

    Single pass: sum + sum-of-squares, affine folded into scale/shift so the
    per-element normalization is one FMA.
    """
    inv_m = 1.0 / y.shape[0]
    s = jnp.sum(y, axis=0, keepdims=True)
    ss = jnp.sum(y * y, axis=0, keepdims=True)
    mu = s * inv_m
    var = jnp.maximum(ss * inv_m - mu * mu, 0.0)
    scale = gamma * jax.lax.rsqrt(var + EPS)
    shift = beta - mu * scale
    return y * scale + shift


# ---------------------------------------------------------------------------
# Fused Bottleneck kernel
# ---------------------------------------------------------------------------
def bottleneck_kernel(x_ref, w1_ref, w2_ref, w3_ref,
                      g1_ref, b1_ref, g2_ref, b2_ref, g3_ref, b3_ref,
                      o_ref, xp_ref):
    # x:(N,H,W,Cin) f32   w1:(Cin,Wd) bf16   w2:(9,Wd,Wd) bf16   w3:(Wd,Cout) bf16
    # g*/b*: (1,C) f32    scratch xp: (N,H+2,W+2,Wd) bf16 (zero-padded activation)
    N, H, W, Cin = x_ref.shape
    Wd = w1_ref.shape[1]
    Cout = w3_ref.shape[1]
    M = N * H * W

    x = x_ref[...]                    # f32; also the residual identity
    x2 = x.reshape(M, Cin)            # flatten leading dims -> plain 2-D GEMMs

    # ---- stage 1: 1x1 conv (bf16 MXU) -> BN -> ReLU --------------------------
    y1 = _mm(x2.astype(jnp.bfloat16), w1_ref[...])                  # (M, Wd) f32
    h1 = jnp.maximum(_bn(y1, g1_ref[...], b1_ref[...]), 0.0)
    h1 = h1.astype(jnp.bfloat16)                                    # single cast

    # ---- stage 2: 3x3 conv, pad=1, as 9 accumulated shifted-slice GEMMs ------
    # Zero ONLY the border strips of the bf16 padded scratch, write interior once.
    zrow = jnp.zeros((N, 1, W + 2, Wd), jnp.bfloat16)
    zcol = jnp.zeros((N, H, 1, Wd), jnp.bfloat16)
    xp_ref[:, 0:1, :, :] = zrow                         # top row
    xp_ref[:, H + 1:H + 2, :, :] = zrow                 # bottom row
    xp_ref[:, 1:H + 1, 0:1, :] = zcol                   # left column
    xp_ref[:, 1:H + 1, W + 1:W + 2, :] = zcol           # right column
    # TODO(synk): this interior store is at W-offset 1 (masked); see file header.
    xp_ref[:, 1:H + 1, 1:W + 1, :] = h1.reshape(N, H, W, Wd)

    w2 = w2_ref[...]                                    # (9, Wd, Wd) bf16
    acc = jnp.zeros((M, Wd), jnp.float32)
    for dy in range(3):                                 # static unroll, 9 taps
        for dx in range(3):
            tap = xp_ref[:, dy:dy + H, dx:dx + W, :]    # (N, H, W, Wd) bf16
            acc = acc + _mm(tap.reshape(M, Wd), w2[dy * 3 + dx])
    h2 = jnp.maximum(_bn(acc, g2_ref[...], b2_ref[...]), 0.0)

    # ---- stage 3: 1x1 conv -> BN -> add identity -> ReLU ---------------------
    y3 = _mm(h2.astype(jnp.bfloat16), w3_ref[...])                  # (M, Cout) f32
    y3 = _bn(y3, g3_ref[...], b3_ref[...])
    o_ref[...] = jnp.maximum(y3 + x2, 0.0).reshape(N, H, W, Cout)


# ---------------------------------------------------------------------------
# pallas_call wrappers (whole tensor = one block; demo shapes are small)
# ---------------------------------------------------------------------------
def _full(shape):
    nd = len(shape)
    return pl.BlockSpec(shape, lambda i, _nd=nd: (0,) * _nd)


def bottleneck_forward_nhwc(x, params):
    """Fused Bottleneck forward. x: (N, H, W, C) float32, NHWC."""
    N, H, W, C = x.shape
    Wd = params["w1"].shape[1]
    Cout = params["w3"].shape[1]
    assert C == Cout, "downsample=None requires inplanes == planes * expansion"

    in_arrays = (x, params["w1"], params["w2"], params["w3"],
                 params["g1"], params["b1"], params["g2"], params["b2"],
                 params["g3"], params["b3"])

    return pl.pallas_call(
        bottleneck_kernel,
        out_shape=jax.ShapeDtypeStruct((N, H, W, Cout), jnp.float32),
        grid=(1,),
        in_specs=[_full(a.shape) for a in in_arrays],
        out_specs=_full((N, H, W, Cout)),
        scratch_shapes=[
            pltpu.VMEM((N, H + 2, W + 2, Wd), jnp.bfloat16),  # padded activation
        ],
        compiler_params=pltpu.CompilerParams(
            dimension_semantics=("arbitrary",)),
    )(*in_arrays)


def bottleneck_forward_nchw(x_nchw, params):
    """NCHW adapter for parity with the PyTorch module interface only.
    Prefer the NHWC entry point — these transposes are extra HBM round-trips."""
    y = bottleneck_forward_nhwc(jnp.transpose(x_nchw, (0, 2, 3, 1)), params)
    return jnp.transpose(y, (0, 3, 1, 2))


# ---------------------------------------------------------------------------
# Deterministic parameter construction (shapes from Bottleneck.__init__)
# ---------------------------------------------------------------------------
def make_params(key, inplanes, planes, base_width=64, groups=1):
    width = int(planes * (base_width / 64.0)) * groups
    out_ch = planes * 4  # expansion
    k1, k2, k3 = jax.random.split(key, 3)
    # PyTorch conv weights are OIHW; build those, then convert to kernel layouts.
    w1_oihw = 0.1 * jax.random.normal(k1, (width, inplanes, 1, 1), jnp.float32)
    w2_oihw = 0.1 * jax.random.normal(k2, (width, width, 3, 3), jnp.float32)
    w3_oihw = 0.1 * jax.random.normal(k3, (out_ch, width, 1, 1), jnp.float32)

    w1_hwio = jnp.transpose(w1_oihw, (2, 3, 1, 0))     # (1,1,Cin,Wd)
    w2_hwio = jnp.transpose(w2_oihw, (2, 3, 1, 0))     # (3,3,Wd,Wd)
    w3_hwio = jnp.transpose(w3_oihw, (2, 3, 1, 0))     # (1,1,Wd,Cout)

    params = {
        # MXU operands in bf16, channel-last friendly layouts
        "w1": w1_hwio[0, 0].astype(jnp.bfloat16),                      # (Cin, Wd)
        "w2": w2_hwio.reshape(9, width, width).astype(jnp.bfloat16),   # per-tap
        "w3": w3_hwio[0, 0].astype(jnp.bfloat16),                      # (Wd, Cout)
        # BN affine params (PyTorch default init: weight=1, bias=0), kept f32
        "g1": jnp.ones((1, width), jnp.float32),
        "b1": jnp.zeros((1, width), jnp.float32),
        "g2": jnp.ones((1, width), jnp.float32),
        "b2": jnp.zeros((1, width), jnp.float32),
        "g3": jnp.ones((1, out_ch), jnp.float32),
        "b3": jnp.zeros((1, out_ch), jnp.float32),
    }
    ref = {"w1": w1_hwio, "w2": w2_hwio, "w3": w3_hwio}  # f32 HWIO for references
    return params, ref


# ---------------------------------------------------------------------------
# Pure-JAX NHWC references (mirror the PyTorch forward).
#   dtype=jnp.bfloat16 : same MXU-operand policy as the kernel (tight check)
#   dtype=jnp.float32  : PyTorch-precision reference (loose sanity check)
# ---------------------------------------------------------------------------
def _conv_nhwc(x, w_hwio, pad, dtype):
    return jax.lax.conv_general_dilated(
        x.astype(dtype), w_hwio.astype(dtype), (1, 1),
        [(pad, pad), (pad, pad)],
        dimension_numbers=("NHWC", "HWIO", "NHWC"),
        preferred_element_type=jnp.float32)


def _bn_ref(y):
    mu = jnp.mean(y, axis=(0, 1, 2), keepdims=True)
    var = jnp.mean(jnp.square(y - mu), axis=(0, 1, 2), keepdims=True)
    return (y - mu) * jax.lax.rsqrt(var + EPS)  # gamma=1, beta=0 (default init)


def reference_forward(x, ref_w, dtype):
    identity = x
    out = jnp.maximum(_bn_ref(_conv_nhwc(x, ref_w["w1"], 0, dtype)), 0.0)
    out = jnp.maximum(_bn_ref(_conv_nhwc(out, ref_w["w2"], 1, dtype)), 0.0)
    out = _bn_ref(_conv_nhwc(out, ref_w["w3"], 0, dtype))
    return jnp.maximum(out + identity, 0.0)


if __name__ == "__main__":
    # Small shapes: inplanes must equal planes*4 (expansion) because
    # downsample=None -> identity add requires matching channels.
    N, inplanes, planes, H, W = 2, 64, 16, 16, 16   # width = 16, out channels = 64

    key = jax.random.PRNGKey(0)
    kx, kp = jax.random.split(key)
    x = jax.random.normal(kx, (N, H, W, inplanes), jnp.float32)   # NHWC

    params, ref_w = make_params(kp, inplanes, planes)

    out = jax.block_until_ready(bottleneck_forward_nhwc(x, params))
    assert out.shape == (N, H, W, planes * 4)

    # Tight structural check: reference with the same bf16-MXU-operand policy.
    ref_bf16 = jax.block_until_ready(reference_forward(x, ref_w, jnp.bfloat16))
    err = float(jnp.max(jnp.abs(out - ref_bf16)))
    assert err < 5e-3, f"mismatch vs bf16-policy reference (max |diff| = {err})"

    # Loose sanity check against the full-f32 (PyTorch-precision) reference:
    # bounds bf16-operand drift, catches structural errors (O(1) deviations).
    ref_f32 = jax.block_until_ready(reference_forward(x, ref_w, jnp.float32))
    err32 = float(jnp.max(jnp.abs(out - ref_f32)))
    assert err32 < 5e-1, f"mismatch vs f32 reference (max |diff| = {err32})"

    print("KERNEL_OK")
</pallas_src>

<mosaic_0001>
module attributes {stable_mosaic.version = 11 : i64} {
  func.func @bottleneck_kernel(%arg0: i32, %arg1: memref<2x16x16x64xf32, #tpu.memory_space<vmem>>, %arg2: memref<64x16xbf16, #tpu.memory_space<vmem>>, %arg3: memref<9x16x16xbf16, #tpu.memory_space<vmem>>, %arg4: memref<16x64xbf16, #tpu.memory_space<vmem>>, %arg5: memref<1x16xf32, #tpu.memory_space<vmem>>, %arg6: memref<1x16xf32, #tpu.memory_space<vmem>>, %arg7: memref<1x16xf32, #tpu.memory_space<vmem>>, %arg8: memref<1x16xf32, #tpu.memory_space<vmem>>, %arg9: memref<1x64xf32, #tpu.memory_space<vmem>>, %arg10: memref<1x64xf32, #tpu.memory_space<vmem>>, %arg11: memref<2x16x16x64xf32, #tpu.memory_space<vmem>>, %arg12: memref<2x18x18x16xbf16, #tpu.memory_space<vmem>>) attributes {dimension_semantics = [#tpu.dimension_semantics<arbitrary>], iteration_bounds = array<i64: 1>, scalar_prefetch = 0 : i64, scratch_operands = 1 : i64, tpu.core_type = #tpu.core_type<tc>, window_params = [{pipeline_mode = #tpu.pipeline_mode<synchronous>, transform_indices = @transform_0, window_bounds = array<i64: 2, 16, 16, 64>}, {pipeline_mode = #tpu.pipeline_mode<synchronous>, transform_indices = @transform_1, window_bounds = array<i64: 64, 16>}, {pipeline_mode = #tpu.pipeline_mode<synchronous>, transform_indices = @transform_2, window_bounds = array<i64: 9, 16, 16>}, {pipeline_mode = #tpu.pipeline_mode<synchronous>, transform_indices = @transform_3, window_bounds = array<i64: 16, 64>}, {pipeline_mode = #tpu.pipeline_mode<synchronous>, transform_indices = @transform_4, window_bounds = array<i64: 1, 16>}, {pipeline_mode = #tpu.pipeline_mode<synchronous>, transform_indices = @transform_5, window_bounds = array<i64: 1, 16>}, {pipeline_mode = #tpu.pipeline_mode<synchronous>, transform_indices = @transform_6, window_bounds = array<i64: 1, 16>}, {pipeline_mode = #tpu.pipeline_mode<synchronous>, transform_indices = @transform_7, window_bounds = array<i64: 1, 16>}, {pipeline_mode = #tpu.pipeline_mode<synchronous>, transform_indices = @transform_8, window_bounds = array<i64: 1, 64>}, {pipeline_mode = #tpu.pipeline_mode<synchronous>, transform_indices = @transform_9, window_bounds = array<i64: 1, 64>}, {pipeline_mode = #tpu.pipeline_mode<synchronous>, transform_indices = @transform_10, window_bounds = array<i64: 2, 16, 16, 64>}]} {
    %c0 = arith.constant 0 : index
    %c0_0 = arith.constant 0 : index
    %c0_1 = arith.constant 0 : index
    %c0_2 = arith.constant 0 : index
    %0 = vector.load %arg1[%c0, %c0_0, %c0_1, %c0_2] : memref<2x16x16x64xf32, #tpu.memory_space<vmem>>, vector<2x16x16x64xf32>
    %1 = vector.shape_cast %0 : vector<2x16x16x64xf32> to vector<512x64xf32>
    %2 = arith.truncf %1 : vector<512x64xf32> to vector<512x64xbf16>
    %c0_3 = arith.constant 0 : index
    %c0_4 = arith.constant 0 : index
    %3 = vector.load %arg2[%c0_3, %c0_4] : memref<64x16xbf16, #tpu.memory_space<vmem>>, vector<64x16xbf16>
    %cst = arith.constant dense<0.000000e+00> : vector<512x16xf32>
    %4 = tpu.matmul %2, %3, %cst {dimension_numbers = #tpu.dot_dimension_numbers<[1], [0], [0], [1], [0, 0, 1, 1], [], []>} : vector<512x64xbf16>, vector<64x16xbf16>, vector<512x16xf32> -> vector<512x16xf32>
    %c0_5 = arith.constant 0 : index
    %c0_6 = arith.constant 0 : index
    %5 = vector.load %arg5[%c0_5, %c0_6] : memref<1x16xf32, #tpu.memory_space<vmem>>, vector<1x16xf32>
    %c0_7 = arith.constant 0 : index
    %c0_8 = arith.constant 0 : index
    %6 = vector.load %arg6[%c0_7, %c0_8] : memref<1x16xf32, #tpu.memory_space<vmem>>, vector<1x16xf32>
    %cst_9 = arith.constant dense<0.000000e+00> : vector<16xf32>
    %7 = vector.multi_reduction <add>, %4, %cst_9 [0] : vector<512x16xf32> to vector<16xf32>
    %8 = vector.shape_cast %7 : vector<16xf32> to vector<1x16xf32>
    %9 = arith.mulf %4, %4 : vector<512x16xf32>
    %cst_10 = arith.constant dense<0.000000e+00> : vector<16xf32>
    %10 = vector.multi_reduction <add>, %9, %cst_10 [0] : vector<512x16xf32> to vector<16xf32>
    %11 = vector.shape_cast %10 : vector<16xf32> to vector<1x16xf32>
    %cst_11 = arith.constant 0.001953125 : f32
    %12 = vector.broadcast %cst_11 : f32 to vector<1x16xf32>
    %13 = arith.mulf %8, %12 : vector<1x16xf32>
    %cst_12 = arith.constant 0.001953125 : f32
    %14 = vector.broadcast %cst_12 : f32 to vector<1x16xf32>
    %15 = arith.mulf %11, %14 : vector<1x16xf32>
    %16 = arith.mulf %13, %13 : vector<1x16xf32>
    %17 = arith.subf %15, %16 : vector<1x16xf32>
    %cst_13 = arith.constant 0.000000e+00 : f32
    %18 = vector.broadcast %cst_13 : f32 to vector<1x16xf32>
    %19 = arith.maximumf %17, %18 : vector<1x16xf32>
    %cst_14 = arith.constant 9.99999974E-6 : f32
    %20 = vector.broadcast %cst_14 : f32 to vector<1x16xf32>
    %21 = arith.addf %19, %20 : vector<1x16xf32>
    %22 = math.rsqrt %21 : vector<1x16xf32>
    %23 = arith.mulf %5, %22 : vector<1x16xf32>
    %24 = arith.mulf %13, %23 : vector<1x16xf32>
    %25 = arith.subf %6, %24 : vector<1x16xf32>
    %26 = vector.broadcast %23 : vector<1x16xf32> to vector<512x16xf32>
    %27 = arith.mulf %4, %26 : vector<512x16xf32>
    %28 = vector.broadcast %25 : vector<1x16xf32> to vector<512x16xf32>
    %29 = arith.addf %27, %28 : vector<512x16xf32>
    %cst_15 = arith.constant 0.000000e+00 : f32
    %30 = vector.broadcast %cst_15 : f32 to vector<512x16xf32>
    %31 = arith.maximumf %29, %30 : vector<512x16xf32>
    %32 = arith.truncf %31 : vector<512x16xf32> to vector<512x16xbf16>
    %cst_16 = arith.constant 0.000000e+00 : bf16
    %33 = vector.broadcast %cst_16 : bf16 to vector<2x1x18x16xbf16>
    %cst_17 = arith.constant 0.000000e+00 : bf16
    %34 = vector.broadcast %cst_17 : bf16 to vector<2x16x1x16xbf16>
    %c0_18 = arith.constant 0 : index
    %c0_19 = arith.constant 0 : index
    %c0_20 = arith.constant 0 : index
    %c0_21 = arith.constant 0 : index
    %35 = vector.load %arg12[%c0_18, %c0_19, %c0_20, %c0_21] : memref<2x18x18x16xbf16, #tpu.memory_space<vmem>>, vector<2x1x18x16xbf16>
    tpu.vector_store %arg12[%c0_18, %c0_19, %c0_20, %c0_21], %33 {strides = array<i32>} : memref<2x18x18x16xbf16, #tpu.memory_space<vmem>>, vector<2x1x18x16xbf16>,
    %c0_22 = arith.constant 0 : index
    %c17 = arith.constant 17 : index
    %c0_23 = arith.constant 0 : index
    %c0_24 = arith.constant 0 : index
    %36 = vector.load %arg12[%c0_22, %c17, %c0_23, %c0_24] : memref<2x18x18x16xbf16, #tpu.memory_space<vmem>>, vector<2x1x18x16xbf16>
    tpu.vector_store %arg12[%c0_22, %c17, %c0_23, %c0_24], %33 {strides = array<i32>} : memref<2x18x18x16xbf16, #tpu.memory_space<vmem>>, vector<2x1x18x16xbf16>,
    %c0_25 = arith.constant 0 : index
    %c1 = arith.constant 1 : index
    %c0_26 = arith.constant 0 : index
    %c0_27 = arith.constant 0 : index
    %37 = vector.load %arg12[%c0_25, %c1, %c0_26, %c0_27] : memref<2x18x18x16xbf16, #tpu.memory_space<vmem>>, vector<2x16x1x16xbf16>
    tpu.vector_store %arg12[%c0_25, %c1, %c0_26, %c0_27], %34 {strides = array<i32>} : memref<2x18x18x16xbf16, #tpu.memory_space<vmem>>, vector<2x16x1x16xbf16>,
    %c0_28 = arith.constant 0 : index
    %c1_29 = arith.constant 1 : index
    %c17_30 = arith.constant 17 : index
    %c0_31 = arith.constant 0 : index
    %38 = vector.load %arg12[%c0_28, %c1_29, %c17_30, %c0_31] : memref<2x18x18x16xbf16, #tpu.memory_space<vmem>>, vector<2x16x1x16xbf16>
    tpu.vector_store %arg12[%c0_28, %c1_29, %c17_30, %c0_31], %34 {strides = array<i32>} : memref<2x18x18x16xbf16, #tpu.memory_space<vmem>>, vector<2x16x1x16xbf16>,
    %39 = vector.shape_cast %32 : vector<512x16xbf16> to vector<2x16x16x16xbf16>
    %c0_32 = arith.constant 0 : index
    %c1_33 = arith.constant 1 : index
    %c1_34 = arith.constant 1 : index
    %c0_35 = arith.constant 0 : index
    %40 = vector.load %arg12[%c0_32, %c1_33, %c1_34, %c0_35] : memref<2x18x18x16xbf16, #tpu.memory_space<vmem>>, vector<2x16x16x16xbf16>
    tpu.vector_store %arg12[%c0_32, %c1_33, %c1_34, %c0_35], %39 {strides = array<i32>} : memref<2x18x18x16xbf16, #tpu.memory_space<vmem>>, vector<2x16x16x16xbf16>,
    %c0_36 = arith.constant 0 : index
    %c0_37 = arith.constant 0 : index
    %c0_38 = arith.constant 0 : index
    %41 = vector.load %arg3[%c0_36, %c0_37, %c0_38] : memref<9x16x16xbf16, #tpu.memory_space<vmem>>, vector<9x16x16xbf16>
    %cst_39 = arith.constant 0.000000e+00 : f32
    %42 = vector.broadcast %cst_39 : f32 to vector<512x16xf32>
    %c0_40 = arith.constant 0 : index
    %c0_41 = arith.constant 0 : index
    %c0_42 = arith.constant 0 : index
    %c0_43 = arith.constant 0 : index
    %43 = vector.load %arg12[%c0_40, %c0_41, %c0_42, %c0_43] : memref<2x18x18x16xbf16, #tpu.memory_space<vmem>>, vector<2x16x16x16xbf16>
    %44 = vector.shape_cast %43 : vector<2x16x16x16xbf16> to vector<512x16xbf16>
    %45 = vector.extract_strided_slice %41 {offsets = [0, 0, 0], sizes = [1, 16, 16], strides = [1, 1, 1]} : vector<9x16x16xbf16> to vector<1x16x16xbf16>
    %46 = vector.shape_cast %45 : vector<1x16x16xbf16> to vector<16x16xbf16>
    %cst_44 = arith.constant dense<0.000000e+00> : vector<512x16xf32>
    %47 = tpu.matmul %44, %46, %cst_44 {dimension_numbers = #tpu.dot_dimension_numbers<[1], [0], [0], [1], [0, 0, 1, 1], [], []>} : vector<512x16xbf16>, vector<16x16xbf16>, vector<512x16xf32> -> vector<512x16xf32>
    %48 = arith.addf %42, %47 : vector<512x16xf32>
    %c0_45 = arith.constant 0 : index
    %c0_46 = arith.constant 0 : index
    %c1_47 = arith.constant 1 : index
    %c0_48 = arith.constant 0 : index
    %49 = vector.load %arg12[%c0_45, %c0_46, %c1_47, %c0_48] : memref<2x18x18x16xbf16, #tpu.memory_space<vmem>>, vector<2x16x16x16xbf16>
    %50 = vector.shape_cast %49 : vector<2x16x16x16xbf16> to vector<512x16xbf16>
    %51 = vector.extract_strided_slice %41 {offsets = [1, 0, 0], sizes = [1, 16, 16], strides = [1, 1, 1]} : vector<9x16x16xbf16> to vector<1x16x16xbf16>
    %52 = vector.shape_cast %51 : vector<1x16x16xbf16> to vector<16x16xbf16>
    %cst_49 = arith.constant dense<0.000000e+00> : vector<512x16xf32>
    %53 = tpu.matmul %50, %52, %cst_49 {dimension_numbers = #tpu.dot_dimension_numbers<[1], [0], [0], [1], [0, 0, 1, 1], [], []>} : vector<512x16xbf16>, vector<16x16xbf16>, vector<512x16xf32> -> vector<512x16xf32>
    %54 = arith.addf %48, %53 : vector<512x16xf32>
    %c0_50 = arith.constant 0 : index
    %c0_51 = arith.constant 0 : index
    %c2 = arith.constant 2 : index
    %c0_52 = arith.constant 0 : index
    %55 = vector.load %arg12[%c0_50, %c0_51, %c2, %c0_52] : memref<2x18x18x16xbf16, #tpu.memory_space<vmem>>, vector<2x16x16x16xbf16>
    %56 = vector.shape_cast %55 : vector<2x16x16x16xbf16> to vector<512x16xbf16>
    %57 = vector.extract_strided_slice %41 {offsets = [2, 0, 0], sizes = [1, 16, 16], strides = [1, 1, 1]} : vector<9x16x16xbf16> to vector<1x16x16xbf16>
    %58 = vector.shape_cast %57 : vector<1x16x16xbf16> to vector<16x16xbf16>
    %cst_53 = arith.constant dense<0.000000e+00> : vector<512x16xf32>
    %59 = tpu.matmul %56, %58, %cst_53 {dimension_numbers = #tpu.dot_dimension_numbers<[1], [0], [0], [1], [0, 0, 1, 1], [], []>} : vector<512x16xbf16>, vector<16x16xbf16>, vector<512x16xf32> -> vector<512x16xf32>
    %60 = arith.addf %54, %59 : vector<512x16xf32>
    %c0_54 = arith.constant 0 : index
    %c1_55 = arith.constant 1 : index
    %c0_56 = arith.constant 0 : index
    %c0_57 = arith.constant 0 : index
    %61 = vector.load %arg12[%c0_54, %c1_55, %c0_56, %c0_57] : memref<2x18x18x16xbf16, #tpu.memory_space<vmem>>, vector<2x16x16x16xbf16>
    %62 = vector.shape_cast %61 : vector<2x16x16x16xbf16> to vector<512x16xbf16>
    %63 = vector.extract_strided_slice %41 {offsets = [3, 0, 0], sizes = [1, 16, 16], strides = [1, 1, 1]} : vector<9x16x16xbf16> to vector<1x16x16xbf16>
    %64 = vector.shape_cast %63 : vector<1x16x16xbf16> to vector<16x16xbf16>
    %cst_58 = arith.constant dense<0.000000e+00> : vector<512x16xf32>
    %65 = tpu.matmul %62, %64, %cst_58 {dimension_numbers = #tpu.dot_dimension_numbers<[1], [0], [0], [1], [0, 0, 1, 1], [], []>} : vector<512x16xbf16>, vector<16x16xbf16>, vector<512x16xf32> -> vector<512x16xf32>
    %66 = arith.addf %60, %65 : vector<512x16xf32>
    %c0_59 = arith.constant 0 : index
    %c1_60 = arith.constant 1 : index
    %c1_61 = arith.constant 1 : index
    %c0_62 = arith.constant 0 : index
    %67 = vector.load %arg12[%c0_59, %c1_60, %c1_61, %c0_62] : memref<2x18x18x16xbf16, #tpu.memory_space<vmem>>, vector<2x16x16x16xbf16>
    %68 = vector.shape_cast %67 : vector<2x16x16x16xbf16> to vector<512x16xbf16>
    %69 = vector.extract_strided_slice %41 {offsets = [4, 0, 0], sizes = [1, 16, 16], strides = [1, 1, 1]} : vector<9x16x16xbf16> to vector<1x16x16xbf16>
    %70 = vector.shape_cast %69 : vector<1x16x16xbf16> to vector<16x16xbf16>
    %cst_63 = arith.constant dense<0.000000e+00> : vector<512x16xf32>
    %71 = tpu.matmul %68, %70, %cst_63 {dimension_numbers = #tpu.dot_dimension_numbers<[1], [0], [0], [1], [0, 0, 1, 1], [], []>} : vector<512x16xbf16>, vector<16x16xbf16>, vector<512x16xf32> -> vector<512x16xf32>
    %72 = arith.addf %66, %71 : vector<512x16xf32>
    %c0_64 = arith.constant 0 : index
    %c1_65 = arith.constant 1 : index
    %c2_66 = arith.constant 2 : index
    %c0_67 = arith.constant 0 : index
    %73 = vector.load %arg12[%c0_64, %c1_65, %c2_66, %c0_67] : memref<2x18x18x16xbf16, #tpu.memory_space<vmem>>, vector<2x16x16x16xbf16>
    %74 = vector.shape_cast %73 : vector<2x16x16x16xbf16> to vector<512x16xbf16>
    %75 = vector.extract_strided_slice %41 {offsets = [5, 0, 0], sizes = [1, 16, 16], strides = [1, 1, 1]} : vector<9x16x16xbf16> to vector<1x16x16xbf16>
    %76 = vector.shape_cast %75 : vector<1x16x16xbf16> to vector<16x16xbf16>
    %cst_68 = arith.constant dense<0.000000e+00> : vector<512x16xf32>
    %77 = tpu.matmul %74, %76, %cst_68 {dimension_numbers = #tpu.dot_dimension_numbers<[1], [0], [0], [1], [0, 0, 1, 1], [], []>} : vector<512x16xbf16>, vector<16x16xbf16>, vector<512x16xf32> -> vector<512x16xf32>
    %78 = arith.addf %72, %77 : vector<512x16xf32>
    %c0_69 = arith.constant 0 : index
    %c2_70 = arith.constant 2 : index
    %c0_71 = arith.constant 0 : index
    %c0_72 = arith.constant 0 : index
    %79 = vector.load %arg12[%c0_69, %c2_70, %c0_71, %c0_72] : memref<2x18x18x16xbf16, #tpu.memory_space<vmem>>, vector<2x16x16x16xbf16>
    %80 = vector.shape_cast %79 : vector<2x16x16x16xbf16> to vector<512x16xbf16>
    %81 = vector.extract_strided_slice %41 {offsets = [6, 0, 0], sizes = [1, 16, 16], strides = [1, 1, 1]} : vector<9x16x16xbf16> to vector<1x16x16xbf16>
    %82 = vector.shape_cast %81 : vector<1x16x16xbf16> to vector<16x16xbf16>
    %cst_73 = arith.constant dense<0.000000e+00> : vector<512x16xf32>
    %83 = tpu.matmul %80, %82, %cst_73 {dimension_numbers = #tpu.dot_dimension_numbers<[1], [0], [0], [1], [0, 0, 1, 1], [], []>} : vector<512x16xbf16>, vector<16x16xbf16>, vector<512x16xf32> -> vector<512x16xf32>
    %84 = arith.addf %78, %83 : vector<512x16xf32>
    %c0_74 = arith.constant 0 : index
    %c2_75 = arith.constant 2 : index
    %c1_76 = arith.constant 1 : index
    %c0_77 = arith.constant 0 : index
    %85 = vector.load %arg12[%c0_74, %c2_75, %c1_76, %c0_77] : memref<2x18x18x16xbf16, #tpu.memory_space<vmem>>, vector<2x16x16x16xbf16>
    %86 = vector.shape_cast %85 : vector<2x16x16x16xbf16> to vector<512x16xbf16>
    %87 = vector.extract_strided_slice %41 {offsets = [7, 0, 0], sizes = [1, 16, 16], strides = [1, 1, 1]} : vector<9x16x16xbf16> to vector<1x16x16xbf16>
    %88 = vector.shape_cast %87 : vector<1x16x16xbf16> to vector<16x16xbf16>
    %cst_78 = arith.constant dense<0.000000e+00> : vector<512x16xf32>
    %89 = tpu.matmul %86, %88, %cst_78 {dimension_numbers = #tpu.dot_dimension_numbers<[1], [0], [0], [1], [0, 0, 1, 1], [], []>} : vector<512x16xbf16>, vector<16x16xbf16>, vector<512x16xf32> -> vector<512x16xf32>
    %90 = arith.addf %84, %89 : vector<512x16xf32>
    %c0_79 = arith.constant 0 : index
    %c2_80 = arith.constant 2 : index
    %c2_81 = arith.constant 2 : index
    %c0_82 = arith.constant 0 : index
    %91 = vector.load %arg12[%c0_79, %c2_80, %c2_81, %c0_82] : memref<2x18x18x16xbf16, #tpu.memory_space<vmem>>, vector<2x16x16x16xbf16>
    %92 = vector.shape_cast %91 : vector<2x16x16x16xbf16> to vector<512x16xbf16>
    %93 = vector.extract_strided_slice %41 {offsets = [8, 0, 0], sizes = [1, 16, 16], strides = [1, 1, 1]} : vector<9x16x16xbf16> to vector<1x16x16xbf16>
    %94 = vector.shape_cast %93 : vector<1x16x16xbf16> to vector<16x16xbf16>
    %cst_83 = arith.constant dense<0.000000e+00> : vector<512x16xf32>
    %95 = tpu.matmul %92, %94, %cst_83 {dimension_numbers = #tpu.dot_dimension_numbers<[1], [0], [0], [1], [0, 0, 1, 1], [], []>} : vector<512x16xbf16>, vector<16x16xbf16>, vector<512x16xf32> -> vector<512x16xf32>
    %96 = arith.addf %90, %95 : vector<512x16xf32>
    %c0_84 = arith.constant 0 : index
    %c0_85 = arith.constant 0 : index
    %97 = vector.load %arg7[%c0_84, %c0_85] : memref<1x16xf32, #tpu.memory_space<vmem>>, vector<1x16xf32>
    %c0_86 = arith.constant 0 : index
    %c0_87 = arith.constant 0 : index
    %98 = vector.load %arg8[%c0_86, %c0_87] : memref<1x16xf32, #tpu.memory_space<vmem>>, vector<1x16xf32>
    %cst_88 = arith.constant dense<0.000000e+00> : vector<16xf32>
    %99 = vector.multi_reduction <add>, %96, %cst_88 [0] : vector<512x16xf32> to vector<16xf32>
    %100 = vector.shape_cast %99 : vector<16xf32> to vector<1x16xf32>
    %101 = arith.mulf %96, %96 : vector<512x16xf32>
    %cst_89 = arith.constant dense<0.000000e+00> : vector<16xf32>
    %102 = vector.multi_reduction <add>, %101, %cst_89 [0] : vector<512x16xf32> to vector<16xf32>
    %103 = vector.shape_cast %102 : vector<16xf32> to vector<1x16xf32>
    %cst_90 = arith.constant 0.001953125 : f32
    %104 = vector.broadcast %cst_90 : f32 to vector<1x16xf32>
    %105 = arith.mulf %100, %104 : vector<1x16xf32>
    %cst_91 = arith.constant 0.001953125 : f32
    %106 = vector.broadcast %cst_91 : f32 to vector<1x16xf32>
    %107 = arith.mulf %103, %106 : vector<1x16xf32>
    %108 = arith.mulf %105, %105 : vector<1x16xf32>
    %109 = arith.subf %107, %108 : vector<1x16xf32>
    %cst_92 = arith.constant 0.000000e+00 : f32
    %110 = vector.broadcast %cst_92 : f32 to vector<1x16xf32>
    %111 = arith.maximumf %109, %110 : vector<1x16xf32>
    %cst_93 = arith.constant 9.99999974E-6 : f32
    %112 = vector.broadcast %cst_93 : f32 to vector<1x16xf32>
    %113 = arith.addf %111, %112 : vector<1x16xf32>
    %114 = math.rsqrt %113 : vector<1x16xf32>
    %115 = arith.mulf %97, %114 : vector<1x16xf32>
    %116 = arith.mulf %105, %115 : vector<1x16xf32>
    %117 = arith.subf %98, %116 : vector<1x16xf32>
    %118 = vector.broadcast %115 : vector<1x16xf32> to vector<512x16xf32>
    %119 = arith.mulf %96, %118 : vector<512x16xf32>
    %120 = vector.broadcast %117 : vector<1x16xf32> to vector<512x16xf32>
    %121 = arith.addf %119, %120 : vector<512x16xf32>
    %cst_94 = arith.constant 0.000000e+00 : f32
    %122 = vector.broadcast %cst_94 : f32 to vector<512x16xf32>
    %123 = arith.maximumf %121, %122 : vector<512x16xf32>
    %124 = arith.truncf %123 : vector<512x16xf32> to vector<512x16xbf16>
    %c0_95 = arith.constant 0 : index
    %c0_96 = arith.constant 0 : index
    %125 = vector.load %arg4[%c0_95, %c0_96] : memref<16x64xbf16, #tpu.memory_space<vmem>>, vector<16x64xbf16>
    %cst_97 = arith.constant dense<0.000000e+00> : vector<512x64xf32>
    %126 = tpu.matmul %124, %125, %cst_97 {dimension_numbers = #tpu.dot_dimension_numbers<[1], [0], [0], [1], [0, 0, 1, 1], [], []>} : vector<512x16xbf16>, vector<16x64xbf16>, vector<512x64xf32> -> vector<512x64xf32>
    %c0_98 = arith.constant 0 : index
    %c0_99 = arith.constant 0 : index
    %127 = vector.load %arg9[%c0_98, %c0_99] : memref<1x64xf32, #tpu.memory_space<vmem>>, vector<1x64xf32>
    %c0_100 = arith.constant 0 : index
    %c0_101 = arith.constant 0 : index
    %128 = vector.load %arg10[%c0_100, %c0_101] : memref<1x64xf32, #tpu.memory_space<vmem>>, vector<1x64xf32>
    %cst_102 = arith.constant dense<0.000000e+00> : vector<64xf32>
    %129 = vector.multi_reduction <add>, %126, %cst_102 [0] : vector<512x64xf32> to vector<64xf32>
    %130 = vector.shape_cast %129 : vector<64xf32> to vector<1x64xf32>
    %131 = arith.mulf %126, %126 : vector<512x64xf32>
    %cst_103 = arith.constant dense<0.000000e+00> : vector<64xf32>
    %132 = vector.multi_reduction <add>, %131, %cst_103 [0] : vector<512x64xf32> to vector<64xf32>
    %133 = vector.shape_cast %132 : vector<64xf32> to vector<1x64xf32>
    %cst_104 = arith.constant 0.001953125 : f32
    %134 = vector.broadcast %cst_104 : f32 to vector<1x64xf32>
    %135 = arith.mulf %130, %134 : vector<1x64xf32>
    %cst_105 = arith.constant 0.001953125 : f32
    %136 = vector.broadcast %cst_105 : f32 to vector<1x64xf32>
    %137 = arith.mulf %133, %136 : vector<1x64xf32>
    %138 = arith.mulf %135, %135 : vector<1x64xf32>
    %139 = arith.subf %137, %138 : vector<1x64xf32>
    %cst_106 = arith.constant 0.000000e+00 : f32
    %140 = vector.broadcast %cst_106 : f32 to vector<1x64xf32>
    %141 = arith.maximumf %139, %140 : vector<1x64xf32>
    %cst_107 = arith.constant 9.99999974E-6 : f32
    %142 = vector.broadcast %cst_107 : f32 to vector<1x64xf32>
    %143 = arith.addf %141, %142 : vector<1x64xf32>
    %144 = math.rsqrt %143 : vector<1x64xf32>
    %145 = arith.mulf %127, %144 : vector<1x64xf32>
    %146 = arith.mulf %135, %145 : vector<1x64xf32>
    %147 = arith.subf %128, %146 : vector<1x64xf32>
    %148 = vector.broadcast %145 : vector<1x64xf32> to vector<512x64xf32>
    %149 = arith.mulf %126, %148 : vector<512x64xf32>
    %150 = vector.broadcast %147 : vector<1x64xf32> to vector<512x64xf32>
    %151 = arith.addf %149, %150 : vector<512x64xf32>
    %152 = arith.addf %151, %1 : vector<512x64xf32>
    %cst_108 = arith.constant 0.000000e+00 : f32
    %153 = vector.broadcast %cst_108 : f32 to vector<512x64xf32>
    %154 = arith.maximumf %152, %153 : vector<512x64xf32>
    %155 = vector.shape_cast %154 : vector<512x64xf32> to vector<2x16x16x64xf32>
    %c0_109 = arith.constant 0 : index
    %c0_110 = arith.constant 0 : index
    %c0_111 = arith.constant 0 : index
    %c0_112 = arith.constant 0 : index
    %156 = vector.load %arg11[%c0_109, %c0_110, %c0_111, %c0_112] : memref<2x16x16x64xf32, #tpu.memory_space<vmem>>, vector<2x16x16x64xf32>
    tpu.vector_store %arg11[%c0_109, %c0_110, %c0_111, %c0_112], %155 {strides = array<i32>} : memref<2x16x16x64xf32, #tpu.memory_space<vmem>>, vector<2x16x16x64xf32>,
    return
  }
  func.func @transform_0(%arg0: i32) -> (i32, i32, i32, i32) {
    %c0_i32 = arith.constant 0 : i32
    %c0_i32_0 = arith.constant 0 : i32
    %c0_i32_1 = arith.constant 0 : i32
    %c0_i32_2 = arith.constant 0 : i32
    %c0_i32_3 = arith.constant 0 : i32
    return %c0_i32, %c0_i32_0, %c0_i32_1, %c0_i32_2 : i32, i32, i32, i32
  }
  func.func @transform_1(%arg0: i32) -> (i32, i32) {
    %c0_i32 = arith.constant 0 : i32
    %c0_i32_0 = arith.constant 0 : i32
    %c0_i32_1 = arith.constant 0 : i32
    return %c0_i32, %c0_i32_0 : i32, i32
  }
  func.func @transform_2(%arg0: i32) -> (i32, i32, i32) {
    %c0_i32 = arith.constant 0 : i32
    %c0_i32_0 = arith.constant 0 : i32
    %c0_i32_1 = arith.constant 0 : i32
    %c0_i32_2 = arith.constant 0 : i32
    return %c0_i32, %c0_i32_0, %c0_i32_1 : i32, i32, i32
  }
  func.func @transform_3(%arg0: i32) -> (i32, i32) {
    %c0_i32 = arith.constant 0 : i32
    %c0_i32_0 = arith.constant 0 : i32
    %c0_i32_1 = arith.constant 0 : i32
    return %c0_i32, %c0_i32_0 : i32, i32
  }
  func.func @transform_4(%arg0: i32) -> (i32, i32) {
    %c0_i32 = arith.constant 0 : i32
    %c0_i32_0 = arith.constant 0 : i32
    %c0_i32_1 = arith.constant 0 : i32
    return %c0_i32, %c0_i32_0 : i32, i32
  }
  func.func @transform_5(%arg0: i32) -> (i32, i32) {
    %c0_i32 = arith.constant 0 : i32
    %c0_i32_0 = arith.constant 0 : i32
    %c0_i32_1 = arith.constant 0 : i32
    return %c0_i32, %c0_i32_0 : i32, i32
  }
  func.func @transform_6(%arg0: i32) -> (i32, i32) {
    %c0_i32 = arith.constant 0 : i32
    %c0_i32_0 = arith.constant 0 : i32
    %c0_i32_1 = arith.constant 0 : i32
    return %c0_i32, %c0_i32_0 : i32, i32
  }
  func.func @transform_7(%arg0: i32) -> (i32, i32) {
    %c0_i32 = arith.constant 0 : i32
    %c0_i32_0 = arith.constant 0 : i32
    %c0_i32_1 = arith.constant 0 : i32
    return %c0_i32, %c0_i32_0 : i32, i32
  }
  func.func @transform_8(%arg0: i32) -> (i32, i32) {
    %c0_i32 = arith.constant 0 : i32
    %c0_i32_0 = arith.constant 0 : i32
    %c0_i32_1 = arith.constant 0 : i32
    return %c0_i32, %c0_i32_0 : i32, i32
  }
  func.func @transform_9(%arg0: i32) -> (i32, i32) {
    %c0_i32 = arith.constant 0 : i32
    %c0_i32_0 = arith.constant 0 : i32
    %c0_i32_1 = arith.constant 0 : i32
    return %c0_i32, %c0_i32_0 : i32, i32
  }
  func.func @transform_10(%arg0: i32) -> (i32, i32, i32, i32) {
    %c0_i32 = arith.constant 0 : i32
    %c0_i32_0 = arith.constant 0 : i32
    %c0_i32_1 = arith.constant 0 : i32
    %c0_i32_2 = arith.constant 0 : i32
    %c0_i32_3 = arith.constant 0 : i32
    return %c0_i32, %c0_i32_0, %c0_i32_1, %c0_i32_2 : i32, i32, i32, i32
  }
}

</mosaic_0001>

<llo_original>
// kernel: tpu_custom_call.1
$region0: #{tpu_custom_call.1}
  #allocation0 [shape = 'u32[]', space=smem, size = 0x4, offset = 0x4, fixed_abs, tag = 'smem constant byte address 0x4 - core index']
  #allocation1 [shape = 'u32[144,128]{1,0:T(1,128)}', space=vmem, size = 0x12000, scoped, tag = 'internal scratch']
  #allocation2 [shape = 'bf16[2,18,18,16]{3,2,1,0:T(8,128)(2,1)}', space=vmem, size = 0x36000, scoped, tag = 'scratch operand']
  %s0 = inlined_call_operand.hbm [shape: f32[2,16,16,64], index: 0, kind: input, shape index: {}]
  %s1 = inlined_call_operand.vmem [shape: bf16[64,16], index: 1, kind: input, shape index: {}]
  %s2 = inlined_call_operand.hbm [shape: bf16[9,16,16], index: 2, kind: input, shape index: {}]
  %s3 = inlined_call_operand.vmem [shape: bf16[16,64], index: 3, kind: input, shape index: {}]
  %s4 = inlined_call_operand.vmem [shape: f32[1,16], index: 4, kind: input, shape index: {}]
  %s5 = inlined_call_operand.vmem [shape: f32[1,16], index: 5, kind: input, shape index: {}]
  %s6 = inlined_call_operand.vmem [shape: f32[1,16], index: 6, kind: input, shape index: {}]
  %s7 = inlined_call_operand.vmem [shape: f32[1,16], index: 7, kind: input, shape index: {}]
  %s8 = inlined_call_operand.vmem [shape: f32[1,64], index: 8, kind: input, shape index: {}]
  %s9 = inlined_call_operand.vmem [shape: f32[1,64], index: 9, kind: input, shape index: {}]
  %s10 = inlined_call_operand.hbm [shape: f32[2,16,16,64], index: 10, kind: output, shape index: {}]
  %s11 = sld [smem:[#allocation0]]
  $region58: #{tpu_custom_call.1} parent=0
    _
  %s13 = ssub.s32 1, %s11
  %s14 = scalar_select 0, %s13, %s11
  $region1: #{tpu_custom_call.1} parent=0
    #allocation3 [shape = 'u8[262144]{0}', space=vmem, size = 0x40000, scoped, tag = 'input window, operand 0, single buffered']
    #allocation4 [shape = 's32[1]{0}', space=sflag, size = 0x4, scoped, tag = 'scoped memory for tpu_custom_call.1']
    #allocation5 [shape = 's32[1]{0}', space=sflag, size = 0x4, scoped, tag = 'scoped memory for tpu_custom_call.1']
    #allocation6 [shape = 'u8[36864]{0}', space=vmem, size = 0x9000, scoped, tag = 'input window, operand 2, single buffered']
    #allocation7 [shape = 's32[1]{0}', space=sflag, size = 0x4, scoped, tag = 'scoped memory for tpu_custom_call.1']
    #allocation8 [shape = 'u8[262144]{0}', space=vmem, size = 0x40000, scoped, tag = 'output window, operand 0, single buffered']
    %15 = vsyncpa [#allocation4], 0
    %16 = vsyncpa [#allocation7], 0
    %17 = vsyncpa [#allocation5], 0
    // Predicated region
    $region2: #{tpu_custom_call.1} parent=1 // pred_check
      _
    $region3: #{tpu_custom_call.1} parent=1 // pred_check_branch
      %19 = sbr.rel (0) target = $region5
    $region4: #{tpu_custom_call.1} parent=1 // pred_region
      %s21 = ssub.s32 8192, 8192
      %22 = vsyncadd [#allocation4], %s21
      %s23 = sshll.u32 [#allocation3], 4
      %s24 = int_to_ptr.vmem [resolvable:$true] %s23
      %29 = dma.hbm_to_vmem [thread:$0]  %s0, 8192, %s24, [#allocation4], 128, 128, 8
    $region5: #{tpu_custom_call.1} parent=1 // pred_fallthru
      _
    // Predicated region
    $region6: #{tpu_custom_call.1} parent=1 // pred_check
      _
    $region7: #{tpu_custom_call.1} parent=1 // pred_check_branch
      %31 = sbr.rel (0) target = $region9
    $region8: #{tpu_custom_call.1} parent=1 // pred_region
      _
    $region9: #{tpu_custom_call.1} parent=1 // pred_fallthru
      _
    // Predicated region
    $region10: #{tpu_custom_call.1} parent=1 // pred_check
      _
    $region11: #{tpu_custom_call.1} parent=1 // pred_check_branch
      %33 = sbr.rel (0) target = $region13
    $region12: #{tpu_custom_call.1} parent=1 // pred_region
      %s35 = ssub.s32 1152, 1152
      %36 = vsyncadd [#allocation7], %s35
      %s37 = sshll.u32 [#allocation6], 4
      %s38 = int_to_ptr.vmem [resolvable:$true] %s37
      %43 = dma.hbm_to_vmem [thread:$0]  %s2, 1152, %s38, [#allocation7], 64, 64, 4
    $region13: #{tpu_custom_call.1} parent=1 // pred_fallthru
      _
    // Predicated region
    $region14: #{tpu_custom_call.1} parent=1 // pred_check
      _
    $region15: #{tpu_custom_call.1} parent=1 // pred_check_branch
      %45 = sbr.rel (0) target = $region17
    $region16: #{tpu_custom_call.1} parent=1 // pred_region
      _
    $region17: #{tpu_custom_call.1} parent=1 // pred_fallthru
      _
    // Predicated region
    $region18: #{tpu_custom_call.1} parent=1 // pred_check
      _
    $region19: #{tpu_custom_call.1} parent=1 // pred_check_branch
      %47 = sbr.rel (0) target = $region21
    $region20: #{tpu_custom_call.1} parent=1 // pred_region
      _
    $region21: #{tpu_custom_call.1} parent=1 // pred_fallthru
      _
    // Predicated region
    $region22: #{tpu_custom_call.1} parent=1 // pred_check
      _
    $region23: #{tpu_custom_call.1} parent=1 // pred_check_branch
      %49 = sbr.rel (0) target = $region25
    $region24: #{tpu_custom_call.1} parent=1 // pred_region
      _
    $region25: #{tpu_custom_call.1} parent=1 // pred_fallthru
      _
    // Predicated region
    $region26: #{tpu_custom_call.1} parent=1 // pred_check
      _
    $region27: #{tpu_custom_call.1} parent=1 // pred_check_branch
      %51 = sbr.rel (0) target = $region29
    $region28: #{tpu_custom_call.1} parent=1 // pred_region
      _
    $region29: #{tpu_custom_call.1} parent=1 // pred_fallthru
      _
    // Predicated region
    $region30: #{tpu_custom_call.1} parent=1 // pred_check
      _
    $region31: #{tpu_custom_call.1} parent=1 // pred_check_branch
      %53 = sbr.rel (0) target = $region33
    $region32: #{tpu_custom_call.1} parent=1 // pred_region
      _
    $region33: #{tpu_custom_call.1} parent=1 // pred_fallthru
      _
    // Predicated region
    $region34: #{tpu_custom_call.1} parent=1 // pred_check
      _
    $region35: #{tpu_custom_call.1} parent=1 // pred_check_branch
      %55 = sbr.rel (0) target = $region37
    $region36: #{tpu_custom_call.1} parent=1 // pred_region
      _
    $region37: #{tpu_custom_call.1} parent=1 // pred_fallthru
      _
    // Predicated region
    $region38: #{tpu_custom_call.1} parent=1 // pred_check
      _
    $region39: #{tpu_custom_call.1} parent=1 // pred_check_branch
      %57 = sbr.rel (0) target = $region41
    $region40: #{tpu_custom_call.1} parent=1 // pred_region
      _
    $region41: #{tpu_custom_call.1} parent=1 // pred_fallthru
      _
    // Predicated region
    $region42: #{tpu_custom_call.1} parent=1 // pred_check
      _
    $region43: #{tpu_custom_call.1} parent=1 // pred_check_branch
      %59 = sbr.rel (0) target = $region45
    $region44: #{tpu_custom_call.1} parent=1 // pred_region
      %60 = dma.done [#allocation4], 8192
    $region45: #{tpu_custom_call.1} parent=1 // pred_fallthru
      _
    // Predicated region
    $region46: #{tpu_custom_call.1} parent=1 // pred_check
      _
    $region47: #{tpu_custom_call.1} parent=1 // pred_check_branch
      %62 = sbr.rel (0) target = $region49
    $region48: #{tpu_custom_call.1} parent=1 // pred_region
      %63 = dma.done [#allocation7], 1152
    $region49: #{tpu_custom_call.1} parent=1 // pred_fallthru
      _
    %v65 = vld [vmem:[#allocation3] sm:$0xff]
    %v66 = vld [vmem:[#allocation3 + $0x8] sm:$0xff]
    %v67 = vld [vmem:[#allocation3 + $0x10] sm:$0xff]
    %v68 = vld [vmem:[#allocation3 + $0x18] sm:$0xff]
    %v69 = vld [vmem:[#allocation3 + $0x20] sm:$0xff]
    %v70 = vld [vmem:[#allocation3 + $0x28] sm:$0xff]
    %v71 = vld [vmem:[#allocation3 + $0x30] sm:$0xff]
    %v72 = vld [vmem:[#allocation3 + $0x38] sm:$0xff]
    %v73 = vld [vmem:[#allocation3 + $0x40] sm:$0xff]
    %v74 = vld [vmem:[#allocation3 + $0x48] sm:$0xff]
    %v75 = vld [vmem:[#allocation3 + $0x50] sm:$0xff]
    %v76 = vld [vmem:[#allocation3 + $0x58] sm:$0xff]
    %v77 = vld [vmem:[#allocation3 + $0x60] sm:$0xff]
    %v78 = vld [vmem:[#allocation3 + $0x68] sm:$0xff]
    %v79 = vld [vmem:[#allocation3 + $0x70] sm:$0xff]
    %v80 = vld [vmem:[#allocation3 + $0x78] sm:$0xff]
    %v81 = vld [vmem:[#allocation3 + $0x80] sm:$0xff]
    %v82 = vld [vmem:[#allocation3 + $0x88] sm:$0xff]
    %v83 = vld [vmem:[#allocation3 + $0x90] sm:$0xff]
    %v84 = vld [vmem:[#allocation3 + $0x98] sm:$0xff]
    %v85 = vld [vmem:[#allocation3 + $0xa0] sm:$0xff]
    %v86 = vld [vmem:[#allocation3 + $0xa8] sm:$0xff]
    %v87 = vld [vmem:[#allocation3 + $0xb0] sm:$0xff]
    %v88 = vld [vmem:[#allocation3 + $0xb8] sm:$0xff]
    %v89 = vld [vmem:[#allocation3 + $0xc0] sm:$0xff]
    %v90 = vld [vmem:[#allocation3 + $0xc8] sm:$0xff]
    %v91 = vld [vmem:[#allocation3 + $0xd0] sm:$0xff]
    %v92 = vld [vmem:[#allocation3 + $0xd8] sm:$0xff]
    %v93 = vld [vmem:[#allocation3 + $0xe0] sm:$0xff]
    %v94 = vld [vmem:[#allocation3 + $0xe8] sm:$0xff]
    %v95 = vld [vmem:[#allocation3 + $0xf0] sm:$0xff]
    %v96 = vld [vmem:[#allocation3 + $0xf8] sm:$0xff]
    %v97 = vld [vmem:[#allocation3 + $0x100] sm:$0xff]
    %v98 = vld [vmem:[#allocation3 + $0x108] sm:$0xff]
    %v99 = vld [vmem:[#allocation3 + $0x110] sm:$0xff]
    %v100 = vld [vmem:[#allocation3 + $0x118] sm:$0xff]
    %v101 = vld [vmem:[#allocation3 + $0x120] sm:$0xff]
    %v102 = vld [vmem:[#allocation3 + $0x128] sm:$0xff]
    %v103 = vld [vmem:[#allocation3 + $0x130] sm:$0xff]
    %v104 = vld [vmem:[#allocation3 + $0x138] sm:$0xff]
    %v105 = vld [vmem:[#allocation3 + $0x140] sm:$0xff]
    %v106 = vld [vmem:[#allocation3 + $0x148] sm:$0xff]
    %v107 = vld [vmem:[#allocation3 + $0x150] sm:$0xff]
    %v108 = vld [vmem:[#allocation3 + $0x158] sm:$0xff]
    %v109 = vld [vmem:[#allocation3 + $0x160] sm:$0xff]
    %v110 = vld [vmem:[#allocation3 + $0x168] sm:$0xff]
    %v111 = vld [vmem:[#allocation3 + $0x170] sm:$0xff]
    %v112 = vld [vmem:[#allocation3 + $0x178] sm:$0xff]
    %v113 = vld [vmem:[#allocation3 + $0x180] sm:$0xff]
    %v114 = vld [vmem:[#allocation3 + $0x188] sm:$0xff]
    %v115 = vld [vmem:[#allocation3 + $0x190] sm:$0xff]
    %v116 = vld [vmem:[#allocation3 + $0x198] sm:$0xff]
    %v117 = vld [vmem:[#allocation3 + $0x1a0] sm:$0xff]
    %v118 = vld [vmem:[#allocation3 + $0x1a8] sm:$0xff]
    %v119 = vld [vmem:[#allocation3 + $0x1b0] sm:$0xff]
    %v120 = vld [vmem:[#allocation3 + $0x1b8] sm:$0xff]
    %v121 = vld [vmem:[#allocation3 + $0x1c0] sm:$0xff]
    %v122 = vld [vmem:[#allocation3 + $0x1c8] sm:$0xff]
    %v123 = vld [vmem:[#allocation3 + $0x1d0] sm:$0xff]
    %v124 = vld [vmem:[#allocation3 + $0x1d8] sm:$0xff]
    %v125 = vld [vmem:[#allocation3 + $0x1e0] sm:$0xff]
    %v126 = vld [vmem:[#allocation3 + $0x1e8] sm:$0xff]
    %v127 = vld [vmem:[#allocation3 + $0x1f0] sm:$0xff]
    %v128 = vld [vmem:[#allocation3 + $0x1f8] sm:$0xff]
    %v129 = vpack.c.bf16 %v66, %v65
    %v130 = vpack.c.bf16 %v68, %v67
    %v131 = vpack.c.bf16 %v70, %v69
    %v132 = vpack.c.bf16 %v72, %v71
    %v133 = vpack.c.bf16 %v74, %v73
    %v134 = vpack.c.bf16 %v76, %v75
    %v135 = vpack.c.bf16 %v78, %v77
    %v136 = vpack.c.bf16 %v80, %v79
    %v137 = vpack.c.bf16 %v82, %v81
    %v138 = vpack.c.bf16 %v84, %v83
    %v139 = vpack.c.bf16 %v86, %v85
    %v140 = vpack.c.bf16 %v88, %v87
    %v141 = vpack.c.bf16 %v90, %v89
    %v142 = vpack.c.bf16 %v92, %v91
    %v143 = vpack.c.bf16 %v94, %v93
    %v144 = vpack.c.bf16 %v96, %v95
    %v145 = vpack.c.bf16 %v98, %v97
    %v146 = vpack.c.bf16 %v100, %v99
    %v147 = vpack.c.bf16 %v102, %v101
    %v148 = vpack.c.bf16 %v104, %v103
    %v149 = vpack.c.bf16 %v106, %v105
    %v150 = vpack.c.bf16 %v108, %v107
    %v151 = vpack.c.bf16 %v110, %v109
    %v152 = vpack.c.bf16 %v112, %v111
    %v153 = vpack.c.bf16 %v114, %v113
    %v154 = vpack.c.bf16 %v116, %v115
    %v155 = vpack.c.bf16 %v118, %v117
    %v156 = vpack.c.bf16 %v120, %v119
    %v157 = vpack.c.bf16 %v122, %v121
    %v158 = vpack.c.bf16 %v124, %v123
    %v159 = vpack.c.bf16 %v126, %v125
    %v160 = vpack.c.bf16 %v128, %v127
    %v161 = vld [vmem:[%s1] sm:$0xf]
    %v162 = vld [vmem:[%s1 + $0x4] sm:$0xf]
    %v163 = vld [vmem:[%s1 + $0x8] sm:$0xf]
    %v164 = vld [vmem:[%s1 + $0xc] sm:$0xf]
    %v165 = vld [vmem:[%s1 + $0x10] sm:$0xf]
    %v166 = vld [vmem:[%s1 + $0x14] sm:$0xf]
    %v167 = vld [vmem:[%s1 + $0x18] sm:$0xf]
    %v168 = vld [vmem:[%s1 + $0x1c] sm:$0xf]
    %v177 = vunpack.c.l.b16 %v161
    %v178 = vunpack.c.l.b16 %v162
    %v179 = vunpack.c.l.b16 %v163
    %v180 = vunpack.c.l.b16 %v164
    %v181 = vunpack.c.l.b16 %v165
    %v182 = vunpack.c.l.b16 %v166
    %v183 = vunpack.c.l.b16 %v167
    %v184 = vunpack.c.l.b16 %v168
    %v185 = vpack.c.b16 %v178, %v177
    %v186 = vpack.c.b16 %v180, %v179
    %v187 = vpack.c.b16 %v182, %v181
    %v188 = vpack.c.b16 %v184, %v183
    %vm193 = vcmask 523264
    %v195 = vsel %vm193, %v129, 0
    %v198 = vsel %vm193, %v130, 0
    %v201 = vsel %vm193, %v131, 0
    %v204 = vsel %vm193, %v132, 0
    %v207 = vsel %vm193, %v133, 0
    %v210 = vsel %vm193, %v134, 0
    %v213 = vsel %vm193, %v135, 0
    %v216 = vsel %vm193, %v136, 0
    %v219 = vsel %vm193, %v137, 0
    %v222 = vsel %vm193, %v138, 0
    %v225 = vsel %vm193, %v139, 0
    %v228 = vsel %vm193, %v140, 0
    %v231 = vsel %vm193, %v141, 0
    %v234 = vsel %vm193, %v142, 0
    %v237 = vsel %vm193, %v143, 0
    %v240 = vsel %vm193, %v144, 0
    %v243 = vsel %vm193, %v145, 0
    %v246 = vsel %vm193, %v146, 0
    %v249 = vsel %vm193, %v147, 0
    %v252 = vsel %vm193, %v148, 0
    %v255 = vsel %vm193, %v149, 0
    %v258 = vsel %vm193, %v150, 0
    %v261 = vsel %vm193, %v151, 0
    %v264 = vsel %vm193, %v152, 0
    %v267 = vsel %vm193, %v153, 0
    %v270 = vsel %vm193, %v154, 0
    %v273 = vsel %vm193, %v155, 0
    %v276 = vsel %vm193, %v156, 0
    %v279 = vsel %vm193, %v157, 0
    %v282 = vsel %vm193, %v158, 0
    %v285 = vsel %vm193, %v159, 0
    %v288 = vsel %vm193, %v160, 0
    %290 = vmatprep.subr.bf16.mxu0 0
    %291 = vmatpush1.bf16.msra.mxu0 0
    %292 = vmatprep.subr.bf16.mxu0 0
    %293 = vmatpush1.bf16.msra.mxu0 0
    %294 = vmatprep.subr.bf16.mxu0 0
    %295 = vmatpush1.bf16.msra.mxu0 0
    %296 = vmatprep.subr.bf16.mxu0 0
    %297 = vmatpush1.bf16.msra.mxu0 0
    %298 = vmatprep.subr.bf16.mxu0 0
    %299 = vmatpush1.bf16.msra.mxu0 %v188
    %300 = vmatprep.subr.bf16.mxu0 0
    %301 = vmatpush1.bf16.msra.mxu0 %v187
    %302 = vmatprep.subr.bf16.mxu0 0
    %303 = vmatpush1.bf16.msra.mxu0 %v186
    %304 = vmatprep.subr.bf16.mxu0 0
    %305 = vmatpush1.bf16.msra.mxu0 %v185
    %306 = vmatprep.subr.bf16.mxu0 0
    %307 = vmatpush2.bf16.msra.mxu0 0
    %308 = vmatprep.subr.bf16.mxu0 0
    %309 = vmatpush2.bf16.msra.mxu0 0
    %310 = vmatprep.subr.bf16.mxu0 0
    %311 = vmatpush2.bf16.msra.mxu0 0
    %312 = vmatprep.subr.bf16.mxu0 0
    %313 = vmatpush2.bf16.msra.mxu0 0
    %314 = vmatprep.subr.bf16.mxu0 0
    %315 = vmatpush2.bf16.msra.mxu0 0
    %316 = vmatprep.subr.bf16.mxu0 0
    %317 = vmatpush2.bf16.msra.mxu0 0
    %318 = vmatprep.subr.bf16.mxu0 0
    %319 = vmatpush2.bf16.msra.mxu0 0
    %320 = vmatprep.subr.bf16.mxu0 0
    %321 = vmatpush2.bf16.msra.mxu0 0
    %322 = vmatprep.mubr.bf16.mxu0 0
    %323 = vmatmul.mubr.bf16.gmra.mxu0 %v195
    %v324 = vpop.f32.mrf.mxu0
    %v325 = vadd.f32 0.0, %v324
    %v326 = vpop.f32.mrf.mxu0
    %v327 = vpop.f32.mrf.mxu0
    %v328 = vadd.f32 0.0, %v327
    %v329 = vpop.f32.mrf.mxu0
    %330 = vmatprep.mubr.bf16.mxu0 0
    %331 = vmatmul.mubr.bf16.gmra.mxu0 %v198
    %v332 = vpop.f32.mrf.mxu0
    %v333 = vadd.f32 0.0, %v332
    %v334 = vpop.f32.mrf.mxu0
    %v335 = vpop.f32.mrf.mxu0
    %v336 = vadd.f32 0.0, %v335
    %v337 = vpop.f32.mrf.mxu0
    %338 = vmatprep.mubr.bf16.mxu0 0
    %339 = vmatmul.mubr.bf16.gmra.mxu0 %v201
    %v340 = vpop.f32.mrf.mxu0
    %v341 = vadd.f32 0.0, %v340
    %v342 = vpop.f32.mrf.mxu0
    %v343 = vpop.f32.mrf.mxu0
    %v344 = vadd.f32 0.0, %v343
    %v345 = vpop.f32.mrf.mxu0
    %346 = vmatprep.mubr.bf16.mxu0 0
    %347 = vmatmul.mubr.bf16.gmra.mxu0 %v204
    %v348 = vpop.f32.mrf.mxu0
    %v349 = vadd.f32 0.0, %v348
    %v350 = vpop.f32.mrf.mxu0
    %v351 = vpop.f32.mrf.mxu0
    %v352 = vadd.f32 0.0, %v351
    %v353 = vpop.f32.mrf.mxu0
    %354 = vmatprep.mubr.bf16.mxu0 0
    %355 = vmatmul.mubr.bf16.gmra.mxu0 %v207
    %v356 = vpop.f32.mrf.mxu0
    %v357 = vadd.f32 0.0, %v356
    %v358 = vpop.f32.mrf.mxu0
    %v359 = vpop.f32.mrf.mxu0
    %v360 = vadd.f32 0.0, %v359
    %v361 = vpop.f32.mrf.mxu0
    %362 = vmatprep.mubr.bf16.mxu0 0
    %363 = vmatmul.mubr.bf16.gmra.mxu0 %v210
    %v364 = vpop.f32.mrf.mxu0
    %v365 = vadd.f32 0.0, %v364
    %v366 = vpop.f32.mrf.mxu0
    %v367 = vpop.f32.mrf.mxu0
    %v368 = vadd.f32 0.0, %v367
    %v369 = vpop.f32.mrf.mxu0
    %370 = vmatprep.mubr.bf16.mxu0 0
    %371 = vmatmul.mubr.bf16.gmra.mxu0 %v213
    %v372 = vpop.f32.mrf.mxu0
    %v373 = vadd.f32 0.0, %v372
    %v374 = vpop.f32.mrf.mxu0
    %v375 = vpop.f32.mrf.mxu0
    %v376 = vadd.f32 0.0, %v375
    %v377 = vpop.f32.mrf.mxu0
    %378 = vmatprep.mubr.bf16.mxu0 0
    %379 = vmatmul.mubr.bf16.gmra.mxu0 %v216
    %v380 = vpop.f32.mrf.mxu0
    %v381 = vadd.f32 0.0, %v380
    %v382 = vpop.f32.mrf.mxu0
    %v383 = vpop.f32.mrf.mxu0
    %v384 = vadd.f32 0.0, %v383
    %v385 = vpop.f32.mrf.mxu0
    %386 = vmatprep.mubr.bf16.mxu0 0
    %387 = vmatmul.mubr.bf16.gmra.mxu0 %v219
    %v388 = vpop.f32.mrf.mxu0
    %v389 = vadd.f32 0.0, %v388
    %v390 = vpop.f32.mrf.mxu0
    %v391 = vpop.f32.mrf.mxu0
    %v392 = vadd.f32 0.0, %v391
    %v393 = vpop.f32.mrf.mxu0
    %394 = vmatprep.mubr.bf16.mxu0 0
    %395 = vmatmul.mubr.bf16.gmra.mxu0 %v222
    %v396 = vpop.f32.mrf.mxu0
    %v397 = vadd.f32 0.0, %v396
    %v398 = vpop.f32.mrf.mxu0
    %v399 = vpop.f32.mrf.mxu0
    %v400 = vadd.f32 0.0, %v399
    %v401 = vpop.f32.mrf.mxu0
    %402 = vmatprep.mubr.bf16.mxu0 0
    %403 = vmatmul.mubr.bf16.gmra.mxu0 %v225
    %v404 = vpop.f32.mrf.mxu0
    %v405 = vadd.f32 0.0, %v404
    %v406 = vpop.f32.mrf.mxu0
    %v407 = vpop.f32.mrf.mxu0
    %v408 = vadd.f32 0.0, %v407
    %v409 = vpop.f32.mrf.mxu0
    %410 = vmatprep.mubr.bf16.mxu0 0
    %411 = vmatmul.mubr.bf16.gmra.mxu0 %v228
    %v412 = vpop.f32.mrf.mxu0
    %v413 = vadd.f32 0.0, %v412
    %v414 = vpop.f32.mrf.mxu0
    %v415 = vpop.f32.mrf.mxu0
    %v416 = vadd.f32 0.0, %v415
    %v417 = vpop.f32.mrf.mxu0
    %418 = vmatprep.mubr.bf16.mxu0 0
    %419 = vmatmul.mubr.bf16.gmra.mxu0 %v231
    %v420 = vpop.f32.mrf.mxu0
    %v421 = vadd.f32 0.0, %v420
    %v422 = vpop.f32.mrf.mxu0
    %v423 = vpop.f32.mrf.mxu0
    %v424 = vadd.f32 0.0, %v423
    %v425 = vpop.f32.mrf.mxu0
    %426 = vmatprep.mubr.bf16.mxu0 0
    %427 = vmatmul.mubr.bf16.gmra.mxu0 %v234
    %v428 = vpop.f32.mrf.mxu0
    %v429 = vadd.f32 0.0, %v428
    %v430 = vpop.f32.mrf.mxu0
    %v431 = vpop.f32.mrf.mxu0
    %v432 = vadd.f32 0.0, %v431
    %v433 = vpop.f32.mrf.mxu0
    %434 = vmatprep.mubr.bf16.mxu0 0
    %435 = vmatmul.mubr.bf16.gmra.mxu0 %v237
    %v436 = vpop.f32.mrf.mxu0
    %v437 = vadd.f32 0.0, %v436
    %v438 = vpop.f32.mrf.mxu0
    %v439 = vpop.f32.mrf.mxu0
    %v440 = vadd.f32 0.0, %v439
    %v441 = vpop.f32.mrf.mxu0
    %442 = vmatprep.mubr.bf16.mxu0 0
    %443 = vmatmul.mubr.bf16.gmra.mxu0 %v240
    %v444 = vpop.f32.mrf.mxu0
    %v445 = vadd.f32 0.0, %v444
    %v446 = vpop.f32.mrf.mxu0
    %v447 = vpop.f32.mrf.mxu0
    %v448 = vadd.f32 0.0, %v447
    %v449 = vpop.f32.mrf.mxu0
    %450 = vmatprep.mubr.bf16.mxu0 0
    %451 = vmatmul.mubr.bf16.gmra.mxu0 %v243
    %v452 = vpop.f32.mrf.mxu0
    %v453 = vadd.f32 0.0, %v452
    %v454 = vpop.f32.mrf.mxu0
    %v455 = vpop.f32.mrf.mxu0
    %v456 = vadd.f32 0.0, %v455
    %v457 = vpop.f32.mrf.mxu0
    %458 = vmatprep.mubr.bf16.mxu0 0
    %459 = vmatmul.mubr.bf16.gmra.mxu0 %v246
    %v460 = vpop.f32.mrf.mxu0
    %v461 = vadd.f32 0.0, %v460
    %v462 = vpop.f32.mrf.mxu0
    %v463 = vpop.f32.mrf.mxu0
    %v464 = vadd.f32 0.0, %v463
    %v465 = vpop.f32.mrf.mxu0
    %466 = vmatprep.mubr.bf16.mxu0 0
    %467 = vmatmul.mubr.bf16.gmra.mxu0 %v249
    %v468 = vpop.f32.mrf.mxu0
    %v469 = vadd.f32 0.0, %v468
    %v470 = vpop.f32.mrf.mxu0
    %v471 = vpop.f32.mrf.mxu0
    %v472 = vadd.f32 0.0, %v471
    %v473 = vpop.f32.mrf.mxu0
    %474 = vmatprep.mubr.bf16.mxu0 0
    %475 = vmatmul.mubr.bf16.gmra.mxu0 %v252
    %v476 = vpop.f32.mrf.mxu0
    %v477 = vadd.f32 0.0, %v476
    %v478 = vpop.f32.mrf.mxu0
    %v479 = vpop.f32.mrf.mxu0
    %v480 = vadd.f32 0.0, %v479
    %v481 = vpop.f32.mrf.mxu0
    %482 = vmatprep.mubr.bf16.mxu0 0
    %483 = vmatmul.mubr.bf16.gmra.mxu0 %v255
    %v484 = vpop.f32.mrf.mxu0
    %v485 = vadd.f32 0.0, %v484
    %v486 = vpop.f32.mrf.mxu0
    %v487 = vpop.f32.mrf.mxu0
    %v488 = vadd.f32 0.0, %v487
    %v489 = vpop.f32.mrf.mxu0
    %490 = vmatprep.mubr.bf16.mxu0 0
    %491 = vmatmul.mubr.bf16.gmra.mxu0 %v258
    %v492 = vpop.f32.mrf.mxu0
    %v493 = vadd.f32 0.0, %v492
    %v494 = vpop.f32.mrf.mxu0
    %v495 = vpop.f32.mrf.mxu0
    %v496 = vadd.f32 0.0, %v495
    %v497 = vpop.f32.mrf.mxu0
    %498 = vmatprep.mubr.bf16.mxu0 0
    %499 = vmatmul.mubr.bf16.gmra.mxu0 %v261
    %v500 = vpop.f32.mrf.mxu0
    %v501 = vadd.f32 0.0, %v500
    %v502 = vpop.f32.mrf.mxu0
    %v503 = vpop.f32.mrf.mxu0
    %v504 = vadd.f32 0.0, %v503
    %v505 = vpop.f32.mrf.mxu0
    %506 = vmatprep.mubr.bf16.mxu0 0
    %507 = vmatmul.mubr.bf16.gmra.mxu0 %v264
    %v508 = vpop.f32.mrf.mxu0
    %v509 = vadd.f32 0.0, %v508
    %v510 = vpop.f32.mrf.mxu0
    %v511 = vpop.f32.mrf.mxu0
    %v512 = vadd.f32 0.0, %v511
    %v513 = vpop.f32.mrf.mxu0
    %514 = vmatprep.mubr.bf16.mxu0 0
    %515 = vmatmul.mubr.bf16.gmra.mxu0 %v267
    %v516 = vpop.f32.mrf.mxu0
    %v517 = vadd.f32 0.0, %v516
    %v518 = vpop.f32.mrf.mxu0
    %v519 = vpop.f32.mrf.mxu0
    %v520 = vadd.f32 0.0, %v519
    %v521 = vpop.f32.mrf.mxu0
    %522 = vmatprep.mubr.bf16.mxu0 0
    %523 = vmatmul.mubr.bf16.gmra.mxu0 %v270
    %v524 = vpop.f32.mrf.mxu0
    %v525 = vadd.f32 0.0, %v524
    %v526 = vpop.f32.mrf.mxu0
    %v527 = vpop.f32.mrf.mxu0
    %v528 = vadd.f32 0.0, %v527
    %v529 = vpop.f32.mrf.mxu0
    %530 = vmatprep.mubr.bf16.mxu0 0
    %531 = vmatmul.mubr.bf16.gmra.mxu0 %v273
    %v532 = vpop.f32.mrf.mxu0
    %v533 = vadd.f32 0.0, %v532
    %v534 = vpop.f32.mrf.mxu0
    %v535 = vpop.f32.mrf.mxu0
    %v536 = vadd.f32 0.0, %v535
    %v537 = vpop.f32.mrf.mxu0
    %538 = vmatprep.mubr.bf16.mxu0 0
    %539 = vmatmul.mubr.bf16.gmra.mxu0 %v276
    %v540 = vpop.f32.mrf.mxu0
    %v541 = vadd.f32 0.0, %v540
    %v542 = vpop.f32.mrf.mxu0
    %v543 = vpop.f32.mrf.mxu0
    %v544 = vadd.f32 0.0, %v543
    %v545 = vpop.f32.mrf.mxu0
    %546 = vmatprep.mubr.bf16.mxu0 0
    %547 = vmatmul.mubr.bf16.gmra.mxu0 %v279
    %v548 = vpop.f32.mrf.mxu0
    %v549 = vadd.f32 0.0, %v548
    %v550 = vpop.f32.mrf.mxu0
    %v551 = vpop.f32.mrf.mxu0
    %v552 = vadd.f32 0.0, %v551
    %v553 = vpop.f32.mrf.mxu0
    %554 = vmatprep.mubr.bf16.mxu0 0
    %555 = vmatmul.mubr.bf16.gmra.mxu0 %v282
    %v556 = vpop.f32.mrf.mxu0
    %v557 = vadd.f32 0.0, %v556
    %v558 = vpop.f32.mrf.mxu0
    %v559 = vpop.f32.mrf.mxu0
    %v560 = vadd.f32 0.0, %v559
    %v561 = vpop.f32.mrf.mxu0
    %562 = vmatprep.mubr.bf16.mxu0 0
    %563 = vmatmul.mubr.bf16.gmra.mxu0 %v285
    %v564 = vpop.f32.mrf.mxu0
    %v565 = vadd.f32 0.0, %v564
    %v566 = vpop.f32.mrf.mxu0
    %v567 = vpop.f32.mrf.mxu0
    %v568 = vadd.f32 0.0, %v567
    %v569 = vpop.f32.mrf.mxu0
    %570 = vmatprep.mubr.bf16.mxu0 0
    %571 = vmatmul.mubr.bf16.gmra.mxu0 %v288
    %v572 = vpop.f32.mrf.mxu0
    %v573 = vadd.f32 0.0, %v572
    %v574 = vpop.f32.mrf.mxu0
    %v575 = vpop.f32.mrf.mxu0
    %v576 = vadd.f32 0.0, %v575
    %v577 = vpop.f32.mrf.mxu0
    %578 = vdwg.mxu0
    %v579 = vld [vmem:[%s4] sm:$0x1]
    %v580 = vld [vmem:[%s5] sm:$0x1]
    %vm581 = vcmask 130048
    %v582 = vsel %vm581, %v325, 0.0
    %v583 = vsel %vm581, %v328, 0.0
    %v584 = vadd.f32 %v582, %v583
    %v585 = vsel %vm581, %v333, 0.0
    %v586 = vadd.f32 %v584, %v585
    %v587 = vsel %vm581, %v336, 0.0
    %v588 = vadd.f32 %v586, %v587
    %v589 = vsel %vm581, %v341, 0.0
    %v590 = vadd.f32 %v588, %v589
    %v591 = vsel %vm581, %v344, 0.0
    %v592 = vadd.f32 %v590, %v591
    %v593 = vsel %vm581, %v349, 0.0
    %v594 = vadd.f32 %v592, %v593
    %v595 = vsel %vm581, %v352, 0.0
    %v596 = vadd.f32 %v594, %v595
    %v597 = vsel %vm581, %v357, 0.0
    %v598 = vadd.f32 %v596, %v597
    %v599 = vsel %vm581, %v360, 0.0
    %v600 = vadd.f32 %v598, %v599
    %v601 = vsel %vm581, %v365, 0.0
    %v602 = vadd.f32 %v600, %v601
    %v603 = vsel %vm581, %v368, 0.0
    %v604 = vadd.f32 %v602, %v603
    %v605 = vsel %vm581, %v373, 0.0
    %v606 = vadd.f32 %v604, %v605
    %v607 = vsel %vm581, %v376, 0.0
    %v608 = vadd.f32 %v606, %v607
    %v609 = vsel %vm581, %v381, 0.0
    %v610 = vadd.f32 %v608, %v609
    %v611 = vsel %vm581, %v384, 0.0
    %v612 = vadd.f32 %v610, %v611
    %v613 = vsel %vm581, %v389, 0.0
    %v614 = vadd.f32 %v612, %v613
    %v615 = vsel %vm581, %v392, 0.0
    %v616 = vadd.f32 %v614, %v615
    %v617 = vsel %vm581, %v397, 0.0
    %v618 = vadd.f32 %v616, %v617
    %v619 = vsel %vm581, %v400, 0.0
    %v620 = vadd.f32 %v618, %v619
    %v621 = vsel %vm581, %v405, 0.0
    %v622 = vadd.f32 %v620, %v621
    %v623 = vsel %vm581, %v408, 0.0
    %v624 = vadd.f32 %v622, %v623
    %v625 = vsel %vm581, %v413, 0.0
    %v626 = vadd.f32 %v624, %v625
    %v627 = vsel %vm581, %v416, 0.0
    %v628 = vadd.f32 %v626, %v627
    %v629 = vsel %vm581, %v421, 0.0
    %v630 = vadd.f32 %v628, %v629
    %v631 = vsel %vm581, %v424, 0.0
    %v632 = vadd.f32 %v630, %v631
    %v633 = vsel %vm581, %v429, 0.0
    %v634 = vadd.f32 %v632, %v633
    %v635 = vsel %vm581, %v432, 0.0
    %v636 = vadd.f32 %v634, %v635
    %v637 = vsel %vm581, %v437, 0.0
    %v638 = vadd.f32 %v636, %v637
    %v639 = vsel %vm581, %v440, 0.0
    %v640 = vadd.f32 %v638, %v639
    %v641 = vsel %vm581, %v445, 0.0
    %v642 = vadd.f32 %v640, %v641
    %v643 = vsel %vm581, %v448, 0.0
    %v644 = vadd.f32 %v642, %v643
    %v645 = vsel %vm581, %v453, 0.0
    %v646 = vadd.f32 %v644, %v645
    %v647 = vsel %vm581, %v456, 0.0
    %v648 = vadd.f32 %v646, %v647
    %v649 = vsel %vm581, %v461, 0.0
    %v650 = vadd.f32 %v648, %v649
    %v651 = vsel %vm581, %v464, 0.0
    %v652 = vadd.f32 %v650, %v651
    %v653 = vsel %vm581, %v469, 0.0
    %v654 = vadd.f32 %v652, %v653
    %v655 = vsel %vm581, %v472, 0.0
    %v656 = vadd.f32 %v654, %v655
    %v657 = vsel %vm581, %v477, 0.0
    %v658 = vadd.f32 %v656, %v657
    %v659 = vsel %vm581, %v480, 0.0
    %v660 = vadd.f32 %v658, %v659
    %v661 = vsel %vm581, %v485, 0.0
    %v662 = vadd.f32 %v660, %v661
    %v663 = vsel %vm581, %v488, 0.0
    %v664 = vadd.f32 %v662, %v663
    %v665 = vsel %vm581, %v493, 0.0
    %v666 = vadd.f32 %v664, %v665
    %v667 = vsel %vm581, %v496, 0.0
    %v668 = vadd.f32 %v666, %v667
    %v669 = vsel %vm581, %v501, 0.0
    %v670 = vadd.f32 %v668, %v669
    %v671 = vsel %vm581, %v504, 0.0
    %v672 = vadd.f32 %v670, %v671
    %v673 = vsel %vm581, %v509, 0.0
    %v674 = vadd.f32 %v672, %v673
    %v675 = vsel %vm581, %v512, 0.0
    %v676 = vadd.f32 %v674, %v675
    %v677 = vsel %vm581, %v517, 0.0
    %v678 = vadd.f32 %v676, %v677
    %v679 = vsel %vm581, %v520, 0.0
    %v680 = vadd.f32 %v678, %v679
    %v681 = vsel %vm581, %v525, 0.0
    %v682 = vadd.f32 %v680, %v681
    %v683 = vsel %vm581, %v528, 0.0
    %v684 = vadd.f32 %v682, %v683
    %v685 = vsel %vm581, %v533, 0.0
    %v686 = vadd.f32 %v684, %v685
    %v687 = vsel %vm581, %v536, 0.0
    %v688 = vadd.f32 %v686, %v687
    %v689 = vsel %vm581, %v541, 0.0
    %v690 = vadd.f32 %v688, %v689
    %v691 = vsel %vm581, %v544, 0.0
    %v692 = vadd.f32 %v690, %v691
    %v693 = vsel %vm581, %v549, 0.0
    %v694 = vadd.f32 %v692, %v693
    %v695 = vsel %vm581, %v552, 0.0
    %v696 = vadd.f32 %v694, %v695
    %v697 = vsel %vm581, %v557, 0.0
    %v698 = vadd.f32 %v696, %v697
    %v699 = vsel %vm581, %v560, 0.0
    %v700 = vadd.f32 %v698, %v699
    %v701 = vsel %vm581, %v565, 0.0
    %v702 = vadd.f32 %v700, %v701
    %v703 = vsel %vm581, %v568, 0.0
    %v704 = vadd.f32 %v702, %v703
    %v705 = vsel %vm581, %v573, 0.0
    %v706 = vadd.f32 %v704, %v705
    %v707 = vsel %vm581, %v576, 0.0
    %v708 = vadd.f32 %v706, %v707
    %v709 = vrot.slane %v708, 4
    %v710 = vadd.f32 %v708, %v709
    %v711 = vrot.slane %v710, 2
    %v712 = vadd.f32 %v710, %v711
    %v713 = vrot.slane %v712, 1
    %v714 = vadd.f32 %v712, %v713
    %v715 = vmul.f32 %v325, %v325
    %v716 = vmul.f32 %v328, %v328
    %v717 = vmul.f32 %v333, %v333
    %v718 = vmul.f32 %v336, %v336
    %v719 = vmul.f32 %v341, %v341
    %v720 = vmul.f32 %v344, %v344
    %v721 = vmul.f32 %v349, %v349
    %v722 = vmul.f32 %v352, %v352
    %v723 = vmul.f32 %v357, %v357
    %v724 = vmul.f32 %v360, %v360
    %v725 = vmul.f32 %v365, %v365
    %v726 = vmul.f32 %v368, %v368
    %v727 = vmul.f32 %v373, %v373
    %v728 = vmul.f32 %v376, %v376
    %v729 = vmul.f32 %v381, %v381
    %v730 = vmul.f32 %v384, %v384
    %v731 = vmul.f32 %v389, %v389
    %v732 = vmul.f32 %v392, %v392
    %v733 = vmul.f32 %v397, %v397
    %v734 = vmul.f32 %v400, %v400
    %v735 = vmul.f32 %v405, %v405
    %v736 = vmul.f32 %v408, %v408
    %v737 = vmul.f32 %v413, %v413
    %v738 = vmul.f32 %v416, %v416
    %v739 = vmul.f32 %v421, %v421
    %v740 = vmul.f32 %v424, %v424
    %v741 = vmul.f32 %v429, %v429
    %v742 = vmul.f32 %v432, %v432
    %v743 = vmul.f32 %v437, %v437
    %v744 = vmul.f32 %v440, %v440
    %v745 = vmul.f32 %v445, %v445
    %v746 = vmul.f32 %v448, %v448
    %v747 = vmul.f32 %v453, %v453
    %v748 = vmul.f32 %v456, %v456
    %v749 = vmul.f32 %v461, %v461
    %v750 = vmul.f32 %v464, %v464
    %v751 = vmul.f32 %v469, %v469
    %v752 = vmul.f32 %v472, %v472
    %v753 = vmul.f32 %v477, %v477
    %v754 = vmul.f32 %v480, %v480
    %v755 = vmul.f32 %v485, %v485
    %v756 = vmul.f32 %v488, %v488
    %v757 = vmul.f32 %v493, %v493
    %v758 = vmul.f32 %v496, %v496
    %v759 = vmul.f32 %v501, %v501
    %v760 = vmul.f32 %v504, %v504
    %v761 = vmul.f32 %v509, %v509
    %v762 = vmul.f32 %v512, %v512
    %v763 = vmul.f32 %v517, %v517
    %v764 = vmul.f32 %v520, %v520
    %v765 = vmul.f32 %v525, %v525
    %v766 = vmul.f32 %v528, %v528
    %v767 = vmul.f32 %v533, %v533
    %v768 = vmul.f32 %v536, %v536
    %v769 = vmul.f32 %v541, %v541
    %v770 = vmul.f32 %v544, %v544
    %v771 = vmul.f32 %v549, %v549
    %v772 = vmul.f32 %v552, %v552
    %v773 = vmul.f32 %v557, %v557
    %v774 = vmul.f32 %v560, %v560
    %v775 = vmul.f32 %v565, %v565
    %v776 = vmul.f32 %v568, %v568
    %v777 = vmul.f32 %v573, %v573
    %v778 = vmul.f32 %v576, %v576
    %v779 = vsel %vm581, %v715, 0.0
    %v780 = vsel %vm581, %v716, 0.0
    %v781 = vadd.f32 %v779, %v780
    %v782 = vsel %vm581, %v717, 0.0
    %v783 = vadd.f32 %v781, %v782
    %v784 = vsel %vm581, %v718, 0.0
    %v785 = vadd.f32 %v783, %v784
    %v786 = vsel %vm581, %v719, 0.0
    %v787 = vadd.f32 %v785, %v786
    %v788 = vsel %vm581, %v720, 0.0
    %v789 = vadd.f32 %v787, %v788
    %v790 = vsel %vm581, %v721, 0.0
    %v791 = vadd.f32 %v789, %v790
    %v792 = vsel %vm581, %v722, 0.0
    %v793 = vadd.f32 %v791, %v792
    %v794 = vsel %vm581, %v723, 0.0
    %v795 = vadd.f32 %v793, %v794
    %v796 = vsel %vm581, %v724, 0.0
    %v797 = vadd.f32 %v795, %v796
    %v798 = vsel %vm581, %v725, 0.0
    %v799 = vadd.f32 %v797, %v798
    %v800 = vsel %vm581, %v726, 0.0
    %v801 = vadd.f32 %v799, %v800
    %v802 = vsel %vm581, %v727, 0.0
    %v803 = vadd.f32 %v801, %v802
    %v804 = vsel %vm581, %v728, 0.0
    %v805 = vadd.f32 %v803, %v804
    %v806 = vsel %vm581, %v729, 0.0
    %v807 = vadd.f32 %v805, %v806
    %v808 = vsel %vm581, %v730, 0.0
    %v809 = vadd.f32 %v807, %v808
    %v810 = vsel %vm581, %v731, 0.0
    %v811 = vadd.f32 %v809, %v810
    %v812 = vsel %vm581, %v732, 0.0
    %v813 = vadd.f32 %v811, %v812
    %v814 = vsel %vm581, %v733, 0.0
    %v815 = vadd.f32 %v813, %v814
    %v816 = vsel %vm581, %v734, 0.0
    %v817 = vadd.f32 %v815, %v816
    %v818 = vsel %vm581, %v735, 0.0
    %v819 = vadd.f32 %v817, %v818
    %v820 = vsel %vm581, %v736, 0.0
    %v821 = vadd.f32 %v819, %v820
    %v822 = vsel %vm581, %v737, 0.0
    %v823 = vadd.f32 %v821, %v822
    %v824 = vsel %vm581, %v738, 0.0
    %v825 = vadd.f32 %v823, %v824
    %v826 = vsel %vm581, %v739, 0.0
    %v827 = vadd.f32 %v825, %v826
    %v828 = vsel %vm581, %v740, 0.0
    %v829 = vadd.f32 %v827, %v828
    %v830 = vsel %vm581, %v741, 0.0
    %v831 = vadd.f32 %v829, %v830
    %v832 = vsel %vm581, %v742, 0.0
    %v833 = vadd.f32 %v831, %v832
    %v834 = vsel %vm581, %v743, 0.0
    %v835 = vadd.f32 %v833, %v834
    %v836 = vsel %vm581, %v744, 0.0
    %v837 = vadd.f32 %v835, %v836
    %v838 = vsel %vm581, %v745, 0.0
    %v839 = vadd.f32 %v837, %v838
    %v840 = vsel %vm581, %v746, 0.0
    %v841 = vadd.f32 %v839, %v840
    %v842 = vsel %vm581, %v747, 0.0
    %v843 = vadd.f32 %v841, %v842
    %v844 = vsel %vm581, %v748, 0.0
    %v845 = vadd.f32 %v843, %v844
    %v846 = vsel %vm581, %v749, 0.0
    %v847 = vadd.f32 %v845, %v846
    %v848 = vsel %vm581, %v750, 0.0
    %v849 = vadd.f32 %v847, %v848
    %v850 = vsel %vm581, %v751, 0.0
    %v851 = vadd.f32 %v849, %v850
    %v852 = vsel %vm581, %v752, 0.0
    %v853 = vadd.f32 %v851, %v852
    %v854 = vsel %vm581, %v753, 0.0
    %v855 = vadd.f32 %v853, %v854
    %v856 = vsel %vm581, %v754, 0.0
    %v857 = vadd.f32 %v855, %v856
    %v858 = vsel %vm581, %v755, 0.0
    %v859 = vadd.f32 %v857, %v858
    %v860 = vsel %vm581, %v756, 0.0
    %v861 = vadd.f32 %v859, %v860
    %v862 = vsel %vm581, %v757, 0.0
    %v863 = vadd.f32 %v861, %v862
    %v864 = vsel %vm581, %v758, 0.0
    %v865 = vadd.f32 %v863, %v864
    %v866 = vsel %vm581, %v759, 0.0
    %v867 = vadd.f32 %v865, %v866
    %v868 = vsel %vm581, %v760, 0.0
    %v869 = vadd.f32 %v867, %v868
    %v870 = vsel %vm581, %v761, 0.0
    %v871 = vadd.f32 %v869, %v870
    %v872 = vsel %vm581, %v762, 0.0
    %v873 = vadd.f32 %v871, %v872
    %v874 = vsel %vm581, %v763, 0.0
    %v875 = vadd.f32 %v873, %v874
    %v876 = vsel %vm581, %v764, 0.0
    %v877 = vadd.f32 %v875, %v876
    %v878 = vsel %vm581, %v765, 0.0
    %v879 = vadd.f32 %v877, %v878
    %v880 = vsel %vm581, %v766, 0.0
    %v881 = vadd.f32 %v879, %v880
    %v882 = vsel %vm581, %v767, 0.0
    %v883 = vadd.f32 %v881, %v882
    %v884 = vsel %vm581, %v768, 0.0
    %v885 = vadd.f32 %v883, %v884
    %v886 = vsel %vm581, %v769, 0.0
    %v887 = vadd.f32 %v885, %v886
    %v888 = vsel %vm581, %v770, 0.0
    %v889 = vadd.f32 %v887, %v888
    %v890 = vsel %vm581, %v771, 0.0
    %v891 = vadd.f32 %v889, %v890
    %v892 = vsel %vm581, %v772, 0.0
    %v893 = vadd.f32 %v891, %v892
    %v894 = vsel %vm581, %v773, 0.0
    %v895 = vadd.f32 %v893, %v894
    %v896 = vsel %vm581, %v774, 0.0
    %v897 = vadd.f32 %v895, %v896
    %v898 = vsel %vm581, %v775, 0.0
    %v899 = vadd.f32 %v897, %v898
    %v900 = vsel %vm581, %v776, 0.0
    %v901 = vadd.f32 %v899, %v900
    %v902 = vsel %vm581, %v777, 0.0
    %v903 = vadd.f32 %v901, %v902
    %v904 = vsel %vm581, %v778, 0.0
    %v905 = vadd.f32 %v903, %v904
    %v906 = vrot.slane %v905, 4
    %v907 = vadd.f32 %v905, %v906
    %v908 = vrot.slane %v907, 2
    %v909 = vadd.f32 %v907, %v908
    %v910 = vrot.slane %v909, 1
    %v911 = vadd.f32 %v909, %v910
    %v912 = vmul.f32 %v714, 0.001953125
    %v913 = vmul.f32 %v911, 0.001953125
    %v914 = vmul.f32 %v912, %v912
    %v915 = vsub.f32 %v913, %v914
    %v916 = vmax.f32 %v915, 0.0
    %v917 = vadd.f32 %v916, 1e-05
    %v918 = vrsqrt.pop %v917
    %v919 = vmul.f32 %v579, %v918
    %v920 = vmul.f32 %v912, %v919
    %v921 = vsub.f32 %v580, %v920
    %v923 = vlaneseq
    %v924 = vshrl.u32 %v923, 7
    %v925 = vsub.s32 0, %v924
    %v926 = vrot.slane %v919, %v925
    %v928 = vmul.f32 %v325, %v926
    %v929 = vmul.f32 %v328, %v926
    %v930 = vmul.f32 %v333, %v926
    %v931 = vmul.f32 %v336, %v926
    %v932 = vmul.f32 %v341, %v926
    %v933 = vmul.f32 %v344, %v926
    %v934 = vmul.f32 %v349, %v926
    %v935 = vmul.f32 %v352, %v926
    %v936 = vmul.f32 %v357, %v926
    %v937 = vmul.f32 %v360, %v926
    %v938 = vmul.f32 %v365, %v926
    %v939 = vmul.f32 %v368, %v926
    %v940 = vmul.f32 %v373, %v926
    %v941 = vmul.f32 %v376, %v926
    %v942 = vmul.f32 %v381, %v926
    %v943 = vmul.f32 %v384, %v926
    %v944 = vmul.f32 %v389, %v926
    %v945 = vmul.f32 %v392, %v926
    %v946 = vmul.f32 %v397, %v926
    %v947 = vmul.f32 %v400, %v926
    %v948 = vmul.f32 %v405, %v926
    %v949 = vmul.f32 %v408, %v926
    %v950 = vmul.f32 %v413, %v926
    %v951 = vmul.f32 %v416, %v926
    %v952 = vmul.f32 %v421, %v926
    %v953 = vmul.f32 %v424, %v926
    %v954 = vmul.f32 %v429, %v926
    %v955 = vmul.f32 %v432, %v926
    %v956 = vmul.f32 %v437, %v926
    %v957 = vmul.f32 %v440, %v926
    %v958 = vmul.f32 %v445, %v926
    %v959 = vmul.f32 %v448, %v926
    %v960 = vmul.f32 %v453, %v926
    %v961 = vmul.f32 %v456, %v926
    %v962 = vmul.f32 %v461, %v926
    %v963 = vmul.f32 %v464, %v926
    %v964 = vmul.f32 %v469, %v926
    %v965 = vmul.f32 %v472, %v926
    %v966 = vmul.f32 %v477, %v926
    %v967 = vmul.f32 %v480, %v926
    %v968 = vmul.f32 %v485, %v926
    %v969 = vmul.f32 %v488, %v926
    %v970 = vmul.f32 %v493, %v926
    %v971 = vmul.f32 %v496, %v926
    %v972 = vmul.f32 %v501, %v926
    %v973 = vmul.f32 %v504, %v926
    %v974 = vmul.f32 %v509, %v926
    %v975 = vmul.f32 %v512, %v926
    %v976 = vmul.f32 %v517, %v926
    %v977 = vmul.f32 %v520, %v926
    %v978 = vmul.f32 %v525, %v926
    %v979 = vmul.f32 %v528, %v926
    %v980 = vmul.f32 %v533, %v926
    %v981 = vmul.f32 %v536, %v926
    %v982 = vmul.f32 %v541, %v926
    %v983 = vmul.f32 %v544, %v926
    %v984 = vmul.f32 %v549, %v926
    %v985 = vmul.f32 %v552, %v926
    %v986 = vmul.f32 %v557, %v926
    %v987 = vmul.f32 %v560, %v926
    %v988 = vmul.f32 %v565, %v926
    %v989 = vmul.f32 %v568, %v926
    %v990 = vmul.f32 %v573, %v926
    %v991 = vmul.f32 %v576, %v926
    %v993 = vlaneseq
    %v994 = vshrl.u32 %v993, 7
    %v995 = vsub.s32 0, %v994
    %v996 = vrot.slane %v921, %v995
    %v998 = vadd.f32 %v928, %v996
    %v999 = vadd.f32 %v929, %v996
    %v1000 = vadd.f32 %v930, %v996
    %v1001 = vadd.f32 %v931, %v996
    %v1002 = vadd.f32 %v932, %v996
    %v1003 = vadd.f32 %v933, %v996
    %v1004 = vadd.f32 %v934, %v996
    %v1005 = vadd.f32 %v935, %v996
    %v1006 = vadd.f32 %v936, %v996
    %v1007 = vadd.f32 %v937, %v996
    %v1008 = vadd.f32 %v938, %v996
    %v1009 = vadd.f32 %v939, %v996
    %v1010 = vadd.f32 %v940, %v996
    %v1011 = vadd.f32 %v941, %v996
    %v1012 = vadd.f32 %v942, %v996
    %v1013 = vadd.f32 %v943, %v996
    %v1014 = vadd.f32 %v944, %v996
    %v1015 = vadd.f32 %v945, %v996
    %v1016 = vadd.f32 %v946, %v996
    %v1017 = vadd.f32 %v947, %v996
    %v1018 = vadd.f32 %v948, %v996
    %v1019 = vadd.f32 %v949, %v996
    %v1020 = vadd.f32 %v950, %v996
    %v1021 = vadd.f32 %v951, %v996
    %v1022 = vadd.f32 %v952, %v996
    %v1023 = vadd.f32 %v953, %v996
    %v1024 = vadd.f32 %v954, %v996
    %v1025 = vadd.f32 %v955, %v996
    %v1026 = vadd.f32 %v956, %v996
    %v1027 = vadd.f32 %v957, %v996
    %v1028 = vadd.f32 %v958, %v996
    %v1029 = vadd.f32 %v959, %v996
    %v1030 = vadd.f32 %v960, %v996
    %v1031 = vadd.f32 %v961, %v996
    %v1032 = vadd.f32 %v962, %v996
    %v1033 = vadd.f32 %v963, %v996
    %v1034 = vadd.f32 %v964, %v996
    %v1035 = vadd.f32 %v965, %v996
    %v1036 = vadd.f32 %v966, %v996
    %v1037 = vadd.f32 %v967, %v996
    %v1038 = vadd.f32 %v968, %v996
    %v1039 = vadd.f32 %v969, %v996
    %v1040 = vadd.f32 %v970, %v996
    %v1041 = vadd.f32 %v971, %v996
    %v1042 = vadd.f32 %v972, %v996
    %v1043 = vadd.f32 %v973, %v996
    %v1044 = vadd.f32 %v974, %v996
    %v1045 = vadd.f32 %v975, %v996
    %v1046 = vadd.f32 %v976, %v996
    %v1047 = vadd.f32 %v977, %v996
    %v1048 = vadd.f32 %v978, %v996
    %v1049 = vadd.f32 %v979, %v996
    %v1050 = vadd.f32 %v980, %v996
    %v1051 = vadd.f32 %v981, %v996
    %v1052 = vadd.f32 %v982, %v996
    %v1053 = vadd.f32 %v983, %v996
    %v1054 = vadd.f32 %v984, %v996
    %v1055 = vadd.f32 %v985, %v996
    %v1056 = vadd.f32 %v986, %v996
    %v1057 = vadd.f32 %v987, %v996
    %v1058 = vadd.f32 %v988, %v996
    %v1059 = vadd.f32 %v989, %v996
    %v1060 = vadd.f32 %v990, %v996
    %v1061 = vadd.f32 %v991, %v996
    %v1062 = vmax.f32 %v998, 0.0
    %v1063 = vmax.f32 %v999, 0.0
    %v1064 = vmax.f32 %v1000, 0.0
    %v1065 = vmax.f32 %v1001, 0.0
    %v1066 = vmax.f32 %v1002, 0.0
    %v1067 = vmax.f32 %v1003, 0.0
    %v1068 = vmax.f32 %v1004, 0.0
    %v1069 = vmax.f32 %v1005, 0.0
    %v1070 = vmax.f32 %v1006, 0.0
    %v1071 = vmax.f32 %v1007, 0.0
    %v1072 = vmax.f32 %v1008, 0.0
    %v1073 = vmax.f32 %v1009, 0.0
    %v1074 = vmax.f32 %v1010, 0.0
    %v1075 = vmax.f32 %v1011, 0.0
    %v1076 = vmax.f32 %v1012, 0.0
    %v1077 = vmax.f32 %v1013, 0.0
    %v1078 = vmax.f32 %v1014, 0.0
    %v1079 = vmax.f32 %v1015, 0.0
    %v1080 = vmax.f32 %v1016, 0.0
    %v1081 = vmax.f32 %v1017, 0.0
    %v1082 = vmax.f32 %v1018, 0.0
    %v1083 = vmax.f32 %v1019, 0.0
    %v1084 = vmax.f32 %v1020, 0.0
    %v1085 = vmax.f32 %v1021, 0.0
    %v1086 = vmax.f32 %v1022, 0.0
    %v1087 = vmax.f32 %v1023, 0.0
    %v1088 = vmax.f32 %v1024, 0.0
    %v1089 = vmax.f32 %v1025, 0.0
    %v1090 = vmax.f32 %v1026, 0.0
    %v1091 = vmax.f32 %v1027, 0.0
    %v1092 = vmax.f32 %v1028, 0.0
    %v1093 = vmax.f32 %v1029, 0.0
    %v1094 = vmax.f32 %v1030, 0.0
    %v1095 = vmax.f32 %v1031, 0.0
    %v1096 = vmax.f32 %v1032, 0.0
    %v1097 = vmax.f32 %v1033, 0.0
    %v1098 = vmax.f32 %v1034, 0.0
    %v1099 = vmax.f32 %v1035, 0.0
    %v1100 = vmax.f32 %v1036, 0.0
    %v1101 = vmax.f32 %v1037, 0.0
    %v1102 = vmax.f32 %v1038, 0.0
    %v1103 = vmax.f32 %v1039, 0.0
    %v1104 = vmax.f32 %v1040, 0.0
    %v1105 = vmax.f32 %v1041, 0.0
    %v1106 = vmax.f32 %v1042, 0.0
    %v1107 = vmax.f32 %v1043, 0.0
    %v1108 = vmax.f32 %v1044, 0.0
    %v1109 = vmax.f32 %v1045, 0.0
    %v1110 = vmax.f32 %v1046, 0.0
    %v1111 = vmax.f32 %v1047, 0.0
    %v1112 = vmax.f32 %v1048, 0.0
    %v1113 = vmax.f32 %v1049, 0.0
    %v1114 = vmax.f32 %v1050, 0.0
    %v1115 = vmax.f32 %v1051, 0.0
    %v1116 = vmax.f32 %v1052, 0.0
    %v1117 = vmax.f32 %v1053, 0.0
    %v1118 = vmax.f32 %v1054, 0.0
    %v1119 = vmax.f32 %v1055, 0.0
    %v1120 = vmax.f32 %v1056, 0.0
    %v1121 = vmax.f32 %v1057, 0.0
    %v1122 = vmax.f32 %v1058, 0.0
    %v1123 = vmax.f32 %v1059, 0.0
    %v1124 = vmax.f32 %v1060, 0.0
    %v1125 = vmax.f32 %v1061, 0.0
    %v1126 = vpack.c.bf16 %v1063, %v1062
    %v1127 = vpack.c.bf16 %v1065, %v1064
    %v1128 = vpack.c.bf16 %v1067, %v1066
    %v1129 = vpack.c.bf16 %v1069, %v1068
    %v1130 = vpack.c.bf16 %v1071, %v1070
    %v1131 = vpack.c.bf16 %v1073, %v1072
    %v1132 = vpack.c.bf16 %v1075, %v1074
    %v1133 = vpack.c.bf16 %v1077, %v1076
    %v1134 = vpack.c.bf16 %v1079, %v1078
    %v1135 = vpack.c.bf16 %v1081, %v1080
    %v1136 = vpack.c.bf16 %v1083, %v1082
    %v1137 = vpack.c.bf16 %v1085, %v1084
    %v1138 = vpack.c.bf16 %v1087, %v1086
    %v1139 = vpack.c.bf16 %v1089, %v1088
    %v1140 = vpack.c.bf16 %v1091, %v1090
    %v1141 = vpack.c.bf16 %v1093, %v1092
    %v1142 = vpack.c.bf16 %v1095, %v1094
    %v1143 = vpack.c.bf16 %v1097, %v1096
    %v1144 = vpack.c.bf16 %v1099, %v1098
    %v1145 = vpack.c.bf16 %v1101, %v1100
    %v1146 = vpack.c.bf16 %v1103, %v1102
    %v1147 = vpack.c.bf16 %v1105, %v1104
    %v1148 = vpack.c.bf16 %v1107, %v1106
    %v1149 = vpack.c.bf16 %v1109, %v1108
    %v1150 = vpack.c.bf16 %v1111, %v1110
    %v1151 = vpack.c.bf16 %v1113, %v1112
    %v1152 = vpack.c.bf16 %v1115, %v1114
    %v1153 = vpack.c.bf16 %v1117, %v1116
    %v1154 = vpack.c.bf16 %v1119, %v1118
    %v1155 = vpack.c.bf16 %v1121, %v1120
    %v1156 = vpack.c.bf16 %v1123, %v1122
    %v1157 = vpack.c.bf16 %v1125, %v1124
    %vm1158 = vcmask 125952
    %1159 = vst.msk [vmem:[#allocation2] sm:$0xf] %vm1158, 0
    %1160 = vst.msk [vmem:[#allocation2 + $0x4] sm:$0xf] %vm1158, 0
    %vm1161 = vcmask 122880
    %1162 = vst.msk [vmem:[#allocation2 + $0x8] sm:$0x1] %vm1161, 0
    %1163 = vst.msk [vmem:[#allocation2 + $0xd8] sm:$0xf] %vm1158, 0
    %1164 = vst.msk [vmem:[#allocation2 + $0xdc] sm:$0xf] %vm1158, 0
    %1165 = vst.msk [vmem:[#allocation2 + $0xe0] sm:$0x1] %vm1161, 0
    %s1166 = scalar_lea.vmem [#allocation2], 204
    %1167 = vst.msk [vmem:[%s1166] sm:$0xf] %vm1158, 0
    %1168 = vst.msk [vmem:[%s1166 + $0x4] sm:$0xf] %vm1158, 0
    %1169 = vst.msk [vmem:[%s1166 + $0x8] sm:$0x1] %vm1161, 0
    %1170 = vst.msk [vmem:[%s1166 + $0xd8] sm:$0xf] %vm1158, 0
    %1171 = vst.msk [vmem:[%s1166 + $0xdc] sm:$0xf] %vm1158, 0
    %1172 = vst.msk [vmem:[%s1166 + $0xe0] sm:$0x1] %vm1161, 0
    %s1173 = scalar_lea.vmem [#allocation2], 12
    %vm1174 = vcmask 122880
    %vm1175 = vsmask.f32 256
    %vm1176 = vmand %vm1174, %vm1175
    %v1177 = vld [vmem:[%s1173] sm:$0x1]
    %v1178 = vsel %vm1176, 0, %v1177
    %1179 = vst [vmem:[%s1173] sm:$0x1] %v1178
    %v1180 = vld [vmem:[%s1173 + $0xc] sm:$0x1]
    %v1181 = vsel %vm1176, 0, %v1180
    %1182 = vst [vmem:[%s1173 + $0xc] sm:$0x1] %v1181
    %v1183 = vld [vmem:[%s1173 + $0x18] sm:$0x1]
    %v1184 = vsel %vm1176, 0, %v1183
    %1185 = vst [vmem:[%s1173 + $0x18] sm:$0x1] %v1184
    %v1186 = vld [vmem:[%s1173 + $0x24] sm:$0x1]
    %v1187 = vsel %vm1176, 0, %v1186
    %1188 = vst [vmem:[%s1173 + $0x24] sm:$0x1] %v1187
    %v1189 = vld [vmem:[%s1173 + $0x30] sm:$0x1]
    %v1190 = vsel %vm1176, 0, %v1189
    %1191 = vst [vmem:[%s1173 + $0x30] sm:$0x1] %v1190
    %v1192 = vld [vmem:[%s1173 + $0x3c] sm:$0x1]
    %v1193 = vsel %vm1176, 0, %v1192
    %1194 = vst [vmem:[%s1173 + $0x3c] sm:$0x1] %v1193
    %v1195 = vld [vmem:[%s1173 + $0x48] sm:$0x1]
    %v1196 = vsel %vm1176, 0, %v1195
    %1197 = vst [vmem:[%s1173 + $0x48] sm:$0x1] %v1196
    %v1198 = vld [vmem:[%s1173 + $0x54] sm:$0x1]
    %v1199 = vsel %vm1176, 0, %v1198
    %1200 = vst [vmem:[%s1173 + $0x54] sm:$0x1] %v1199
    %v1201 = vld [vmem:[%s1173 + $0x60] sm:$0x1]
    %v1202 = vsel %vm1176, 0, %v1201
    %1203 = vst [vmem:[%s1173 + $0x60] sm:$0x1] %v1202
    %v1204 = vld [vmem:[%s1173 + $0x6c] sm:$0x1]
    %v1205 = vsel %vm1176, 0, %v1204
    %1206 = vst [vmem:[%s1173 + $0x6c] sm:$0x1] %v1205
    %v1207 = vld [vmem:[%s1173 + $0x78] sm:$0x1]
    %v1208 = vsel %vm1176, 0, %v1207
    %1209 = vst [vmem:[%s1173 + $0x78] sm:$0x1] %v1208
    %v1210 = vld [vmem:[%s1173 + $0x84] sm:$0x1]
    %v1211 = vsel %vm1176, 0, %v1210
    %1212 = vst [vmem:[%s1173 + $0x84] sm:$0x1] %v1211
    %v1213 = vld [vmem:[%s1173 + $0x90] sm:$0x1]
    %v1214 = vsel %vm1176, 0, %v1213
    %1215 = vst [vmem:[%s1173 + $0x90] sm:$0x1] %v1214
    %v1216 = vld [vmem:[%s1173 + $0x9c] sm:$0x1]
    %v1217 = vsel %vm1176, 0, %v1216
    %1218 = vst [vmem:[%s1173 + $0x9c] sm:$0x1] %v1217
    %v1219 = vld [vmem:[%s1173 + $0xa8] sm:$0x1]
    %v1220 = vsel %vm1176, 0, %v1219
    %1221 = vst [vmem:[%s1173 + $0xa8] sm:$0x1] %v1220
    %v1222 = vld [vmem:[%s1173 + $0xb4] sm:$0x1]
    %v1223 = vsel %vm1176, 0, %v1222
    %1224 = vst [vmem:[%s1173 + $0xb4] sm:$0x1] %v1223
    %v1225 = vld [vmem:[%s1173 + $0xd8] sm:$0x1]
    %v1226 = vsel %vm1176, 0, %v1225
    %1227 = vst [vmem:[%s1173 + $0xd8] sm:$0x1] %v1226
    %v1228 = vld [vmem:[%s1173 + $0xe4] sm:$0x1]
    %v1229 = vsel %vm1176, 0, %v1228
    %1230 = vst [vmem:[%s1173 + $0xe4] sm:$0x1] %v1229
    %v1231 = vld [vmem:[%s1173 + $0xf0] sm:$0x1]
    %v1232 = vsel %vm1176, 0, %v1231
    %1233 = vst [vmem:[%s1173 + $0xf0] sm:$0x1] %v1232
    %v1234 = vld [vmem:[%s1173 + $0xfc] sm:$0x1]
    %v1235 = vsel %vm1176, 0, %v1234
    %1236 = vst [vmem:[%s1173 + $0xfc] sm:$0x1] %v1235
    %v1237 = vld [vmem:[%s1173 + $0x108] sm:$0x1]
    %v1238 = vsel %vm1176, 0, %v1237
    %1239 = vst [vmem:[%s1173 + $0x108] sm:$0x1] %v1238
    %v1240 = vld [vmem:[%s1173 + $0x114] sm:$0x1]
    %v1241 = vsel %vm1176, 0, %v1240
    %1242 = vst [vmem:[%s1173 + $0x114] sm:$0x1] %v1241
    %v1243 = vld [vmem:[%s1173 + $0x120] sm:$0x1]
    %v1244 = vsel %vm1176, 0, %v1243
    %1245 = vst [vmem:[%s1173 + $0x120] sm:$0x1] %v1244
    %v1246 = vld [vmem:[%s1173 + $0x12c] sm:$0x1]
    %v1247 = vsel %vm1176, 0, %v1246
    %1248 = vst [vmem:[%s1173 + $0x12c] sm:$0x1] %v1247
    %v1249 = vld [vmem:[%s1173 + $0x138] sm:$0x1]
    %v1250 = vsel %vm1176, 0, %v1249
    %1251 = vst [vmem:[%s1173 + $0x138] sm:$0x1] %v1250
    %v1252 = vld [vmem:[%s1173 + $0x144] sm:$0x1]
    %v1253 = vsel %vm1176, 0, %v1252
    %1254 = vst [vmem:[%s1173 + $0x144] sm:$0x1] %v1253
    %v1255 = vld [vmem:[%s1173 + $0x150] sm:$0x1]
    %v1256 = vsel %vm1176, 0, %v1255
    %1257 = vst [vmem:[%s1173 + $0x150] sm:$0x1] %v1256
    %v1258 = vld [vmem:[%s1173 + $0x15c] sm:$0x1]
    %v1259 = vsel %vm1176, 0, %v1258
    %1260 = vst [vmem:[%s1173 + $0x15c] sm:$0x1] %v1259
    %v1261 = vld [vmem:[%s1173 + $0x168] sm:$0x1]
    %v1262 = vsel %vm1176, 0, %v1261
    %1263 = vst [vmem:[%s1173 + $0x168] sm:$0x1] %v1262
    %v1264 = vld [vmem:[%s1173 + $0x174] sm:$0x1]
    %v1265 = vsel %vm1176, 0, %v1264
    %1266 = vst [vmem:[%s1173 + $0x174] sm:$0x1] %v1265
    %v1267 = vld [vmem:[%s1173 + $0x180] sm:$0x1]
    %v1268 = vsel %vm1176, 0, %v1267
    %1269 = vst [vmem:[%s1173 + $0x180] sm:$0x1] %v1268
    %v1270 = vld [vmem:[%s1173 + $0x18c] sm:$0x1]
    %v1271 = vsel %vm1176, 0, %v1270
    %1272 = vst [vmem:[%s1173 + $0x18c] sm:$0x1] %v1271
    %vm1273 = vsmask.f32 7938
    %vm1274 = vmand %vm1174, %vm1273
    %v1275 = vld [vmem:[%s1173 + $0x8] sm:$0x1]
    %v1276 = vsel %vm1274, 0, %v1275
    %1277 = vst [vmem:[%s1173 + $0x8] sm:$0x1] %v1276
    %v1278 = vld [vmem:[%s1173 + $0x14] sm:$0x1]
    %v1279 = vsel %vm1274, 0, %v1278
    %1280 = vst [vmem:[%s1173 + $0x14] sm:$0x1] %v1279
    %v1281 = vld [vmem:[%s1173 + $0x20] sm:$0x1]
    %v1282 = vsel %vm1274, 0, %v1281
    %1283 = vst [vmem:[%s1173 + $0x20] sm:$0x1] %v1282
    %v1284 = vld [vmem:[%s1173 + $0x2c] sm:$0x1]
    %v1285 = vsel %vm1274, 0, %v1284
    %1286 = vst [vmem:[%s1173 + $0x2c] sm:$0x1] %v1285
    %v1287 = vld [vmem:[%s1173 + $0x38] sm:$0x1]
    %v1288 = vsel %vm1274, 0, %v1287
    %1289 = vst [vmem:[%s1173 + $0x38] sm:$0x1] %v1288
    %v1290 = vld [vmem:[%s1173 + $0x44] sm:$0x1]
    %v1291 = vsel %vm1274, 0, %v1290
    %1292 = vst [vmem:[%s1173 + $0x44] sm:$0x1] %v1291
    %v1293 = vld [vmem:[%s1173 + $0x50] sm:$0x1]
    %v1294 = vsel %vm1274, 0, %v1293
    %1295 = vst [vmem:[%s1173 + $0x50] sm:$0x1] %v1294
    %v1296 = vld [vmem:[%s1173 + $0x5c] sm:$0x1]
    %v1297 = vsel %vm1274, 0, %v1296
    %1298 = vst [vmem:[%s1173 + $0x5c] sm:$0x1] %v1297
    %v1299 = vld [vmem:[%s1173 + $0x68] sm:$0x1]
    %v1300 = vsel %vm1274, 0, %v1299
    %1301 = vst [vmem:[%s1173 + $0x68] sm:$0x1] %v1300
    %v1302 = vld [vmem:[%s1173 + $0x74] sm:$0x1]
    %v1303 = vsel %vm1274, 0, %v1302
    %1304 = vst [vmem:[%s1173 + $0x74] sm:$0x1] %v1303
    %v1305 = vld [vmem:[%s1173 + $0x80] sm:$0x1]
    %v1306 = vsel %vm1274, 0, %v1305
    %1307 = vst [vmem:[%s1173 + $0x80] sm:$0x1] %v1306
    %v1308 = vld [vmem:[%s1173 + $0x8c] sm:$0x1]
    %v1309 = vsel %vm1274, 0, %v1308
    %1310 = vst [vmem:[%s1173 + $0x8c] sm:$0x1] %v1309
    %v1311 = vld [vmem:[%s1173 + $0x98] sm:$0x1]
    %v1312 = vsel %vm1274, 0, %v1311
    %1313 = vst [vmem:[%s1173 + $0x98] sm:$0x1] %v1312
    %v1314 = vld [vmem:[%s1173 + $0xa4] sm:$0x1]
    %v1315 = vsel %vm1274, 0, %v1314
    %1316 = vst [vmem:[%s1173 + $0xa4] sm:$0x1] %v1315
    %v1317 = vld [vmem:[%s1173 + $0xb0] sm:$0x1]
    %v1318 = vsel %vm1274, 0, %v1317
    %1319 = vst [vmem:[%s1173 + $0xb0] sm:$0x1] %v1318
    %v1320 = vld [vmem:[%s1173 + $0xbc] sm:$0x1]
    %v1321 = vsel %vm1274, 0, %v1320
    %1322 = vst [vmem:[%s1173 + $0xbc] sm:$0x1] %v1321
    %v1323 = vld [vmem:[%s1173 + $0xe0] sm:$0x1]
    %v1324 = vsel %vm1274, 0, %v1323
    %1325 = vst [vmem:[%s1173 + $0xe0] sm:$0x1] %v1324
    %v1326 = vld [vmem:[%s1173 + $0xec] sm:$0x1]
    %v1327 = vsel %vm1274, 0, %v1326
    %1328 = vst [vmem:[%s1173 + $0xec] sm:$0x1] %v1327
    %v1329 = vld [vmem:[%s1173 + $0xf8] sm:$0x1]
    %v1330 = vsel %vm1274, 0, %v1329
    %1331 = vst [vmem:[%s1173 + $0xf8] sm:$0x1] %v1330
    %v1332 = vld [vmem:[%s1173 + $0x104] sm:$0x1]
    %v1333 = vsel %vm1274, 0, %v1332
    %1334 = vst [vmem:[%s1173 + $0x104] sm:$0x1] %v1333
    %v1335 = vld [vmem:[%s1173 + $0x110] sm:$0x1]
    %v1336 = vsel %vm1274, 0, %v1335
    %1337 = vst [vmem:[%s1173 + $0x110] sm:$0x1] %v1336
    %v1338 = vld [vmem:[%s1173 + $0x11c] sm:$0x1]
    %v1339 = vsel %vm1274, 0, %v1338
    %1340 = vst [vmem:[%s1173 + $0x11c] sm:$0x1] %v1339
    %v1341 = vld [vmem:[%s1173 + $0x128] sm:$0x1]
    %v1342 = vsel %vm1274, 0, %v1341
    %1343 = vst [vmem:[%s1173 + $0x128] sm:$0x1] %v1342
    %v1344 = vld [vmem:[%s1173 + $0x134] sm:$0x1]
    %v1345 = vsel %vm1274, 0, %v1344
    %1346 = vst [vmem:[%s1173 + $0x134] sm:$0x1] %v1345
    %v1347 = vld [vmem:[%s1173 + $0x140] sm:$0x1]
    %v1348 = vsel %vm1274, 0, %v1347
    %1349 = vst [vmem:[%s1173 + $0x140] sm:$0x1] %v1348
    %v1350 = vld [vmem:[%s1173 + $0x14c] sm:$0x1]
    %v1351 = vsel %vm1274, 0, %v1350
    %1352 = vst [vmem:[%s1173 + $0x14c] sm:$0x1] %v1351
    %v1353 = vld [vmem:[%s1173 + $0x158] sm:$0x1]
    %v1354 = vsel %vm1274, 0, %v1353
    %1355 = vst [vmem:[%s1173 + $0x158] sm:$0x1] %v1354
    %v1356 = vld [vmem:[%s1173 + $0x164] sm:$0x1]
    %v1357 = vsel %vm1274, 0, %v1356
    %1358 = vst [vmem:[%s1173 + $0x164] sm:$0x1] %v1357
    %v1359 = vld [vmem:[%s1173 + $0x170] sm:$0x1]
    %v1360 = vsel %vm1274, 0, %v1359
    %1361 = vst [vmem:[%s1173 + $0x170] sm:$0x1] %v1360
    %v1362 = vld [vmem:[%s1173 + $0x17c] sm:$0x1]
    %v1363 = vsel %vm1274, 0, %v1362
    %1364 = vst [vmem:[%s1173 + $0x17c] sm:$0x1] %v1363
    %v1365 = vld [vmem:[%s1173 + $0x188] sm:$0x1]
    %v1366 = vsel %vm1274, 0, %v1365
    %1367 = vst [vmem:[%s1173 + $0x188] sm:$0x1] %v1366
    %v1368 = vld [vmem:[%s1173 + $0x194] sm:$0x1]
    %v1369 = vsel %vm1274, 0, %v1368
    %1370 = vst [vmem:[%s1173 + $0x194] sm:$0x1] %v1369
    %v1403 = vunpack.c.l.b16 %v1126
    %v1404 = vunpack.c.h.b16 %v1126
    %v1405 = vunpack.c.l.b16 %v1127
    %v1406 = vunpack.c.h.b16 %v1127
    %v1407 = vunpack.c.l.b16 %v1128
    %v1408 = vunpack.c.h.b16 %v1128
    %v1409 = vunpack.c.l.b16 %v1129
    %v1410 = vunpack.c.h.b16 %v1129
    %v1411 = vunpack.c.l.b16 %v1130
    %v1412 = vunpack.c.h.b16 %v1130
    %v1413 = vunpack.c.l.b16 %v1131
    %v1414 = vunpack.c.h.b16 %v1131
    %v1415 = vunpack.c.l.b16 %v1132
    %v1416 = vunpack.c.h.b16 %v1132
    %v1417 = vunpack.c.l.b16 %v1133
    %v1418 = vunpack.c.h.b16 %v1133
    %v1419 = vunpack.c.l.b16 %v1134
    %v1420 = vunpack.c.h.b16 %v1134
    %v1421 = vunpack.c.l.b16 %v1135
    %v1422 = vunpack.c.h.b16 %v1135
    %v1423 = vunpack.c.l.b16 %v1136
    %v1424 = vunpack.c.h.b16 %v1136
    %v1425 = vunpack.c.l.b16 %v1137
    %v1426 = vunpack.c.h.b16 %v1137
    %v1427 = vunpack.c.l.b16 %v1138
    %v1428 = vunpack.c.h.b16 %v1138
    %v1429 = vunpack.c.l.b16 %v1139
    %v1430 = vunpack.c.h.b16 %v1139
    %v1431 = vunpack.c.l.b16 %v1140
    %v1432 = vunpack.c.h.b16 %v1140
    %v1433 = vunpack.c.l.b16 %v1141
    %v1434 = vunpack.c.h.b16 %v1141
    %v1435 = vunpack.c.l.b16 %v1142
    %v1436 = vunpack.c.h.b16 %v1142
    %v1437 = vunpack.c.l.b16 %v1143
    %v1438 = vunpack.c.h.b16 %v1143
    %v1439 = vunpack.c.l.b16 %v1144
    %v1440 = vunpack.c.h.b16 %v1144
    %v1441 = vunpack.c.l.b16 %v1145
    %v1442 = vunpack.c.h.b16 %v1145
    %v1443 = vunpack.c.l.b16 %v1146
    %v1444 = vunpack.c.h.b16 %v1146
    %v1445 = vunpack.c.l.b16 %v1147
    %v1446 = vunpack.c.h.b16 %v1147
    %v1447 = vunpack.c.l.b16 %v1148
    %v1448 = vunpack.c.h.b16 %v1148
    %v1449 = vunpack.c.l.b16 %v1149
    %v1450 = vunpack.c.h.b16 %v1149
    %v1451 = vunpack.c.l.b16 %v1150
    %v1452 = vunpack.c.h.b16 %v1150
    %v1453 = vunpack.c.l.b16 %v1151
    %v1454 = vunpack.c.h.b16 %v1151
    %v1455 = vunpack.c.l.b16 %v1152
    %v1456 = vunpack.c.h.b16 %v1152
    %v1457 = vunpack.c.l.b16 %v1153
    %v1458 = vunpack.c.h.b16 %v1153
    %v1459 = vunpack.c.l.b16 %v1154
    %v1460 = vunpack.c.h.b16 %v1154
    %v1461 = vunpack.c.l.b16 %v1155
    %v1462 = vunpack.c.h.b16 %v1155
    %v1463 = vunpack.c.l.b16 %v1156
    %v1464 = vunpack.c.h.b16 %v1156
    %v1465 = vunpack.c.l.b16 %v1157
    %v1466 = vunpack.c.h.b16 %v1157
    %v1467 = vpack.c.b16 %v1403, %v1403
    %v1468 = vpack.c.b16 %v1404, %v1404
    %v1469 = vpack.c.b16 %v1405, %v1405
    %v1470 = vpack.c.b16 %v1406, %v1406
    %v1471 = vpack.c.b16 %v1407, %v1407
    %v1472 = vpack.c.b16 %v1408, %v1408
    %v1473 = vpack.c.b16 %v1409, %v1409
    %v1474 = vpack.c.b16 %v1410, %v1410
    %v1475 = vpack.c.b16 %v1411, %v1411
    %v1476 = vpack.c.b16 %v1412, %v1412
    %v1477 = vpack.c.b16 %v1413, %v1413
    %v1478 = vpack.c.b16 %v1414, %v1414
    %v1479 = vpack.c.b16 %v1415, %v1415
    %v1480 = vpack.c.b16 %v1416, %v1416
    %v1481 = vpack.c.b16 %v1417, %v1417
    %v1482 = vpack.c.b16 %v1418, %v1418
    %v1483 = vpack.c.b16 %v1419, %v1419
    %v1484 = vpack.c.b16 %v1420, %v1420
    %v1485 = vpack.c.b16 %v1421, %v1421
    %v1486 = vpack.c.b16 %v1422, %v1422
    %v1487 = vpack.c.b16 %v1423, %v1423
    %v1488 = vpack.c.b16 %v1424, %v1424
    %v1489 = vpack.c.b16 %v1425, %v1425
    %v1490 = vpack.c.b16 %v1426, %v1426
    %v1491 = vpack.c.b16 %v1427, %v1427
    %v1492 = vpack.c.b16 %v1428, %v1428
    %v1493 = vpack.c.b16 %v1429, %v1429
    %v1494 = vpack.c.b16 %v1430, %v1430
    %v1495 = vpack.c.b16 %v1431, %v1431
    %v1496 = vpack.c.b16 %v1432, %v1432
    %v1497 = vpack.c.b16 %v1433, %v1433
    %v1498 = vpack.c.b16 %v1434, %v1434
    %v1499 = vpack.c.b16 %v1435, %v1435
    %v1500 = vpack.c.b16 %v1436, %v1436
    %v1501 = vpack.c.b16 %v1437, %v1437
    %v1502 = vpack.c.b16 %v1438, %v1438
    %v1503 = vpack.c.b16 %v1439, %v1439
    %v1504 = vpack.c.b16 %v1440, %v1440
    %v1505 = vpack.c.b16 %v1441, %v1441
    %v1506 = vpack.c.b16 %v1442, %v1442
    %v1507 = vpack.c.b16 %v1443, %v1443
    %v1508 = vpack.c.b16 %v1444, %v1444
    %v1509 = vpack.c.b16 %v1445, %v1445
    %v1510 = vpack.c.b16 %v1446, %v1446
    %v1511 = vpack.c.b16 %v1447, %v1447
    %v1512 = vpack.c.b16 %v1448, %v1448
    %v1513 = vpack.c.b16 %v1449, %v1449
    %v1514 = vpack.c.b16 %v1450, %v1450
    %v1515 = vpack.c.b16 %v1451, %v1451
    %v1516 = vpack.c.b16 %v1452, %v1452
    %v1517 = vpack.c.b16 %v1453, %v1453
    %v1518 = vpack.c.b16 %v1454, %v1454
    %v1519 = vpack.c.b16 %v1455, %v1455
    %v1520 = vpack.c.b16 %v1456, %v1456
    %v1521 = vpack.c.b16 %v1457, %v1457
    %v1522 = vpack.c.b16 %v1458, %v1458
    %v1523 = vpack.c.b16 %v1459, %v1459
    %v1524 = vpack.c.b16 %v1460, %v1460
    %v1525 = vpack.c.b16 %v1461, %v1461
    %v1526 = vpack.c.b16 %v1462, %v1462
    %v1527 = vpack.c.b16 %v1463, %v1463
    %v1528 = vpack.c.b16 %v1464, %v1464
    %v1529 = vpack.c.b16 %v1465, %v1465
    %v1530 = vpack.c.b16 %v1466, %v1466
    %vm1531 = vsmask.f32 4368
    %vm1532 = vmor %vm1175, %vm1531
    %v1534 = vshrl.u32 %v1467, 16
    %v1536 = vrot.slane %v1534, 7
    %v1537 = vshll.u32 %v1467, 16
    %v1539 = vor.u32 %v1536, %v1537
    %v1540 = vrot.slane %v1536, 4
    %v1542 = vshrl.u32 %v1468, 16
    %v1544 = vrot.slane %v1542, 7
    %v1545 = vshll.u32 %v1468, 16
    %v1547 = vor.u32 %v1544, %v1545
    %v1548 = vsel %vm1532, %v1540, %v1547
    %v1549 = vrot.slane %v1544, 4
    %v1551 = vshrl.u32 %v1469, 16
    %v1553 = vrot.slane %v1551, 7
    %v1554 = vshll.u32 %v1469, 16
    %v1556 = vor.u32 %v1553, %v1554
    %v1557 = vrot.slane %v1553, 4
    %v1559 = vshrl.u32 %v1470, 16
    %v1561 = vrot.slane %v1559, 7
    %v1562 = vshll.u32 %v1470, 16
    %v1564 = vor.u32 %v1561, %v1562
    %v1565 = vsel %vm1532, %v1557, %v1564
    %v1566 = vrot.slane %v1561, 4
    %v1568 = vshrl.u32 %v1471, 16
    %v1570 = vrot.slane %v1568, 7
    %v1571 = vshll.u32 %v1471, 16
    %v1573 = vor.u32 %v1570, %v1571
    %v1574 = vrot.slane %v1570, 4
    %v1576 = vshrl.u32 %v1472, 16
    %v1578 = vrot.slane %v1576, 7
    %v1579 = vshll.u32 %v1472, 16
    %v1581 = vor.u32 %v1578, %v1579
    %v1582 = vsel %vm1532, %v1574, %v1581
    %v1583 = vrot.slane %v1578, 4
    %v1585 = vshrl.u32 %v1473, 16
    %v1587 = vrot.slane %v1585, 7
    %v1588 = vshll.u32 %v1473, 16
    %v1590 = vor.u32 %v1587, %v1588
    %v1591 = vrot.slane %v1587, 4
    %v1593 = vshrl.u32 %v1474, 16
    %v1595 = vrot.slane %v1593, 7
    %v1596 = vshll.u32 %v1474, 16
    %v1598 = vor.u32 %v1595, %v1596
    %v1599 = vsel %vm1532, %v1591, %v1598
    %v1600 = vrot.slane %v1595, 4
    %v1602 = vshrl.u32 %v1475, 16
    %v1604 = vrot.slane %v1602, 7
    %v1605 = vshll.u32 %v1475, 16
    %v1607 = vor.u32 %v1604, %v1605
    %v1608 = vrot.slane %v1604, 4
    %v1610 = vshrl.u32 %v1476, 16
    %v1612 = vrot.slane %v1610, 7
    %v1613 = vshll.u32 %v1476, 16
    %v1615 = vor.u32 %v1612, %v1613
    %v1616 = vsel %vm1532, %v1608, %v1615
    %v1617 = vrot.slane %v1612, 4
    %v1619 = vshrl.u32 %v1477, 16
    %v1621 = vrot.slane %v1619, 7
    %v1622 = vshll.u32 %v1477, 16
    %v1624 = vor.u32 %v1621, %v1622
    %v1625 = vrot.slane %v1621, 4
    %v1627 = vshrl.u32 %v1478, 16
    %v1629 = vrot.slane %v1627, 7
    %v1630 = vshll.u32 %v1478, 16
    %v1632 = vor.u32 %v1629, %v1630
    %v1633 = vsel %vm1532, %v1625, %v1632
    %v1634 = vrot.slane %v1629, 4
    %v1636 = vshrl.u32 %v1479, 16
    %v1638 = vrot.slane %v1636, 7
    %v1639 = vshll.u32 %v1479, 16
    %v1641 = vor.u32 %v1638, %v1639
    %v1642 = vrot.slane %v1638, 4
    %v1644 = vshrl.u32 %v1480, 16
    %v1646 = vrot.slane %v1644, 7
    %v1647 = vshll.u32 %v1480, 16
    %v1649 = vor.u32 %v1646, %v1647
    %v1650 = vsel %vm1532, %v1642, %v1649
    %v1651 = vrot.slane %v1646, 4
    %v1653 = vshrl.u32 %v1481, 16
    %v1655 = vrot.slane %v1653, 7
    %v1656 = vshll.u32 %v1481, 16
    %v1658 = vor.u32 %v1655, %v1656
    %v1659 = vrot.slane %v1655, 4
    %v1661 = vshrl.u32 %v1482, 16
    %v1663 = vrot.slane %v1661, 7
    %v1664 = vshll.u32 %v1482, 16
    %v1666 = vor.u32 %v1663, %v1664
    %v1667 = vsel %vm1532, %v1659, %v1666
    %v1668 = vrot.slane %v1663, 4
    %v1670 = vshrl.u32 %v1483, 16
    %v1672 = vrot.slane %v1670, 7
    %v1673 = vshll.u32 %v1483, 16
    %v1675 = vor.u32 %v1672, %v1673
    %v1676 = vrot.slane %v1672, 4
    %v1678 = vshrl.u32 %v1484, 16
    %v1680 = vrot.slane %v1678, 7
    %v1681 = vshll.u32 %v1484, 16
    %v1683 = vor.u32 %v1680, %v1681
    %v1684 = vsel %vm1532, %v1676, %v1683
    %v1685 = vrot.slane %v1680, 4
    %v1687 = vshrl.u32 %v1485, 16
    %v1689 = vrot.slane %v1687, 7
    %v1690 = vshll.u32 %v1485, 16
    %v1692 = vor.u32 %v1689, %v1690
    %v1693 = vrot.slane %v1689, 4
    %v1695 = vshrl.u32 %v1486, 16
    %v1697 = vrot.slane %v1695, 7
    %v1698 = vshll.u32 %v1486, 16
    %v1700 = vor.u32 %v1697, %v1698
    %v1701 = vsel %vm1532, %v1693, %v1700
    %v1702 = vrot.slane %v1697, 4
    %v1704 = vshrl.u32 %v1487, 16
    %v1706 = vrot.slane %v1704, 7
    %v1707 = vshll.u32 %v1487, 16
    %v1709 = vor.u32 %v1706, %v1707
    %v1710 = vrot.slane %v1706, 4
    %v1712 = vshrl.u32 %v1488, 16
    %v1714 = vrot.slane %v1712, 7
    %v1715 = vshll.u32 %v1488, 16
    %v1717 = vor.u32 %v1714, %v1715
    %v1718 = vsel %vm1532, %v1710, %v1717
    %v1719 = vrot.slane %v1714, 4
    %v1721 = vshrl.u32 %v1489, 16
    %v1723 = vrot.slane %v1721, 7
    %v1724 = vshll.u32 %v1489, 16
    %v1726 = vor.u32 %v1723, %v1724
    %v1727 = vrot.slane %v1723, 4
    %v1729 = vshrl.u32 %v1490, 16
    %v1731 = vrot.slane %v1729, 7
    %v1732 = vshll.u32 %v1490, 16
    %v1734 = vor.u32 %v1731, %v1732
    %v1735 = vsel %vm1532, %v1727, %v1734
    %v1736 = vrot.slane %v1731, 4
    %v1738 = vshrl.u32 %v1491, 16
    %v1740 = vrot.slane %v1738, 7
    %v1741 = vshll.u32 %v1491, 16
    %v1743 = vor.u32 %v1740, %v1741
    %v1744 = vrot.slane %v1740, 4
    %v1746 = vshrl.u32 %v1492, 16
    %v1748 = vrot.slane %v1746, 7
    %v1749 = vshll.u32 %v1492, 16
    %v1751 = vor.u32 %v1748, %v1749
    %v1752 = vsel %vm1532, %v1744, %v1751
    %v1753 = vrot.slane %v1748, 4
    %v1755 = vshrl.u32 %v1493, 16
    %v1757 = vrot.slane %v1755, 7
    %v1758 = vshll.u32 %v1493, 16
    %v1760 = vor.u32 %v1757, %v1758
    %v1761 = vrot.slane %v1757, 4
    %v1763 = vshrl.u32 %v1494, 16
    %v1765 = vrot.slane %v1763, 7
    %v1766 = vshll.u32 %v1494, 16
    %v1768 = vor.u32 %v1765, %v1766
    %v1769 = vsel %vm1532, %v1761, %v1768
    %v1770 = vrot.slane %v1765, 4
    %v1772 = vshrl.u32 %v1495, 16
    %v1774 = vrot.slane %v1772, 7
    %v1775 = vshll.u32 %v1495, 16
    %v1777 = vor.u32 %v1774, %v1775
    %v1778 = vrot.slane %v1774, 4
    %v1780 = vshrl.u32 %v1496, 16
    %v1782 = vrot.slane %v1780, 7
    %v1783 = vshll.u32 %v1496, 16
    %v1785 = vor.u32 %v1782, %v1783
    %v1786 = vsel %vm1532, %v1778, %v1785
    %v1787 = vrot.slane %v1782, 4
    %v1789 = vshrl.u32 %v1497, 16
    %v1791 = vrot.slane %v1789, 7
    %v1792 = vshll.u32 %v1497, 16
    %v1794 = vor.u32 %v1791, %v1792
    %v1795 = vrot.slane %v1791, 4
    %v1797 = vshrl.u32 %v1498, 16
    %v1799 = vrot.slane %v1797, 7
    %v1800 = vshll.u32 %v1498, 16
    %v1802 = vor.u32 %v1799, %v1800
    %v1803 = vsel %vm1532, %v1795, %v1802
    %v1804 = vrot.slane %v1799, 4
    %v1806 = vshrl.u32 %v1499, 16
    %v1808 = vrot.slane %v1806, 7
    %v1809 = vshll.u32 %v1499, 16
    %v1811 = vor.u32 %v1808, %v1809
    %v1812 = vrot.slane %v1808, 4
    %v1814 = vshrl.u32 %v1500, 16
    %v1816 = vrot.slane %v1814, 7
    %v1817 = vshll.u32 %v1500, 16
    %v1819 = vor.u32 %v1816, %v1817
    %v1820 = vsel %vm1532, %v1812, %v1819
    %v1821 = vrot.slane %v1816, 4
    %v1823 = vshrl.u32 %v1501, 16
    %v1825 = vrot.slane %v1823, 7
    %v1826 = vshll.u32 %v1501, 16
    %v1828 = vor.u32 %v1825, %v1826
    %v1829 = vrot.slane %v1825, 4
    %v1831 = vshrl.u32 %v1502, 16
    %v1833 = vrot.slane %v1831, 7
    %v1834 = vshll.u32 %v1502, 16
    %v1836 = vor.u32 %v1833, %v1834
    %v1837 = vsel %vm1532, %v1829, %v1836
    %v1838 = vrot.slane %v1833, 4
    %v1840 = vshrl.u32 %v1503, 16
    %v1842 = vrot.slane %v1840, 7
    %v1843 = vshll.u32 %v1503, 16
    %v1845 = vor.u32 %v1842, %v1843
    %v1846 = vrot.slane %v1842, 4
    %v1848 = vshrl.u32 %v1504, 16
    %v1850 = vrot.slane %v1848, 7
    %v1851 = vshll.u32 %v1504, 16
    %v1853 = vor.u32 %v1850, %v1851
    %v1854 = vsel %vm1532, %v1846, %v1853
    %v1855 = vrot.slane %v1850, 4
    %v1857 = vshrl.u32 %v1505, 16
    %v1859 = vrot.slane %v1857, 7
    %v1860 = vshll.u32 %v1505, 16
    %v1862 = vor.u32 %v1859, %v1860
    %v1863 = vrot.slane %v1859, 4
    %v1865 = vshrl.u32 %v1506, 16
    %v1867 = vrot.slane %v1865, 7
    %v1868 = vshll.u32 %v1506, 16
    %v1870 = vor.u32 %v1867, %v1868
    %v1871 = vsel %vm1532, %v1863, %v1870
    %v1872 = vrot.slane %v1867, 4
    %v1874 = vshrl.u32 %v1507, 16
    %v1876 = vrot.slane %v1874, 7
    %v1877 = vshll.u32 %v1507, 16
    %v1879 = vor.u32 %v1876, %v1877
    %v1880 = vrot.slane %v1876, 4
    %v1882 = vshrl.u32 %v1508, 16
    %v1884 = vrot.slane %v1882, 7
    %v1885 = vshll.u32 %v1508, 16
    %v1887 = vor.u32 %v1884, %v1885
    %v1888 = vsel %vm1532, %v1880, %v1887
    %v1889 = vrot.slane %v1884, 4
    %v1891 = vshrl.u32 %v1509, 16
    %v1893 = vrot.slane %v1891, 7
    %v1894 = vshll.u32 %v1509, 16
    %v1896 = vor.u32 %v1893, %v1894
    %v1897 = vrot.slane %v1893, 4
    %v1899 = vshrl.u32 %v1510, 16
    %v1901 = vrot.slane %v1899, 7
    %v1902 = vshll.u32 %v1510, 16
    %v1904 = vor.u32 %v1901, %v1902
    %v1905 = vsel %vm1532, %v1897, %v1904
    %v1906 = vrot.slane %v1901, 4
    %v1908 = vshrl.u32 %v1511, 16
    %v1910 = vrot.slane %v1908, 7
    %v1911 = vshll.u32 %v1511, 16
    %v1913 = vor.u32 %v1910, %v1911
    %v1914 = vrot.slane %v1910, 4
    %v1916 = vshrl.u32 %v1512, 16
    %v1918 = vrot.slane %v1916, 7
    %v1919 = vshll.u32 %v1512, 16
    %v1921 = vor.u32 %v1918, %v1919
    %v1922 = vsel %vm1532, %v1914, %v1921
    %v1923 = vrot.slane %v1918, 4
    %v1925 = vshrl.u32 %v1513, 16
    %v1927 = vrot.slane %v1925, 7
    %v1928 = vshll.u32 %v1513, 16
    %v1930 = vor.u32 %v1927, %v1928
    %v1931 = vrot.slane %v1927, 4
    %v1933 = vshrl.u32 %v1514, 16
    %v1935 = vrot.slane %v1933, 7
    %v1936 = vshll.u32 %v1514, 16
    %v1938 = vor.u32 %v1935, %v1936
    %v1939 = vsel %vm1532, %v1931, %v1938
    %v1940 = vrot.slane %v1935, 4
    %v1942 = vshrl.u32 %v1515, 16
    %v1944 = vrot.slane %v1942, 7
    %v1945 = vshll.u32 %v1515, 16
    %v1947 = vor.u32 %v1944, %v1945
    %v1948 = vrot.slane %v1944, 4
    %v1950 = vshrl.u32 %v1516, 16
    %v1952 = vrot.slane %v1950, 7
    %v1953 = vshll.u32 %v1516, 16
    %v1955 = vor.u32 %v1952, %v1953
    %v1956 = vsel %vm1532, %v1948, %v1955
    %v1957 = vrot.slane %v1952, 4
    %v1959 = vshrl.u32 %v1517, 16
    %v1961 = vrot.slane %v1959, 7
    %v1962 = vshll.u32 %v1517, 16
    %v1964 = vor.u32 %v1961, %v1962
    %v1965 = vrot.slane %v1961, 4
    %v1967 = vshrl.u32 %v1518, 16
    %v1969 = vrot.slane %v1967, 7
    %v1970 = vshll.u32 %v1518, 16
    %v1972 = vor.u32 %v1969, %v1970
    %v1973 = vsel %vm1532, %v1965, %v1972
    %v1974 = vrot.slane %v1969, 4
    %v1976 = vshrl.u32 %v1519, 16
    %v1978 = vrot.slane %v1976, 7
    %v1979 = vshll.u32 %v1519, 16
    %v1981 = vor.u32 %v1978, %v1979
    %v1982 = vrot.slane %v1978, 4
    %v1984 = vshrl.u32 %v1520, 16
    %v1986 = vrot.slane %v1984, 7
    %v1987 = vshll.u32 %v1520, 16
    %v1989 = vor.u32 %v1986, %v1987
    %v1990 = vsel %vm1532, %v1982, %v1989
    %v1991 = vrot.slane %v1986, 4
    %v1993 = vshrl.u32 %v1521, 16
    %v1995 = vrot.slane %v1993, 7
    %v1996 = vshll.u32 %v1521, 16
    %v1998 = vor.u32 %v1995, %v1996
    %v1999 = vrot.slane %v1995, 4
    %v2001 = vshrl.u32 %v1522, 16
    %v2003 = vrot.slane %v2001, 7
    %v2004 = vshll.u32 %v1522, 16
    %v2006 = vor.u32 %v2003, %v2004
    %v2007 = vsel %vm1532, %v1999, %v2006
    %v2008 = vrot.slane %v2003, 4
    %v2010 = vshrl.u32 %v1523, 16
    %v2012 = vrot.slane %v2010, 7
    %v2013 = vshll.u32 %v1523, 16
    %v2015 = vor.u32 %v2012, %v2013
    %v2016 = vrot.slane %v2012, 4
    %v2018 = vshrl.u32 %v1524, 16
    %v2020 = vrot.slane %v2018, 7
    %v2021 = vshll.u32 %v1524, 16
    %v2023 = vor.u32 %v2020, %v2021
    %v2024 = vsel %vm1532, %v2016, %v2023
    %v2025 = vrot.slane %v2020, 4
    %v2027 = vshrl.u32 %v1525, 16
    %v2029 = vrot.slane %v2027, 7
    %v2030 = vshll.u32 %v1525, 16
    %v2032 = vor.u32 %v2029, %v2030
    %v2033 = vrot.slane %v2029, 4
    %v2035 = vshrl.u32 %v1526, 16
    %v2037 = vrot.slane %v2035, 7
    %v2038 = vshll.u32 %v1526, 16
    %v2040 = vor.u32 %v2037, %v2038
    %v2041 = vsel %vm1532, %v2033, %v2040
    %v2042 = vrot.slane %v2037, 4
    %v2044 = vshrl.u32 %v1527, 16
    %v2046 = vrot.slane %v2044, 7
    %v2047 = vshll.u32 %v1527, 16
    %v2049 = vor.u32 %v2046, %v2047
    %v2050 = vrot.slane %v2046, 4
    %v2052 = vshrl.u32 %v1528, 16
    %v2054 = vrot.slane %v2052, 7
    %v2055 = vshll.u32 %v1528, 16
    %v2057 = vor.u32 %v2054, %v2055
    %v2058 = vsel %vm1532, %v2050, %v2057
    %v2059 = vrot.slane %v2054, 4
    %v2061 = vshrl.u32 %v1529, 16
    %v2063 = vrot.slane %v2061, 7
    %v2064 = vshll.u32 %v1529, 16
    %v2066 = vor.u32 %v2063, %v2064
    %v2067 = vrot.slane %v2063, 4
    %v2069 = vshrl.u32 %v1530, 16
    %v2071 = vrot.slane %v2069, 7
    %v2072 = vshll.u32 %v1530, 16
    %v2074 = vor.u32 %v2071, %v2072
    %v2075 = vsel %vm1532, %v2067, %v2074
    %v2076 = vrot.slane %v2071, 4
    %vm2173 = vcmask 125952
    %vm2174 = vmand %vm2173, %vm1273
    %v2175 = vld [vmem:[%s1173] sm:$0xf]
    %v2176 = vsel %vm2174, %v1539, %v2175
    %2177 = vst [vmem:[%s1173] sm:$0xf] %v2176
    %2178 = vst.msk [vmem:[%s1173 + $0x4] sm:$0xf] %vm1158, %v1548
    %v2179 = vld [vmem:[%s1173 + $0x8] sm:$0x1]
    %v2180 = vsel %vm1176, %v1549, %v2179
    %2181 = vst [vmem:[%s1173 + $0x8] sm:$0x1] %v2180
    %v2182 = vld [vmem:[%s1173 + $0xc] sm:$0xf]
    %v2183 = vsel %vm2174, %v1556, %v2182
    %2184 = vst [vmem:[%s1173 + $0xc] sm:$0xf] %v2183
    %2185 = vst.msk [vmem:[%s1173 + $0x10] sm:$0xf] %vm1158, %v1565
    %v2186 = vld [vmem:[%s1173 + $0x14] sm:$0x1]
    %v2187 = vsel %vm1176, %v1566, %v2186
    %2188 = vst [vmem:[%s1173 + $0x14] sm:$0x1] %v2187
    %v2189 = vld [vmem:[%s1173 + $0x18] sm:$0xf]
    %v2190 = vsel %vm2174, %v1573, %v2189
    %2191 = vst [vmem:[%s1173 + $0x18] sm:$0xf] %v2190
    %2192 = vst.msk [vmem:[%s1173 + $0x1c] sm:$0xf] %vm1158, %v1582
    %v2193 = vld [vmem:[%s1173 + $0x20] sm:$0x1]
    %v2194 = vsel %vm1176, %v1583, %v2193
    %2195 = vst [vmem:[%s1173 + $0x20] sm:$0x1] %v2194
    %v2196 = vld [vmem:[%s1173 + $0x24] sm:$0xf]
    %v2197 = vsel %vm2174, %v1590, %v2196
    %2198 = vst [vmem:[%s1173 + $0x24] sm:$0xf] %v2197
    %2199 = vst.msk [vmem:[%s1173 + $0x28] sm:$0xf] %vm1158, %v1599
    %v2200 = vld [vmem:[%s1173 + $0x2c] sm:$0x1]
    %v2201 = vsel %vm1176, %v1600, %v2200
    %2202 = vst [vmem:[%s1173 + $0x2c] sm:$0x1] %v2201
    %v2203 = vld [vmem:[%s1173 + $0x30] sm:$0xf]
    %v2204 = vsel %vm2174, %v1607, %v2203
    %2205 = vst [vmem:[%s1173 + $0x30] sm:$0xf] %v2204
    %2206 = vst.msk [vmem:[%s1173 + $0x34] sm:$0xf] %vm1158, %v1616
    %v2207 = vld [vmem:[%s1173 + $0x38] sm:$0x1]
    %v2208 = vsel %vm1176, %v1617, %v2207
    %2209 = vst [vmem:[%s1173 + $0x38] sm:$0x1] %v2208
    %v2210 = vld [vmem:[%s1173 + $0x3c] sm:$0xf]
    %v2211 = vsel %vm2174, %v1624, %v2210
    %2212 = vst [vmem:[%s1173 + $0x3c] sm:$0xf] %v2211
    %2213 = vst.msk [vmem:[%s1173 + $0x40] sm:$0xf] %vm1158, %v1633
    %v2214 = vld [vmem:[%s1173 + $0x44] sm:$0x1]
    %v2215 = vsel %vm1176, %v1634, %v2214
    %2216 = vst [vmem:[%s1173 + $0x44] sm:$0x1] %v2215
    %v2217 = vld [vmem:[%s1173 + $0x48] sm:$0xf]
    %v2218 = vsel %vm2174, %v1641, %v2217
    %2219 = vst [vmem:[%s1173 + $0x48] sm:$0xf] %v2218
    %2220 = vst.msk [vmem:[%s1173 + $0x4c] sm:$0xf] %vm1158, %v1650
    %v2221 = vld [vmem:[%s1173 + $0x50] sm:$0x1]
    %v2222 = vsel %vm1176, %v1651, %v2221
    %2223 = vst [vmem:[%s1173 + $0x50] sm:$0x1] %v2222
    %v2224 = vld [vmem:[%s1173 + $0x54] sm:$0xf]
    %v2225 = vsel %vm2174, %v1658, %v2224
    %2226 = vst [vmem:[%s1173 + $0x54] sm:$0xf] %v2225
    %2227 = vst.msk [vmem:[%s1173 + $0x58] sm:$0xf] %vm1158, %v1667
    %v2228 = vld [vmem:[%s1173 + $0x5c] sm:$0x1]
    %v2229 = vsel %vm1176, %v1668, %v2228
    %2230 = vst [vmem:[%s1173 + $0x5c] sm:$0x1] %v2229
    %v2231 = vld [vmem:[%s1173 + $0x60] sm:$0xf]
    %v2232 = vsel %vm2174, %v1675, %v2231
    %2233 = vst [vmem:[%s1173 + $0x60] sm:$0xf] %v2232
    %2234 = vst.msk [vmem:[%s1173 + $0x64] sm:$0xf] %vm1158, %v1684
    %v2235 = vld [vmem:[%s1173 + $0x68] sm:$0x1]
    %v2236 = vsel %vm1176, %v1685, %v2235
    %2237 = vst [vmem:[%s1173 + $0x68] sm:$0x1] %v2236
    %v2238 = vld [vmem:[%s1173 + $0x6c] sm:$0xf]
    %v2239 = vsel %vm2174, %v1692, %v2238
    %2240 = vst [vmem:[%s1173 + $0x6c] sm:$0xf] %v2239
    %2241 = vst.msk [vmem:[%s1173 + $0x70] sm:$0xf] %vm1158, %v1701
    %v2242 = vld [vmem:[%s1173 + $0x74] sm:$0x1]
    %v2243 = vsel %vm1176, %v1702, %v2242
    %2244 = vst [vmem:[%s1173 + $0x74] sm:$0x1] %v2243
    %v2245 = vld [vmem:[%s1173 + $0x78] sm:$0xf]
    %v2246 = vsel %vm2174, %v1709, %v2245
    %2247 = vst [vmem:[%s1173 + $0x78] sm:$0xf] %v2246
    %2248 = vst.msk [vmem:[%s1173 + $0x7c] sm:$0xf] %vm1158, %v1718
    %v2249 = vld [vmem:[%s1173 + $0x80] sm:$0x1]
    %v2250 = vsel %vm1176, %v1719, %v2249
    %2251 = vst [vmem:[%s1173 + $0x80] sm:$0x1] %v2250
    %v2252 = vld [vmem:[%s1173 + $0x84] sm:$0xf]
    %v2253 = vsel %vm2174, %v1726, %v2252
    %2254 = vst [vmem:[%s1173 + $0x84] sm:$0xf] %v2253
    %2255 = vst.msk [vmem:[%s1173 + $0x88] sm:$0xf] %vm1158, %v1735
    %v2256 = vld [vmem:[%s1173 + $0x8c] sm:$0x1]
    %v2257 = vsel %vm1176, %v1736, %v2256
    %2258 = vst [vmem:[%s1173 + $0x8c] sm:$0x1] %v2257
    %v2259 = vld [vmem:[%s1173 + $0x90] sm:$0xf]
    %v2260 = vsel %vm2174, %v1743, %v2259
    %2261 = vst [vmem:[%s1173 + $0x90] sm:$0xf] %v2260
    %2262 = vst.msk [vmem:[%s1173 + $0x94] sm:$0xf] %vm1158, %v1752
    %v2263 = vld [vmem:[%s1173 + $0x98] sm:$0x1]
    %v2264 = vsel %vm1176, %v1753, %v2263
    %2265 = vst [vmem:[%s1173 + $0x98] sm:$0x1] %v2264
    %v2266 = vld [vmem:[%s1173 + $0x9c] sm:$0xf]
    %v2267 = vsel %vm2174, %v1760, %v2266
    %2268 = vst [vmem:[%s1173 + $0x9c] sm:$0xf] %v2267
    %2269 = vst.msk [vmem:[%s1173 + $0xa0] sm:$0xf] %vm1158, %v1769
    %v2270 = vld [vmem:[%s1173 + $0xa4] sm:$0x1]
    %v2271 = vsel %vm1176, %v1770, %v2270
    %2272 = vst [vmem:[%s1173 + $0xa4] sm:$0x1] %v2271
    %v2273 = vld [vmem:[%s1173 + $0xa8] sm:$0xf]
    %v2274 = vsel %vm2174, %v1777, %v2273
    %2275 = vst [vmem:[%s1173 + $0xa8] sm:$0xf] %v2274
    %2276 = vst.msk [vmem:[%s1173 + $0xac] sm:$0xf] %vm1158, %v1786
    %v2277 = vld [vmem:[%s1173 + $0xb0] sm:$0x1]
    %v2278 = vsel %vm1176, %v1787, %v2277
    %2279 = vst [vmem:[%s1173 + $0xb0] sm:$0x1] %v2278
    %v2280 = vld [vmem:[%s1173 + $0xb4] sm:$0xf]
    %v2281 = vsel %vm2174, %v1794, %v2280
    %2282 = vst [vmem:[%s1173 + $0xb4] sm:$0xf] %v2281
    %2283 = vst.msk [vmem:[%s1173 + $0xb8] sm:$0xf] %vm1158, %v1803
    %v2284 = vld [vmem:[%s1173 + $0xbc] sm:$0x1]
    %v2285 = vsel %vm1176, %v1804, %v2284
    %2286 = vst [vmem:[%s1173 + $0xbc] sm:$0x1] %v2285
    %v2287 = vld [vmem:[%s1173 + $0xd8] sm:$0xf]
    %v2288 = vsel %vm2174, %v1811, %v2287
    %2289 = vst [vmem:[%s1173 + $0xd8] sm:$0xf] %v2288
    %2290 = vst.msk [vmem:[%s1173 + $0xdc] sm:$0xf] %vm1158, %v1820
    %v2291 = vld [vmem:[%s1173 + $0xe0] sm:$0x1]
    %v2292 = vsel %vm1176, %v1821, %v2291
    %2293 = vst [vmem:[%s1173 + $0xe0] sm:$0x1] %v2292
    %v2294 = vld [vmem:[%s1173 + $0xe4] sm:$0xf]
    %v2295 = vsel %vm2174, %v1828, %v2294
    %2296 = vst [vmem:[%s1173 + $0xe4] sm:$0xf] %v2295
    %2297 = vst.msk [vmem:[%s1173 + $0xe8] sm:$0xf] %vm1158, %v1837
    %v2298 = vld [vmem:[%s1173 + $0xec] sm:$0x1]
    %v2299 = vsel %vm1176, %v1838, %v2298
    %2300 = vst [vmem:[%s1173 + $0xec] sm:$0x1] %v2299
    %v2301 = vld [vmem:[%s1173 + $0xf0] sm:$0xf]
    %v2302 = vsel %vm2174, %v1845, %v2301
    %2303 = vst [vmem:[%s1173 + $0xf0] sm:$0xf] %v2302
    %2304 = vst.msk [vmem:[%s1173 + $0xf4] sm:$0xf] %vm1158, %v1854
    %v2305 = vld [vmem:[%s1173 + $0xf8] sm:$0x1]
    %v2306 = vsel %vm1176, %v1855, %v2305
    %2307 = vst [vmem:[%s1173 + $0xf8] sm:$0x1] %v2306
    %v2308 = vld [vmem:[%s1173 + $0xfc] sm:$0xf]
    %v2309 = vsel %vm2174, %v1862, %v2308
    %2310 = vst [vmem:[%s1173 + $0xfc] sm:$0xf] %v2309
    %2311 = vst.msk [vmem:[%s1173 + $0x100] sm:$0xf] %vm1158, %v1871
    %v2312 = vld [vmem:[%s1173 + $0x104] sm:$0x1]
    %v2313 = vsel %vm1176, %v1872, %v2312
    %2314 = vst [vmem:[%s1173 + $0x104] sm:$0x1] %v2313
    %v2315 = vld [vmem:[%s1173 + $0x108] sm:$0xf]
    %v2316 = vsel %vm2174, %v1879, %v2315
    %2317 = vst [vmem:[%s1173 + $0x108] sm:$0xf] %v2316
    %2318 = vst.msk [vmem:[%s1173 + $0x10c] sm:$0xf] %vm1158, %v1888
    %v2319 = vld [vmem:[%s1173 + $0x110] sm:$0x1]
    %v2320 = vsel %vm1176, %v1889, %v2319
    %2321 = vst [vmem:[%s1173 + $0x110] sm:$0x1] %v2320
    %v2322 = vld [vmem:[%s1173 + $0x114] sm:$0xf]
    %v2323 = vsel %vm2174, %v1896, %v2322
    %2324 = vst [vmem:[%s1173 + $0x114] sm:$0xf] %v2323
    %2325 = vst.msk [vmem:[%s1173 + $0x118] sm:$0xf] %vm1158, %v1905
    %v2326 = vld [vmem:[%s1173 + $0x11c] sm:$0x1]
    %v2327 = vsel %vm1176, %v1906, %v2326
    %2328 = vst [vmem:[%s1173 + $0x11c] sm:$0x1] %v2327
    %v2329 = vld [vmem:[%s1173 + $0x120] sm:$0xf]
    %v2330 = vsel %vm2174, %v1913, %v2329
    %2331 = vst [vmem:[%s1173 + $0x120] sm:$0xf] %v2330
    %2332 = vst.msk [vmem:[%s1173 + $0x124] sm:$0xf] %vm1158, %v1922
    %v2333 = vld [vmem:[%s1173 + $0x128] sm:$0x1]
    %v2334 = vsel %vm1176, %v1923, %v2333
    %2335 = vst [vmem:[%s1173 + $0x128] sm:$0x1] %v2334
    %v2336 = vld [vmem:[%s1173 + $0x12c] sm:$0xf]
    %v2337 = vsel %vm2174, %v1930, %v2336
    %2338 = vst [vmem:[%s1173 + $0x12c] sm:$0xf] %v2337
    %2339 = vst.msk [vmem:[%s1173 + $0x130] sm:$0xf] %vm1158, %v1939
    %v2340 = vld [vmem:[%s1173 + $0x134] sm:$0x1]
    %v2341 = vsel %vm1176, %v1940, %v2340
    %2342 = vst [vmem:[%s1173 + $0x134] sm:$0x1] %v2341
    %v2343 = vld [vmem:[%s1173 + $0x138] sm:$0xf]
    %v2344 = vsel %vm2174, %v1947, %v2343
    %2345 = vst [vmem:[%s1173 + $0x138] sm:$0xf] %v2344
    %2346 = vst.msk [vmem:[%s1173 + $0x13c] sm:$0xf] %vm1158, %v1956
    %v2347 = vld [vmem:[%s1173 + $0x140] sm:$0x1]
    %v2348 = vsel %vm1176, %v1957, %v2347
    %2349 = vst [vmem:[%s1173 + $0x140] sm:$0x1] %v2348
    %v2350 = vld [vmem:[%s1173 + $0x144] sm:$0xf]
    %v2351 = vsel %vm2174, %v1964, %v2350
    %2352 = vst [vmem:[%s1173 + $0x144] sm:$0xf] %v2351
    %2353 = vst.msk [vmem:[%s1173 + $0x148] sm:$0xf] %vm1158, %v1973
    %v2354 = vld [vmem:[%s1173 + $0x14c] sm:$0x1]
    %v2355 = vsel %vm1176, %v1974, %v2354
    %2356 = vst [vmem:[%s1173 + $0x14c] sm:$0x1] %v2355
    %v2357 = vld [vmem:[%s1173 + $0x150] sm:$0xf]
    %v2358 = vsel %vm2174, %v1981, %v2357
    %2359 = vst [vmem:[%s1173 + $0x150] sm:$0xf] %v2358
    %2360 = vst.msk [vmem:[%s1173 + $0x154] sm:$0xf] %vm1158, %v1990
    %v2361 = vld [vmem:[%s1173 + $0x158] sm:$0x1]
    %v2362 = vsel %vm1176, %v1991, %v2361
    %2363 = vst [vmem:[%s1173 + $0x158] sm:$0x1] %v2362
    %v2364 = vld [vmem:[%s1173 + $0x15c] sm:$0xf]
    %v2365 = vsel %vm2174, %v1998, %v2364
    %2366 = vst [vmem:[%s1173 + $0x15c] sm:$0xf] %v2365
    %2367 = vst.msk [vmem:[%s1173 + $0x160] sm:$0xf] %vm1158, %v2007
    %v2368 = vld [vmem:[%s1173 + $0x164] sm:$0x1]
    %v2369 = vsel %vm1176, %v2008, %v2368
    %2370 = vst [vmem:[%s1173 + $0x164] sm:$0x1] %v2369
    %v2371 = vld [vmem:[%s1173 + $0x168] sm:$0xf]
    %v2372 = vsel %vm2174, %v2015, %v2371
    %2373 = vst [vmem:[%s1173 + $0x168] sm:$0xf] %v2372
    %2374 = vst.msk [vmem:[%s1173 + $0x16c] sm:$0xf] %vm1158, %v2024
    %v2375 = vld [vmem:[%s1173 + $0x170] sm:$0x1]
    %v2376 = vsel %vm1176, %v2025, %v2375
    %2377 = vst [vmem:[%s1173 + $0x170] sm:$0x1] %v2376
    %v2378 = vld [vmem:[%s1173 + $0x174] sm:$0xf]
    %v2379 = vsel %vm2174, %v2032, %v2378
    %2380 = vst [vmem:[%s1173 + $0x174] sm:$0xf] %v2379
    %2381 = vst.msk [vmem:[%s1173 + $0x178] sm:$0xf] %vm1158, %v2041
    %v2382 = vld [vmem:[%s1173 + $0x17c] sm:$0x1]
    %v2383 = vsel %vm1176, %v2042, %v2382
    %2384 = vst [vmem:[%s1173 + $0x17c] sm:$0x1] %v2383
    %v2385 = vld [vmem:[%s1173 + $0x180] sm:$0xf]
    %v2386 = vsel %vm2174, %v2049, %v2385
    %2387 = vst [vmem:[%s1173 + $0x180] sm:$0xf] %v2386
    %2388 = vst.msk [vmem:[%s1173 + $0x184] sm:$0xf] %vm1158, %v2058
    %v2389 = vld [vmem:[%s1173 + $0x188] sm:$0x1]
    %v2390 = vsel %vm1176, %v2059, %v2389
    %2391 = vst [vmem:[%s1173 + $0x188] sm:$0x1] %v2390
    %v2392 = vld [vmem:[%s1173 + $0x18c] sm:$0xf]
    %v2393 = vsel %vm2174, %v2066, %v2392
    %2394 = vst [vmem:[%s1173 + $0x18c] sm:$0xf] %v2393
    %2395 = vst.msk [vmem:[%s1173 + $0x190] sm:$0xf] %vm1158, %v2075
    %v2396 = vld [vmem:[%s1173 + $0x194] sm:$0x1]
    %v2397 = vsel %vm1176, %v2076, %v2396
    %2398 = vst [vmem:[%s1173 + $0x194] sm:$0x1] %v2397
    %v2399 = vld [vmem:[#allocation6] sm:$0xf]
    %v2400 = vld [vmem:[#allocation6 + $0x4] sm:$0xf]
    %v2401 = vld [vmem:[#allocation6 + $0x8] sm:$0xf]
    %v2402 = vld [vmem:[#allocation6 + $0xc] sm:$0xf]
    %v2403 = vld [vmem:[#allocation6 + $0x10] sm:$0xf]
    %v2404 = vld [vmem:[#allocation6 + $0x14] sm:$0xf]
    %v2405 = vld [vmem:[#allocation6 + $0x18] sm:$0xf]
    %v2406 = vld [vmem:[#allocation6 + $0x1c] sm:$0xf]
    %v2407 = vld [vmem:[#allocation6 + $0x20] sm:$0xf]
    %v2408 = vld [vmem:[#allocation6 + $0x24] sm:$0xf]
    %v2409 = vld [vmem:[#allocation6 + $0x28] sm:$0xf]
    %v2410 = vld [vmem:[#allocation6 + $0x2c] sm:$0xf]
    %v2411 = vld [vmem:[#allocation6 + $0x30] sm:$0xf]
    %v2412 = vld [vmem:[#allocation6 + $0x34] sm:$0xf]
    %v2413 = vld [vmem:[#allocation6 + $0x38] sm:$0xf]
    %v2414 = vld [vmem:[#allocation6 + $0x3c] sm:$0xf]
    %v2415 = vld [vmem:[#allocation6 + $0x40] sm:$0xf]
    %v2416 = vld [vmem:[#allocation6 + $0x44] sm:$0xf]
    %v2417 = vld [vmem:[#allocation2] sm:$0xf]
    %v2418 = vld [vmem:[#allocation2 + $0x4] sm:$0xf]
    %v2419 = vld [vmem:[#allocation2 + $0xc] sm:$0xf]
    %v2420 = vld [vmem:[#allocation2 + $0x10] sm:$0xf]
    %v2421 = vld [vmem:[#allocation2 + $0x18] sm:$0xf]
    %v2422 = vld [vmem:[#allocation2 + $0x1c] sm:$0xf]
    %v2423 = vld [vmem:[#allocation2 + $0x24] sm:$0xf]
    %v2424 = vld [vmem:[#allocation2 + $0x28] sm:$0xf]
    %v2425 = vld [vmem:[#allocation2 + $0x30] sm:$0xf]
    %v2426 = vld [vmem:[#allocation2 + $0x34] sm:$0xf]
    %v2427 = vld [vmem:[#allocation2 + $0x3c] sm:$0xf]
    %v2428 = vld [vmem:[#allocation2 + $0x40] sm:$0xf]
    %v2429 = vld [vmem:[#allocation2 + $0x48] sm:$0xf]
    %v2430 = vld [vmem:[#allocation2 + $0x4c] sm:$0xf]
    %v2431 = vld [vmem:[#allocation2 + $0x54] sm:$0xf]
    %v2432 = vld [vmem:[#allocation2 + $0x58] sm:$0xf]
    %v2433 = vld [vmem:[#allocation2 + $0x60] sm:$0xf]
    %v2434 = vld [vmem:[#allocation2 + $0x64] sm:$0xf]
    %v2435 = vld [vmem:[#allocation2 + $0x6c] sm:$0xf]
    %v2436 = vld [vmem:[#allocation2 + $0x70] sm:$0xf]
    %v2437 = vld [vmem:[#allocation2 + $0x78] sm:$0xf]
    %v2438 = vld [vmem:[#allocation2 + $0x7c] sm:$0xf]
    %v2439 = vld [vmem:[#allocation2 + $0x84] sm:$0xf]
    %v2440 = vld [vmem:[#allocation2 + $0x88] sm:$0xf]
    %v2441 = vld [vmem:[#allocation2 + $0x90] sm:$0xf]
    %v2442 = vld [vmem:[#allocation2 + $0x94] sm:$0xf]
    %v2443 = vld [vmem:[#allocation2 + $0x9c] sm:$0xf]
    %v2444 = vld [vmem:[#allocation2 + $0xa0] sm:$0xf]
    %v2445 = vld [vmem:[#allocation2 + $0xa8] sm:$0xf]
    %v2446 = vld [vmem:[#allocation2 + $0xac] sm:$0xf]
    %v2447 = vld [vmem:[#allocation2 + $0xb4] sm:$0xf]
    %v2448 = vld [vmem:[#allocation2 + $0xb8] sm:$0xf]
    %v2449 = vld [vmem:[#allocation2 + $0xd8] sm:$0xf]
    %v2450 = vld [vmem:[#allocation2 + $0xdc] sm:$0xf]
    %v2451 = vld [vmem:[#allocation2 + $0xe4] sm:$0xf]
    %v2452 = vld [vmem:[#allocation2 + $0xe8] sm:$0xf]
    %v2453 = vld [vmem:[#allocation2 + $0xf0] sm:$0xf]
    %v2454 = vld [vmem:[#allocation2 + $0xf4] sm:$0xf]
    %v2455 = vld [vmem:[#allocation2 + $0xfc] sm:$0xf]
    %v2456 = vld [vmem:[#allocation2 + $0x100] sm:$0xf]
    %v2457 = vld [vmem:[#allocation2 + $0x108] sm:$0xf]
    %v2458 = vld [vmem:[#allocation2 + $0x10c] sm:$0xf]
    %v2459 = vld [vmem:[#allocation2 + $0x114] sm:$0xf]
    %v2460 = vld [vmem:[#allocation2 + $0x118] sm:$0xf]
    %v2461 = vld [vmem:[#allocation2 + $0x120] sm:$0xf]
    %v2462 = vld [vmem:[#allocation2 + $0x124] sm:$0xf]
    %v2463 = vld [vmem:[#allocation2 + $0x12c] sm:$0xf]
    %v2464 = vld [vmem:[#allocation2 + $0x130] sm:$0xf]
    %v2465 = vld [vmem:[#allocation2 + $0x138] sm:$0xf]
    %v2466 = vld [vmem:[#allocation2 + $0x13c] sm:$0xf]
    %v2467 = vld [vmem:[#allocation2 + $0x144] sm:$0xf]
    %v2468 = vld [vmem:[#allocation2 + $0x148] sm:$0xf]
    %v2469 = vld [vmem:[#allocation2 + $0x150] sm:$0xf]
    %v2470 = vld [vmem:[#allocation2 + $0x154] sm:$0xf]
    %v2471 = vld [vmem:[#allocation2 + $0x15c] sm:$0xf]
    %v2472 = vld [vmem:[#allocation2 + $0x160] sm:$0xf]
    %v2473 = vld [vmem:[#allocation2 + $0x168] sm:$0xf]
    %v2474 = vld [vmem:[#allocation2 + $0x16c] sm:$0xf]
    %v2475 = vld [vmem:[#allocation2 + $0x174] sm:$0xf]
    %v2476 = vld [vmem:[#allocation2 + $0x178] sm:$0xf]
    %v2477 = vld [vmem:[#allocation2 + $0x180] sm:$0xf]
    %v2478 = vld [vmem:[#allocation2 + $0x184] sm:$0xf]
    %v2479 = vld [vmem:[#allocation2 + $0x18c] sm:$0xf]
    %v2480 = vld [vmem:[#allocation2 + $0x190] sm:$0xf]
    %v2481 = vld [vmem:[#allocation2 + $0x8] sm:$0x1]
    %v2482 = vld [vmem:[#allocation2 + $0x14] sm:$0x1]
    %v2483 = vld [vmem:[#allocation2 + $0x20] sm:$0x1]
    %v2484 = vld [vmem:[#allocation2 + $0x2c] sm:$0x1]
    %v2485 = vld [vmem:[#allocation2 + $0x38] sm:$0x1]
    %v2486 = vld [vmem:[#allocation2 + $0x44] sm:$0x1]
    %v2487 = vld [vmem:[#allocation2 + $0x50] sm:$0x1]
    %v2488 = vld [vmem:[#allocation2 + $0x5c] sm:$0x1]
    %v2489 = vld [vmem:[#allocation2 + $0x68] sm:$0x1]
    %v2490 = vld [vmem:[#allocation2 + $0x74] sm:$0x1]
    %v2491 = vld [vmem:[#allocation2 + $0x80] sm:$0x1]
    %v2492 = vld [vmem:[#allocation2 + $0x8c] sm:$0x1]
    %v2493 = vld [vmem:[#allocation2 + $0x98] sm:$0x1]
    %v2494 = vld [vmem:[#allocation2 + $0xa4] sm:$0x1]
    %v2495 = vld [vmem:[#allocation2 + $0xb0] sm:$0x1]
    %v2496 = vld [vmem:[#allocation2 + $0xbc] sm:$0x1]
    %v2497 = vld [vmem:[#allocation2 + $0xe0] sm:$0x1]
    %v2498 = vld [vmem:[#allocation2 + $0xec] sm:$0x1]
    %v2499 = vld [vmem:[#allocation2 + $0xf8] sm:$0x1]
    %v2500 = vld [vmem:[#allocation2 + $0x104] sm:$0x1]
    %v2501 = vld [vmem:[#allocation2 + $0x110] sm:$0x1]
    %v2502 = vld [vmem:[#allocation2 + $0x11c] sm:$0x1]
    %v2503 = vld [vmem:[#allocation2 + $0x128] sm:$0x1]
    %v2504 = vld [vmem:[#allocation2 + $0x134] sm:$0x1]
    %v2505 = vld [vmem:[#allocation2 + $0x140] sm:$0x1]
    %v2506 = vld [vmem:[#allocation2 + $0x14c] sm:$0x1]
    %v2507 = vld [vmem:[#allocation2 + $0x158] sm:$0x1]
    %v2508 = vld [vmem:[#allocation2 + $0x164] sm:$0x1]
    %v2509 = vld [vmem:[#allocation2 + $0x170] sm:$0x1]
    %v2510 = vld [vmem:[#allocation2 + $0x17c] sm:$0x1]
    %v2511 = vld [vmem:[#allocation2 + $0x188] sm:$0x1]
    %v2512 = vld [vmem:[#allocation2 + $0x194] sm:$0x1]
    %vm2513 = vsmask.f32 3328
    %vm2514 = vsmask.f32 7440
    %vm2515 = vmor %vm2513, %vm2514
    %v2517 = vshrl.u32 %v2417, 16
    %v2519 = vrot.slane %v2517, 4
    %v2520 = vshll.u32 %v2417, 16
    %v2522 = vrot.slane %v2520, 5
    %v2523 = vor.u32 %v2519, %v2522
    %v2524 = vrot.slane %v2523, 4
    %v2526 = vshll.u32 %v2418, 16
    %v2528 = vrot.slane %v2526, 5
    %v2529 = vsel %vm2515, %v2524, %v2528
    %v2530 = vshrl.u32 %v2418, 16
    %v2532 = vrot.slane %v2530, 4
    %v2533 = vor.u32 %v2532, %v2528
    %v2534 = vrot.slane %v2533, 4
    %v2536 = vshll.u32 %v2481, 16
    %v2538 = vrot.slane %v2536, 5
    %v2539 = vsel %vm2515, %v2534, %v2538
    %v2541 = vshrl.u32 %v2419, 16
    %v2543 = vrot.slane %v2541, 4
    %v2544 = vshll.u32 %v2419, 16
    %v2546 = vrot.slane %v2544, 5
    %v2547 = vor.u32 %v2543, %v2546
    %v2548 = vrot.slane %v2547, 4
    %v2550 = vshll.u32 %v2420, 16
    %v2552 = vrot.slane %v2550, 5
    %v2553 = vsel %vm2515, %v2548, %v2552
    %v2554 = vshrl.u32 %v2420, 16
    %v2556 = vrot.slane %v2554, 4
    %v2557 = vor.u32 %v2556, %v2552
    %v2558 = vrot.slane %v2557, 4
    %v2560 = vshll.u32 %v2482, 16
    %v2562 = vrot.slane %v2560, 5
    %v2563 = vsel %vm2515, %v2558, %v2562
    %v2565 = vshrl.u32 %v2421, 16
    %v2567 = vrot.slane %v2565, 4
    %v2568 = vshll.u32 %v2421, 16
    %v2570 = vrot.slane %v2568, 5
    %v2571 = vor.u32 %v2567, %v2570
    %v2572 = vrot.slane %v2571, 4
    %v2574 = vshll.u32 %v2422, 16
    %v2576 = vrot.slane %v2574, 5
    %v2577 = vsel %vm2515, %v2572, %v2576
    %v2578 = vshrl.u32 %v2422, 16
    %v2580 = vrot.slane %v2578, 4
    %v2581 = vor.u32 %v2580, %v2576
    %v2582 = vrot.slane %v2581, 4
    %v2584 = vshll.u32 %v2483, 16
    %v2586 = vrot.slane %v2584, 5
    %v2587 = vsel %vm2515, %v2582, %v2586
    %v2589 = vshrl.u32 %v2423, 16
    %v2591 = vrot.slane %v2589, 4
    %v2592 = vshll.u32 %v2423, 16
    %v2594 = vrot.slane %v2592, 5
    %v2595 = vor.u32 %v2591, %v2594
    %v2596 = vrot.slane %v2595, 4
    %v2598 = vshll.u32 %v2424, 16
    %v2600 = vrot.slane %v2598, 5
    %v2601 = vsel %vm2515, %v2596, %v2600
    %v2602 = vshrl.u32 %v2424, 16
    %v2604 = vrot.slane %v2602, 4
    %v2605 = vor.u32 %v2604, %v2600
    %v2606 = vrot.slane %v2605, 4
    %v2608 = vshll.u32 %v2484, 16
    %v2610 = vrot.slane %v2608, 5
    %v2611 = vsel %vm2515, %v2606, %v2610
    %v2613 = vshrl.u32 %v2425, 16
    %v2615 = vrot.slane %v2613, 4
    %v2616 = vshll.u32 %v2425, 16
    %v2618 = vrot.slane %v2616, 5
    %v2619 = vor.u32 %v2615, %v2618
    %v2620 = vrot.slane %v2619, 4
    %v2622 = vshll.u32 %v2426, 16
    %v2624 = vrot.slane %v2622, 5
    %v2625 = vsel %vm2515, %v2620, %v2624
    %v2626 = vshrl.u32 %v2426, 16
    %v2628 = vrot.slane %v2626, 4
    %v2629 = vor.u32 %v2628, %v2624
    %v2630 = vrot.slane %v2629, 4
    %v2632 = vshll.u32 %v2485, 16
    %v2634 = vrot.slane %v2632, 5
    %v2635 = vsel %vm2515, %v2630, %v2634
    %v2637 = vshrl.u32 %v2427, 16
    %v2639 = vrot.slane %v2637, 4
    %v2640 = vshll.u32 %v2427, 16
    %v2642 = vrot.slane %v2640, 5
    %v2643 = vor.u32 %v2639, %v2642
    %v2644 = vrot.slane %v2643, 4
    %v2646 = vshll.u32 %v2428, 16
    %v2648 = vrot.slane %v2646, 5
    %v2649 = vsel %vm2515, %v2644, %v2648
    %v2650 = vshrl.u32 %v2428, 16
    %v2652 = vrot.slane %v2650, 4
    %v2653 = vor.u32 %v2652, %v2648
    %v2654 = vrot.slane %v2653, 4
    %v2656 = vshll.u32 %v2486, 16
    %v2658 = vrot.slane %v2656, 5
    %v2659 = vsel %vm2515, %v2654, %v2658
    %v2661 = vshrl.u32 %v2429, 16
    %v2663 = vrot.slane %v2661, 4
    %v2664 = vshll.u32 %v2429, 16
    %v2666 = vrot.slane %v2664, 5
    %v2667 = vor.u32 %v2663, %v2666
    %v2668 = vrot.slane %v2667, 4
    %v2670 = vshll.u32 %v2430, 16
    %v2672 = vrot.slane %v2670, 5
    %v2673 = vsel %vm2515, %v2668, %v2672
    %v2674 = vshrl.u32 %v2430, 16
    %v2676 = vrot.slane %v2674, 4
    %v2677 = vor.u32 %v2676, %v2672
    %v2678 = vrot.slane %v2677, 4
    %v2680 = vshll.u32 %v2487, 16
    %v2682 = vrot.slane %v2680, 5
    %v2683 = vsel %vm2515, %v2678, %v2682
    %v2685 = vshrl.u32 %v2431, 16
    %v2687 = vrot.slane %v2685, 4
    %v2688 = vshll.u32 %v2431, 16
    %v2690 = vrot.slane %v2688, 5
    %v2691 = vor.u32 %v2687, %v2690
    %v2692 = vrot.slane %v2691, 4
    %v2694 = vshll.u32 %v2432, 16
    %v2696 = vrot.slane %v2694, 5
    %v2697 = vsel %vm2515, %v2692, %v2696
    %v2698 = vshrl.u32 %v2432, 16
    %v2700 = vrot.slane %v2698, 4
    %v2701 = vor.u32 %v2700, %v2696
    %v2702 = vrot.slane %v2701, 4
    %v2704 = vshll.u32 %v2488, 16
    %v2706 = vrot.slane %v2704, 5
    %v2707 = vsel %vm2515, %v2702, %v2706
    %v2709 = vshrl.u32 %v2433, 16
    %v2711 = vrot.slane %v2709, 4
    %v2712 = vshll.u32 %v2433, 16
    %v2714 = vrot.slane %v2712, 5
    %v2715 = vor.u32 %v2711, %v2714
    %v2716 = vrot.slane %v2715, 4
    %v2718 = vshll.u32 %v2434, 16
    %v2720 = vrot.slane %v2718, 5
    %v2721 = vsel %vm2515, %v2716, %v2720
    %v2722 = vshrl.u32 %v2434, 16
    %v2724 = vrot.slane %v2722, 4
    %v2725 = vor.u32 %v2724, %v2720
    %v2726 = vrot.slane %v2725, 4
    %v2728 = vshll.u32 %v2489, 16
    %v2730 = vrot.slane %v2728, 5
    %v2731 = vsel %vm2515, %v2726, %v2730
    %v2733 = vshrl.u32 %v2435, 16
    %v2735 = vrot.slane %v2733, 4
    %v2736 = vshll.u32 %v2435, 16
    %v2738 = vrot.slane %v2736, 5
    %v2739 = vor.u32 %v2735, %v2738
    %v2740 = vrot.slane %v2739, 4
    %v2742 = vshll.u32 %v2436, 16
    %v2744 = vrot.slane %v2742, 5
    %v2745 = vsel %vm2515, %v2740, %v2744
    %v2746 = vshrl.u32 %v2436, 16
    %v2748 = vrot.slane %v2746, 4
    %v2749 = vor.u32 %v2748, %v2744
    %v2750 = vrot.slane %v2749, 4
    %v2752 = vshll.u32 %v2490, 16
    %v2754 = vrot.slane %v2752, 5
    %v2755 = vsel %vm2515, %v2750, %v2754
    %v2757 = vshrl.u32 %v2437, 16
    %v2759 = vrot.slane %v2757, 4
    %v2760 = vshll.u32 %v2437, 16
    %v2762 = vrot.slane %v2760, 5
    %v2763 = vor.u32 %v2759, %v2762
    %v2764 = vrot.slane %v2763, 4
    %v2766 = vshll.u32 %v2438, 16
    %v2768 = vrot.slane %v2766, 5
    %v2769 = vsel %vm2515, %v2764, %v2768
    %v2770 = vshrl.u32 %v2438, 16
    %v2772 = vrot.slane %v2770, 4
    %v2773 = vor.u32 %v2772, %v2768
    %v2774 = vrot.slane %v2773, 4
    %v2776 = vshll.u32 %v2491, 16
    %v2778 = vrot.slane %v2776, 5
    %v2779 = vsel %vm2515, %v2774, %v2778
    %v2781 = vshrl.u32 %v2439, 16
    %v2783 = vrot.slane %v2781, 4
    %v2784 = vshll.u32 %v2439, 16
    %v2786 = vrot.slane %v2784, 5
    %v2787 = vor.u32 %v2783, %v2786
    %v2788 = vrot.slane %v2787, 4
    %v2790 = vshll.u32 %v2440, 16
    %v2792 = vrot.slane %v2790, 5
    %v2793 = vsel %vm2515, %v2788, %v2792
    %v2794 = vshrl.u32 %v2440, 16
    %v2796 = vrot.slane %v2794, 4
    %v2797 = vor.u32 %v2796, %v2792
    %v2798 = vrot.slane %v2797, 4
    %v2800 = vshll.u32 %v2492, 16
    %v2802 = vrot.slane %v2800, 5
    %v2803 = vsel %vm2515, %v2798, %v2802
    %v2805 = vshrl.u32 %v2441, 16
    %v2807 = vrot.slane %v2805, 4
    %v2808 = vshll.u32 %v2441, 16
    %v2810 = vrot.slane %v2808, 5
    %v2811 = vor.u32 %v2807, %v2810
    %v2812 = vrot.slane %v2811, 4
    %v2814 = vshll.u32 %v2442, 16
    %v2816 = vrot.slane %v2814, 5
    %v2817 = vsel %vm2515, %v2812, %v2816
    %v2818 = vshrl.u32 %v2442, 16
    %v2820 = vrot.slane %v2818, 4
    %v2821 = vor.u32 %v2820, %v2816
    %v2822 = vrot.slane %v2821, 4
    %v2824 = vshll.u32 %v2493, 16
    %v2826 = vrot.slane %v2824, 5
    %v2827 = vsel %vm2515, %v2822, %v2826
    %v2829 = vshrl.u32 %v2443, 16
    %v2831 = vrot.slane %v2829, 4
    %v2832 = vshll.u32 %v2443, 16
    %v2834 = vrot.slane %v2832, 5
    %v2835 = vor.u32 %v2831, %v2834
    %v2836 = vrot.slane %v2835, 4
    %v2838 = vshll.u32 %v2444, 16
    %v2840 = vrot.slane %v2838, 5
    %v2841 = vsel %vm2515, %v2836, %v2840
    %v2842 = vshrl.u32 %v2444, 16
    %v2844 = vrot.slane %v2842, 4
    %v2845 = vor.u32 %v2844, %v2840
    %v2846 = vrot.slane %v2845, 4
    %v2848 = vshll.u32 %v2494, 16
    %v2850 = vrot.slane %v2848, 5
    %v2851 = vsel %vm2515, %v2846, %v2850
    %v2853 = vshrl.u32 %v2445, 16
    %v2855 = vrot.slane %v2853, 4
    %v2856 = vshll.u32 %v2445, 16
    %v2858 = vrot.slane %v2856, 5
    %v2859 = vor.u32 %v2855, %v2858
    %v2860 = vrot.slane %v2859, 4
    %v2862 = vshll.u32 %v2446, 16
    %v2864 = vrot.slane %v2862, 5
    %v2865 = vsel %vm2515, %v2860, %v2864
    %v2866 = vshrl.u32 %v2446, 16
    %v2868 = vrot.slane %v2866, 4
    %v2869 = vor.u32 %v2868, %v2864
    %v2870 = vrot.slane %v2869, 4
    %v2872 = vshll.u32 %v2495, 16
    %v2874 = vrot.slane %v2872, 5
    %v2875 = vsel %vm2515, %v2870, %v2874
    %v2877 = vshrl.u32 %v2447, 16
    %v2879 = vrot.slane %v2877, 4
    %v2880 = vshll.u32 %v2447, 16
    %v2882 = vrot.slane %v2880, 5
    %v2883 = vor.u32 %v2879, %v2882
    %v2884 = vrot.slane %v2883, 4
    %v2886 = vshll.u32 %v2448, 16
    %v2888 = vrot.slane %v2886, 5
    %v2889 = vsel %vm2515, %v2884, %v2888
    %v2890 = vshrl.u32 %v2448, 16
    %v2892 = vrot.slane %v2890, 4
    %v2893 = vor.u32 %v2892, %v2888
    %v2894 = vrot.slane %v2893, 4
    %v2896 = vshll.u32 %v2496, 16
    %v2898 = vrot.slane %v2896, 5
    %v2899 = vsel %vm2515, %v2894, %v2898
    %v2901 = vshrl.u32 %v2449, 16
    %v2903 = vrot.slane %v2901, 4
    %v2904 = vshll.u32 %v2449, 16
    %v2906 = vrot.slane %v2904, 5
    %v2907 = vor.u32 %v2903, %v2906
    %v2908 = vrot.slane %v2907, 4
    %v2910 = vshll.u32 %v2450, 16
    %v2912 = vrot.slane %v2910, 5
    %v2913 = vsel %vm2515, %v2908, %v2912
    %v2914 = vshrl.u32 %v2450, 16
    %v2916 = vrot.slane %v2914, 4
    %v2917 = vor.u32 %v2916, %v2912
    %v2918 = vrot.slane %v2917, 4
    %v2920 = vshll.u32 %v2497, 16
    %v2922 = vrot.slane %v2920, 5
    %v2923 = vsel %vm2515, %v2918, %v2922
    %v2925 = vshrl.u32 %v2451, 16
    %v2927 = vrot.slane %v2925, 4
    %v2928 = vshll.u32 %v2451, 16
    %v2930 = vrot.slane %v2928, 5
    %v2931 = vor.u32 %v2927, %v2930
    %v2932 = vrot.slane %v2931, 4
    %v2934 = vshll.u32 %v2452, 16
    %v2936 = vrot.slane %v2934, 5
    %v2937 = vsel %vm2515, %v2932, %v2936
    %v2938 = vshrl.u32 %v2452, 16
    %v2940 = vrot.slane %v2938, 4
    %v2941 = vor.u32 %v2940, %v2936
    %v2942 = vrot.slane %v2941, 4
    %v2944 = vshll.u32 %v2498, 16
    %v2946 = vrot.slane %v2944, 5
    %v2947 = vsel %vm2515, %v2942, %v2946
    %v2949 = vshrl.u32 %v2453, 16
    %v2951 = vrot.slane %v2949, 4
    %v2952 = vshll.u32 %v2453, 16
    %v2954 = vrot.slane %v2952, 5
    %v2955 = vor.u32 %v2951, %v2954
    %v2956 = vrot.slane %v2955, 4
    %v2958 = vshll.u32 %v2454, 16
    %v2960 = vrot.slane %v2958, 5
    %v2961 = vsel %vm2515, %v2956, %v2960
    %v2962 = vshrl.u32 %v2454, 16
    %v2964 = vrot.slane %v2962, 4
    %v2965 = vor.u32 %v2964, %v2960
    %v2966 = vrot.slane %v2965, 4
    %v2968 = vshll.u32 %v2499, 16
    %v2970 = vrot.slane %v2968, 5
    %v2971 = vsel %vm2515, %v2966, %v2970
    %v2973 = vshrl.u32 %v2455, 16
    %v2975 = vrot.slane %v2973, 4
    %v2976 = vshll.u32 %v2455, 16
    %v2978 = vrot.slane %v2976, 5
    %v2979 = vor.u32 %v2975, %v2978
    %v2980 = vrot.slane %v2979, 4
    %v2982 = vshll.u32 %v2456, 16
    %v2984 = vrot.slane %v2982, 5
    %v2985 = vsel %vm2515, %v2980, %v2984
    %v2986 = vshrl.u32 %v2456, 16
    %v2988 = vrot.slane %v2986, 4
    %v2989 = vor.u32 %v2988, %v2984
    %v2990 = vrot.slane %v2989, 4
    %v2992 = vshll.u32 %v2500, 16
    %v2994 = vrot.slane %v2992, 5
    %v2995 = vsel %vm2515, %v2990, %v2994
    %v2997 = vshrl.u32 %v2457, 16
    %v2999 = vrot.slane %v2997, 4
    %v3000 = vshll.u32 %v2457, 16
    %v3002 = vrot.slane %v3000, 5
    %v3003 = vor.u32 %v2999, %v3002
    %v3004 = vrot.slane %v3003, 4
    %v3006 = vshll.u32 %v2458, 16
    %v3008 = vrot.slane %v3006, 5
    %v3009 = vsel %vm2515, %v3004, %v3008
    %v3010 = vshrl.u32 %v2458, 16
    %v3012 = vrot.slane %v3010, 4
    %v3013 = vor.u32 %v3012, %v3008
    %v3014 = vrot.slane %v3013, 4
    %v3016 = vshll.u32 %v2501, 16
    %v3018 = vrot.slane %v3016, 5
    %v3019 = vsel %vm2515, %v3014, %v3018
    %v3021 = vshrl.u32 %v2459, 16
    %v3023 = vrot.slane %v3021, 4
    %v3024 = vshll.u32 %v2459, 16
    %v3026 = vrot.slane %v3024, 5
    %v3027 = vor.u32 %v3023, %v3026
    %v3028 = vrot.slane %v3027, 4
    %v3030 = vshll.u32 %v2460, 16
    %v3032 = vrot.slane %v3030, 5
    %v3033 = vsel %vm2515, %v3028, %v3032
    %v3034 = vshrl.u32 %v2460, 16
    %v3036 = vrot.slane %v3034, 4
    %v3037 = vor.u32 %v3036, %v3032
    %v3038 = vrot.slane %v3037, 4
    %v3040 = vshll.u32 %v2502, 16
    %v3042 = vrot.slane %v3040, 5
    %v3043 = vsel %vm2515, %v3038, %v3042
    %v3045 = vshrl.u32 %v2461, 16
    %v3047 = vrot.slane %v3045, 4
    %v3048 = vshll.u32 %v2461, 16
    %v3050 = vrot.slane %v3048, 5
    %v3051 = vor.u32 %v3047, %v3050
    %v3052 = vrot.slane %v3051, 4
    %v3054 = vshll.u32 %v2462, 16
    %v3056 = vrot.slane %v3054, 5
    %v3057 = vsel %vm2515, %v3052, %v3056
    %v3058 = vshrl.u32 %v2462, 16
    %v3060 = vrot.slane %v3058, 4
    %v3061 = vor.u32 %v3060, %v3056
    %v3062 = vrot.slane %v3061, 4
    %v3064 = vshll.u32 %v2503, 16
    %v3066 = vrot.slane %v3064, 5
    %v3067 = vsel %vm2515, %v3062, %v3066
    %v3069 = vshrl.u32 %v2463, 16
    %v3071 = vrot.slane %v3069, 4
    %v3072 = vshll.u32 %v2463, 16
    %v3074 = vrot.slane %v3072, 5
    %v3075 = vor.u32 %v3071, %v3074
    %v3076 = vrot.slane %v3075, 4
    %v3078 = vshll.u32 %v2464, 16
    %v3080 = vrot.slane %v3078, 5
    %v3081 = vsel %vm2515, %v3076, %v3080
    %v3082 = vshrl.u32 %v2464, 16
    %v3084 = vrot.slane %v3082, 4
    %v3085 = vor.u32 %v3084, %v3080
    %v3086 = vrot.slane %v3085, 4
    %v3088 = vshll.u32 %v2504, 16
    %v3090 = vrot.slane %v3088, 5
    %v3091 = vsel %vm2515, %v3086, %v3090
    %v3093 = vshrl.u32 %v2465, 16
    %v3095 = vrot.slane %v3093, 4
    %v3096 = vshll.u32 %v2465, 16
    %v3098 = vrot.slane %v3096, 5
    %v3099 = vor.u32 %v3095, %v3098
    %v3100 = vrot.slane %v3099, 4
    %v3102 = vshll.u32 %v2466, 16
    %v3104 = vrot.slane %v3102, 5
    %v3105 = vsel %vm2515, %v3100, %v3104
    %v3106 = vshrl.u32 %v2466, 16
    %v3108 = vrot.slane %v3106, 4
    %v3109 = vor.u32 %v3108, %v3104
    %v3110 = vrot.slane %v3109, 4
    %v3112 = vshll.u32 %v2505, 16
    %v3114 = vrot.slane %v3112, 5
    %v3115 = vsel %vm2515, %v3110, %v3114
    %v3117 = vshrl.u32 %v2467, 16
    %v3119 = vrot.slane %v3117, 4
    %v3120 = vshll.u32 %v2467, 16
    %v3122 = vrot.slane %v3120, 5
    %v3123 = vor.u32 %v3119, %v3122
    %v3124 = vrot.slane %v3123, 4
    %v3126 = vshll.u32 %v2468, 16
    %v3128 = vrot.slane %v3126, 5
    %v3129 = vsel %vm2515, %v3124, %v3128
    %v3130 = vshrl.u32 %v2468, 16
    %v3132 = vrot.slane %v3130, 4
    %v3133 = vor.u32 %v3132, %v3128
    %v3134 = vrot.slane %v3133, 4
    %v3136 = vshll.u32 %v2506, 16
    %v3138 = vrot.slane %v3136, 5
    %v3139 = vsel %vm2515, %v3134, %v3138
    %v3141 = vshrl.u32 %v2469, 16
    %v3143 = vrot.slane %v3141, 4
    %v3144 = vshll.u32 %v2469, 16
    %v3146 = vrot.slane %v3144, 5
    %v3147 = vor.u32 %v3143, %v3146
    %v3148 = vrot.slane %v3147, 4
    %v3150 = vshll.u32 %v2470, 16
    %v3152 = vrot.slane %v3150, 5
    %v3153 = vsel %vm2515, %v3148, %v3152
    %v3154 = vshrl.u32 %v2470, 16
    %v3156 = vrot.slane %v3154, 4
    %v3157 = vor.u32 %v3156, %v3152
    %v3158 = vrot.slane %v3157, 4
    %v3160 = vshll.u32 %v2507, 16
    %v3162 = vrot.slane %v3160, 5
    %v3163 = vsel %vm2515, %v3158, %v3162
    %v3165 = vshrl.u32 %v2471, 16
    %v3167 = vrot.slane %v3165, 4
    %v3168 = vshll.u32 %v2471, 16
    %v3170 = vrot.slane %v3168, 5
    %v3171 = vor.u32 %v3167, %v3170
    %v3172 = vrot.slane %v3171, 4
    %v3174 = vshll.u32 %v2472, 16
    %v3176 = vrot.slane %v3174, 5
    %v3177 = vsel %vm2515, %v3172, %v3176
    %v3178 = vshrl.u32 %v2472, 16
    %v3180 = vrot.slane %v3178, 4
    %v3181 = vor.u32 %v3180, %v3176
    %v3182 = vrot.slane %v3181, 4
    %v3184 = vshll.u32 %v2508, 16
    %v3186 = vrot.slane %v3184, 5
    %v3187 = vsel %vm2515, %v3182, %v3186
    %v3189 = vshrl.u32 %v2473, 16
    %v3191 = vrot.slane %v3189, 4
    %v3192 = vshll.u32 %v2473, 16
    %v3194 = vrot.slane %v3192, 5
    %v3195 = vor.u32 %v3191, %v3194
    %v3196 = vrot.slane %v3195, 4
    %v3198 = vshll.u32 %v2474, 16
    %v3200 = vrot.slane %v3198, 5
    %v3201 = vsel %vm2515, %v3196, %v3200
    %v3202 = vshrl.u32 %v2474, 16
    %v3204 = vrot.slane %v3202, 4
    %v3205 = vor.u32 %v3204, %v3200
    %v3206 = vrot.slane %v3205, 4
    %v3208 = vshll.u32 %v2509, 16
    %v3210 = vrot.slane %v3208, 5
    %v3211 = vsel %vm2515, %v3206, %v3210
    %v3213 = vshrl.u32 %v2475, 16
    %v3215 = vrot.slane %v3213, 4
    %v3216 = vshll.u32 %v2475, 16
    %v3218 = vrot.slane %v3216, 5
    %v3219 = vor.u32 %v3215, %v3218
    %v3220 = vrot.slane %v3219, 4
    %v3222 = vshll.u32 %v2476, 16
    %v3224 = vrot.slane %v3222, 5
    %v3225 = vsel %vm2515, %v3220, %v3224
    %v3226 = vshrl.u32 %v2476, 16
    %v3228 = vrot.slane %v3226, 4
    %v3229 = vor.u32 %v3228, %v3224
    %v3230 = vrot.slane %v3229, 4
    %v3232 = vshll.u32 %v2510, 16
    %v3234 = vrot.slane %v3232, 5
    %v3235 = vsel %vm2515, %v3230, %v3234
    %v3237 = vshrl.u32 %v2477, 16
    %v3239 = vrot.slane %v3237, 4
    %v3240 = vshll.u32 %v2477, 16
    %v3242 = vrot.slane %v3240, 5
    %v3243 = vor.u32 %v3239, %v3242
    %v3244 = vrot.slane %v3243, 4
    %v3246 = vshll.u32 %v2478, 16
    %v3248 = vrot.slane %v3246, 5
    %v3249 = vsel %vm2515, %v3244, %v3248
    %v3250 = vshrl.u32 %v2478, 16
    %v3252 = vrot.slane %v3250, 4
    %v3253 = vor.u32 %v3252, %v3248
    %v3254 = vrot.slane %v3253, 4
    %v3256 = vshll.u32 %v2511, 16
    %v3258 = vrot.slane %v3256, 5
    %v3259 = vsel %vm2515, %v3254, %v3258
    %v3261 = vshrl.u32 %v2479, 16
    %v3263 = vrot.slane %v3261, 4
    %v3264 = vshll.u32 %v2479, 16
    %v3266 = vrot.slane %v3264, 5
    %v3267 = vor.u32 %v3263, %v3266
    %v3268 = vrot.slane %v3267, 4
    %v3270 = vshll.u32 %v2480, 16
    %v3272 = vrot.slane %v3270, 5
    %v3273 = vsel %vm2515, %v3268, %v3272
    %v3274 = vshrl.u32 %v2480, 16
    %v3276 = vrot.slane %v3274, 4
    %v3277 = vor.u32 %v3276, %v3272
    %v3278 = vrot.slane %v3277, 4
    %v3280 = vshll.u32 %v2512, 16
    %v3282 = vrot.slane %v3280, 5
    %v3283 = vsel %vm2515, %v3278, %v3282
    %v3284 = vunpack.c.l.b16 %v2529
    %v3285 = vunpack.c.l.b16 %v2539
    %v3286 = vunpack.c.l.b16 %v2553
    %v3287 = vunpack.c.l.b16 %v2563
    %v3288 = vunpack.c.l.b16 %v2577
    %v3289 = vunpack.c.l.b16 %v2587
    %v3290 = vunpack.c.l.b16 %v2601
    %v3291 = vunpack.c.l.b16 %v2611
    %v3292 = vunpack.c.l.b16 %v2625
    %v3293 = vunpack.c.l.b16 %v2635
    %v3294 = vunpack.c.l.b16 %v2649
    %v3295 = vunpack.c.l.b16 %v2659
    %v3296 = vunpack.c.l.b16 %v2673
    %v3297 = vunpack.c.l.b16 %v2683
    %v3298 = vunpack.c.l.b16 %v2697
    %v3299 = vunpack.c.l.b16 %v2707
    %v3300 = vunpack.c.l.b16 %v2721
    %v3301 = vunpack.c.l.b16 %v2731
    %v3302 = vunpack.c.l.b16 %v2745
    %v3303 = vunpack.c.l.b16 %v2755
    %v3304 = vunpack.c.l.b16 %v2769
    %v3305 = vunpack.c.l.b16 %v2779
    %v3306 = vunpack.c.l.b16 %v2793
    %v3307 = vunpack.c.l.b16 %v2803
    %v3308 = vunpack.c.l.b16 %v2817
    %v3309 = vunpack.c.l.b16 %v2827
    %v3310 = vunpack.c.l.b16 %v2841
    %v3311 = vunpack.c.l.b16 %v2851
    %v3312 = vunpack.c.l.b16 %v2865
    %v3313 = vunpack.c.l.b16 %v2875
    %v3314 = vunpack.c.l.b16 %v2889
    %v3315 = vunpack.c.l.b16 %v2899
    %v3316 = vunpack.c.l.b16 %v2913
    %v3317 = vunpack.c.l.b16 %v2923
    %v3318 = vunpack.c.l.b16 %v2937
    %v3319 = vunpack.c.l.b16 %v2947
    %v3320 = vunpack.c.l.b16 %v2961
    %v3321 = vunpack.c.l.b16 %v2971
    %v3322 = vunpack.c.l.b16 %v2985
    %v3323 = vunpack.c.l.b16 %v2995
    %v3324 = vunpack.c.l.b16 %v3009
    %v3325 = vunpack.c.l.b16 %v3019
    %v3326 = vunpack.c.l.b16 %v3033
    %v3327 = vunpack.c.l.b16 %v3043
    %v3328 = vunpack.c.l.b16 %v3057
    %v3329 = vunpack.c.l.b16 %v3067
    %v3330 = vunpack.c.l.b16 %v3081
    %v3331 = vunpack.c.l.b16 %v3091
    %v3332 = vunpack.c.l.b16 %v3105
    %v3333 = vunpack.c.l.b16 %v3115
    %v3334 = vunpack.c.l.b16 %v3129
    %v3335 = vunpack.c.l.b16 %v3139
    %v3336 = vunpack.c.l.b16 %v3153
    %v3337 = vunpack.c.l.b16 %v3163
    %v3338 = vunpack.c.l.b16 %v3177
    %v3339 = vunpack.c.l.b16 %v3187
    %v3340 = vunpack.c.l.b16 %v3201
    %v3341 = vunpack.c.l.b16 %v3211
    %v3342 = vunpack.c.l.b16 %v3225
    %v3343 = vunpack.c.l.b16 %v3235
    %v3344 = vunpack.c.l.b16 %v3249
    %v3345 = vunpack.c.l.b16 %v3259
    %v3346 = vunpack.c.l.b16 %v3273
    %v3347 = vunpack.c.l.b16 %v3283
    %v3348 = vpack.c.b16 %v3285, %v3284
    %v3349 = vpack.c.b16 %v3287, %v3286
    %v3350 = vpack.c.b16 %v3289, %v3288
    %v3351 = vpack.c.b16 %v3291, %v3290
    %v3352 = vpack.c.b16 %v3293, %v3292
    %v3353 = vpack.c.b16 %v3295, %v3294
    %v3354 = vpack.c.b16 %v3297, %v3296
    %v3355 = vpack.c.b16 %v3299, %v3298
    %v3356 = vpack.c.b16 %v3301, %v3300
    %v3357 = vpack.c.b16 %v3303, %v3302
    %v3358 = vpack.c.b16 %v3305, %v3304
    %v3359 = vpack.c.b16 %v3307, %v3306
    %v3360 = vpack.c.b16 %v3309, %v3308
    %v3361 = vpack.c.b16 %v3311, %v3310
    %v3362 = vpack.c.b16 %v3313, %v3312
    %v3363 = vpack.c.b16 %v3315, %v3314
    %v3364 = vpack.c.b16 %v3317, %v3316
    %v3365 = vpack.c.b16 %v3319, %v3318
    %v3366 = vpack.c.b16 %v3321, %v3320
    %v3367 = vpack.c.b16 %v3323, %v3322
    %v3368 = vpack.c.b16 %v3325, %v3324
    %v3369 = vpack.c.b16 %v3327, %v3326
    %v3370 = vpack.c.b16 %v3329, %v3328
    %v3371 = vpack.c.b16 %v3331, %v3330
    %v3372 = vpack.c.b16 %v3333, %v3332
    %v3373 = vpack.c.b16 %v3335, %v3334
    %v3374 = vpack.c.b16 %v3337, %v3336
    %v3375 = vpack.c.b16 %v3339, %v3338
    %v3376 = vpack.c.b16 %v3341, %v3340
    %v3377 = vpack.c.b16 %v3343, %v3342
    %v3378 = vpack.c.b16 %v3345, %v3344
    %v3379 = vpack.c.b16 %v3347, %v3346
    %v3382 = vunpack.c.l.b16 %v2401
    %v3383 = vunpack.c.l.b16 %v2402
    %v3384 = vpack.c.b16 %v3383, %v3382
    %v3387 = vsel %vm581, %v3348, 0
    %v3390 = vsel %vm581, %v3349, 0
    %v3393 = vsel %vm581, %v3350, 0
    %v3396 = vsel %vm581, %v3351, 0
    %v3399 = vsel %vm581, %v3352, 0
    %v3402 = vsel %vm581, %v3353, 0
    %v3405 = vsel %vm581, %v3354, 0
    %v3408 = vsel %vm581, %v3355, 0
    %v3411 = vsel %vm581, %v3356, 0
    %v3414 = vsel %vm581, %v3357, 0
    %v3417 = vsel %vm581, %v3358, 0
    %v3420 = vsel %vm581, %v3359, 0
    %v3423 = vsel %vm581, %v3360, 0
    %v3426 = vsel %vm581, %v3361, 0
    %v3429 = vsel %vm581, %v3362, 0
    %v3432 = vsel %vm581, %v3363, 0
    %v3435 = vsel %vm581, %v3364, 0
    %v3438 = vsel %vm581, %v3365, 0
    %v3441 = vsel %vm581, %v3366, 0
    %v3444 = vsel %vm581, %v3367, 0
    %v3447 = vsel %vm581, %v3368, 0
    %v3450 = vsel %vm581, %v3369, 0
    %v3453 = vsel %vm581, %v3370, 0
    %v3456 = vsel %vm581, %v3371, 0
    %v3459 = vsel %vm581, %v3372, 0
    %v3462 = vsel %vm581, %v3373, 0
    %v3465 = vsel %vm581, %v3374, 0
    %v3468 = vsel %vm581, %v3375, 0
    %v3471 = vsel %vm581, %v3376, 0
    %v3474 = vsel %vm581, %v3377, 0
    %v3477 = vsel %vm581, %v3378, 0
    %v3480 = vsel %vm581, %v3379, 0
    %3482 = vmatprep.subr.bf16.mxu0 0
    %3483 = vmatpush1.bf16.msra.mxu0 0
    %3484 = vmatprep.subr.bf16.mxu0 0
    %3485 = vmatpush1.bf16.msra.mxu0 0
    %3486 = vmatprep.subr.bf16.mxu0 0
    %3487 = vmatpush1.bf16.msra.mxu0 0
    %3488 = vmatprep.subr.bf16.mxu0 0
    %3489 = vmatpush1.bf16.msra.mxu0 0
    %3490 = vmatprep.subr.bf16.mxu0 0
    %3491 = vmatpush1.bf16.msra.mxu0 0
    %3492 = vmatprep.subr.bf16.mxu0 0
    %3493 = vmatpush1.bf16.msra.mxu0 0
    %3494 = vmatprep.subr.bf16.mxu0 0
    %3495 = vmatpush1.bf16.msra.mxu0 0
    %3496 = vmatprep.subr.bf16.mxu0 0
    %3497 = vmatpush1.bf16.msra.mxu0 %v3384
    %3498 = vmatprep.subr.bf16.mxu0 0
    %3499 = vmatpush2.bf16.msra.mxu0 0
    %3500 = vmatprep.subr.bf16.mxu0 0
    %3501 = vmatpush2.bf16.msra.mxu0 0
    %3502 = vmatprep.subr.bf16.mxu0 0
    %3503 = vmatpush2.bf16.msra.mxu0 0
    %3504 = vmatprep.subr.bf16.mxu0 0
    %3505 = vmatpush2.bf16.msra.mxu0 0
    %3506 = vmatprep.subr.bf16.mxu0 0
    %3507 = vmatpush2.bf16.msra.mxu0 0
    %3508 = vmatprep.subr.bf16.mxu0 0
    %3509 = vmatpush2.bf16.msra.mxu0 0
    %3510 = vmatprep.subr.bf16.mxu0 0
    %3511 = vmatpush2.bf16.msra.mxu0 0
    %3512 = vmatprep.subr.bf16.mxu0 0
    %3513 = vmatpush2.bf16.msra.mxu0 0
    %3514 = vmatprep.mubr.bf16.mxu0 0
    %3515 = vmatmul.mubr.bf16.gmra.mxu0 %v3387
    %v3516 = vpop.f32.mrf.mxu0
    %v3517 = vadd.f32 0.0, %v3516
    %v3518 = vpop.f32.mrf.mxu0
    %v3519 = vpop.f32.mrf.mxu0
    %v3520 = vadd.f32 0.0, %v3519
    %v3521 = vpop.f32.mrf.mxu0
    %3522 = vmatprep.mubr.bf16.mxu0 0
    %3523 = vmatmul.mubr.bf16.gmra.mxu0 %v3390
    %v3524 = vpop.f32.mrf.mxu0
    %v3525 = vadd.f32 0.0, %v3524
    %v3526 = vpop.f32.mrf.mxu0
    %v3527 = vpop.f32.mrf.mxu0
    %v3528 = vadd.f32 0.0, %v3527
    %v3529 = vpop.f32.mrf.mxu0
    %3530 = vmatprep.mubr.bf16.mxu0 0
    %3531 = vmatmul.mubr.bf16.gmra.mxu0 %v3393
    %v3532 = vpop.f32.mrf.mxu0
    %v3533 = vadd.f32 0.0, %v3532
    %v3534 = vpop.f32.mrf.mxu0
    %v3535 = vpop.f32.mrf.mxu0
    %v3536 = vadd.f32 0.0, %v3535
    %v3537 = vpop.f32.mrf.mxu0
    %3538 = vmatprep.mubr.bf16.mxu0 0
    %3539 = vmatmul.mubr.bf16.gmra.mxu0 %v3396
    %v3540 = vpop.f32.mrf.mxu0
    %v3541 = vadd.f32 0.0, %v3540
    %v3542 = vpop.f32.mrf.mxu0
    %v3543 = vpop.f32.mrf.mxu0
    %v3544 = vadd.f32 0.0, %v3543
    %v3545 = vpop.f32.mrf.mxu0
    %3546 = vmatprep.mubr.bf16.mxu0 0
    %3547 = vmatmul.mubr.bf16.gmra.mxu0 %v3399
    %v3548 = vpop.f32.mrf.mxu0
    %v3549 = vadd.f32 0.0, %v3548
    %v3550 = vpop.f32.mrf.mxu0
    %v3551 = vpop.f32.mrf.mxu0
    %v3552 = vadd.f32 0.0, %v3551
    %v3553 = vpop.f32.mrf.mxu0
    %3554 = vmatprep.mubr.bf16.mxu0 0
    %3555 = vmatmul.mubr.bf16.gmra.mxu0 %v3402
    %v3556 = vpop.f32.mrf.mxu0
    %v3557 = vadd.f32 0.0, %v3556
    %v3558 = vpop.f32.mrf.mxu0
    %v3559 = vpop.f32.mrf.mxu0
    %v3560 = vadd.f32 0.0, %v3559
    %v3561 = vpop.f32.mrf.mxu0
    %3562 = vmatprep.mubr.bf16.mxu0 0
    %3563 = vmatmul.mubr.bf16.gmra.mxu0 %v3405
    %v3564 = vpop.f32.mrf.mxu0
    %v3565 = vadd.f32 0.0, %v3564
    %v3566 = vpop.f32.mrf.mxu0
    %v3567 = vpop.f32.mrf.mxu0
    %v3568 = vadd.f32 0.0, %v3567
    %v3569 = vpop.f32.mrf.mxu0
    %3570 = vmatprep.mubr.bf16.mxu0 0
    %3571 = vmatmul.mubr.bf16.gmra.mxu0 %v3408
    %v3572 = vpop.f32.mrf.mxu0
    %v3573 = vadd.f32 0.0, %v3572
    %v3574 = vpop.f32.mrf.mxu0
    %v3575 = vpop.f32.mrf.mxu0
    %v3576 = vadd.f32 0.0, %v3575
    %v3577 = vpop.f32.mrf.mxu0
    %3578 = vmatprep.mubr.bf16.mxu0 0
    %3579 = vmatmul.mubr.bf16.gmra.mxu0 %v3411
    %v3580 = vpop.f32.mrf.mxu0
    %v3581 = vadd.f32 0.0, %v3580
    %v3582 = vpop.f32.mrf.mxu0
    %v3583 = vpop.f32.mrf.mxu0
    %v3584 = vadd.f32 0.0, %v3583
    %v3585 = vpop.f32.mrf.mxu0
    %3586 = vmatprep.mubr.bf16.mxu0 0
    %3587 = vmatmul.mubr.bf16.gmra.mxu0 %v3414
    %v3588 = vpop.f32.mrf.mxu0
    %v3589 = vadd.f32 0.0, %v3588
    %v3590 = vpop.f32.mrf.mxu0
    %v3591 = vpop.f32.mrf.mxu0
    %v3592 = vadd.f32 0.0, %v3591
    %v3593 = vpop.f32.mrf.mxu0
    %3594 = vmatprep.mubr.bf16.mxu0 0
    %3595 = vmatmul.mubr.bf16.gmra.mxu0 %v3417
    %v3596 = vpop.f32.mrf.mxu0
    %v3597 = vadd.f32 0.0, %v3596
    %v3598 = vpop.f32.mrf.mxu0
    %v3599 = vpop.f32.mrf.mxu0
    %v3600 = vadd.f32 0.0, %v3599
    %v3601 = vpop.f32.mrf.mxu0
    %3602 = vmatprep.mubr.bf16.mxu0 0
    %3603 = vmatmul.mubr.bf16.gmra.mxu0 %v3420
    %v3604 = vpop.f32.mrf.mxu0
    %v3605 = vadd.f32 0.0, %v3604
    %v3606 = vpop.f32.mrf.mxu0
    %v3607 = vpop.f32.mrf.mxu0
    %v3608 = vadd.f32 0.0, %v3607
    %v3609 = vpop.f32.mrf.mxu0
    %3610 = vmatprep.mubr.bf16.mxu0 0
    %3611 = vmatmul.mubr.bf16.gmra.mxu0 %v3423
    %v3612 = vpop.f32.mrf.mxu0
    %v3613 = vadd.f32 0.0, %v3612
    %v3614 = vpop.f32.mrf.mxu0
    %v3615 = vpop.f32.mrf.mxu0
    %v3616 = vadd.f32 0.0, %v3615
    %v3617 = vpop.f32.mrf.mxu0
    %3618 = vmatprep.mubr.bf16.mxu0 0
    %3619 = vmatmul.mubr.bf16.gmra.mxu0 %v3426
    %v3620 = vpop.f32.mrf.mxu0
    %v3621 = vadd.f32 0.0, %v3620
    %v3622 = vpop.f32.mrf.mxu0
    %v3623 = vpop.f32.mrf.mxu0
    %v3624 = vadd.f32 0.0, %v3623
    %v3625 = vpop.f32.mrf.mxu0
    %3626 = vmatprep.mubr.bf16.mxu0 0
    %3627 = vmatmul.mubr.bf16.gmra.mxu0 %v3429
    %v3628 = vpop.f32.mrf.mxu0
    %v3629 = vadd.f32 0.0, %v3628
    %v3630 = vpop.f32.mrf.mxu0
    %v3631 = vpop.f32.mrf.mxu0
    %v3632 = vadd.f32 0.0, %v3631
    %v3633 = vpop.f32.mrf.mxu0
    %3634 = vmatprep.mubr.bf16.mxu0 0
    %3635 = vmatmul.mubr.bf16.gmra.mxu0 %v3432
    %v3636 = vpop.f32.mrf.mxu0
    %v3637 = vadd.f32 0.0, %v3636
    %v3638 = vpop.f32.mrf.mxu0
    %v3639 = vpop.f32.mrf.mxu0
    %v3640 = vadd.f32 0.0, %v3639
    %v3641 = vpop.f32.mrf.mxu0
    %3642 = vmatprep.mubr.bf16.mxu0 0
    %3643 = vmatmul.mubr.bf16.gmra.mxu0 %v3435
    %v3644 = vpop.f32.mrf.mxu0
    %v3645 = vadd.f32 0.0, %v3644
    %v3646 = vpop.f32.mrf.mxu0
    %v3647 = vpop.f32.mrf.mxu0
    %v3648 = vadd.f32 0.0, %v3647
    %v3649 = vpop.f32.mrf.mxu0
    %3650 = vmatprep.mubr.bf16.mxu0 0
    %3651 = vmatmul.mubr.bf16.gmra.mxu0 %v3438
    %v3652 = vpop.f32.mrf.mxu0
    %v3653 = vadd.f32 0.0, %v3652
    %v3654 = vpop.f32.mrf.mxu0
    %v3655 = vpop.f32.mrf.mxu0
    %v3656 = vadd.f32 0.0, %v3655
    %v3657 = vpop.f32.mrf.mxu0
    %3658 = vmatprep.mubr.bf16.mxu0 0
    %3659 = vmatmul.mubr.bf16.gmra.mxu0 %v3441
    %v3660 = vpop.f32.mrf.mxu0
    %v3661 = vadd.f32 0.0, %v3660
    %v3662 = vpop.f32.mrf.mxu0
    %v3663 = vpop.f32.mrf.mxu0
    %v3664 = vadd.f32 0.0, %v3663
    %v3665 = vpop.f32.mrf.mxu0
    %3666 = vmatprep.mubr.bf16.mxu0 0
    %3667 = vmatmul.mubr.bf16.gmra.mxu0 %v3444
    %v3668 = vpop.f32.mrf.mxu0
    %v3669 = vadd.f32 0.0, %v3668
    %v3670 = vpop.f32.mrf.mxu0
    %v3671 = vpop.f32.mrf.mxu0
    %v3672 = vadd.f32 0.0, %v3671
    %v3673 = vpop.f32.mrf.mxu0
    %3674 = vmatprep.mubr.bf16.mxu0 0
    %3675 = vmatmul.mubr.bf16.gmra.mxu0 %v3447
    %v3676 = vpop.f32.mrf.mxu0
    %v3677 = vadd.f32 0.0, %v3676
    %v3678 = vpop.f32.mrf.mxu0
    %v3679 = vpop.f32.mrf.mxu0
    %v3680 = vadd.f32 0.0, %v3679
    %v3681 = vpop.f32.mrf.mxu0
    %3682 = vmatprep.mubr.bf16.mxu0 0
    %3683 = vmatmul.mubr.bf16.gmra.mxu0 %v3450
    %v3684 = vpop.f32.mrf.mxu0
    %v3685 = vadd.f32 0.0, %v3684
    %v3686 = vpop.f32.mrf.mxu0
    %v3687 = vpop.f32.mrf.mxu0
    %v3688 = vadd.f32 0.0, %v3687
    %v3689 = vpop.f32.mrf.mxu0
    %3690 = vmatprep.mubr.bf16.mxu0 0
    %3691 = vmatmul.mubr.bf16.gmra.mxu0 %v3453
    %v3692 = vpop.f32.mrf.mxu0
    %v3693 = vadd.f32 0.0, %v3692
    %v3694 = vpop.f32.mrf.mxu0
    %v3695 = vpop.f32.mrf.mxu0
    %v3696 = vadd.f32 0.0, %v3695
    %v3697 = vpop.f32.mrf.mxu0
    %3698 = vmatprep.mubr.bf16.mxu0 0
    %3699 = vmatmul.mubr.bf16.gmra.mxu0 %v3456
    %v3700 = vpop.f32.mrf.mxu0
    %v3701 = vadd.f32 0.0, %v3700
    %v3702 = vpop.f32.mrf.mxu0
    %v3703 = vpop.f32.mrf.mxu0
    %v3704 = vadd.f32 0.0, %v3703
    %v3705 = vpop.f32.mrf.mxu0
    %3706 = vmatprep.mubr.bf16.mxu0 0
    %3707 = vmatmul.mubr.bf16.gmra.mxu0 %v3459
    %v3708 = vpop.f32.mrf.mxu0
    %v3709 = vadd.f32 0.0, %v3708
    %v3710 = vpop.f32.mrf.mxu0
    %v3711 = vpop.f32.mrf.mxu0
    %v3712 = vadd.f32 0.0, %v3711
    %v3713 = vpop.f32.mrf.mxu0
    %3714 = vmatprep.mubr.bf16.mxu0 0
    %3715 = vmatmul.mubr.bf16.gmra.mxu0 %v3462
    %v3716 = vpop.f32.mrf.mxu0
    %v3717 = vadd.f32 0.0, %v3716
    %v3718 = vpop.f32.mrf.mxu0
    %v3719 = vpop.f32.mrf.mxu0
    %v3720 = vadd.f32 0.0, %v3719
    %v3721 = vpop.f32.mrf.mxu0
    %3722 = vmatprep.mubr.bf16.mxu0 0
    %3723 = vmatmul.mubr.bf16.gmra.mxu0 %v3465
    %v3724 = vpop.f32.mrf.mxu0
    %v3725 = vadd.f32 0.0, %v3724
    %v3726 = vpop.f32.mrf.mxu0
    %v3727 = vpop.f32.mrf.mxu0
    %v3728 = vadd.f32 0.0, %v3727
    %v3729 = vpop.f32.mrf.mxu0
    %3730 = vmatprep.mubr.bf16.mxu0 0
    %3731 = vmatmul.mubr.bf16.gmra.mxu0 %v3468
    %v3732 = vpop.f32.mrf.mxu0
    %v3733 = vadd.f32 0.0, %v3732
    %v3734 = vpop.f32.mrf.mxu0
    %v3735 = vpop.f32.mrf.mxu0
    %v3736 = vadd.f32 0.0, %v3735
    %v3737 = vpop.f32.mrf.mxu0
    %3738 = vmatprep.mubr.bf16.mxu0 0
    %3739 = vmatmul.mubr.bf16.gmra.mxu0 %v3471
    %v3740 = vpop.f32.mrf.mxu0
    %v3741 = vadd.f32 0.0, %v3740
    %v3742 = vpop.f32.mrf.mxu0
    %v3743 = vpop.f32.mrf.mxu0
    %v3744 = vadd.f32 0.0, %v3743
    %v3745 = vpop.f32.mrf.mxu0
    %3746 = vmatprep.mubr.bf16.mxu0 0
    %3747 = vmatmul.mubr.bf16.gmra.mxu0 %v3474
    %v3748 = vpop.f32.mrf.mxu0
    %v3749 = vadd.f32 0.0, %v3748
    %v3750 = vpop.f32.mrf.mxu0
    %v3751 = vpop.f32.mrf.mxu0
    %v3752 = vadd.f32 0.0, %v3751
    %v3753 = vpop.f32.mrf.mxu0
    %3754 = vmatprep.mubr.bf16.mxu0 0
    %3755 = vmatmul.mubr.bf16.gmra.mxu0 %v3477
    %v3756 = vpop.f32.mrf.mxu0
    %v3757 = vadd.f32 0.0, %v3756
    %v3758 = vpop.f32.mrf.mxu0
    %v3759 = vpop.f32.mrf.mxu0
    %v3760 = vadd.f32 0.0, %v3759
    %v3761 = vpop.f32.mrf.mxu0
    %3762 = vmatprep.mubr.bf16.mxu0 0
    %3763 = vmatmul.mubr.bf16.gmra.mxu0 %v3480
    %v3764 = vpop.f32.mrf.mxu0
    %v3765 = vadd.f32 0.0, %v3764
    %v3766 = vpop.f32.mrf.mxu0
    %v3767 = vpop.f32.mrf.mxu0
    %v3768 = vadd.f32 0.0, %v3767
    %v3769 = vpop.f32.mrf.mxu0
    %3770 = vdwg.mxu0
    %v3835 = vunpack.c.l.b16 %v2417
    %v3836 = vunpack.c.l.b16 %v2418
    %v3837 = vunpack.c.l.b16 %v2419
    %v3838 = vunpack.c.l.b16 %v2420
    %v3839 = vunpack.c.l.b16 %v2421
    %v3840 = vunpack.c.l.b16 %v2422
    %v3841 = vunpack.c.l.b16 %v2423
    %v3842 = vunpack.c.l.b16 %v2424
    %v3843 = vunpack.c.l.b16 %v2425
    %v3844 = vunpack.c.l.b16 %v2426
    %v3845 = vunpack.c.l.b16 %v2427
    %v3846 = vunpack.c.l.b16 %v2428
    %v3847 = vunpack.c.l.b16 %v2429
    %v3848 = vunpack.c.l.b16 %v2430
    %v3849 = vunpack.c.l.b16 %v2431
    %v3850 = vunpack.c.l.b16 %v2432
    %v3851 = vunpack.c.l.b16 %v2433
    %v3852 = vunpack.c.l.b16 %v2434
    %v3853 = vunpack.c.l.b16 %v2435
    %v3854 = vunpack.c.l.b16 %v2436
    %v3855 = vunpack.c.l.b16 %v2437
    %v3856 = vunpack.c.l.b16 %v2438
    %v3857 = vunpack.c.l.b16 %v2439
    %v3858 = vunpack.c.l.b16 %v2440
    %v3859 = vunpack.c.l.b16 %v2441
    %v3860 = vunpack.c.l.b16 %v2442
    %v3861 = vunpack.c.l.b16 %v2443
    %v3862 = vunpack.c.l.b16 %v2444
    %v3863 = vunpack.c.l.b16 %v2445
    %v3864 = vunpack.c.l.b16 %v2446
    %v3865 = vunpack.c.l.b16 %v2447
    %v3866 = vunpack.c.l.b16 %v2448
    %v3867 = vunpack.c.l.b16 %v2449
    %v3868 = vunpack.c.l.b16 %v2450
    %v3869 = vunpack.c.l.b16 %v2451
    %v3870 = vunpack.c.l.b16 %v2452
    %v3871 = vunpack.c.l.b16 %v2453
    %v3872 = vunpack.c.l.b16 %v2454
    %v3873 = vunpack.c.l.b16 %v2455
    %v3874 = vunpack.c.l.b16 %v2456
    %v3875 = vunpack.c.l.b16 %v2457
    %v3876 = vunpack.c.l.b16 %v2458
    %v3877 = vunpack.c.l.b16 %v2459
    %v3878 = vunpack.c.l.b16 %v2460
    %v3879 = vunpack.c.l.b16 %v2461
    %v3880 = vunpack.c.l.b16 %v2462
    %v3881 = vunpack.c.l.b16 %v2463
    %v3882 = vunpack.c.l.b16 %v2464
    %v3883 = vunpack.c.l.b16 %v2465
    %v3884 = vunpack.c.l.b16 %v2466
    %v3885 = vunpack.c.l.b16 %v2467
    %v3886 = vunpack.c.l.b16 %v2468
    %v3887 = vunpack.c.l.b16 %v2469
    %v3888 = vunpack.c.l.b16 %v2470
    %v3889 = vunpack.c.l.b16 %v2471
    %v3890 = vunpack.c.l.b16 %v2472
    %v3891 = vunpack.c.l.b16 %v2473
    %v3892 = vunpack.c.l.b16 %v2474
    %v3893 = vunpack.c.l.b16 %v2475
    %v3894 = vunpack.c.l.b16 %v2476
    %v3895 = vunpack.c.l.b16 %v2477
    %v3896 = vunpack.c.l.b16 %v2478
    %v3897 = vunpack.c.l.b16 %v2479
    %v3898 = vunpack.c.l.b16 %v2480
    %v3899 = vpack.c.b16 %v3836, %v3835
    %v3900 = vpack.c.b16 %v3838, %v3837
    %v3901 = vpack.c.b16 %v3840, %v3839
    %v3902 = vpack.c.b16 %v3842, %v3841
    %v3903 = vpack.c.b16 %v3844, %v3843
    %v3904 = vpack.c.b16 %v3846, %v3845
    %v3905 = vpack.c.b16 %v3848, %v3847
    %v3906 = vpack.c.b16 %v3850, %v3849
    %v3907 = vpack.c.b16 %v3852, %v3851
    %v3908 = vpack.c.b16 %v3854, %v3853
    %v3909 = vpack.c.b16 %v3856, %v3855
    %v3910 = vpack.c.b16 %v3858, %v3857
    %v3911 = vpack.c.b16 %v3860, %v3859
    %v3912 = vpack.c.b16 %v3862, %v3861
    %v3913 = vpack.c.b16 %v3864, %v3863
    %v3914 = vpack.c.b16 %v3866, %v3865
    %v3915 = vpack.c.b16 %v3868, %v3867
    %v3916 = vpack.c.b16 %v3870, %v3869
    %v3917 = vpack.c.b16 %v3872, %v3871
    %v3918 = vpack.c.b16 %v3874, %v3873
    %v3919 = vpack.c.b16 %v3876, %v3875
    %v3920 = vpack.c.b16 %v3878, %v3877
    %v3921 = vpack.c.b16 %v3880, %v3879
    %v3922 = vpack.c.b16 %v3882, %v3881
    %v3923 = vpack.c.b16 %v3884, %v3883
    %v3924 = vpack.c.b16 %v3886, %v3885
    %v3925 = vpack.c.b16 %v3888, %v3887
    %v3926 = vpack.c.b16 %v3890, %v3889
    %v3927 = vpack.c.b16 %v3892, %v3891
    %v3928 = vpack.c.b16 %v3894, %v3893
    %v3929 = vpack.c.b16 %v3896, %v3895
    %v3930 = vpack.c.b16 %v3898, %v3897
    %v3933 = vunpack.c.l.b16 %v2399
    %v3934 = vunpack.c.l.b16 %v2400
    %v3935 = vpack.c.b16 %v3934, %v3933
    %v3938 = vsel %vm581, %v3899, 0
    %v3941 = vsel %vm581, %v3900, 0
    %v3944 = vsel %vm581, %v3901, 0
    %v3947 = vsel %vm581, %v3902, 0
    %v3950 = vsel %vm581, %v3903, 0
    %v3953 = vsel %vm581, %v3904, 0
    %v3956 = vsel %vm581, %v3905, 0
    %v3959 = vsel %vm581, %v3906, 0
    %v3962 = vsel %vm581, %v3907, 0
    %v3965 = vsel %vm581, %v3908, 0
    %v3968 = vsel %vm581, %v3909, 0
    %v3971 = vsel %vm581, %v3910, 0
    %v3974 = vsel %vm581, %v3911, 0
    %v3977 = vsel %vm581, %v3912, 0
    %v3980 = vsel %vm581, %v3913, 0
    %v3983 = vsel %vm581, %v3914, 0
    %v3986 = vsel %vm581, %v3915, 0
    %v3989 = vsel %vm581, %v3916, 0
    %v3992 = vsel %vm581, %v3917, 0
    %v3995 = vsel %vm581, %v3918, 0
    %v3998 = vsel %vm581, %v3919, 0
    %v4001 = vsel %vm581, %v3920, 0
    %v4004 = vsel %vm581, %v3921, 0
    %v4007 = vsel %vm581, %v3922, 0
    %v4010 = vsel %vm581, %v3923, 0
    %v4013 = vsel %vm581, %v3924, 0
    %v4016 = vsel %vm581, %v3925, 0
    %v4019 = vsel %vm581, %v3926, 0
    %v4022 = vsel %vm581, %v3927, 0
    %v4025 = vsel %vm581, %v3928, 0
    %v4028 = vsel %vm581, %v3929, 0
    %v4031 = vsel %vm581, %v3930, 0
    %4033 = vmatprep.subr.bf16.mxu0 0
    %4034 = vmatpush1.bf16.msra.mxu0 0
    %4035 = vmatprep.subr.bf16.mxu0 0
    %4036 = vmatpush1.bf16.msra.mxu0 0
    %4037 = vmatprep.subr.bf16.mxu0 0
    %4038 = vmatpush1.bf16.msra.mxu0 0
    %4039 = vmatprep.subr.bf16.mxu0 0
    %4040 = vmatpush1.bf16.msra.mxu0 0
    %4041 = vmatprep.subr.bf16.mxu0 0
    %4042 = vmatpush1.bf16.msra.mxu0 0
    %4043 = vmatprep.subr.bf16.mxu0 0
    %4044 = vmatpush1.bf16.msra.mxu0 0
    %4045 = vmatprep.subr.bf16.mxu0 0
    %4046 = vmatpush1.bf16.msra.mxu0 0
    %4047 = vmatprep.subr.bf16.mxu0 0
    %4048 = vmatpush1.bf16.msra.mxu0 %v3935
    %4049 = vmatprep.subr.bf16.mxu0 0
    %4050 = vmatpush2.bf16.msra.mxu0 0
    %4051 = vmatprep.subr.bf16.mxu0 0
    %4052 = vmatpush2.bf16.msra.mxu0 0
    %4053 = vmatprep.subr.bf16.mxu0 0
    %4054 = vmatpush2.bf16.msra.mxu0 0
    %4055 = vmatprep.subr.bf16.mxu0 0
    %4056 = vmatpush2.bf16.msra.mxu0 0
    %4057 = vmatprep.subr.bf16.mxu0 0
    %4058 = vmatpush2.bf16.msra.mxu0 0
    %4059 = vmatprep.subr.bf16.mxu0 0
    %4060 = vmatpush2.bf16.msra.mxu0 0
    %4061 = vmatprep.subr.bf16.mxu0 0
    %4062 = vmatpush2.bf16.msra.mxu0 0
    %4063 = vmatprep.subr.bf16.mxu0 0
    %4064 = vmatpush2.bf16.msra.mxu0 0
    %4065 = vmatprep.mubr.bf16.mxu0 0
    %4066 = vmatmul.mubr.bf16.gmra.mxu0 %v3938
    %v4067 = vpop.f32.mrf.mxu0
    %v4068 = vadd.f32 %v3517, %v4067
    %v4069 = vpop.f32.mrf.mxu0
    %v4070 = vpop.f32.mrf.mxu0
    %v4071 = vadd.f32 %v3520, %v4070
    %v4072 = vpop.f32.mrf.mxu0
    %4073 = vmatprep.mubr.bf16.mxu0 0
    %4074 = vmatmul.mubr.bf16.gmra.mxu0 %v3941
    %v4075 = vpop.f32.mrf.mxu0
    %v4076 = vadd.f32 %v3525, %v4075
    %v4077 = vpop.f32.mrf.mxu0
    %v4078 = vpop.f32.mrf.mxu0
    %v4079 = vadd.f32 %v3528, %v4078
    %v4080 = vpop.f32.mrf.mxu0
    %4081 = vmatprep.mubr.bf16.mxu0 0
    %4082 = vmatmul.mubr.bf16.gmra.mxu0 %v3944
    %v4083 = vpop.f32.mrf.mxu0
    %v4084 = vadd.f32 %v3533, %v4083
    %v4085 = vpop.f32.mrf.mxu0
    %v4086 = vpop.f32.mrf.mxu0
    %v4087 = vadd.f32 %v3536, %v4086
    %v4088 = vpop.f32.mrf.mxu0
    %4089 = vmatprep.mubr.bf16.mxu0 0
    %4090 = vmatmul.mubr.bf16.gmra.mxu0 %v3947
    %v4091 = vpop.f32.mrf.mxu0
    %v4092 = vadd.f32 %v3541, %v4091
    %v4093 = vpop.f32.mrf.mxu0
    %v4094 = vpop.f32.mrf.mxu0
    %v4095 = vadd.f32 %v3544, %v4094
    %v4096 = vpop.f32.mrf.mxu0
    %4097 = vmatprep.mubr.bf16.mxu0 0
    %4098 = vmatmul.mubr.bf16.gmra.mxu0 %v3950
    %v4099 = vpop.f32.mrf.mxu0
    %v4100 = vadd.f32 %v3549, %v4099
    %v4101 = vpop.f32.mrf.mxu0
    %v4102 = vpop.f32.mrf.mxu0
    %v4103 = vadd.f32 %v3552, %v4102
    %v4104 = vpop.f32.mrf.mxu0
    %4105 = vmatprep.mubr.bf16.mxu0 0
    %4106 = vmatmul.mubr.bf16.gmra.mxu0 %v3953
    %v4107 = vpop.f32.mrf.mxu0
    %v4108 = vadd.f32 %v3557, %v4107
    %v4109 = vpop.f32.mrf.mxu0
    %v4110 = vpop.f32.mrf.mxu0
    %v4111 = vadd.f32 %v3560, %v4110
    %v4112 = vpop.f32.mrf.mxu0
    %4113 = vmatprep.mubr.bf16.mxu0 0
    %4114 = vmatmul.mubr.bf16.gmra.mxu0 %v3956
    %v4115 = vpop.f32.mrf.mxu0
    %v4116 = vadd.f32 %v3565, %v4115
    %v4117 = vpop.f32.mrf.mxu0
    %v4118 = vpop.f32.mrf.mxu0
    %v4119 = vadd.f32 %v3568, %v4118
    %v4120 = vpop.f32.mrf.mxu0
    %4121 = vmatprep.mubr.bf16.mxu0 0
    %4122 = vmatmul.mubr.bf16.gmra.mxu0 %v3959
    %v4123 = vpop.f32.mrf.mxu0
    %v4124 = vadd.f32 %v3573, %v4123
    %v4125 = vpop.f32.mrf.mxu0
    %v4126 = vpop.f32.mrf.mxu0
    %v4127 = vadd.f32 %v3576, %v4126
    %v4128 = vpop.f32.mrf.mxu0
    %4129 = vmatprep.mubr.bf16.mxu0 0
    %4130 = vmatmul.mubr.bf16.gmra.mxu0 %v3962
    %v4131 = vpop.f32.mrf.mxu0
    %v4132 = vadd.f32 %v3581, %v4131
    %v4133 = vpop.f32.mrf.mxu0
    %v4134 = vpop.f32.mrf.mxu0
    %v4135 = vadd.f32 %v3584, %v4134
    %v4136 = vpop.f32.mrf.mxu0
    %4137 = vmatprep.mubr.bf16.mxu0 0
    %4138 = vmatmul.mubr.bf16.gmra.mxu0 %v3965
    %v4139 = vpop.f32.mrf.mxu0
    %v4140 = vadd.f32 %v3589, %v4139
    %v4141 = vpop.f32.mrf.mxu0
    %v4142 = vpop.f32.mrf.mxu0
    %v4143 = vadd.f32 %v3592, %v4142
    %v4144 = vpop.f32.mrf.mxu0
    %4145 = vmatprep.mubr.bf16.mxu0 0
    %4146 = vmatmul.mubr.bf16.gmra.mxu0 %v3968
    %v4147 = vpop.f32.mrf.mxu0
    %v4148 = vadd.f32 %v3597, %v4147
    %v4149 = vpop.f32.mrf.mxu0
    %v4150 = vpop.f32.mrf.mxu0
    %v4151 = vadd.f32 %v3600, %v4150
    %v4152 = vpop.f32.mrf.mxu0
    %4153 = vmatprep.mubr.bf16.mxu0 0
    %4154 = vmatmul.mubr.bf16.gmra.mxu0 %v3971
    %v4155 = vpop.f32.mrf.mxu0
    %v4156 = vadd.f32 %v3605, %v4155
    %v4157 = vpop.f32.mrf.mxu0
    %v4158 = vpop.f32.mrf.mxu0
    %v4159 = vadd.f32 %v3608, %v4158
    %v4160 = vpop.f32.mrf.mxu0
    %4161 = vmatprep.mubr.bf16.mxu0 0
    %4162 = vmatmul.mubr.bf16.gmra.mxu0 %v3974
    %v4163 = vpop.f32.mrf.mxu0
    %v4164 = vadd.f32 %v3613, %v4163
    %v4165 = vpop.f32.mrf.mxu0
    %v4166 = vpop.f32.mrf.mxu0
    %v4167 = vadd.f32 %v3616, %v4166
    %v4168 = vpop.f32.mrf.mxu0
    %4169 = vmatprep.mubr.bf16.mxu0 0
    %4170 = vmatmul.mubr.bf16.gmra.mxu0 %v3977
    %v4171 = vpop.f32.mrf.mxu0
    %v4172 = vadd.f32 %v3621, %v4171
    %v4173 = vpop.f32.mrf.mxu0
    %v4174 = vpop.f32.mrf.mxu0
    %v4175 = vadd.f32 %v3624, %v4174
    %v4176 = vpop.f32.mrf.mxu0
    %4177 = vmatprep.mubr.bf16.mxu0 0
    %4178 = vmatmul.mubr.bf16.gmra.mxu0 %v3980
    %v4179 = vpop.f32.mrf.mxu0
    %v4180 = vadd.f32 %v3629, %v4179
    %v4181 = vpop.f32.mrf.mxu0
    %v4182 = vpop.f32.mrf.mxu0
    %v4183 = vadd.f32 %v3632, %v4182
    %v4184 = vpop.f32.mrf.mxu0
    %4185 = vmatprep.mubr.bf16.mxu0 0
    %4186 = vmatmul.mubr.bf16.gmra.mxu0 %v3983
    %v4187 = vpop.f32.mrf.mxu0
    %v4188 = vadd.f32 %v3637, %v4187
    %v4189 = vpop.f32.mrf.mxu0
    %v4190 = vpop.f32.mrf.mxu0
    %v4191 = vadd.f32 %v3640, %v4190
    %v4192 = vpop.f32.mrf.mxu0
    %4193 = vmatprep.mubr.bf16.mxu0 0
    %4194 = vmatmul.mubr.bf16.gmra.mxu0 %v3986
    %v4195 = vpop.f32.mrf.mxu0
    %v4196 = vadd.f32 %v3645, %v4195
    %v4197 = vpop.f32.mrf.mxu0
    %v4198 = vpop.f32.mrf.mxu0
    %v4199 = vadd.f32 %v3648, %v4198
    %v4200 = vpop.f32.mrf.mxu0
    %4201 = vmatprep.mubr.bf16.mxu0 0
    %4202 = vmatmul.mubr.bf16.gmra.mxu0 %v3989
    %v4203 = vpop.f32.mrf.mxu0
    %v4204 = vadd.f32 %v3653, %v4203
    %v4205 = vpop.f32.mrf.mxu0
    %v4206 = vpop.f32.mrf.mxu0
    %v4207 = vadd.f32 %v3656, %v4206
    %v4208 = vpop.f32.mrf.mxu0
    %4209 = vmatprep.mubr.bf16.mxu0 0
    %4210 = vmatmul.mubr.bf16.gmra.mxu0 %v3992
    %v4211 = vpop.f32.mrf.mxu0
    %v4212 = vadd.f32 %v3661, %v4211
    %v4213 = vpop.f32.mrf.mxu0
    %v4214 = vpop.f32.mrf.mxu0
    %v4215 = vadd.f32 %v3664, %v4214
    %v4216 = vpop.f32.mrf.mxu0
    %4217 = vmatprep.mubr.bf16.mxu0 0
    %4218 = vmatmul.mubr.bf16.gmra.mxu0 %v3995
    %v4219 = vpop.f32.mrf.mxu0
    %v4220 = vadd.f32 %v3669, %v4219
    %v4221 = vpop.f32.mrf.mxu0
    %v4222 = vpop.f32.mrf.mxu0
    %v4223 = vadd.f32 %v3672, %v4222
    %v4224 = vpop.f32.mrf.mxu0
    %4225 = vmatprep.mubr.bf16.mxu0 0
    %4226 = vmatmul.mubr.bf16.gmra.mxu0 %v3998
    %v4227 = vpop.f32.mrf.mxu0
    %v4228 = vadd.f32 %v3677, %v4227
    %v4229 = vpop.f32.mrf.mxu0
    %v4230 = vpop.f32.mrf.mxu0
    %v4231 = vadd.f32 %v3680, %v4230
    %v4232 = vpop.f32.mrf.mxu0
    %4233 = vmatprep.mubr.bf16.mxu0 0
    %4234 = vmatmul.mubr.bf16.gmra.mxu0 %v4001
    %v4235 = vpop.f32.mrf.mxu0
    %v4236 = vadd.f32 %v3685, %v4235
    %v4237 = vpop.f32.mrf.mxu0
    %v4238 = vpop.f32.mrf.mxu0
    %v4239 = vadd.f32 %v3688, %v4238
    %v4240 = vpop.f32.mrf.mxu0
    %4241 = vmatprep.mubr.bf16.mxu0 0
    %4242 = vmatmul.mubr.bf16.gmra.mxu0 %v4004
    %v4243 = vpop.f32.mrf.mxu0
    %v4244 = vadd.f32 %v3693, %v4243
    %v4245 = vpop.f32.mrf.mxu0
    %v4246 = vpop.f32.mrf.mxu0
    %v4247 = vadd.f32 %v3696, %v4246
    %v4248 = vpop.f32.mrf.mxu0
    %4249 = vmatprep.mubr.bf16.mxu0 0
    %4250 = vmatmul.mubr.bf16.gmra.mxu0 %v4007
    %v4251 = vpop.f32.mrf.mxu0
    %v4252 = vadd.f32 %v3701, %v4251
    %v4253 = vpop.f32.mrf.mxu0
    %v4254 = vpop.f32.mrf.mxu0
    %v4255 = vadd.f32 %v3704, %v4254
    %v4256 = vpop.f32.mrf.mxu0
    %4257 = vmatprep.mubr.bf16.mxu0 0
    %4258 = vmatmul.mubr.bf16.gmra.mxu0 %v4010
    %v4259 = vpop.f32.mrf.mxu0
    %v4260 = vadd.f32 %v3709, %v4259
    %v4261 = vpop.f32.mrf.mxu0
    %v4262 = vpop.f32.mrf.mxu0
    %v4263 = vadd.f32 %v3712, %v4262
    %v4264 = vpop.f32.mrf.mxu0
    %4265 = vmatprep.mubr.bf16.mxu0 0
    %4266 = vmatmul.mubr.bf16.gmra.mxu0 %v4013
    %v4267 = vpop.f32.mrf.mxu0
    %v4268 = vadd.f32 %v3717, %v4267
    %v4269 = vpop.f32.mrf.mxu0
    %v4270 = vpop.f32.mrf.mxu0
    %v4271 = vadd.f32 %v3720, %v4270
    %v4272 = vpop.f32.mrf.mxu0
    %4273 = vmatprep.mubr.bf16.mxu0 0
    %4274 = vmatmul.mubr.bf16.gmra.mxu0 %v4016
    %v4275 = vpop.f32.mrf.mxu0
    %v4276 = vadd.f32 %v3725, %v4275
    %v4277 = vpop.f32.mrf.mxu0
    %v4278 = vpop.f32.mrf.mxu0
    %v4279 = vadd.f32 %v3728, %v4278
    %v4280 = vpop.f32.mrf.mxu0
    %4281 = vmatprep.mubr.bf16.mxu0 0
    %4282 = vmatmul.mubr.bf16.gmra.mxu0 %v4019
    %v4283 = vpop.f32.mrf.mxu0
    %v4284 = vadd.f32 %v3733, %v4283
    %v4285 = vpop.f32.mrf.mxu0
    %v4286 = vpop.f32.mrf.mxu0
    %v4287 = vadd.f32 %v3736, %v4286
    %v4288 = vpop.f32.mrf.mxu0
    %4289 = vmatprep.mubr.bf16.mxu0 0
    %4290 = vmatmul.mubr.bf16.gmra.mxu0 %v4022
    %v4291 = vpop.f32.mrf.mxu0
    %v4292 = vadd.f32 %v3741, %v4291
    %v4293 = vpop.f32.mrf.mxu0
    %v4294 = vpop.f32.mrf.mxu0
    %v4295 = vadd.f32 %v3744, %v4294
    %v4296 = vpop.f32.mrf.mxu0
    %4297 = vmatprep.mubr.bf16.mxu0 0
    %4298 = vmatmul.mubr.bf16.gmra.mxu0 %v4025
    %v4299 = vpop.f32.mrf.mxu0
    %v4300 = vadd.f32 %v3749, %v4299
    %v4301 = vpop.f32.mrf.mxu0
    %v4302 = vpop.f32.mrf.mxu0
    %v4303 = vadd.f32 %v3752, %v4302
    %v4304 = vpop.f32.mrf.mxu0
    %4305 = vmatprep.mubr.bf16.mxu0 0
    %4306 = vmatmul.mubr.bf16.gmra.mxu0 %v4028
    %v4307 = vpop.f32.mrf.mxu0
    %v4308 = vadd.f32 %v3757, %v4307
    %v4309 = vpop.f32.mrf.mxu0
    %v4310 = vpop.f32.mrf.mxu0
    %v4311 = vadd.f32 %v3760, %v4310
    %v4312 = vpop.f32.mrf.mxu0
    %4313 = vmatprep.mubr.bf16.mxu0 0
    %4314 = vmatmul.mubr.bf16.gmra.mxu0 %v4031
    %v4315 = vpop.f32.mrf.mxu0
    %v4316 = vadd.f32 %v3765, %v4315
    %v4317 = vpop.f32.mrf.mxu0
    %v4318 = vpop.f32.mrf.mxu0
    %v4319 = vadd.f32 %v3768, %v4318
    %v4320 = vpop.f32.mrf.mxu0
    %4321 = vdwg.mxu0
    %v4322 = vld [vmem:[#allocation2] sm:$0xe]
    %v4323 = vld [vmem:[#allocation2 + $0xc] sm:$0xe]
    %v4324 = vld [vmem:[#allocation2 + $0x18] sm:$0xe]
    %v4325 = vld [vmem:[#allocation2 + $0x24] sm:$0xe]
    %v4326 = vld [vmem:[#allocation2 + $0x30] sm:$0xe]
    %v4327 = vld [vmem:[#allocation2 + $0x3c] sm:$0xe]
    %v4328 = vld [vmem:[#allocation2 + $0x48] sm:$0xe]
    %v4329 = vld [vmem:[#allocation2 + $0x54] sm:$0xe]
    %v4330 = vld [vmem:[#allocation2 + $0x60] sm:$0xe]
    %v4331 = vld [vmem:[#allocation2 + $0x6c] sm:$0xe]
    %v4332 = vld [vmem:[#allocation2 + $0x78] sm:$0xe]
    %v4333 = vld [vmem:[#allocation2 + $0x84] sm:$0xe]
    %v4334 = vld [vmem:[#allocation2 + $0x90] sm:$0xe]
    %v4335 = vld [vmem:[#allocation2 + $0x9c] sm:$0xe]
    %v4336 = vld [vmem:[#allocation2 + $0xa8] sm:$0xe]
    %v4337 = vld [vmem:[#allocation2 + $0xb4] sm:$0xe]
    %v4338 = vld [vmem:[#allocation2 + $0xd8] sm:$0xe]
    %v4339 = vld [vmem:[#allocation2 + $0xe4] sm:$0xe]
    %v4340 = vld [vmem:[#allocation2 + $0xf0] sm:$0xe]
    %v4341 = vld [vmem:[#allocation2 + $0xfc] sm:$0xe]
    %v4342 = vld [vmem:[#allocation2 + $0x108] sm:$0xe]
    %v4343 = vld [vmem:[#allocation2 + $0x114] sm:$0xe]
    %v4344 = vld [vmem:[#allocation2 + $0x120] sm:$0xe]
    %v4345 = vld [vmem:[#allocation2 + $0x12c] sm:$0xe]
    %v4346 = vld [vmem:[#allocation2 + $0x138] sm:$0xe]
    %v4347 = vld [vmem:[#allocation2 + $0x144] sm:$0xe]
    %v4348 = vld [vmem:[#allocation2 + $0x150] sm:$0xe]
    %v4349 = vld [vmem:[#allocation2 + $0x15c] sm:$0xe]
    %v4350 = vld [vmem:[#allocation2 + $0x168] sm:$0xe]
    %v4351 = vld [vmem:[#allocation2 + $0x174] sm:$0xe]
    %v4352 = vld [vmem:[#allocation2 + $0x180] sm:$0xe]
    %v4353 = vld [vmem:[#allocation2 + $0x18c] sm:$0xe]
    %vm4418 = vcmask 1042432
    %vm4419 = vcmask 1046532
    %vm4420 = vmor %vm4418, %vm4419
    %v4421 = vrot.slane %v4322, 5
    %v4422 = vrot.slane %v4421, 4
    %v4423 = vrot.slane %v2418, 5
    %v4424 = vsel %vm4420, %v4422, %v4423
    %v4425 = vrot.slane %v4423, 4
    %v4426 = vrot.slane %v2481, 5
    %v4427 = vsel %vm4420, %v4425, %v4426
    %v4428 = vrot.slane %v4323, 5
    %v4429 = vrot.slane %v4428, 4
    %v4430 = vrot.slane %v2420, 5
    %v4431 = vsel %vm4420, %v4429, %v4430
    %v4432 = vrot.slane %v4430, 4
    %v4433 = vrot.slane %v2482, 5
    %v4434 = vsel %vm4420, %v4432, %v4433
    %v4435 = vrot.slane %v4324, 5
    %v4436 = vrot.slane %v4435, 4
    %v4437 = vrot.slane %v2422, 5
    %v4438 = vsel %vm4420, %v4436, %v4437
    %v4439 = vrot.slane %v4437, 4
    %v4440 = vrot.slane %v2483, 5
    %v4441 = vsel %vm4420, %v4439, %v4440
    %v4442 = vrot.slane %v4325, 5
    %v4443 = vrot.slane %v4442, 4
    %v4444 = vrot.slane %v2424, 5
    %v4445 = vsel %vm4420, %v4443, %v4444
    %v4446 = vrot.slane %v4444, 4
    %v4447 = vrot.slane %v2484, 5
    %v4448 = vsel %vm4420, %v4446, %v4447
    %v4449 = vrot.slane %v4326, 5
    %v4450 = vrot.slane %v4449, 4
    %v4451 = vrot.slane %v2426, 5
    %v4452 = vsel %vm4420, %v4450, %v4451
    %v4453 = vrot.slane %v4451, 4
    %v4454 = vrot.slane %v2485, 5
    %v4455 = vsel %vm4420, %v4453, %v4454
    %v4456 = vrot.slane %v4327, 5
    %v4457 = vrot.slane %v4456, 4
    %v4458 = vrot.slane %v2428, 5
    %v4459 = vsel %vm4420, %v4457, %v4458
    %v4460 = vrot.slane %v4458, 4
    %v4461 = vrot.slane %v2486, 5
    %v4462 = vsel %vm4420, %v4460, %v4461
    %v4463 = vrot.slane %v4328, 5
    %v4464 = vrot.slane %v4463, 4
    %v4465 = vrot.slane %v2430, 5
    %v4466 = vsel %vm4420, %v4464, %v4465
    %v4467 = vrot.slane %v4465, 4
    %v4468 = vrot.slane %v2487, 5
    %v4469 = vsel %vm4420, %v4467, %v4468
    %v4470 = vrot.slane %v4329, 5
    %v4471 = vrot.slane %v4470, 4
    %v4472 = vrot.slane %v2432, 5
    %v4473 = vsel %vm4420, %v4471, %v4472
    %v4474 = vrot.slane %v4472, 4
    %v4475 = vrot.slane %v2488, 5
    %v4476 = vsel %vm4420, %v4474, %v4475
    %v4477 = vrot.slane %v4330, 5
    %v4478 = vrot.slane %v4477, 4
    %v4479 = vrot.slane %v2434, 5
    %v4480 = vsel %vm4420, %v4478, %v4479
    %v4481 = vrot.slane %v4479, 4
    %v4482 = vrot.slane %v2489, 5
    %v4483 = vsel %vm4420, %v4481, %v4482
    %v4484 = vrot.slane %v4331, 5
    %v4485 = vrot.slane %v4484, 4
    %v4486 = vrot.slane %v2436, 5
    %v4487 = vsel %vm4420, %v4485, %v4486
    %v4488 = vrot.slane %v4486, 4
    %v4489 = vrot.slane %v2490, 5
    %v4490 = vsel %vm4420, %v4488, %v4489
    %v4491 = vrot.slane %v4332, 5
    %v4492 = vrot.slane %v4491, 4
    %v4493 = vrot.slane %v2438, 5
    %v4494 = vsel %vm4420, %v4492, %v4493
    %v4495 = vrot.slane %v4493, 4
    %v4496 = vrot.slane %v2491, 5
    %v4497 = vsel %vm4420, %v4495, %v4496
    %v4498 = vrot.slane %v4333, 5
    %v4499 = vrot.slane %v4498, 4
    %v4500 = vrot.slane %v2440, 5
    %v4501 = vsel %vm4420, %v4499, %v4500
    %v4502 = vrot.slane %v4500, 4
    %v4503 = vrot.slane %v2492, 5
    %v4504 = vsel %vm4420, %v4502, %v4503
    %v4505 = vrot.slane %v4334, 5
    %v4506 = vrot.slane %v4505, 4
    %v4507 = vrot.slane %v2442, 5
    %v4508 = vsel %vm4420, %v4506, %v4507
    %v4509 = vrot.slane %v4507, 4
    %v4510 = vrot.slane %v2493, 5
    %v4511 = vsel %vm4420, %v4509, %v4510
    %v4512 = vrot.slane %v4335, 5
    %v4513 = vrot.slane %v4512, 4
    %v4514 = vrot.slane %v2444, 5
    %v4515 = vsel %vm4420, %v4513, %v4514
    %v4516 = vrot.slane %v4514, 4
    %v4517 = vrot.slane %v2494, 5
    %v4518 = vsel %vm4420, %v4516, %v4517
    %v4519 = vrot.slane %v4336, 5
    %v4520 = vrot.slane %v4519, 4
    %v4521 = vrot.slane %v2446, 5
    %v4522 = vsel %vm4420, %v4520, %v4521
    %v4523 = vrot.slane %v4521, 4
    %v4524 = vrot.slane %v2495, 5
    %v4525 = vsel %vm4420, %v4523, %v4524
    %v4526 = vrot.slane %v4337, 5
    %v4527 = vrot.slane %v4526, 4
    %v4528 = vrot.slane %v2448, 5
    %v4529 = vsel %vm4420, %v4527, %v4528
    %v4530 = vrot.slane %v4528, 4
    %v4531 = vrot.slane %v2496, 5
    %v4532 = vsel %vm4420, %v4530, %v4531
    %v4533 = vrot.slane %v4338, 5
    %v4534 = vrot.slane %v4533, 4
    %v4535 = vrot.slane %v2450, 5
    %v4536 = vsel %vm4420, %v4534, %v4535
    %v4537 = vrot.slane %v4535, 4
    %v4538 = vrot.slane %v2497, 5
    %v4539 = vsel %vm4420, %v4537, %v4538
    %v4540 = vrot.slane %v4339, 5
    %v4541 = vrot.slane %v4540, 4
    %v4542 = vrot.slane %v2452, 5
    %v4543 = vsel %vm4420, %v4541, %v4542
    %v4544 = vrot.slane %v4542, 4
    %v4545 = vrot.slane %v2498, 5
    %v4546 = vsel %vm4420, %v4544, %v4545
    %v4547 = vrot.slane %v4340, 5
    %v4548 = vrot.slane %v4547, 4
    %v4549 = vrot.slane %v2454, 5
    %v4550 = vsel %vm4420, %v4548, %v4549
    %v4551 = vrot.slane %v4549, 4
    %v4552 = vrot.slane %v2499, 5
    %v4553 = vsel %vm4420, %v4551, %v4552
    %v4554 = vrot.slane %v4341, 5
    %v4555 = vrot.slane %v4554, 4
    %v4556 = vrot.slane %v2456, 5
    %v4557 = vsel %vm4420, %v4555, %v4556
    %v4558 = vrot.slane %v4556, 4
    %v4559 = vrot.slane %v2500, 5
    %v4560 = vsel %vm4420, %v4558, %v4559
    %v4561 = vrot.slane %v4342, 5
    %v4562 = vrot.slane %v4561, 4
    %v4563 = vrot.slane %v2458, 5
    %v4564 = vsel %vm4420, %v4562, %v4563
    %v4565 = vrot.slane %v4563, 4
    %v4566 = vrot.slane %v2501, 5
    %v4567 = vsel %vm4420, %v4565, %v4566
    %v4568 = vrot.slane %v4343, 5
    %v4569 = vrot.slane %v4568, 4
    %v4570 = vrot.slane %v2460, 5
    %v4571 = vsel %vm4420, %v4569, %v4570
    %v4572 = vrot.slane %v4570, 4
    %v4573 = vrot.slane %v2502, 5
    %v4574 = vsel %vm4420, %v4572, %v4573
    %v4575 = vrot.slane %v4344, 5
    %v4576 = vrot.slane %v4575, 4
    %v4577 = vrot.slane %v2462, 5
    %v4578 = vsel %vm4420, %v4576, %v4577
    %v4579 = vrot.slane %v4577, 4
    %v4580 = vrot.slane %v2503, 5
    %v4581 = vsel %vm4420, %v4579, %v4580
    %v4582 = vrot.slane %v4345, 5
    %v4583 = vrot.slane %v4582, 4
    %v4584 = vrot.slane %v2464, 5
    %v4585 = vsel %vm4420, %v4583, %v4584
    %v4586 = vrot.slane %v4584, 4
    %v4587 = vrot.slane %v2504, 5
    %v4588 = vsel %vm4420, %v4586, %v4587
    %v4589 = vrot.slane %v4346, 5
    %v4590 = vrot.slane %v4589, 4
    %v4591 = vrot.slane %v2466, 5
    %v4592 = vsel %vm4420, %v4590, %v4591
    %v4593 = vrot.slane %v4591, 4
    %v4594 = vrot.slane %v2505, 5
    %v4595 = vsel %vm4420, %v4593, %v4594
    %v4596 = vrot.slane %v4347, 5
    %v4597 = vrot.slane %v4596, 4
    %v4598 = vrot.slane %v2468, 5
    %v4599 = vsel %vm4420, %v4597, %v4598
    %v4600 = vrot.slane %v4598, 4
    %v4601 = vrot.slane %v2506, 5
    %v4602 = vsel %vm4420, %v4600, %v4601
    %v4603 = vrot.slane %v4348, 5
    %v4604 = vrot.slane %v4603, 4
    %v4605 = vrot.slane %v2470, 5
    %v4606 = vsel %vm4420, %v4604, %v4605
    %v4607 = vrot.slane %v4605, 4
    %v4608 = vrot.slane %v2507, 5
    %v4609 = vsel %vm4420, %v4607, %v4608
    %v4610 = vrot.slane %v4349, 5
    %v4611 = vrot.slane %v4610, 4
    %v4612 = vrot.slane %v2472, 5
    %v4613 = vsel %vm4420, %v4611, %v4612
    %v4614 = vrot.slane %v4612, 4
    %v4615 = vrot.slane %v2508, 5
    %v4616 = vsel %vm4420, %v4614, %v4615
    %v4617 = vrot.slane %v4350, 5
    %v4618 = vrot.slane %v4617, 4
    %v4619 = vrot.slane %v2474, 5
    %v4620 = vsel %vm4420, %v4618, %v4619
    %v4621 = vrot.slane %v4619, 4
    %v4622 = vrot.slane %v2509, 5
    %v4623 = vsel %vm4420, %v4621, %v4622
    %v4624 = vrot.slane %v4351, 5
    %v4625 = vrot.slane %v4624, 4
    %v4626 = vrot.slane %v2476, 5
    %v4627 = vsel %vm4420, %v4625, %v4626
    %v4628 = vrot.slane %v4626, 4
    %v4629 = vrot.slane %v2510, 5
    %v4630 = vsel %vm4420, %v4628, %v4629
    %v4631 = vrot.slane %v4352, 5
    %v4632 = vrot.slane %v4631, 4
    %v4633 = vrot.slane %v2478, 5
    %v4634 = vsel %vm4420, %v4632, %v4633
    %v4635 = vrot.slane %v4633, 4
    %v4636 = vrot.slane %v2511, 5
    %v4637 = vsel %vm4420, %v4635, %v4636
    %v4638 = vrot.slane %v4353, 5
    %v4639 = vrot.slane %v4638, 4
    %v4640 = vrot.slane %v2480, 5
    %v4641 = vsel %vm4420, %v4639, %v4640
    %v4642 = vrot.slane %v4640, 4
    %v4643 = vrot.slane %v2512, 5
    %v4644 = vsel %vm4420, %v4642, %v4643
    %v4645 = vunpack.c.l.b16 %v4424
    %v4646 = vunpack.c.l.b16 %v4427
    %v4647 = vunpack.c.l.b16 %v4431
    %v4648 = vunpack.c.l.b16 %v4434
    %v4649 = vunpack.c.l.b16 %v4438
    %v4650 = vunpack.c.l.b16 %v4441
    %v4651 = vunpack.c.l.b16 %v4445
    %v4652 = vunpack.c.l.b16 %v4448
    %v4653 = vunpack.c.l.b16 %v4452
    %v4654 = vunpack.c.l.b16 %v4455
    %v4655 = vunpack.c.l.b16 %v4459
    %v4656 = vunpack.c.l.b16 %v4462
    %v4657 = vunpack.c.l.b16 %v4466
    %v4658 = vunpack.c.l.b16 %v4469
    %v4659 = vunpack.c.l.b16 %v4473
    %v4660 = vunpack.c.l.b16 %v4476
    %v4661 = vunpack.c.l.b16 %v4480
    %v4662 = vunpack.c.l.b16 %v4483
    %v4663 = vunpack.c.l.b16 %v4487
    %v4664 = vunpack.c.l.b16 %v4490
    %v4665 = vunpack.c.l.b16 %v4494
    %v4666 = vunpack.c.l.b16 %v4497
    %v4667 = vunpack.c.l.b16 %v4501
    %v4668 = vunpack.c.l.b16 %v4504
    %v4669 = vunpack.c.l.b16 %v4508
    %v4670 = vunpack.c.l.b16 %v4511
    %v4671 = vunpack.c.l.b16 %v4515
    %v4672 = vunpack.c.l.b16 %v4518
    %v4673 = vunpack.c.l.b16 %v4522
    %v4674 = vunpack.c.l.b16 %v4525
    %v4675 = vunpack.c.l.b16 %v4529
    %v4676 = vunpack.c.l.b16 %v4532
    %v4677 = vunpack.c.l.b16 %v4536
    %v4678 = vunpack.c.l.b16 %v4539
    %v4679 = vunpack.c.l.b16 %v4543
    %v4680 = vunpack.c.l.b16 %v4546
    %v4681 = vunpack.c.l.b16 %v4550
    %v4682 = vunpack.c.l.b16 %v4553
    %v4683 = vunpack.c.l.b16 %v4557
    %v4684 = vunpack.c.l.b16 %v4560
    %v4685 = vunpack.c.l.b16 %v4564
    %v4686 = vunpack.c.l.b16 %v4567
    %v4687 = vunpack.c.l.b16 %v4571
    %v4688 = vunpack.c.l.b16 %v4574
    %v4689 = vunpack.c.l.b16 %v4578
    %v4690 = vunpack.c.l.b16 %v4581
    %v4691 = vunpack.c.l.b16 %v4585
    %v4692 = vunpack.c.l.b16 %v4588
    %v4693 = vunpack.c.l.b16 %v4592
    %v4694 = vunpack.c.l.b16 %v4595
    %v4695 = vunpack.c.l.b16 %v4599
    %v4696 = vunpack.c.l.b16 %v4602
    %v4697 = vunpack.c.l.b16 %v4606
    %v4698 = vunpack.c.l.b16 %v4609
    %v4699 = vunpack.c.l.b16 %v4613
    %v4700 = vunpack.c.l.b16 %v4616
    %v4701 = vunpack.c.l.b16 %v4620
    %v4702 = vunpack.c.l.b16 %v4623
    %v4703 = vunpack.c.l.b16 %v4627
    %v4704 = vunpack.c.l.b16 %v4630
    %v4705 = vunpack.c.l.b16 %v4634
    %v4706 = vunpack.c.l.b16 %v4637
    %v4707 = vunpack.c.l.b16 %v4641
    %v4708 = vunpack.c.l.b16 %v4644
    %v4709 = vpack.c.b16 %v4646, %v4645
    %v4710 = vpack.c.b16 %v4648, %v4647
    %v4711 = vpack.c.b16 %v4650, %v4649
    %v4712 = vpack.c.b16 %v4652, %v4651
    %v4713 = vpack.c.b16 %v4654, %v4653
    %v4714 = vpack.c.b16 %v4656, %v4655
    %v4715 = vpack.c.b16 %v4658, %v4657
    %v4716 = vpack.c.b16 %v4660, %v4659
    %v4717 = vpack.c.b16 %v4662, %v4661
    %v4718 = vpack.c.b16 %v4664, %v4663
    %v4719 = vpack.c.b16 %v4666, %v4665
    %v4720 = vpack.c.b16 %v4668, %v4667
    %v4721 = vpack.c.b16 %v4670, %v4669
    %v4722 = vpack.c.b16 %v4672, %v4671
    %v4723 = vpack.c.b16 %v4674, %v4673
    %v4724 = vpack.c.b16 %v4676, %v4675
    %v4725 = vpack.c.b16 %v4678, %v4677
    %v4726 = vpack.c.b16 %v4680, %v4679
    %v4727 = vpack.c.b16 %v4682, %v4681
    %v4728 = vpack.c.b16 %v4684, %v4683
    %v4729 = vpack.c.b16 %v4686, %v4685
    %v4730 = vpack.c.b16 %v4688, %v4687
    %v4731 = vpack.c.b16 %v4690, %v4689
    %v4732 = vpack.c.b16 %v4692, %v4691
    %v4733 = vpack.c.b16 %v4694, %v4693
    %v4734 = vpack.c.b16 %v4696, %v4695
    %v4735 = vpack.c.b16 %v4698, %v4697
    %v4736 = vpack.c.b16 %v4700, %v4699
    %v4737 = vpack.c.b16 %v4702, %v4701
    %v4738 = vpack.c.b16 %v4704, %v4703
    %v4739 = vpack.c.b16 %v4706, %v4705
    %v4740 = vpack.c.b16 %v4708, %v4707
    %v4743 = vunpack.c.l.b16 %v2403
    %v4744 = vunpack.c.l.b16 %v2404
    %v4745 = vpack.c.b16 %v4744, %v4743
    %v4748 = vsel %vm581, %v4709, 0
    %v4751 = vsel %vm581, %v4710, 0
    %v4754 = vsel %vm581, %v4711, 0
    %v4757 = vsel %vm581, %v4712, 0
    %v4760 = vsel %vm581, %v4713, 0
    %v4763 = vsel %vm581, %v4714, 0
    %v4766 = vsel %vm581, %v4715, 0
    %v4769 = vsel %vm581, %v4716, 0
    %v4772 = vsel %vm581, %v4717, 0
    %v4775 = vsel %vm581, %v4718, 0
    %v4778 = vsel %vm581, %v4719, 0
    %v4781 = vsel %vm581, %v4720, 0
    %v4784 = vsel %vm581, %v4721, 0
    %v4787 = vsel %vm581, %v4722, 0
    %v4790 = vsel %vm581, %v4723, 0
    %v4793 = vsel %vm581, %v4724, 0
    %v4796 = vsel %vm581, %v4725, 0
    %v4799 = vsel %vm581, %v4726, 0
    %v4802 = vsel %vm581, %v4727, 0
    %v4805 = vsel %vm581, %v4728, 0
    %v4808 = vsel %vm581, %v4729, 0
    %v4811 = vsel %vm581, %v4730, 0
    %v4814 = vsel %vm581, %v4731, 0
    %v4817 = vsel %vm581, %v4732, 0
    %v4820 = vsel %vm581, %v4733, 0
    %v4823 = vsel %vm581, %v4734, 0
    %v4826 = vsel %vm581, %v4735, 0
    %v4829 = vsel %vm581, %v4736, 0
    %v4832 = vsel %vm581, %v4737, 0
    %v4835 = vsel %vm581, %v4738, 0
    %v4838 = vsel %vm581, %v4739, 0
    %v4841 = vsel %vm581, %v4740, 0
    %4843 = vmatprep.subr.bf16.mxu0 0
    %4844 = vmatpush1.bf16.msra.mxu0 0
    %4845 = vmatprep.subr.bf16.mxu0 0
    %4846 = vmatpush1.bf16.msra.mxu0 0
    %4847 = vmatprep.subr.bf16.mxu0 0
    %4848 = vmatpush1.bf16.msra.mxu0 0
    %4849 = vmatprep.subr.bf16.mxu0 0
    %4850 = vmatpush1.bf16.msra.mxu0 0
    %4851 = vmatprep.subr.bf16.mxu0 0
    %4852 = vmatpush1.bf16.msra.mxu0 0
    %4853 = vmatprep.subr.bf16.mxu0 0
    %4854 = vmatpush1.bf16.msra.mxu0 0
    %4855 = vmatprep.subr.bf16.mxu0 0
    %4856 = vmatpush1.bf16.msra.mxu0 0
    %4857 = vmatprep.subr.bf16.mxu0 0
    %4858 = vmatpush1.bf16.msra.mxu0 %v4745
    %4859 = vmatprep.subr.bf16.mxu0 0
    %4860 = vmatpush2.bf16.msra.mxu0 0
    %4861 = vmatprep.subr.bf16.mxu0 0
    %4862 = vmatpush2.bf16.msra.mxu0 0
    %4863 = vmatprep.subr.bf16.mxu0 0
    %4864 = vmatpush2.bf16.msra.mxu0 0
    %4865 = vmatprep.subr.bf16.mxu0 0
    %4866 = vmatpush2.bf16.msra.mxu0 0
    %4867 = vmatprep.subr.bf16.mxu0 0
    %4868 = vmatpush2.bf16.msra.mxu0 0
    %4869 = vmatprep.subr.bf16.mxu0 0
    %4870 = vmatpush2.bf16.msra.mxu0 0
    %4871 = vmatprep.subr.bf16.mxu0 0
    %4872 = vmatpush2.bf16.msra.mxu0 0
    %4873 = vmatprep.subr.bf16.mxu0 0
    %4874 = vmatpush2.bf16.msra.mxu0 0
    %4875 = vmatprep.mubr.bf16.mxu0 0
    %4876 = vmatmul.mubr.bf16.gmra.mxu0 %v4748
    %v4877 = vpop.f32.mrf.mxu0
    %v4878 = vadd.f32 0.0, %v4877
    %v4879 = vpop.f32.mrf.mxu0
    %v4880 = vpop.f32.mrf.mxu0
    %v4881 = vadd.f32 0.0, %v4880
    %v4882 = vpop.f32.mrf.mxu0
    %4883 = vmatprep.mubr.bf16.mxu0 0
    %4884 = vmatmul.mubr.bf16.gmra.mxu0 %v4751
    %v4885 = vpop.f32.mrf.mxu0
    %v4886 = vadd.f32 0.0, %v4885
    %v4887 = vpop.f32.mrf.mxu0
    %v4888 = vpop.f32.mrf.mxu0
    %v4889 = vadd.f32 0.0, %v4888
    %v4890 = vpop.f32.mrf.mxu0
    %4891 = vmatprep.mubr.bf16.mxu0 0
    %4892 = vmatmul.mubr.bf16.gmra.mxu0 %v4754
    %v4893 = vpop.f32.mrf.mxu0
    %v4894 = vadd.f32 0.0, %v4893
    %v4895 = vpop.f32.mrf.mxu0
    %v4896 = vpop.f32.mrf.mxu0
    %v4897 = vadd.f32 0.0, %v4896
    %v4898 = vpop.f32.mrf.mxu0
    %4899 = vmatprep.mubr.bf16.mxu0 0
    %4900 = vmatmul.mubr.bf16.gmra.mxu0 %v4757
    %v4901 = vpop.f32.mrf.mxu0
    %v4902 = vadd.f32 0.0, %v4901
    %v4903 = vpop.f32.mrf.mxu0
    %v4904 = vpop.f32.mrf.mxu0
    %v4905 = vadd.f32 0.0, %v4904
    %v4906 = vpop.f32.mrf.mxu0
    %4907 = vmatprep.mubr.bf16.mxu0 0
    %4908 = vmatmul.mubr.bf16.gmra.mxu0 %v4760
    %v4909 = vpop.f32.mrf.mxu0
    %v4910 = vadd.f32 0.0, %v4909
    %v4911 = vpop.f32.mrf.mxu0
    %v4912 = vpop.f32.mrf.mxu0
    %v4913 = vadd.f32 0.0, %v4912
    %v4914 = vpop.f32.mrf.mxu0
    %4915 = vmatprep.mubr.bf16.mxu0 0
    %4916 = vmatmul.mubr.bf16.gmra.mxu0 %v4763
    %v4917 = vpop.f32.mrf.mxu0
    %v4918 = vadd.f32 0.0, %v4917
    %v4919 = vpop.f32.mrf.mxu0
    %v4920 = vpop.f32.mrf.mxu0
    %v4921 = vadd.f32 0.0, %v4920
    %v4922 = vpop.f32.mrf.mxu0
    %4923 = vmatprep.mubr.bf16.mxu0 0
    %4924 = vmatmul.mubr.bf16.gmra.mxu0 %v4766
    %v4925 = vpop.f32.mrf.mxu0
    %v4926 = vadd.f32 0.0, %v4925
    %v4927 = vpop.f32.mrf.mxu0
    %v4928 = vpop.f32.mrf.mxu0
    %v4929 = vadd.f32 0.0, %v4928
    %v4930 = vpop.f32.mrf.mxu0
    %4931 = vmatprep.mubr.bf16.mxu0 0
    %4932 = vmatmul.mubr.bf16.gmra.mxu0 %v4769
    %v4933 = vpop.f32.mrf.mxu0
    %v4934 = vadd.f32 0.0, %v4933
    %v4935 = vpop.f32.mrf.mxu0
    %v4936 = vpop.f32.mrf.mxu0
    %v4937 = vadd.f32 0.0, %v4936
    %v4938 = vpop.f32.mrf.mxu0
    %4939 = vmatprep.mubr.bf16.mxu0 0
    %4940 = vmatmul.mubr.bf16.gmra.mxu0 %v4772
    %v4941 = vpop.f32.mrf.mxu0
    %v4942 = vadd.f32 0.0, %v4941
    %v4943 = vpop.f32.mrf.mxu0
    %v4944 = vpop.f32.mrf.mxu0
    %v4945 = vadd.f32 0.0, %v4944
    %v4946 = vpop.f32.mrf.mxu0
    %4947 = vmatprep.mubr.bf16.mxu0 0
    %4948 = vmatmul.mubr.bf16.gmra.mxu0 %v4775
    %v4949 = vpop.f32.mrf.mxu0
    %v4950 = vadd.f32 0.0, %v4949
    %v4951 = vpop.f32.mrf.mxu0
    %v4952 = vpop.f32.mrf.mxu0
    %v4953 = vadd.f32 0.0, %v4952
    %v4954 = vpop.f32.mrf.mxu0
    %4955 = vmatprep.mubr.bf16.mxu0 0
    %4956 = vmatmul.mubr.bf16.gmra.mxu0 %v4778
    %v4957 = vpop.f32.mrf.mxu0
    %v4958 = vadd.f32 0.0, %v4957
    %v4959 = vpop.f32.mrf.mxu0
    %v4960 = vpop.f32.mrf.mxu0
    %v4961 = vadd.f32 0.0, %v4960
    %v4962 = vpop.f32.mrf.mxu0
    %4963 = vmatprep.mubr.bf16.mxu0 0
    %4964 = vmatmul.mubr.bf16.gmra.mxu0 %v4781
    %v4965 = vpop.f32.mrf.mxu0
    %v4966 = vadd.f32 0.0, %v4965
    %v4967 = vpop.f32.mrf.mxu0
    %v4968 = vpop.f32.mrf.mxu0
    %v4969 = vadd.f32 0.0, %v4968
    %v4970 = vpop.f32.mrf.mxu0
    %4971 = vmatprep.mubr.bf16.mxu0 0
    %4972 = vmatmul.mubr.bf16.gmra.mxu0 %v4784
    %v4973 = vpop.f32.mrf.mxu0
    %v4974 = vadd.f32 0.0, %v4973
    %v4975 = vpop.f32.mrf.mxu0
    %v4976 = vpop.f32.mrf.mxu0
    %v4977 = vadd.f32 0.0, %v4976
    %v4978 = vpop.f32.mrf.mxu0
    %4979 = vmatprep.mubr.bf16.mxu0 0
    %4980 = vmatmul.mubr.bf16.gmra.mxu0 %v4787
    %v4981 = vpop.f32.mrf.mxu0
    %v4982 = vadd.f32 0.0, %v4981
    %v4983 = vpop.f32.mrf.mxu0
    %v4984 = vpop.f32.mrf.mxu0
    %v4985 = vadd.f32 0.0, %v4984
    %v4986 = vpop.f32.mrf.mxu0
    %4987 = vmatprep.mubr.bf16.mxu0 0
    %4988 = vmatmul.mubr.bf16.gmra.mxu0 %v4790
    %v4989 = vpop.f32.mrf.mxu0
    %v4990 = vadd.f32 0.0, %v4989
    %v4991 = vpop.f32.mrf.mxu0
    %v4992 = vpop.f32.mrf.mxu0
    %v4993 = vadd.f32 0.0, %v4992
    %v4994 = vpop.f32.mrf.mxu0
    %4995 = vmatprep.mubr.bf16.mxu0 0
    %4996 = vmatmul.mubr.bf16.gmra.mxu0 %v4793
    %v4997 = vpop.f32.mrf.mxu0
    %v4998 = vadd.f32 0.0, %v4997
    %v4999 = vpop.f32.mrf.mxu0
    %v5000 = vpop.f32.mrf.mxu0
    %v5001 = vadd.f32 0.0, %v5000
    %v5002 = vpop.f32.mrf.mxu0
    %5003 = vmatprep.mubr.bf16.mxu0 0
    %5004 = vmatmul.mubr.bf16.gmra.mxu0 %v4796
    %v5005 = vpop.f32.mrf.mxu0
    %v5006 = vadd.f32 0.0, %v5005
    %v5007 = vpop.f32.mrf.mxu0
    %v5008 = vpop.f32.mrf.mxu0
    %v5009 = vadd.f32 0.0, %v5008
    %v5010 = vpop.f32.mrf.mxu0
    %5011 = vmatprep.mubr.bf16.mxu0 0
    %5012 = vmatmul.mubr.bf16.gmra.mxu0 %v4799
    %v5013 = vpop.f32.mrf.mxu0
    %v5014 = vadd.f32 0.0, %v5013
    %v5015 = vpop.f32.mrf.mxu0
    %v5016 = vpop.f32.mrf.mxu0
    %v5017 = vadd.f32 0.0, %v5016
    %v5018 = vpop.f32.mrf.mxu0
    %5019 = vmatprep.mubr.bf16.mxu0 0
    %5020 = vmatmul.mubr.bf16.gmra.mxu0 %v4802
    %v5021 = vpop.f32.mrf.mxu0
    %v5022 = vadd.f32 0.0, %v5021
    %v5023 = vpop.f32.mrf.mxu0
    %v5024 = vpop.f32.mrf.mxu0
    %v5025 = vadd.f32 0.0, %v5024
    %v5026 = vpop.f32.mrf.mxu0
    %5027 = vmatprep.mubr.bf16.mxu0 0
    %5028 = vmatmul.mubr.bf16.gmra.mxu0 %v4805
    %v5029 = vpop.f32.mrf.mxu0
    %v5030 = vadd.f32 0.0, %v5029
    %v5031 = vpop.f32.mrf.mxu0
    %v5032 = vpop.f32.mrf.mxu0
    %v5033 = vadd.f32 0.0, %v5032
    %v5034 = vpop.f32.mrf.mxu0
    %5035 = vmatprep.mubr.bf16.mxu0 0
    %5036 = vmatmul.mubr.bf16.gmra.mxu0 %v4808
    %v5037 = vpop.f32.mrf.mxu0
    %v5038 = vadd.f32 0.0, %v5037
    %v5039 = vpop.f32.mrf.mxu0
    %v5040 = vpop.f32.mrf.mxu0
    %v5041 = vadd.f32 0.0, %v5040
    %v5042 = vpop.f32.mrf.mxu0
    %5043 = vmatprep.mubr.bf16.mxu0 0
    %5044 = vmatmul.mubr.bf16.gmra.mxu0 %v4811
    %v5045 = vpop.f32.mrf.mxu0
    %v5046 = vadd.f32 0.0, %v5045
    %v5047 = vpop.f32.mrf.mxu0
    %v5048 = vpop.f32.mrf.mxu0
    %v5049 = vadd.f32 0.0, %v5048
    %v5050 = vpop.f32.mrf.mxu0
    %5051 = vmatprep.mubr.bf16.mxu0 0
    %5052 = vmatmul.mubr.bf16.gmra.mxu0 %v4814
    %v5053 = vpop.f32.mrf.mxu0
    %v5054 = vadd.f32 0.0, %v5053
    %v5055 = vpop.f32.mrf.mxu0
    %v5056 = vpop.f32.mrf.mxu0
    %v5057 = vadd.f32 0.0, %v5056
    %v5058 = vpop.f32.mrf.mxu0
    %5059 = vmatprep.mubr.bf16.mxu0 0
    %5060 = vmatmul.mubr.bf16.gmra.mxu0 %v4817
    %v5061 = vpop.f32.mrf.mxu0
    %v5062 = vadd.f32 0.0, %v5061
    %v5063 = vpop.f32.mrf.mxu0
    %v5064 = vpop.f32.mrf.mxu0
    %v5065 = vadd.f32 0.0, %v5064
    %v5066 = vpop.f32.mrf.mxu0
    %5067 = vmatprep.mubr.bf16.mxu0 0
    %5068 = vmatmul.mubr.bf16.gmra.mxu0 %v4820
    %v5069 = vpop.f32.mrf.mxu0
    %v5070 = vadd.f32 0.0, %v5069
    %v5071 = vpop.f32.mrf.mxu0
    %v5072 = vpop.f32.mrf.mxu0
    %v5073 = vadd.f32 0.0, %v5072
    %v5074 = vpop.f32.mrf.mxu0
    %5075 = vmatprep.mubr.bf16.mxu0 0
    %5076 = vmatmul.mubr.bf16.gmra.mxu0 %v4823
    %v5077 = vpop.f32.mrf.mxu0
    %v5078 = vadd.f32 0.0, %v5077
    %v5079 = vpop.f32.mrf.mxu0
    %v5080 = vpop.f32.mrf.mxu0
    %v5081 = vadd.f32 0.0, %v5080
    %v5082 = vpop.f32.mrf.mxu0
    %5083 = vmatprep.mubr.bf16.mxu0 0
    %5084 = vmatmul.mubr.bf16.gmra.mxu0 %v4826
    %v5085 = vpop.f32.mrf.mxu0
    %v5086 = vadd.f32 0.0, %v5085
    %v5087 = vpop.f32.mrf.mxu0
    %v5088 = vpop.f32.mrf.mxu0
    %v5089 = vadd.f32 0.0, %v5088
    %v5090 = vpop.f32.mrf.mxu0
    %5091 = vmatprep.mubr.bf16.mxu0 0
    %5092 = vmatmul.mubr.bf16.gmra.mxu0 %v4829
    %v5093 = vpop.f32.mrf.mxu0
    %v5094 = vadd.f32 0.0, %v5093
    %v5095 = vpop.f32.mrf.mxu0
    %v5096 = vpop.f32.mrf.mxu0
    %v5097 = vadd.f32 0.0, %v5096
    %v5098 = vpop.f32.mrf.mxu0
    %5099 = vmatprep.mubr.bf16.mxu0 0
    %5100 = vmatmul.mubr.bf16.gmra.mxu0 %v4832
    %v5101 = vpop.f32.mrf.mxu0
    %v5102 = vadd.f32 0.0, %v5101
    %v5103 = vpop.f32.mrf.mxu0
    %v5104 = vpop.f32.mrf.mxu0
    %v5105 = vadd.f32 0.0, %v5104
    %v5106 = vpop.f32.mrf.mxu0
    %5107 = vmatprep.mubr.bf16.mxu0 0
    %5108 = vmatmul.mubr.bf16.gmra.mxu0 %v4835
    %v5109 = vpop.f32.mrf.mxu0
    %v5110 = vadd.f32 0.0, %v5109
    %v5111 = vpop.f32.mrf.mxu0
    %v5112 = vpop.f32.mrf.mxu0
    %v5113 = vadd.f32 0.0, %v5112
    %v5114 = vpop.f32.mrf.mxu0
    %5115 = vmatprep.mubr.bf16.mxu0 0
    %5116 = vmatmul.mubr.bf16.gmra.mxu0 %v4838
    %v5117 = vpop.f32.mrf.mxu0
    %v5118 = vadd.f32 0.0, %v5117
    %v5119 = vpop.f32.mrf.mxu0
    %v5120 = vpop.f32.mrf.mxu0
    %v5121 = vadd.f32 0.0, %v5120
    %v5122 = vpop.f32.mrf.mxu0
    %5123 = vmatprep.mubr.bf16.mxu0 0
    %5124 = vmatmul.mubr.bf16.gmra.mxu0 %v4841
    %v5125 = vpop.f32.mrf.mxu0
    %v5126 = vadd.f32 0.0, %v5125
    %v5127 = vpop.f32.mrf.mxu0
    %v5128 = vpop.f32.mrf.mxu0
    %v5129 = vadd.f32 0.0, %v5128
    %v5130 = vpop.f32.mrf.mxu0
    %5131 = vdwg.mxu0
    %v5132 = vadd.f32 %v4068, %v4878
    %v5133 = vadd.f32 %v4071, %v4881
    %v5134 = vadd.f32 %v4076, %v4886
    %v5135 = vadd.f32 %v4079, %v4889
    %v5136 = vadd.f32 %v4084, %v4894
    %v5137 = vadd.f32 %v4087, %v4897
    %v5138 = vadd.f32 %v4092, %v4902
    %v5139 = vadd.f32 %v4095, %v4905
    %v5140 = vadd.f32 %v4100, %v4910
    %v5141 = vadd.f32 %v4103, %v4913
    %v5142 = vadd.f32 %v4108, %v4918
    %v5143 = vadd.f32 %v4111, %v4921
    %v5144 = vadd.f32 %v4116, %v4926
    %v5145 = vadd.f32 %v4119, %v4929
    %v5146 = vadd.f32 %v4124, %v4934
    %v5147 = vadd.f32 %v4127, %v4937
    %v5148 = vadd.f32 %v4132, %v4942
    %v5149 = vadd.f32 %v4135, %v4945
    %v5150 = vadd.f32 %v4140, %v4950
    %v5151 = vadd.f32 %v4143, %v4953
    %v5152 = vadd.f32 %v4148, %v4958
    %v5153 = vadd.f32 %v4151, %v4961
    %v5154 = vadd.f32 %v4156, %v4966
    %v5155 = vadd.f32 %v4159, %v4969
    %v5156 = vadd.f32 %v4164, %v4974
    %v5157 = vadd.f32 %v4167, %v4977
    %v5158 = vadd.f32 %v4172, %v4982
    %v5159 = vadd.f32 %v4175, %v4985
    %v5160 = vadd.f32 %v4180, %v4990
    %v5161 = vadd.f32 %v4183, %v4993
    %v5162 = vadd.f32 %v4188, %v4998
    %v5163 = vadd.f32 %v4191, %v5001
    %v5164 = vadd.f32 %v4196, %v5006
    %v5165 = vadd.f32 %v4199, %v5009
    %v5166 = vadd.f32 %v4204, %v5014
    %v5167 = vadd.f32 %v4207, %v5017
    %v5168 = vadd.f32 %v4212, %v5022
    %v5169 = vadd.f32 %v4215, %v5025
    %v5170 = vadd.f32 %v4220, %v5030
    %v5171 = vadd.f32 %v4223, %v5033
    %v5172 = vadd.f32 %v4228, %v5038
    %v5173 = vadd.f32 %v4231, %v5041
    %v5174 = vadd.f32 %v4236, %v5046
    %v5175 = vadd.f32 %v4239, %v5049
    %v5176 = vadd.f32 %v4244, %v5054
    %v5177 = vadd.f32 %v4247, %v5057
    %v5178 = vadd.f32 %v4252, %v5062
    %v5179 = vadd.f32 %v4255, %v5065
    %v5180 = vadd.f32 %v4260, %v5070
    %v5181 = vadd.f32 %v4263, %v5073
    %v5182 = vadd.f32 %v4268, %v5078
    %v5183 = vadd.f32 %v4271, %v5081
    %v5184 = vadd.f32 %v4276, %v5086
    %v5185 = vadd.f32 %v4279, %v5089
    %v5186 = vadd.f32 %v4284, %v5094
    %v5187 = vadd.f32 %v4287, %v5097
    %v5188 = vadd.f32 %v4292, %v5102
    %v5189 = vadd.f32 %v4295, %v5105
    %v5190 = vadd.f32 %v4300, %v5110
    %v5191 = vadd.f32 %v4303, %v5113
    %v5192 = vadd.f32 %v4308, %v5118
    %v5193 = vadd.f32 %v4311, %v5121
    %v5194 = vadd.f32 %v4316, %v5126
    %v5195 = vadd.f32 %v4319, %v5129
    %v5196 = vld [vmem:[%s1173] sm:$0xf]
    %v5197 = vld [vmem:[%s1173 + $0x4] sm:$0xf]
    %v5198 = vld [vmem:[%s1173 + $0xc] sm:$0xf]
    %v5199 = vld [vmem:[%s1173 + $0x10] sm:$0xf]
    %v5200 = vld [vmem:[%s1173 + $0x18] sm:$0xf]
    %v5201 = vld [vmem:[%s1173 + $0x1c] sm:$0xf]
    %v5202 = vld [vmem:[%s1173 + $0x24] sm:$0xf]
    %v5203 = vld [vmem:[%s1173 + $0x28] sm:$0xf]
    %v5204 = vld [vmem:[%s1173 + $0x30] sm:$0xf]
    %v5205 = vld [vmem:[%s1173 + $0x34] sm:$0xf]
    %v5206 = vld [vmem:[%s1173 + $0x3c] sm:$0xf]
    %v5207 = vld [vmem:[%s1173 + $0x40] sm:$0xf]
    %v5208 = vld [vmem:[%s1173 + $0x48] sm:$0xf]
    %v5209 = vld [vmem:[%s1173 + $0x4c] sm:$0xf]
    %v5210 = vld [vmem:[%s1173 + $0x54] sm:$0xf]
    %v5211 = vld [vmem:[%s1173 + $0x58] sm:$0xf]
    %v5212 = vld [vmem:[%s1173 + $0x60] sm:$0xf]
    %v5213 = vld [vmem:[%s1173 + $0x64] sm:$0xf]
    %v5214 = vld [vmem:[%s1173 + $0x6c] sm:$0xf]
    %v5215 = vld [vmem:[%s1173 + $0x70] sm:$0xf]
    %v5216 = vld [vmem:[%s1173 + $0x78] sm:$0xf]
    %v5217 = vld [vmem:[%s1173 + $0x7c] sm:$0xf]
    %v5218 = vld [vmem:[%s1173 + $0x84] sm:$0xf]
    %v5219 = vld [vmem:[%s1173 + $0x88] sm:$0xf]
    %v5220 = vld [vmem:[%s1173 + $0x90] sm:$0xf]
    %v5221 = vld [vmem:[%s1173 + $0x94] sm:$0xf]
    %v5222 = vld [vmem:[%s1173 + $0x9c] sm:$0xf]
    %v5223 = vld [vmem:[%s1173 + $0xa0] sm:$0xf]
    %v5224 = vld [vmem:[%s1173 + $0xa8] sm:$0xf]
    %v5225 = vld [vmem:[%s1173 + $0xac] sm:$0xf]
    %v5226 = vld [vmem:[%s1173 + $0xb4] sm:$0xf]
    %v5227 = vld [vmem:[%s1173 + $0xb8] sm:$0xf]
    %v5228 = vld [vmem:[%s1173 + $0xd8] sm:$0xf]
    %v5229 = vld [vmem:[%s1173 + $0xdc] sm:$0xf]
    %v5230 = vld [vmem:[%s1173 + $0xe4] sm:$0xf]
    %v5231 = vld [vmem:[%s1173 + $0xe8] sm:$0xf]
    %v5232 = vld [vmem:[%s1173 + $0xf0] sm:$0xf]
    %v5233 = vld [vmem:[%s1173 + $0xf4] sm:$0xf]
    %v5234 = vld [vmem:[%s1173 + $0xfc] sm:$0xf]
    %v5235 = vld [vmem:[%s1173 + $0x100] sm:$0xf]
    %v5236 = vld [vmem:[%s1173 + $0x108] sm:$0xf]
    %v5237 = vld [vmem:[%s1173 + $0x10c] sm:$0xf]
    %v5238 = vld [vmem:[%s1173 + $0x114] sm:$0xf]
    %v5239 = vld [vmem:[%s1173 + $0x118] sm:$0xf]
    %v5240 = vld [vmem:[%s1173 + $0x120] sm:$0xf]
    %v5241 = vld [vmem:[%s1173 + $0x124] sm:$0xf]
    %v5242 = vld [vmem:[%s1173 + $0x12c] sm:$0xf]
    %v5243 = vld [vmem:[%s1173 + $0x130] sm:$0xf]
    %v5244 = vld [vmem:[%s1173 + $0x138] sm:$0xf]
    %v5245 = vld [vmem:[%s1173 + $0x13c] sm:$0xf]
    %v5246 = vld [vmem:[%s1173 + $0x144] sm:$0xf]
    %v5247 = vld [vmem:[%s1173 + $0x148] sm:$0xf]
    %v5248 = vld [vmem:[%s1173 + $0x150] sm:$0xf]
    %v5249 = vld [vmem:[%s1173 + $0x154] sm:$0xf]
    %v5250 = vld [vmem:[%s1173 + $0x15c] sm:$0xf]
    %v5251 = vld [vmem:[%s1173 + $0x160] sm:$0xf]
    %v5252 = vld [vmem:[%s1173 + $0x168] sm:$0xf]
    %v5253 = vld [vmem:[%s1173 + $0x16c] sm:$0xf]
    %v5254 = vld [vmem:[%s1173 + $0x174] sm:$0xf]
    %v5255 = vld [vmem:[%s1173 + $0x178] sm:$0xf]
    %v5256 = vld [vmem:[%s1173 + $0x180] sm:$0xf]
    %v5257 = vld [vmem:[%s1173 + $0x184] sm:$0xf]
    %v5258 = vld [vmem:[%s1173 + $0x18c] sm:$0xf]
    %v5259 = vld [vmem:[%s1173 + $0x190] sm:$0xf]
    %v5324 = vunpack.c.l.b16 %v5196
    %v5325 = vunpack.c.l.b16 %v5197
    %v5326 = vunpack.c.l.b16 %v5198
    %v5327 = vunpack.c.l.b16 %v5199
    %v5328 = vunpack.c.l.b16 %v5200
    %v5329 = vunpack.c.l.b16 %v5201
    %v5330 = vunpack.c.l.b16 %v5202
    %v5331 = vunpack.c.l.b16 %v5203
    %v5332 = vunpack.c.l.b16 %v5204
    %v5333 = vunpack.c.l.b16 %v5205
    %v5334 = vunpack.c.l.b16 %v5206
    %v5335 = vunpack.c.l.b16 %v5207
    %v5336 = vunpack.c.l.b16 %v5208
    %v5337 = vunpack.c.l.b16 %v5209
    %v5338 = vunpack.c.l.b16 %v5210
    %v5339 = vunpack.c.l.b16 %v5211
    %v5340 = vunpack.c.l.b16 %v5212
    %v5341 = vunpack.c.l.b16 %v5213
    %v5342 = vunpack.c.l.b16 %v5214
    %v5343 = vunpack.c.l.b16 %v5215
    %v5344 = vunpack.c.l.b16 %v5216
    %v5345 = vunpack.c.l.b16 %v5217
    %v5346 = vunpack.c.l.b16 %v5218
    %v5347 = vunpack.c.l.b16 %v5219
    %v5348 = vunpack.c.l.b16 %v5220
    %v5349 = vunpack.c.l.b16 %v5221
    %v5350 = vunpack.c.l.b16 %v5222
    %v5351 = vunpack.c.l.b16 %v5223
    %v5352 = vunpack.c.l.b16 %v5224
    %v5353 = vunpack.c.l.b16 %v5225
    %v5354 = vunpack.c.l.b16 %v5226
    %v5355 = vunpack.c.l.b16 %v5227
    %v5356 = vunpack.c.l.b16 %v5228
    %v5357 = vunpack.c.l.b16 %v5229
    %v5358 = vunpack.c.l.b16 %v5230
    %v5359 = vunpack.c.l.b16 %v5231
    %v5360 = vunpack.c.l.b16 %v5232
    %v5361 = vunpack.c.l.b16 %v5233
    %v5362 = vunpack.c.l.b16 %v5234
    %v5363 = vunpack.c.l.b16 %v5235
    %v5364 = vunpack.c.l.b16 %v5236
    %v5365 = vunpack.c.l.b16 %v5237
    %v5366 = vunpack.c.l.b16 %v5238
    %v5367 = vunpack.c.l.b16 %v5239
    %v5368 = vunpack.c.l.b16 %v5240
    %v5369 = vunpack.c.l.b16 %v5241
    %v5370 = vunpack.c.l.b16 %v5242
    %v5371 = vunpack.c.l.b16 %v5243
    %v5372 = vunpack.c.l.b16 %v5244
    %v5373 = vunpack.c.l.b16 %v5245
    %v5374 = vunpack.c.l.b16 %v5246
    %v5375 = vunpack.c.l.b16 %v5247
    %v5376 = vunpack.c.l.b16 %v5248
    %v5377 = vunpack.c.l.b16 %v5249
    %v5378 = vunpack.c.l.b16 %v5250
    %v5379 = vunpack.c.l.b16 %v5251
    %v5380 = vunpack.c.l.b16 %v5252
    %v5381 = vunpack.c.l.b16 %v5253
    %v5382 = vunpack.c.l.b16 %v5254
    %v5383 = vunpack.c.l.b16 %v5255
    %v5384 = vunpack.c.l.b16 %v5256
    %v5385 = vunpack.c.l.b16 %v5257
    %v5386 = vunpack.c.l.b16 %v5258
    %v5387 = vunpack.c.l.b16 %v5259
    %v5388 = vpack.c.b16 %v5325, %v5324
    %v5389 = vpack.c.b16 %v5327, %v5326
    %v5390 = vpack.c.b16 %v5329, %v5328
    %v5391 = vpack.c.b16 %v5331, %v5330
    %v5392 = vpack.c.b16 %v5333, %v5332
    %v5393 = vpack.c.b16 %v5335, %v5334
    %v5394 = vpack.c.b16 %v5337, %v5336
    %v5395 = vpack.c.b16 %v5339, %v5338
    %v5396 = vpack.c.b16 %v5341, %v5340
    %v5397 = vpack.c.b16 %v5343, %v5342
    %v5398 = vpack.c.b16 %v5345, %v5344
    %v5399 = vpack.c.b16 %v5347, %v5346
    %v5400 = vpack.c.b16 %v5349, %v5348
    %v5401 = vpack.c.b16 %v5351, %v5350
    %v5402 = vpack.c.b16 %v5353, %v5352
    %v5403 = vpack.c.b16 %v5355, %v5354
    %v5404 = vpack.c.b16 %v5357, %v5356
    %v5405 = vpack.c.b16 %v5359, %v5358
    %v5406 = vpack.c.b16 %v5361, %v5360
    %v5407 = vpack.c.b16 %v5363, %v5362
    %v5408 = vpack.c.b16 %v5365, %v5364
    %v5409 = vpack.c.b16 %v5367, %v5366
    %v5410 = vpack.c.b16 %v5369, %v5368
    %v5411 = vpack.c.b16 %v5371, %v5370
    %v5412 = vpack.c.b16 %v5373, %v5372
    %v5413 = vpack.c.b16 %v5375, %v5374
    %v5414 = vpack.c.b16 %v5377, %v5376
    %v5415 = vpack.c.b16 %v5379, %v5378
    %v5416 = vpack.c.b16 %v5381, %v5380
    %v5417 = vpack.c.b16 %v5383, %v5382
    %v5418 = vpack.c.b16 %v5385, %v5384
    %v5419 = vpack.c.b16 %v5387, %v5386
    %v5422 = vunpack.c.l.b16 %v2405
    %v5423 = vunpack.c.l.b16 %v2406
    %v5424 = vpack.c.b16 %v5423, %v5422
    %v5427 = vsel %vm581, %v5388, 0
    %v5430 = vsel %vm581, %v5389, 0
    %v5433 = vsel %vm581, %v5390, 0
    %v5436 = vsel %vm581, %v5391, 0
    %v5439 = vsel %vm581, %v5392, 0
    %v5442 = vsel %vm581, %v5393, 0
    %v5445 = vsel %vm581, %v5394, 0
    %v5448 = vsel %vm581, %v5395, 0
    %v5451 = vsel %vm581, %v5396, 0
    %v5454 = vsel %vm581, %v5397, 0
    %v5457 = vsel %vm581, %v5398, 0
    %v5460 = vsel %vm581, %v5399, 0
    %v5463 = vsel %vm581, %v5400, 0
    %v5466 = vsel %vm581, %v5401, 0
    %v5469 = vsel %vm581, %v5402, 0
    %v5472 = vsel %vm581, %v5403, 0
    %v5475 = vsel %vm581, %v5404, 0
    %v5478 = vsel %vm581, %v5405, 0
    %v5481 = vsel %vm581, %v5406, 0
    %v5484 = vsel %vm581, %v5407, 0
    %v5487 = vsel %vm581, %v5408, 0
    %v5490 = vsel %vm581, %v5409, 0
    %v5493 = vsel %vm581, %v5410, 0
    %v5496 = vsel %vm581, %v5411, 0
    %v5499 = vsel %vm581, %v5412, 0
    %v5502 = vsel %vm581, %v5413, 0
    %v5505 = vsel %vm581, %v5414, 0
    %v5508 = vsel %vm581, %v5415, 0
    %v5511 = vsel %vm581, %v5416, 0
    %v5514 = vsel %vm581, %v5417, 0
    %v5517 = vsel %vm581, %v5418, 0
    %v5520 = vsel %vm581, %v5419, 0
    %5522 = vmatprep.subr.bf16.mxu0 0
    %5523 = vmatpush1.bf16.msra.mxu0 0
    %5524 = vmatprep.subr.bf16.mxu0 0
    %5525 = vmatpush1.bf16.msra.mxu0 0
    %5526 = vmatprep.subr.bf16.mxu0 0
    %5527 = vmatpush1.bf16.msra.mxu0 0
    %5528 = vmatprep.subr.bf16.mxu0 0
    %5529 = vmatpush1.bf16.msra.mxu0 0
    %5530 = vmatprep.subr.bf16.mxu0 0
    %5531 = vmatpush1.bf16.msra.mxu0 0
    %5532 = vmatprep.subr.bf16.mxu0 0
    %5533 = vmatpush1.bf16.msra.mxu0 0
    %5534 = vmatprep.subr.bf16.mxu0 0
    %5535 = vmatpush1.bf16.msra.mxu0 0
    %5536 = vmatprep.subr.bf16.mxu0 0
    %5537 = vmatpush1.bf16.msra.mxu0 %v5424
    %5538 = vmatprep.subr.bf16.mxu0 0
    %5539 = vmatpush2.bf16.msra.mxu0 0
    %5540 = vmatprep.subr.bf16.mxu0 0
    %5541 = vmatpush2.bf16.msra.mxu0 0
    %5542 = vmatprep.subr.bf16.mxu0 0
    %5543 = vmatpush2.bf16.msra.mxu0 0
    %5544 = vmatprep.subr.bf16.mxu0 0
    %5545 = vmatpush2.bf16.msra.mxu0 0
    %5546 = vmatprep.subr.bf16.mxu0 0
    %5547 = vmatpush2.bf16.msra.mxu0 0
    %5548 = vmatprep.subr.bf16.mxu0 0
    %5549 = vmatpush2.bf16.msra.mxu0 0
    %5550 = vmatprep.subr.bf16.mxu0 0
    %5551 = vmatpush2.bf16.msra.mxu0 0
    %5552 = vmatprep.subr.bf16.mxu0 0
    %5553 = vmatpush2.bf16.msra.mxu0 0
    %5554 = vmatprep.mubr.bf16.mxu0 0
    %5555 = vmatmul.mubr.bf16.gmra.mxu0 %v5427
    %v5556 = vpop.f32.mrf.mxu0
    %v5557 = vadd.f32 0.0, %v5556
    %v5558 = vpop.f32.mrf.mxu0
    %v5559 = vpop.f32.mrf.mxu0
    %v5560 = vadd.f32 0.0, %v5559
    %v5561 = vpop.f32.mrf.mxu0
    %5562 = vmatprep.mubr.bf16.mxu0 0
    %5563 = vmatmul.mubr.bf16.gmra.mxu0 %v5430
    %v5564 = vpop.f32.mrf.mxu0
    %v5565 = vadd.f32 0.0, %v5564
    %v5566 = vpop.f32.mrf.mxu0
    %v5567 = vpop.f32.mrf.mxu0
    %v5568 = vadd.f32 0.0, %v5567
    %v5569 = vpop.f32.mrf.mxu0
    %5570 = vmatprep.mubr.bf16.mxu0 0
    %5571 = vmatmul.mubr.bf16.gmra.mxu0 %v5433
    %v5572 = vpop.f32.mrf.mxu0
    %v5573 = vadd.f32 0.0, %v5572
    %v5574 = vpop.f32.mrf.mxu0
    %v5575 = vpop.f32.mrf.mxu0
    %v5576 = vadd.f32 0.0, %v5575
    %v5577 = vpop.f32.mrf.mxu0
    %5578 = vmatprep.mubr.bf16.mxu0 0
    %5579 = vmatmul.mubr.bf16.gmra.mxu0 %v5436
    %v5580 = vpop.f32.mrf.mxu0
    %v5581 = vadd.f32 0.0, %v5580
    %v5582 = vpop.f32.mrf.mxu0
    %v5583 = vpop.f32.mrf.mxu0
    %v5584 = vadd.f32 0.0, %v5583
    %v5585 = vpop.f32.mrf.mxu0
    %5586 = vmatprep.mubr.bf16.mxu0 0
    %5587 = vmatmul.mubr.bf16.gmra.mxu0 %v5439
    %v5588 = vpop.f32.mrf.mxu0
    %v5589 = vadd.f32 0.0, %v5588
    %v5590 = vpop.f32.mrf.mxu0
    %v5591 = vpop.f32.mrf.mxu0
    %v5592 = vadd.f32 0.0, %v5591
    %v5593 = vpop.f32.mrf.mxu0
    %5594 = vmatprep.mubr.bf16.mxu0 0
    %5595 = vmatmul.mubr.bf16.gmra.mxu0 %v5442
    %v5596 = vpop.f32.mrf.mxu0
    %v5597 = vadd.f32 0.0, %v5596
    %v5598 = vpop.f32.mrf.mxu0
    %v5599 = vpop.f32.mrf.mxu0
    %v5600 = vadd.f32 0.0, %v5599
    %v5601 = vpop.f32.mrf.mxu0
    %5602 = vmatprep.mubr.bf16.mxu0 0
    %5603 = vmatmul.mubr.bf16.gmra.mxu0 %v5445
    %v5604 = vpop.f32.mrf.mxu0
    %v5605 = vadd.f32 0.0, %v5604
    %v5606 = vpop.f32.mrf.mxu0
    %v5607 = vpop.f32.mrf.mxu0
    %v5608 = vadd.f32 0.0, %v5607
    %v5609 = vpop.f32.mrf.mxu0
    %5610 = vmatprep.mubr.bf16.mxu0 0
    %5611 = vmatmul.mubr.bf16.gmra.mxu0 %v5448
    %v5612 = vpop.f32.mrf.mxu0
    %v5613 = vadd.f32 0.0, %v5612
    %v5614 = vpop.f32.mrf.mxu0
    %v5615 = vpop.f32.mrf.mxu0
    %v5616 = vadd.f32 0.0, %v5615
    %v5617 = vpop.f32.mrf.mxu0
    %5618 = vmatprep.mubr.bf16.mxu0 0
    %5619 = vmatmul.mubr.bf16.gmra.mxu0 %v5451
    %v5620 = vpop.f32.mrf.mxu0
    %v5621 = vadd.f32 0.0, %v5620
    %v5622 = vpop.f32.mrf.mxu0
    %v5623 = vpop.f32.mrf.mxu0
    %v5624 = vadd.f32 0.0, %v5623
    %v5625 = vpop.f32.mrf.mxu0
    %5626 = vmatprep.mubr.bf16.mxu0 0
    %5627 = vmatmul.mubr.bf16.gmra.mxu0 %v5454
    %v5628 = vpop.f32.mrf.mxu0
    %v5629 = vadd.f32 0.0, %v5628
    %v5630 = vpop.f32.mrf.mxu0
    %v5631 = vpop.f32.mrf.mxu0
    %v5632 = vadd.f32 0.0, %v5631
    %v5633 = vpop.f32.mrf.mxu0
    %5634 = vmatprep.mubr.bf16.mxu0 0
    %5635 = vmatmul.mubr.bf16.gmra.mxu0 %v5457
    %v5636 = vpop.f32.mrf.mxu0
    %v5637 = vadd.f32 0.0, %v5636
    %v5638 = vpop.f32.mrf.mxu0
    %v5639 = vpop.f32.mrf.mxu0
    %v5640 = vadd.f32 0.0, %v5639
    %v5641 = vpop.f32.mrf.mxu0
    %5642 = vmatprep.mubr.bf16.mxu0 0
    %5643 = vmatmul.mubr.bf16.gmra.mxu0 %v5460
    %v5644 = vpop.f32.mrf.mxu0
    %v5645 = vadd.f32 0.0, %v5644
    %v5646 = vpop.f32.mrf.mxu0
    %v5647 = vpop.f32.mrf.mxu0
    %v5648 = vadd.f32 0.0, %v5647
    %v5649 = vpop.f32.mrf.mxu0
    %5650 = vmatprep.mubr.bf16.mxu0 0
    %5651 = vmatmul.mubr.bf16.gmra.mxu0 %v5463
    %v5652 = vpop.f32.mrf.mxu0
    %v5653 = vadd.f32 0.0, %v5652
    %v5654 = vpop.f32.mrf.mxu0
    %v5655 = vpop.f32.mrf.mxu0
    %v5656 = vadd.f32 0.0, %v5655
    %v5657 = vpop.f32.mrf.mxu0
    %5658 = vmatprep.mubr.bf16.mxu0 0
    %5659 = vmatmul.mubr.bf16.gmra.mxu0 %v5466
    %v5660 = vpop.f32.mrf.mxu0
    %v5661 = vadd.f32 0.0, %v5660
    %v5662 = vpop.f32.mrf.mxu0
    %v5663 = vpop.f32.mrf.mxu0
    %v5664 = vadd.f32 0.0, %v5663
    %v5665 = vpop.f32.mrf.mxu0
    %5666 = vmatprep.mubr.bf16.mxu0 0
    %5667 = vmatmul.mubr.bf16.gmra.mxu0 %v5469
    %v5668 = vpop.f32.mrf.mxu0
    %v5669 = vadd.f32 0.0, %v5668
    %v5670 = vpop.f32.mrf.mxu0
    %v5671 = vpop.f32.mrf.mxu0
    %v5672 = vadd.f32 0.0, %v5671
    %v5673 = vpop.f32.mrf.mxu0
    %5674 = vmatprep.mubr.bf16.mxu0 0
    %5675 = vmatmul.mubr.bf16.gmra.mxu0 %v5472
    %v5676 = vpop.f32.mrf.mxu0
    %v5677 = vadd.f32 0.0, %v5676
    %v5678 = vpop.f32.mrf.mxu0
    %v5679 = vpop.f32.mrf.mxu0
    %v5680 = vadd.f32 0.0, %v5679
    %v5681 = vpop.f32.mrf.mxu0
    %5682 = vmatprep.mubr.bf16.mxu0 0
    %5683 = vmatmul.mubr.bf16.gmra.mxu0 %v5475
    %v5684 = vpop.f32.mrf.mxu0
    %v5685 = vadd.f32 0.0, %v5684
    %v5686 = vpop.f32.mrf.mxu0
    %v5687 = vpop.f32.mrf.mxu0
    %v5688 = vadd.f32 0.0, %v5687
    %v5689 = vpop.f32.mrf.mxu0
    %5690 = vmatprep.mubr.bf16.mxu0 0
    %5691 = vmatmul.mubr.bf16.gmra.mxu0 %v5478
    %v5692 = vpop.f32.mrf.mxu0
    %v5693 = vadd.f32 0.0, %v5692
    %v5694 = vpop.f32.mrf.mxu0
    %v5695 = vpop.f32.mrf.mxu0
    %v5696 = vadd.f32 0.0, %v5695
    %v5697 = vpop.f32.mrf.mxu0
    %5698 = vmatprep.mubr.bf16.mxu0 0
    %5699 = vmatmul.mubr.bf16.gmra.mxu0 %v5481
    %v5700 = vpop.f32.mrf.mxu0
    %v5701 = vadd.f32 0.0, %v5700
    %v5702 = vpop.f32.mrf.mxu0
    %v5703 = vpop.f32.mrf.mxu0
    %v5704 = vadd.f32 0.0, %v5703
    %v5705 = vpop.f32.mrf.mxu0
    %5706 = vmatprep.mubr.bf16.mxu0 0
    %5707 = vmatmul.mubr.bf16.gmra.mxu0 %v5484
    %v5708 = vpop.f32.mrf.mxu0
    %v5709 = vadd.f32 0.0, %v5708
    %v5710 = vpop.f32.mrf.mxu0
    %v5711 = vpop.f32.mrf.mxu0
    %v5712 = vadd.f32 0.0, %v5711
    %v5713 = vpop.f32.mrf.mxu0
    %5714 = vmatprep.mubr.bf16.mxu0 0
    %5715 = vmatmul.mubr.bf16.gmra.mxu0 %v5487
    %v5716 = vpop.f32.mrf.mxu0
    %v5717 = vadd.f32 0.0, %v5716
    %v5718 = vpop.f32.mrf.mxu0
    %v5719 = vpop.f32.mrf.mxu0
    %v5720 = vadd.f32 0.0, %v5719
    %v5721 = vpop.f32.mrf.mxu0
    %5722 = vmatprep.mubr.bf16.mxu0 0
    %5723 = vmatmul.mubr.bf16.gmra.mxu0 %v5490
    %v5724 = vpop.f32.mrf.mxu0
    %v5725 = vadd.f32 0.0, %v5724
    %v5726 = vpop.f32.mrf.mxu0
    %v5727 = vpop.f32.mrf.mxu0
    %v5728 = vadd.f32 0.0, %v5727
    %v5729 = vpop.f32.mrf.mxu0
    %5730 = vmatprep.mubr.bf16.mxu0 0
    %5731 = vmatmul.mubr.bf16.gmra.mxu0 %v5493
    %v5732 = vpop.f32.mrf.mxu0
    %v5733 = vadd.f32 0.0, %v5732
    %v5734 = vpop.f32.mrf.mxu0
    %v5735 = vpop.f32.mrf.mxu0
    %v5736 = vadd.f32 0.0, %v5735
    %v5737 = vpop.f32.mrf.mxu0
    %5738 = vmatprep.mubr.bf16.mxu0 0
    %5739 = vmatmul.mubr.bf16.gmra.mxu0 %v5496
    %v5740 = vpop.f32.mrf.mxu0
    %v5741 = vadd.f32 0.0, %v5740
    %v5742 = vpop.f32.mrf.mxu0
    %v5743 = vpop.f32.mrf.mxu0
    %v5744 = vadd.f32 0.0, %v5743
    %v5745 = vpop.f32.mrf.mxu0
    %5746 = vmatprep.mubr.bf16.mxu0 0
    %5747 = vmatmul.mubr.bf16.gmra.mxu0 %v5499
    %v5748 = vpop.f32.mrf.mxu0
    %v5749 = vadd.f32 0.0, %v5748
    %v5750 = vpop.f32.mrf.mxu0
    %v5751 = vpop.f32.mrf.mxu0
    %v5752 = vadd.f32 0.0, %v5751
    %v5753 = vpop.f32.mrf.mxu0
    %5754 = vmatprep.mubr.bf16.mxu0 0
    %5755 = vmatmul.mubr.bf16.gmra.mxu0 %v5502
    %v5756 = vpop.f32.mrf.mxu0
    %v5757 = vadd.f32 0.0, %v5756
    %v5758 = vpop.f32.mrf.mxu0
    %v5759 = vpop.f32.mrf.mxu0
    %v5760 = vadd.f32 0.0, %v5759
    %v5761 = vpop.f32.mrf.mxu0
    %5762 = vmatprep.mubr.bf16.mxu0 0
    %5763 = vmatmul.mubr.bf16.gmra.mxu0 %v5505
    %v5764 = vpop.f32.mrf.mxu0
    %v5765 = vadd.f32 0.0, %v5764
    %v5766 = vpop.f32.mrf.mxu0
    %v5767 = vpop.f32.mrf.mxu0
    %v5768 = vadd.f32 0.0, %v5767
    %v5769 = vpop.f32.mrf.mxu0
    %5770 = vmatprep.mubr.bf16.mxu0 0
    %5771 = vmatmul.mubr.bf16.gmra.mxu0 %v5508
    %v5772 = vpop.f32.mrf.mxu0
    %v5773 = vadd.f32 0.0, %v5772
    %v5774 = vpop.f32.mrf.mxu0
    %v5775 = vpop.f32.mrf.mxu0
    %v5776 = vadd.f32 0.0, %v5775
    %v5777 = vpop.f32.mrf.mxu0
    %5778 = vmatprep.mubr.bf16.mxu0 0
    %5779 = vmatmul.mubr.bf16.gmra.mxu0 %v5511
    %v5780 = vpop.f32.mrf.mxu0
    %v5781 = vadd.f32 0.0, %v5780
    %v5782 = vpop.f32.mrf.mxu0
    %v5783 = vpop.f32.mrf.mxu0
    %v5784 = vadd.f32 0.0, %v5783
    %v5785 = vpop.f32.mrf.mxu0
    %5786 = vmatprep.mubr.bf16.mxu0 0
    %5787 = vmatmul.mubr.bf16.gmra.mxu0 %v5514
    %v5788 = vpop.f32.mrf.mxu0
    %v5789 = vadd.f32 0.0, %v5788
    %v5790 = vpop.f32.mrf.mxu0
    %v5791 = vpop.f32.mrf.mxu0
    %v5792 = vadd.f32 0.0, %v5791
    %v5793 = vpop.f32.mrf.mxu0
    %5794 = vmatprep.mubr.bf16.mxu0 0
    %5795 = vmatmul.mubr.bf16.gmra.mxu0 %v5517
    %v5796 = vpop.f32.mrf.mxu0
    %v5797 = vadd.f32 0.0, %v5796
    %v5798 = vpop.f32.mrf.mxu0
    %v5799 = vpop.f32.mrf.mxu0
    %v5800 = vadd.f32 0.0, %v5799
    %v5801 = vpop.f32.mrf.mxu0
    %5802 = vmatprep.mubr.bf16.mxu0 0
    %5803 = vmatmul.mubr.bf16.gmra.mxu0 %v5520
    %v5804 = vpop.f32.mrf.mxu0
    %v5805 = vadd.f32 0.0, %v5804
    %v5806 = vpop.f32.mrf.mxu0
    %v5807 = vpop.f32.mrf.mxu0
    %v5808 = vadd.f32 0.0, %v5807
    %v5809 = vpop.f32.mrf.mxu0
    %5810 = vdwg.mxu0
    %v5811 = vadd.f32 %v5132, %v5557
    %v5812 = vadd.f32 %v5133, %v5560
    %v5813 = vadd.f32 %v5134, %v5565
    %v5814 = vadd.f32 %v5135, %v5568
    %v5815 = vadd.f32 %v5136, %v5573
    %v5816 = vadd.f32 %v5137, %v5576
    %v5817 = vadd.f32 %v5138, %v5581
    %v5818 = vadd.f32 %v5139, %v5584
    %v5819 = vadd.f32 %v5140, %v5589
    %v5820 = vadd.f32 %v5141, %v5592
    %v5821 = vadd.f32 %v5142, %v5597
    %v5822 = vadd.f32 %v5143, %v5600
    %v5823 = vadd.f32 %v5144, %v5605
    %v5824 = vadd.f32 %v5145, %v5608
    %v5825 = vadd.f32 %v5146, %v5613
    %v5826 = vadd.f32 %v5147, %v5616
    %v5827 = vadd.f32 %v5148, %v5621
    %v5828 = vadd.f32 %v5149, %v5624
    %v5829 = vadd.f32 %v5150, %v5629
    %v5830 = vadd.f32 %v5151, %v5632
    %v5831 = vadd.f32 %v5152, %v5637
    %v5832 = vadd.f32 %v5153, %v5640
    %v5833 = vadd.f32 %v5154, %v5645
    %v5834 = vadd.f32 %v5155, %v5648
    %v5835 = vadd.f32 %v5156, %v5653
    %v5836 = vadd.f32 %v5157, %v5656
    %v5837 = vadd.f32 %v5158, %v5661
    %v5838 = vadd.f32 %v5159, %v5664
    %v5839 = vadd.f32 %v5160, %v5669
    %v5840 = vadd.f32 %v5161, %v5672
    %v5841 = vadd.f32 %v5162, %v5677
    %v5842 = vadd.f32 %v5163, %v5680
    %v5843 = vadd.f32 %v5164, %v5685
    %v5844 = vadd.f32 %v5165, %v5688
    %v5845 = vadd.f32 %v5166, %v5693
    %v5846 = vadd.f32 %v5167, %v5696
    %v5847 = vadd.f32 %v5168, %v5701
    %v5848 = vadd.f32 %v5169, %v5704
    %v5849 = vadd.f32 %v5170, %v5709
    %v5850 = vadd.f32 %v5171, %v5712
    %v5851 = vadd.f32 %v5172, %v5717
    %v5852 = vadd.f32 %v5173, %v5720
    %v5853 = vadd.f32 %v5174, %v5725
    %v5854 = vadd.f32 %v5175, %v5728
    %v5855 = vadd.f32 %v5176, %v5733
    %v5856 = vadd.f32 %v5177, %v5736
    %v5857 = vadd.f32 %v5178, %v5741
    %v5858 = vadd.f32 %v5179, %v5744
    %v5859 = vadd.f32 %v5180, %v5749
    %v5860 = vadd.f32 %v5181, %v5752
    %v5861 = vadd.f32 %v5182, %v5757
    %v5862 = vadd.f32 %v5183, %v5760
    %v5863 = vadd.f32 %v5184, %v5765
    %v5864 = vadd.f32 %v5185, %v5768
    %v5865 = vadd.f32 %v5186, %v5773
    %v5866 = vadd.f32 %v5187, %v5776
    %v5867 = vadd.f32 %v5188, %v5781
    %v5868 = vadd.f32 %v5189, %v5784
    %v5869 = vadd.f32 %v5190, %v5789
    %v5870 = vadd.f32 %v5191, %v5792
    %v5871 = vadd.f32 %v5192, %v5797
    %v5872 = vadd.f32 %v5193, %v5800
    %v5873 = vadd.f32 %v5194, %v5805
    %v5874 = vadd.f32 %v5195, %v5808
    %v5875 = vld [vmem:[%s1173] sm:$0xf]
    %v5876 = vld [vmem:[%s1173 + $0x4] sm:$0xf]
    %v5877 = vld [vmem:[%s1173 + $0x8] sm:$0x1]
    %v5878 = vld [vmem:[%s1173 + $0xc] sm:$0xf]
    %v5879 = vld [vmem:[%s1173 + $0x10] sm:$0xf]
    %v5880 = vld [vmem:[%s1173 + $0x14] sm:$0x1]
    %v5881 = vld [vmem:[%s1173 + $0x18] sm:$0xf]
    %v5882 = vld [vmem:[%s1173 + $0x1c] sm:$0xf]
    %v5883 = vld [vmem:[%s1173 + $0x20] sm:$0x1]
    %v5884 = vld [vmem:[%s1173 + $0x24] sm:$0xf]
    %v5885 = vld [vmem:[%s1173 + $0x28] sm:$0xf]
    %v5886 = vld [vmem:[%s1173 + $0x2c] sm:$0x1]
    %v5887 = vld [vmem:[%s1173 + $0x30] sm:$0xf]
    %v5888 = vld [vmem:[%s1173 + $0x34] sm:$0xf]
    %v5889 = vld [vmem:[%s1173 + $0x38] sm:$0x1]
    %v5890 = vld [vmem:[%s1173 + $0x3c] sm:$0xf]
    %v5891 = vld [vmem:[%s1173 + $0x40] sm:$0xf]
    %v5892 = vld [vmem:[%s1173 + $0x44] sm:$0x1]
    %v5893 = vld [vmem:[%s1173 + $0x48] sm:$0xf]
    %v5894 = vld [vmem:[%s1173 + $0x4c] sm:$0xf]
    %v5895 = vld [vmem:[%s1173 + $0x50] sm:$0x1]
    %v5896 = vld [vmem:[%s1173 + $0x54] sm:$0xf]
    %v5897 = vld [vmem:[%s1173 + $0x58] sm:$0xf]
    %v5898 = vld [vmem:[%s1173 + $0x5c] sm:$0x1]
    %v5899 = vld [vmem:[%s1173 + $0x60] sm:$0xf]
    %v5900 = vld [vmem:[%s1173 + $0x64] sm:$0xf]
    %v5901 = vld [vmem:[%s1173 + $0x68] sm:$0x1]
    %v5902 = vld [vmem:[%s1173 + $0x6c] sm:$0xf]
    %v5903 = vld [vmem:[%s1173 + $0x70] sm:$0xf]
    %v5904 = vld [vmem:[%s1173 + $0x74] sm:$0x1]
    %v5905 = vld [vmem:[%s1173 + $0x78] sm:$0xf]
    %v5906 = vld [vmem:[%s1173 + $0x7c] sm:$0xf]
    %v5907 = vld [vmem:[%s1173 + $0x80] sm:$0x1]
    %v5908 = vld [vmem:[%s1173 + $0x84] sm:$0xf]
    %v5909 = vld [vmem:[%s1173 + $0x88] sm:$0xf]
    %v5910 = vld [vmem:[%s1173 + $0x8c] sm:$0x1]
    %v5911 = vld [vmem:[%s1173 + $0x90] sm:$0xf]
    %v5912 = vld [vmem:[%s1173 + $0x94] sm:$0xf]
    %v5913 = vld [vmem:[%s1173 + $0x98] sm:$0x1]
    %v5914 = vld [vmem:[%s1173 + $0x9c] sm:$0xf]
    %v5915 = vld [vmem:[%s1173 + $0xa0] sm:$0xf]
    %v5916 = vld [vmem:[%s1173 + $0xa4] sm:$0x1]
    %v5917 = vld [vmem:[%s1173 + $0xa8] sm:$0xf]
    %v5918 = vld [vmem:[%s1173 + $0xac] sm:$0xf]
    %v5919 = vld [vmem:[%s1173 + $0xb0] sm:$0x1]
    %v5920 = vld [vmem:[%s1173 + $0xb4] sm:$0xf]
    %v5921 = vld [vmem:[%s1173 + $0xb8] sm:$0xf]
    %v5922 = vld [vmem:[%s1173 + $0xbc] sm:$0x1]
    %v5923 = vld [vmem:[%s1173 + $0xd8] sm:$0xf]
    %v5924 = vld [vmem:[%s1173 + $0xdc] sm:$0xf]
    %v5925 = vld [vmem:[%s1173 + $0xe0] sm:$0x1]
    %v5926 = vld [vmem:[%s1173 + $0xe4] sm:$0xf]
    %v5927 = vld [vmem:[%s1173 + $0xe8] sm:$0xf]
    %v5928 = vld [vmem:[%s1173 + $0xec] sm:$0x1]
    %v5929 = vld [vmem:[%s1173 + $0xf0] sm:$0xf]
    %v5930 = vld [vmem:[%s1173 + $0xf4] sm:$0xf]
    %v5931 = vld [vmem:[%s1173 + $0xf8] sm:$0x1]
    %v5932 = vld [vmem:[%s1173 + $0xfc] sm:$0xf]
    %v5933 = vld [vmem:[%s1173 + $0x100] sm:$0xf]
    %v5934 = vld [vmem:[%s1173 + $0x104] sm:$0x1]
    %v5935 = vld [vmem:[%s1173 + $0x108] sm:$0xf]
    %v5936 = vld [vmem:[%s1173 + $0x10c] sm:$0xf]
    %v5937 = vld [vmem:[%s1173 + $0x110] sm:$0x1]
    %v5938 = vld [vmem:[%s1173 + $0x114] sm:$0xf]
    %v5939 = vld [vmem:[%s1173 + $0x118] sm:$0xf]
    %v5940 = vld [vmem:[%s1173 + $0x11c] sm:$0x1]
    %v5941 = vld [vmem:[%s1173 + $0x120] sm:$0xf]
    %v5942 = vld [vmem:[%s1173 + $0x124] sm:$0xf]
    %v5943 = vld [vmem:[%s1173 + $0x128] sm:$0x1]
    %v5944 = vld [vmem:[%s1173 + $0x12c] sm:$0xf]
    %v5945 = vld [vmem:[%s1173 + $0x130] sm:$0xf]
    %v5946 = vld [vmem:[%s1173 + $0x134] sm:$0x1]
    %v5947 = vld [vmem:[%s1173 + $0x138] sm:$0xf]
    %v5948 = vld [vmem:[%s1173 + $0x13c] sm:$0xf]
    %v5949 = vld [vmem:[%s1173 + $0x140] sm:$0x1]
    %v5950 = vld [vmem:[%s1173 + $0x144] sm:$0xf]
    %v5951 = vld [vmem:[%s1173 + $0x148] sm:$0xf]
    %v5952 = vld [vmem:[%s1173 + $0x14c] sm:$0x1]
    %v5953 = vld [vmem:[%s1173 + $0x150] sm:$0xf]
    %v5954 = vld [vmem:[%s1173 + $0x154] sm:$0xf]
    %v5955 = vld [vmem:[%s1173 + $0x158] sm:$0x1]
    %v5956 = vld [vmem:[%s1173 + $0x15c] sm:$0xf]
    %v5957 = vld [vmem:[%s1173 + $0x160] sm:$0xf]
    %v5958 = vld [vmem:[%s1173 + $0x164] sm:$0x1]
    %v5959 = vld [vmem:[%s1173 + $0x168] sm:$0xf]
    %v5960 = vld [vmem:[%s1173 + $0x16c] sm:$0xf]
    %v5961 = vld [vmem:[%s1173 + $0x170] sm:$0x1]
    %v5962 = vld [vmem:[%s1173 + $0x174] sm:$0xf]
    %v5963 = vld [vmem:[%s1173 + $0x178] sm:$0xf]
    %v5964 = vld [vmem:[%s1173 + $0x17c] sm:$0x1]
    %v5965 = vld [vmem:[%s1173 + $0x180] sm:$0xf]
    %v5966 = vld [vmem:[%s1173 + $0x184] sm:$0xf]
    %v5967 = vld [vmem:[%s1173 + $0x188] sm:$0x1]
    %v5968 = vld [vmem:[%s1173 + $0x18c] sm:$0xf]
    %v5969 = vld [vmem:[%s1173 + $0x190] sm:$0xf]
    %v5970 = vld [vmem:[%s1173 + $0x194] sm:$0x1]
    %v5972 = vshrl.u32 %v5875, 16
    %v5974 = vrot.slane %v5972, 4
    %v5975 = vshll.u32 %v5875, 16
    %v5977 = vrot.slane %v5975, 5
    %v5978 = vor.u32 %v5974, %v5977
    %v5979 = vrot.slane %v5978, 4
    %v5981 = vshll.u32 %v5876, 16
    %v5983 = vrot.slane %v5981, 5
    %v5984 = vsel %vm2515, %v5979, %v5983
    %v5985 = vshrl.u32 %v5876, 16
    %v5987 = vrot.slane %v5985, 4
    %v5988 = vor.u32 %v5987, %v5983
    %v5989 = vrot.slane %v5988, 4
    %v5991 = vshll.u32 %v5877, 16
    %v5993 = vrot.slane %v5991, 5
    %v5994 = vsel %vm2515, %v5989, %v5993
    %v5996 = vshrl.u32 %v5878, 16
    %v5998 = vrot.slane %v5996, 4
    %v5999 = vshll.u32 %v5878, 16
    %v6001 = vrot.slane %v5999, 5
    %v6002 = vor.u32 %v5998, %v6001
    %v6003 = vrot.slane %v6002, 4
    %v6005 = vshll.u32 %v5879, 16
    %v6007 = vrot.slane %v6005, 5
    %v6008 = vsel %vm2515, %v6003, %v6007
    %v6009 = vshrl.u32 %v5879, 16
    %v6011 = vrot.slane %v6009, 4
    %v6012 = vor.u32 %v6011, %v6007
    %v6013 = vrot.slane %v6012, 4
    %v6015 = vshll.u32 %v5880, 16
    %v6017 = vrot.slane %v6015, 5
    %v6018 = vsel %vm2515, %v6013, %v6017
    %v6020 = vshrl.u32 %v5881, 16
    %v6022 = vrot.slane %v6020, 4
    %v6023 = vshll.u32 %v5881, 16
    %v6025 = vrot.slane %v6023, 5
    %v6026 = vor.u32 %v6022, %v6025
    %v6027 = vrot.slane %v6026, 4
    %v6029 = vshll.u32 %v5882, 16
    %v6031 = vrot.slane %v6029, 5
    %v6032 = vsel %vm2515, %v6027, %v6031
    %v6033 = vshrl.u32 %v5882, 16
    %v6035 = vrot.slane %v6033, 4
    %v6036 = vor.u32 %v6035, %v6031
    %v6037 = vrot.slane %v6036, 4
    %v6039 = vshll.u32 %v5883, 16
    %v6041 = vrot.slane %v6039, 5
    %v6042 = vsel %vm2515, %v6037, %v6041
    %v6044 = vshrl.u32 %v5884, 16
    %v6046 = vrot.slane %v6044, 4
    %v6047 = vshll.u32 %v5884, 16
    %v6049 = vrot.slane %v6047, 5
    %v6050 = vor.u32 %v6046, %v6049
    %v6051 = vrot.slane %v6050, 4
    %v6053 = vshll.u32 %v5885, 16
    %v6055 = vrot.slane %v6053, 5
    %v6056 = vsel %vm2515, %v6051, %v6055
    %v6057 = vshrl.u32 %v5885, 16
    %v6059 = vrot.slane %v6057, 4
    %v6060 = vor.u32 %v6059, %v6055
    %v6061 = vrot.slane %v6060, 4
    %v6063 = vshll.u32 %v5886, 16
    %v6065 = vrot.slane %v6063, 5
    %v6066 = vsel %vm2515, %v6061, %v6065
    %v6068 = vshrl.u32 %v5887, 16
    %v6070 = vrot.slane %v6068, 4
    %v6071 = vshll.u32 %v5887, 16
    %v6073 = vrot.slane %v6071, 5
    %v6074 = vor.u32 %v6070, %v6073
    %v6075 = vrot.slane %v6074, 4
    %v6077 = vshll.u32 %v5888, 16
    %v6079 = vrot.slane %v6077, 5
    %v6080 = vsel %vm2515, %v6075, %v6079
    %v6081 = vshrl.u32 %v5888, 16
    %v6083 = vrot.slane %v6081, 4
    %v6084 = vor.u32 %v6083, %v6079
    %v6085 = vrot.slane %v6084, 4
    %v6087 = vshll.u32 %v5889, 16
    %v6089 = vrot.slane %v6087, 5
    %v6090 = vsel %vm2515, %v6085, %v6089
    %v6092 = vshrl.u32 %v5890, 16
    %v6094 = vrot.slane %v6092, 4
    %v6095 = vshll.u32 %v5890, 16
    %v6097 = vrot.slane %v6095, 5
    %v6098 = vor.u32 %v6094, %v6097
    %v6099 = vrot.slane %v6098, 4
    %v6101 = vshll.u32 %v5891, 16
    %v6103 = vrot.slane %v6101, 5
    %v6104 = vsel %vm2515, %v6099, %v6103
    %v6105 = vshrl.u32 %v5891, 16
    %v6107 = vrot.slane %v6105, 4
    %v6108 = vor.u32 %v6107, %v6103
    %v6109 = vrot.slane %v6108, 4
    %v6111 = vshll.u32 %v5892, 16
    %v6113 = vrot.slane %v6111, 5
    %v6114 = vsel %vm2515, %v6109, %v6113
    %v6116 = vshrl.u32 %v5893, 16
    %v6118 = vrot.slane %v6116, 4
    %v6119 = vshll.u32 %v5893, 16
    %v6121 = vrot.slane %v6119, 5
    %v6122 = vor.u32 %v6118, %v6121
    %v6123 = vrot.slane %v6122, 4
    %v6125 = vshll.u32 %v5894, 16
    %v6127 = vrot.slane %v6125, 5
    %v6128 = vsel %vm2515, %v6123, %v6127
    %v6129 = vshrl.u32 %v5894, 16
    %v6131 = vrot.slane %v6129, 4
    %v6132 = vor.u32 %v6131, %v6127
    %v6133 = vrot.slane %v6132, 4
    %v6135 = vshll.u32 %v5895, 16
    %v6137 = vrot.slane %v6135, 5
    %v6138 = vsel %vm2515, %v6133, %v6137
    %v6140 = vshrl.u32 %v5896, 16
    %v6142 = vrot.slane %v6140, 4
    %v6143 = vshll.u32 %v5896, 16
    %v6145 = vrot.slane %v6143, 5
    %v6146 = vor.u32 %v6142, %v6145
    %v6147 = vrot.slane %v6146, 4
    %v6149 = vshll.u32 %v5897, 16
    %v6151 = vrot.slane %v6149, 5
    %v6152 = vsel %vm2515, %v6147, %v6151
    %v6153 = vshrl.u32 %v5897, 16
    %v6155 = vrot.slane %v6153, 4
    %v6156 = vor.u32 %v6155, %v6151
    %v6157 = vrot.slane %v6156, 4
    %v6159 = vshll.u32 %v5898, 16
    %v6161 = vrot.slane %v6159, 5
    %v6162 = vsel %vm2515, %v6157, %v6161
    %v6164 = vshrl.u32 %v5899, 16
    %v6166 = vrot.slane %v6164, 4
    %v6167 = vshll.u32 %v5899, 16
    %v6169 = vrot.slane %v6167, 5
    %v6170 = vor.u32 %v6166, %v6169
    %v6171 = vrot.slane %v6170, 4
    %v6173 = vshll.u32 %v5900, 16
    %v6175 = vrot.slane %v6173, 5
    %v6176 = vsel %vm2515, %v6171, %v6175
    %v6177 = vshrl.u32 %v5900, 16
    %v6179 = vrot.slane %v6177, 4
    %v6180 = vor.u32 %v6179, %v6175
    %v6181 = vrot.slane %v6180, 4
    %v6183 = vshll.u32 %v5901, 16
    %v6185 = vrot.slane %v6183, 5
    %v6186 = vsel %vm2515, %v6181, %v6185
    %v6188 = vshrl.u32 %v5902, 16
    %v6190 = vrot.slane %v6188, 4
    %v6191 = vshll.u32 %v5902, 16
    %v6193 = vrot.slane %v6191, 5
    %v6194 = vor.u32 %v6190, %v6193
    %v6195 = vrot.slane %v6194, 4
    %v6197 = vshll.u32 %v5903, 16
    %v6199 = vrot.slane %v6197, 5
    %v6200 = vsel %vm2515, %v6195, %v6199
    %v6201 = vshrl.u32 %v5903, 16
    %v6203 = vrot.slane %v6201, 4
    %v6204 = vor.u32 %v6203, %v6199
    %v6205 = vrot.slane %v6204, 4
    %v6207 = vshll.u32 %v5904, 16
    %v6209 = vrot.slane %v6207, 5
    %v6210 = vsel %vm2515, %v6205, %v6209
    %v6212 = vshrl.u32 %v5905, 16
    %v6214 = vrot.slane %v6212, 4
    %v6215 = vshll.u32 %v5905, 16
    %v6217 = vrot.slane %v6215, 5
    %v6218 = vor.u32 %v6214, %v6217
    %v6219 = vrot.slane %v6218, 4
    %v6221 = vshll.u32 %v5906, 16
    %v6223 = vrot.slane %v6221, 5
    %v6224 = vsel %vm2515, %v6219, %v6223
    %v6225 = vshrl.u32 %v5906, 16
    %v6227 = vrot.slane %v6225, 4
    %v6228 = vor.u32 %v6227, %v6223
    %v6229 = vrot.slane %v6228, 4
    %v6231 = vshll.u32 %v5907, 16
    %v6233 = vrot.slane %v6231, 5
    %v6234 = vsel %vm2515, %v6229, %v6233
    %v6236 = vshrl.u32 %v5908, 16
    %v6238 = vrot.slane %v6236, 4
    %v6239 = vshll.u32 %v5908, 16
    %v6241 = vrot.slane %v6239, 5
    %v6242 = vor.u32 %v6238, %v6241
    %v6243 = vrot.slane %v6242, 4
    %v6245 = vshll.u32 %v5909, 16
    %v6247 = vrot.slane %v6245, 5
    %v6248 = vsel %vm2515, %v6243, %v6247
    %v6249 = vshrl.u32 %v5909, 16
    %v6251 = vrot.slane %v6249, 4
    %v6252 = vor.u32 %v6251, %v6247
    %v6253 = vrot.slane %v6252, 4
    %v6255 = vshll.u32 %v5910, 16
    %v6257 = vrot.slane %v6255, 5
    %v6258 = vsel %vm2515, %v6253, %v6257
    %v6260 = vshrl.u32 %v5911, 16
    %v6262 = vrot.slane %v6260, 4
    %v6263 = vshll.u32 %v5911, 16
    %v6265 = vrot.slane %v6263, 5
    %v6266 = vor.u32 %v6262, %v6265
    %v6267 = vrot.slane %v6266, 4
    %v6269 = vshll.u32 %v5912, 16
    %v6271 = vrot.slane %v6269, 5
    %v6272 = vsel %vm2515, %v6267, %v6271
    %v6273 = vshrl.u32 %v5912, 16
    %v6275 = vrot.slane %v6273, 4
    %v6276 = vor.u32 %v6275, %v6271
    %v6277 = vrot.slane %v6276, 4
    %v6279 = vshll.u32 %v5913, 16
    %v6281 = vrot.slane %v6279, 5
    %v6282 = vsel %vm2515, %v6277, %v6281
    %v6284 = vshrl.u32 %v5914, 16
    %v6286 = vrot.slane %v6284, 4
    %v6287 = vshll.u32 %v5914, 16
    %v6289 = vrot.slane %v6287, 5
    %v6290 = vor.u32 %v6286, %v6289
    %v6291 = vrot.slane %v6290, 4
    %v6293 = vshll.u32 %v5915, 16
    %v6295 = vrot.slane %v6293, 5
    %v6296 = vsel %vm2515, %v6291, %v6295
    %v6297 = vshrl.u32 %v5915, 16
    %v6299 = vrot.slane %v6297, 4
    %v6300 = vor.u32 %v6299, %v6295
    %v6301 = vrot.slane %v6300, 4
    %v6303 = vshll.u32 %v5916, 16
    %v6305 = vrot.slane %v6303, 5
    %v6306 = vsel %vm2515, %v6301, %v6305
    %v6308 = vshrl.u32 %v5917, 16
    %v6310 = vrot.slane %v6308, 4
    %v6311 = vshll.u32 %v5917, 16
    %v6313 = vrot.slane %v6311, 5
    %v6314 = vor.u32 %v6310, %v6313
    %v6315 = vrot.slane %v6314, 4
    %v6317 = vshll.u32 %v5918, 16
    %v6319 = vrot.slane %v6317, 5
    %v6320 = vsel %vm2515, %v6315, %v6319
    %v6321 = vshrl.u32 %v5918, 16
    %v6323 = vrot.slane %v6321, 4
    %v6324 = vor.u32 %v6323, %v6319
    %v6325 = vrot.slane %v6324, 4
    %v6327 = vshll.u32 %v5919, 16
    %v6329 = vrot.slane %v6327, 5
    %v6330 = vsel %vm2515, %v6325, %v6329
    %v6332 = vshrl.u32 %v5920, 16
    %v6334 = vrot.slane %v6332, 4
    %v6335 = vshll.u32 %v5920, 16
    %v6337 = vrot.slane %v6335, 5
    %v6338 = vor.u32 %v6334, %v6337
    %v6339 = vrot.slane %v6338, 4
    %v6341 = vshll.u32 %v5921, 16
    %v6343 = vrot.slane %v6341, 5
    %v6344 = vsel %vm2515, %v6339, %v6343
    %v6345 = vshrl.u32 %v5921, 16
    %v6347 = vrot.slane %v6345, 4
    %v6348 = vor.u32 %v6347, %v6343
    %v6349 = vrot.slane %v6348, 4
    %v6351 = vshll.u32 %v5922, 16
    %v6353 = vrot.slane %v6351, 5
    %v6354 = vsel %vm2515, %v6349, %v6353
    %v6356 = vshrl.u32 %v5923, 16
    %v6358 = vrot.slane %v6356, 4
    %v6359 = vshll.u32 %v5923, 16
    %v6361 = vrot.slane %v6359, 5
    %v6362 = vor.u32 %v6358, %v6361
    %v6363 = vrot.slane %v6362, 4
    %v6365 = vshll.u32 %v5924, 16
    %v6367 = vrot.slane %v6365, 5
    %v6368 = vsel %vm2515, %v6363, %v6367
    %v6369 = vshrl.u32 %v5924, 16
    %v6371 = vrot.slane %v6369, 4
    %v6372 = vor.u32 %v6371, %v6367
    %v6373 = vrot.slane %v6372, 4
    %v6375 = vshll.u32 %v5925, 16
    %v6377 = vrot.slane %v6375, 5
    %v6378 = vsel %vm2515, %v6373, %v6377
    %v6380 = vshrl.u32 %v5926, 16
    %v6382 = vrot.slane %v6380, 4
    %v6383 = vshll.u32 %v5926, 16
    %v6385 = vrot.slane %v6383, 5
    %v6386 = vor.u32 %v6382, %v6385
    %v6387 = vrot.slane %v6386, 4
    %v6389 = vshll.u32 %v5927, 16
    %v6391 = vrot.slane %v6389, 5
    %v6392 = vsel %vm2515, %v6387, %v6391
    %v6393 = vshrl.u32 %v5927, 16
    %v6395 = vrot.slane %v6393, 4
    %v6396 = vor.u32 %v6395, %v6391
    %v6397 = vrot.slane %v6396, 4
    %v6399 = vshll.u32 %v5928, 16
    %v6401 = vrot.slane %v6399, 5
    %v6402 = vsel %vm2515, %v6397, %v6401
    %v6404 = vshrl.u32 %v5929, 16
    %v6406 = vrot.slane %v6404, 4
    %v6407 = vshll.u32 %v5929, 16
    %v6409 = vrot.slane %v6407, 5
    %v6410 = vor.u32 %v6406, %v6409
    %v6411 = vrot.slane %v6410, 4
    %v6413 = vshll.u32 %v5930, 16
    %v6415 = vrot.slane %v6413, 5
    %v6416 = vsel %vm2515, %v6411, %v6415
    %v6417 = vshrl.u32 %v5930, 16
    %v6419 = vrot.slane %v6417, 4
    %v6420 = vor.u32 %v6419, %v6415
    %v6421 = vrot.slane %v6420, 4
    %v6423 = vshll.u32 %v5931, 16
    %v6425 = vrot.slane %v6423, 5
    %v6426 = vsel %vm2515, %v6421, %v6425
    %v6428 = vshrl.u32 %v5932, 16
    %v6430 = vrot.slane %v6428, 4
    %v6431 = vshll.u32 %v5932, 16
    %v6433 = vrot.slane %v6431, 5
    %v6434 = vor.u32 %v6430, %v6433
    %v6435 = vrot.slane %v6434, 4
    %v6437 = vshll.u32 %v5933, 16
    %v6439 = vrot.slane %v6437, 5
    %v6440 = vsel %vm2515, %v6435, %v6439
    %v6441 = vshrl.u32 %v5933, 16
    %v6443 = vrot.slane %v6441, 4
    %v6444 = vor.u32 %v6443, %v6439
    %v6445 = vrot.slane %v6444, 4
    %v6447 = vshll.u32 %v5934, 16
    %v6449 = vrot.slane %v6447, 5
    %v6450 = vsel %vm2515, %v6445, %v6449
    %v6452 = vshrl.u32 %v5935, 16
    %v6454 = vrot.slane %v6452, 4
    %v6455 = vshll.u32 %v5935, 16
    %v6457 = vrot.slane %v6455, 5
    %v6458 = vor.u32 %v6454, %v6457
    %v6459 = vrot.slane %v6458, 4
    %v6461 = vshll.u32 %v5936, 16
    %v6463 = vrot.slane %v6461, 5
    %v6464 = vsel %vm2515, %v6459, %v6463
    %v6465 = vshrl.u32 %v5936, 16
    %v6467 = vrot.slane %v6465, 4
    %v6468 = vor.u32 %v6467, %v6463
    %v6469 = vrot.slane %v6468, 4
    %v6471 = vshll.u32 %v5937, 16
    %v6473 = vrot.slane %v6471, 5
    %v6474 = vsel %vm2515, %v6469, %v6473
    %v6476 = vshrl.u32 %v5938, 16
    %v6478 = vrot.slane %v6476, 4
    %v6479 = vshll.u32 %v5938, 16
    %v6481 = vrot.slane %v6479, 5
    %v6482 = vor.u32 %v6478, %v6481
    %v6483 = vrot.slane %v6482, 4
    %v6485 = vshll.u32 %v5939, 16
    %v6487 = vrot.slane %v6485, 5
    %v6488 = vsel %vm2515, %v6483, %v6487
    %v6489 = vshrl.u32 %v5939, 16
    %v6491 = vrot.slane %v6489, 4
    %v6492 = vor.u32 %v6491, %v6487
    %v6493 = vrot.slane %v6492, 4
    %v6495 = vshll.u32 %v5940, 16
    %v6497 = vrot.slane %v6495, 5
    %v6498 = vsel %vm2515, %v6493, %v6497
    %v6500 = vshrl.u32 %v5941, 16
    %v6502 = vrot.slane %v6500, 4
    %v6503 = vshll.u32 %v5941, 16
    %v6505 = vrot.slane %v6503, 5
    %v6506 = vor.u32 %v6502, %v6505
    %v6507 = vrot.slane %v6506, 4
    %v6509 = vshll.u32 %v5942, 16
    %v6511 = vrot.slane %v6509, 5
    %v6512 = vsel %vm2515, %v6507, %v6511
    %v6513 = vshrl.u32 %v5942, 16
    %v6515 = vrot.slane %v6513, 4
    %v6516 = vor.u32 %v6515, %v6511
    %v6517 = vrot.slane %v6516, 4
    %v6519 = vshll.u32 %v5943, 16
    %v6521 = vrot.slane %v6519, 5
    %v6522 = vsel %vm2515, %v6517, %v6521
    %v6524 = vshrl.u32 %v5944, 16
    %v6526 = vrot.slane %v6524, 4
    %v6527 = vshll.u32 %v5944, 16
    %v6529 = vrot.slane %v6527, 5
    %v6530 = vor.u32 %v6526, %v6529
    %v6531 = vrot.slane %v6530, 4
    %v6533 = vshll.u32 %v5945, 16
    %v6535 = vrot.slane %v6533, 5
    %v6536 = vsel %vm2515, %v6531, %v6535
    %v6537 = vshrl.u32 %v5945, 16
    %v6539 = vrot.slane %v6537, 4
    %v6540 = vor.u32 %v6539, %v6535
    %v6541 = vrot.slane %v6540, 4
    %v6543 = vshll.u32 %v5946, 16
    %v6545 = vrot.slane %v6543, 5
    %v6546 = vsel %vm2515, %v6541, %v6545
    %v6548 = vshrl.u32 %v5947, 16
    %v6550 = vrot.slane %v6548, 4
    %v6551 = vshll.u32 %v5947, 16
    %v6553 = vrot.slane %v6551, 5
    %v6554 = vor.u32 %v6550, %v6553
    %v6555 = vrot.slane %v6554, 4
    %v6557 = vshll.u32 %v5948, 16
    %v6559 = vrot.slane %v6557, 5
    %v6560 = vsel %vm2515, %v6555, %v6559
    %v6561 = vshrl.u32 %v5948, 16
    %v6563 = vrot.slane %v6561, 4
    %v6564 = vor.u32 %v6563, %v6559
    %v6565 = vrot.slane %v6564, 4
    %v6567 = vshll.u32 %v5949, 16
    %v6569 = vrot.slane %v6567, 5
    %v6570 = vsel %vm2515, %v6565, %v6569
    %v6572 = vshrl.u32 %v5950, 16
    %v6574 = vrot.slane %v6572, 4
    %v6575 = vshll.u32 %v5950, 16
    %v6577 = vrot.slane %v6575, 5
    %v6578 = vor.u32 %v6574, %v6577
    %v6579 = vrot.slane %v6578, 4
    %v6581 = vshll.u32 %v5951, 16
    %v6583 = vrot.slane %v6581, 5
    %v6584 = vsel %vm2515, %v6579, %v6583
    %v6585 = vshrl.u32 %v5951, 16
    %v6587 = vrot.slane %v6585, 4
    %v6588 = vor.u32 %v6587, %v6583
    %v6589 = vrot.slane %v6588, 4
    %v6591 = vshll.u32 %v5952, 16
    %v6593 = vrot.slane %v6591, 5
    %v6594 = vsel %vm2515, %v6589, %v6593
    %v6596 = vshrl.u32 %v5953, 16
    %v6598 = vrot.slane %v6596, 4
    %v6599 = vshll.u32 %v5953, 16
    %v6601 = vrot.slane %v6599, 5
    %v6602 = vor.u32 %v6598, %v6601
    %v6603 = vrot.slane %v6602, 4
    %v6605 = vshll.u32 %v5954, 16
    %v6607 = vrot.slane %v6605, 5
    %v6608 = vsel %vm2515, %v6603, %v6607
    %v6609 = vshrl.u32 %v5954, 16
    %v6611 = vrot.slane %v6609, 4
    %v6612 = vor.u32 %v6611, %v6607
    %v6613 = vrot.slane %v6612, 4
    %v6615 = vshll.u32 %v5955, 16
    %v6617 = vrot.slane %v6615, 5
    %v6618 = vsel %vm2515, %v6613, %v6617
    %v6620 = vshrl.u32 %v5956, 16
    %v6622 = vrot.slane %v6620, 4
    %v6623 = vshll.u32 %v5956, 16
    %v6625 = vrot.slane %v6623, 5
    %v6626 = vor.u32 %v6622, %v6625
    %v6627 = vrot.slane %v6626, 4
    %v6629 = vshll.u32 %v5957, 16
    %v6631 = vrot.slane %v6629, 5
    %v6632 = vsel %vm2515, %v6627, %v6631
    %v6633 = vshrl.u32 %v5957, 16
    %v6635 = vrot.slane %v6633, 4
    %v6636 = vor.u32 %v6635, %v6631
    %v6637 = vrot.slane %v6636, 4
    %v6639 = vshll.u32 %v5958, 16
    %v6641 = vrot.slane %v6639, 5
    %v6642 = vsel %vm2515, %v6637, %v6641
    %v6644 = vshrl.u32 %v5959, 16
    %v6646 = vrot.slane %v6644, 4
    %v6647 = vshll.u32 %v5959, 16
    %v6649 = vrot.slane %v6647, 5
    %v6650 = vor.u32 %v6646, %v6649
    %v6651 = vrot.slane %v6650, 4
    %v6653 = vshll.u32 %v5960, 16
    %v6655 = vrot.slane %v6653, 5
    %v6656 = vsel %vm2515, %v6651, %v6655
    %v6657 = vshrl.u32 %v5960, 16
    %v6659 = vrot.slane %v6657, 4
    %v6660 = vor.u32 %v6659, %v6655
    %v6661 = vrot.slane %v6660, 4
    %v6663 = vshll.u32 %v5961, 16
    %v6665 = vrot.slane %v6663, 5
    %v6666 = vsel %vm2515, %v6661, %v6665
    %v6668 = vshrl.u32 %v5962, 16
    %v6670 = vrot.slane %v6668, 4
    %v6671 = vshll.u32 %v5962, 16
    %v6673 = vrot.slane %v6671, 5
    %v6674 = vor.u32 %v6670, %v6673
    %v6675 = vrot.slane %v6674, 4
    %v6677 = vshll.u32 %v5963, 16
    %v6679 = vrot.slane %v6677, 5
    %v6680 = vsel %vm2515, %v6675, %v6679
    %v6681 = vshrl.u32 %v5963, 16
    %v6683 = vrot.slane %v6681, 4
    %v6684 = vor.u32 %v6683, %v6679
    %v6685 = vrot.slane %v6684, 4
    %v6687 = vshll.u32 %v5964, 16
    %v6689 = vrot.slane %v6687, 5
    %v6690 = vsel %vm2515, %v6685, %v6689
    %v6692 = vshrl.u32 %v5965, 16
    %v6694 = vrot.slane %v6692, 4
    %v6695 = vshll.u32 %v5965, 16
    %v6697 = vrot.slane %v6695, 5
    %v6698 = vor.u32 %v6694, %v6697
    %v6699 = vrot.slane %v6698, 4
    %v6701 = vshll.u32 %v5966, 16
    %v6703 = vrot.slane %v6701, 5
    %v6704 = vsel %vm2515, %v6699, %v6703
    %v6705 = vshrl.u32 %v5966, 16
    %v6707 = vrot.slane %v6705, 4
    %v6708 = vor.u32 %v6707, %v6703
    %v6709 = vrot.slane %v6708, 4
    %v6711 = vshll.u32 %v5967, 16
    %v6713 = vrot.slane %v6711, 5
    %v6714 = vsel %vm2515, %v6709, %v6713
    %v6716 = vshrl.u32 %v5968, 16
    %v6718 = vrot.slane %v6716, 4
    %v6719 = vshll.u32 %v5968, 16
    %v6721 = vrot.slane %v6719, 5
    %v6722 = vor.u32 %v6718, %v6721
    %v6723 = vrot.slane %v6722, 4
    %v6725 = vshll.u32 %v5969, 16
    %v6727 = vrot.slane %v6725, 5
    %v6728 = vsel %vm2515, %v6723, %v6727
    %v6729 = vshrl.u32 %v5969, 16
    %v6731 = vrot.slane %v6729, 4
    %v6732 = vor.u32 %v6731, %v6727
    %v6733 = vrot.slane %v6732, 4
    %v6735 = vshll.u32 %v5970, 16
    %v6737 = vrot.slane %v6735, 5
    %v6738 = vsel %vm2515, %v6733, %v6737
    %v6739 = vunpack.c.l.b16 %v5984
    %v6740 = vunpack.c.l.b16 %v5994
    %v6741 = vunpack.c.l.b16 %v6008
    %v6742 = vunpack.c.l.b16 %v6018
    %v6743 = vunpack.c.l.b16 %v6032
    %v6744 = vunpack.c.l.b16 %v6042
    %v6745 = vunpack.c.l.b16 %v6056
    %v6746 = vunpack.c.l.b16 %v6066
    %v6747 = vunpack.c.l.b16 %v6080
    %v6748 = vunpack.c.l.b16 %v6090
    %v6749 = vunpack.c.l.b16 %v6104
    %v6750 = vunpack.c.l.b16 %v6114
    %v6751 = vunpack.c.l.b16 %v6128
    %v6752 = vunpack.c.l.b16 %v6138
    %v6753 = vunpack.c.l.b16 %v6152
    %v6754 = vunpack.c.l.b16 %v6162
    %v6755 = vunpack.c.l.b16 %v6176
    %v6756 = vunpack.c.l.b16 %v6186
    %v6757 = vunpack.c.l.b16 %v6200
    %v6758 = vunpack.c.l.b16 %v6210
    %v6759 = vunpack.c.l.b16 %v6224
    %v6760 = vunpack.c.l.b16 %v6234
    %v6761 = vunpack.c.l.b16 %v6248
    %v6762 = vunpack.c.l.b16 %v6258
    %v6763 = vunpack.c.l.b16 %v6272
    %v6764 = vunpack.c.l.b16 %v6282
    %v6765 = vunpack.c.l.b16 %v6296
    %v6766 = vunpack.c.l.b16 %v6306
    %v6767 = vunpack.c.l.b16 %v6320
    %v6768 = vunpack.c.l.b16 %v6330
    %v6769 = vunpack.c.l.b16 %v6344
    %v6770 = vunpack.c.l.b16 %v6354
    %v6771 = vunpack.c.l.b16 %v6368
    %v6772 = vunpack.c.l.b16 %v6378
    %v6773 = vunpack.c.l.b16 %v6392
    %v6774 = vunpack.c.l.b16 %v6402
    %v6775 = vunpack.c.l.b16 %v6416
    %v6776 = vunpack.c.l.b16 %v6426
    %v6777 = vunpack.c.l.b16 %v6440
    %v6778 = vunpack.c.l.b16 %v6450
    %v6779 = vunpack.c.l.b16 %v6464
    %v6780 = vunpack.c.l.b16 %v6474
    %v6781 = vunpack.c.l.b16 %v6488
    %v6782 = vunpack.c.l.b16 %v6498
    %v6783 = vunpack.c.l.b16 %v6512
    %v6784 = vunpack.c.l.b16 %v6522
    %v6785 = vunpack.c.l.b16 %v6536
    %v6786 = vunpack.c.l.b16 %v6546
    %v6787 = vunpack.c.l.b16 %v6560
    %v6788 = vunpack.c.l.b16 %v6570
    %v6789 = vunpack.c.l.b16 %v6584
    %v6790 = vunpack.c.l.b16 %v6594
    %v6791 = vunpack.c.l.b16 %v6608
    %v6792 = vunpack.c.l.b16 %v6618
    %v6793 = vunpack.c.l.b16 %v6632
    %v6794 = vunpack.c.l.b16 %v6642
    %v6795 = vunpack.c.l.b16 %v6656
    %v6796 = vunpack.c.l.b16 %v6666
    %v6797 = vunpack.c.l.b16 %v6680
    %v6798 = vunpack.c.l.b16 %v6690
    %v6799 = vunpack.c.l.b16 %v6704
    %v6800 = vunpack.c.l.b16 %v6714
    %v6801 = vunpack.c.l.b16 %v6728
    %v6802 = vunpack.c.l.b16 %v6738
    %v6803 = vpack.c.b16 %v6740, %v6739
    %v6804 = vpack.c.b16 %v6742, %v6741
    %v6805 = vpack.c.b16 %v6744, %v6743
    %v6806 = vpack.c.b16 %v6746, %v6745
    %v6807 = vpack.c.b16 %v6748, %v6747
    %v6808 = vpack.c.b16 %v6750, %v6749
    %v6809 = vpack.c.b16 %v6752, %v6751
    %v6810 = vpack.c.b16 %v6754, %v6753
    %v6811 = vpack.c.b16 %v6756, %v6755
    %v6812 = vpack.c.b16 %v6758, %v6757
    %v6813 = vpack.c.b16 %v6760, %v6759
    %v6814 = vpack.c.b16 %v6762, %v6761
    %v6815 = vpack.c.b16 %v6764, %v6763
    %v6816 = vpack.c.b16 %v6766, %v6765
    %v6817 = vpack.c.b16 %v6768, %v6767
    %v6818 = vpack.c.b16 %v6770, %v6769
    %v6819 = vpack.c.b16 %v6772, %v6771
    %v6820 = vpack.c.b16 %v6774, %v6773
    %v6821 = vpack.c.b16 %v6776, %v6775
    %v6822 = vpack.c.b16 %v6778, %v6777
    %v6823 = vpack.c.b16 %v6780, %v6779
    %v6824 = vpack.c.b16 %v6782, %v6781
    %v6825 = vpack.c.b16 %v6784, %v6783
    %v6826 = vpack.c.b16 %v6786, %v6785
    %v6827 = vpack.c.b16 %v6788, %v6787
    %v6828 = vpack.c.b16 %v6790, %v6789
    %v6829 = vpack.c.b16 %v6792, %v6791
    %v6830 = vpack.c.b16 %v6794, %v6793
    %v6831 = vpack.c.b16 %v6796, %v6795
    %v6832 = vpack.c.b16 %v6798, %v6797
    %v6833 = vpack.c.b16 %v6800, %v6799
    %v6834 = vpack.c.b16 %v6802, %v6801
    %v6837 = vunpack.c.l.b16 %v2407
    %v6838 = vunpack.c.l.b16 %v2408
    %v6839 = vpack.c.b16 %v6838, %v6837
    %v6842 = vsel %vm581, %v6803, 0
    %v6845 = vsel %vm581, %v6804, 0
    %v6848 = vsel %vm581, %v6805, 0
    %v6851 = vsel %vm581, %v6806, 0
    %v6854 = vsel %vm581, %v6807, 0
    %v6857 = vsel %vm581, %v6808, 0
    %v6860 = vsel %vm581, %v6809, 0
    %v6863 = vsel %vm581, %v6810, 0
    %v6866 = vsel %vm581, %v6811, 0
    %v6869 = vsel %vm581, %v6812, 0
    %v6872 = vsel %vm581, %v6813, 0
    %v6875 = vsel %vm581, %v6814, 0
    %v6878 = vsel %vm581, %v6815, 0
    %v6881 = vsel %vm581, %v6816, 0
    %v6884 = vsel %vm581, %v6817, 0
    %v6887 = vsel %vm581, %v6818, 0
    %v6890 = vsel %vm581, %v6819, 0
    %v6893 = vsel %vm581, %v6820, 0
    %v6896 = vsel %vm581, %v6821, 0
    %v6899 = vsel %vm581, %v6822, 0
    %v6902 = vsel %vm581, %v6823, 0
    %v6905 = vsel %vm581, %v6824, 0
    %v6908 = vsel %vm581, %v6825, 0
    %v6911 = vsel %vm581, %v6826, 0
    %v6914 = vsel %vm581, %v6827, 0
    %v6917 = vsel %vm581, %v6828, 0
    %v6920 = vsel %vm581, %v6829, 0
    %v6923 = vsel %vm581, %v6830, 0
    %v6926 = vsel %vm581, %v6831, 0
    %v6929 = vsel %vm581, %v6832, 0
    %v6932 = vsel %vm581, %v6833, 0
    %v6935 = vsel %vm581, %v6834, 0
    %6937 = vmatprep.subr.bf16.mxu0 0
    %6938 = vmatpush1.bf16.msra.mxu0 0
    %6939 = vmatprep.subr.bf16.mxu0 0
    %6940 = vmatpush1.bf16.msra.mxu0 0
    %6941 = vmatprep.subr.bf16.mxu0 0
    %6942 = vmatpush1.bf16.msra.mxu0 0
    %6943 = vmatprep.subr.bf16.mxu0 0
    %6944 = vmatpush1.bf16.msra.mxu0 0
    %6945 = vmatprep.subr.bf16.mxu0 0
    %6946 = vmatpush1.bf16.msra.mxu0 0
    %6947 = vmatprep.subr.bf16.mxu0 0
    %6948 = vmatpush1.bf16.msra.mxu0 0
    %6949 = vmatprep.subr.bf16.mxu0 0
    %6950 = vmatpush1.bf16.msra.mxu0 0
    %6951 = vmatprep.subr.bf16.mxu0 0
    %6952 = vmatpush1.bf16.msra.mxu0 %v6839
    %6953 = vmatprep.subr.bf16.mxu0 0
    %6954 = vmatpush2.bf16.msra.mxu0 0
    %6955 = vmatprep.subr.bf16.mxu0 0
    %6956 = vmatpush2.bf16.msra.mxu0 0
    %6957 = vmatprep.subr.bf16.mxu0 0
    %6958 = vmatpush2.bf16.msra.mxu0 0
    %6959 = vmatprep.subr.bf16.mxu0 0
    %6960 = vmatpush2.bf16.msra.mxu0 0
    %6961 = vmatprep.subr.bf16.mxu0 0
    %6962 = vmatpush2.bf16.msra.mxu0 0
    %6963 = vmatprep.subr.bf16.mxu0 0
    %6964 = vmatpush2.bf16.msra.mxu0 0
    %6965 = vmatprep.subr.bf16.mxu0 0
    %6966 = vmatpush2.bf16.msra.mxu0 0
    %6967 = vmatprep.subr.bf16.mxu0 0
    %6968 = vmatpush2.bf16.msra.mxu0 0
    %6969 = vmatprep.mubr.bf16.mxu0 0
    %6970 = vmatmul.mubr.bf16.gmra.mxu0 %v6842
    %v6971 = vpop.f32.mrf.mxu0
    %v6972 = vadd.f32 0.0, %v6971
    %v6973 = vpop.f32.mrf.mxu0
    %v6974 = vpop.f32.mrf.mxu0
    %v6975 = vadd.f32 0.0, %v6974
    %v6976 = vpop.f32.mrf.mxu0
    %6977 = vmatprep.mubr.bf16.mxu0 0
    %6978 = vmatmul.mubr.bf16.gmra.mxu0 %v6845
    %v6979 = vpop.f32.mrf.mxu0
    %v6980 = vadd.f32 0.0, %v6979
    %v6981 = vpop.f32.mrf.mxu0
    %v6982 = vpop.f32.mrf.mxu0
    %v6983 = vadd.f32 0.0, %v6982
    %v6984 = vpop.f32.mrf.mxu0
    %6985 = vmatprep.mubr.bf16.mxu0 0
    %6986 = vmatmul.mubr.bf16.gmra.mxu0 %v6848
    %v6987 = vpop.f32.mrf.mxu0
    %v6988 = vadd.f32 0.0, %v6987
    %v6989 = vpop.f32.mrf.mxu0
    %v6990 = vpop.f32.mrf.mxu0
    %v6991 = vadd.f32 0.0, %v6990
    %v6992 = vpop.f32.mrf.mxu0
    %6993 = vmatprep.mubr.bf16.mxu0 0
    %6994 = vmatmul.mubr.bf16.gmra.mxu0 %v6851
    %v6995 = vpop.f32.mrf.mxu0
    %v6996 = vadd.f32 0.0, %v6995
    %v6997 = vpop.f32.mrf.mxu0
    %v6998 = vpop.f32.mrf.mxu0
    %v6999 = vadd.f32 0.0, %v6998
    %v7000 = vpop.f32.mrf.mxu0
    %7001 = vmatprep.mubr.bf16.mxu0 0
    %7002 = vmatmul.mubr.bf16.gmra.mxu0 %v6854
    %v7003 = vpop.f32.mrf.mxu0
    %v7004 = vadd.f32 0.0, %v7003
    %v7005 = vpop.f32.mrf.mxu0
    %v7006 = vpop.f32.mrf.mxu0
    %v7007 = vadd.f32 0.0, %v7006
    %v7008 = vpop.f32.mrf.mxu0
    %7009 = vmatprep.mubr.bf16.mxu0 0
    %7010 = vmatmul.mubr.bf16.gmra.mxu0 %v6857
    %v7011 = vpop.f32.mrf.mxu0
    %v7012 = vadd.f32 0.0, %v7011
    %v7013 = vpop.f32.mrf.mxu0
    %v7014 = vpop.f32.mrf.mxu0
    %v7015 = vadd.f32 0.0, %v7014
    %v7016 = vpop.f32.mrf.mxu0
    %7017 = vmatprep.mubr.bf16.mxu0 0
    %7018 = vmatmul.mubr.bf16.gmra.mxu0 %v6860
    %v7019 = vpop.f32.mrf.mxu0
    %v7020 = vadd.f32 0.0, %v7019
    %v7021 = vpop.f32.mrf.mxu0
    %v7022 = vpop.f32.mrf.mxu0
    %v7023 = vadd.f32 0.0, %v7022
    %v7024 = vpop.f32.mrf.mxu0
    %7025 = vmatprep.mubr.bf16.mxu0 0
    %7026 = vmatmul.mubr.bf16.gmra.mxu0 %v6863
    %v7027 = vpop.f32.mrf.mxu0
    %v7028 = vadd.f32 0.0, %v7027
    %v7029 = vpop.f32.mrf.mxu0
    %v7030 = vpop.f32.mrf.mxu0
    %v7031 = vadd.f32 0.0, %v7030
    %v7032 = vpop.f32.mrf.mxu0
    %7033 = vmatprep.mubr.bf16.mxu0 0
    %7034 = vmatmul.mubr.bf16.gmra.mxu0 %v6866
    %v7035 = vpop.f32.mrf.mxu0
    %v7036 = vadd.f32 0.0, %v7035
    %v7037 = vpop.f32.mrf.mxu0
    %v7038 = vpop.f32.mrf.mxu0
    %v7039 = vadd.f32 0.0, %v7038
    %v7040 = vpop.f32.mrf.mxu0
    %7041 = vmatprep.mubr.bf16.mxu0 0
    %7042 = vmatmul.mubr.bf16.gmra.mxu0 %v6869
    %v7043 = vpop.f32.mrf.mxu0
    %v7044 = vadd.f32 0.0, %v7043
    %v7045 = vpop.f32.mrf.mxu0
    %v7046 = vpop.f32.mrf.mxu0
    %v7047 = vadd.f32 0.0, %v7046
    %v7048 = vpop.f32.mrf.mxu0
    %7049 = vmatprep.mubr.bf16.mxu0 0
    %7050 = vmatmul.mubr.bf16.gmra.mxu0 %v6872
    %v7051 = vpop.f32.mrf.mxu0
    %v7052 = vadd.f32 0.0, %v7051
    %v7053 = vpop.f32.mrf.mxu0
    %v7054 = vpop.f32.mrf.mxu0
    %v7055 = vadd.f32 0.0, %v7054
    %v7056 = vpop.f32.mrf.mxu0
    %7057 = vmatprep.mubr.bf16.mxu0 0
    %7058 = vmatmul.mubr.bf16.gmra.mxu0 %v6875
    %v7059 = vpop.f32.mrf.mxu0
    %v7060 = vadd.f32 0.0, %v7059
    %v7061 = vpop.f32.mrf.mxu0
    %v7062 = vpop.f32.mrf.mxu0
    %v7063 = vadd.f32 0.0, %v7062
    %v7064 = vpop.f32.mrf.mxu0
    %7065 = vmatprep.mubr.bf16.mxu0 0
    %7066 = vmatmul.mubr.bf16.gmra.mxu0 %v6878
    %v7067 = vpop.f32.mrf.mxu0
    %v7068 = vadd.f32 0.0, %v7067
    %v7069 = vpop.f32.mrf.mxu0
    %v7070 = vpop.f32.mrf.mxu0
    %v7071 = vadd.f32 0.0, %v7070
    %v7072 = vpop.f32.mrf.mxu0
    %7073 = vmatprep.mubr.bf16.mxu0 0
    %7074 = vmatmul.mubr.bf16.gmra.mxu0 %v6881
    %v7075 = vpop.f32.mrf.mxu0
    %v7076 = vadd.f32 0.0, %v7075
    %v7077 = vpop.f32.mrf.mxu0
    %v7078 = vpop.f32.mrf.mxu0
    %v7079 = vadd.f32 0.0, %v7078
    %v7080 = vpop.f32.mrf.mxu0
    %7081 = vmatprep.mubr.bf16.mxu0 0
    %7082 = vmatmul.mubr.bf16.gmra.mxu0 %v6884
    %v7083 = vpop.f32.mrf.mxu0
    %v7084 = vadd.f32 0.0, %v7083
    %v7085 = vpop.f32.mrf.mxu0
    %v7086 = vpop.f32.mrf.mxu0
    %v7087 = vadd.f32 0.0, %v7086
    %v7088 = vpop.f32.mrf.mxu0
    %7089 = vmatprep.mubr.bf16.mxu0 0
    %7090 = vmatmul.mubr.bf16.gmra.mxu0 %v6887
    %v7091 = vpop.f32.mrf.mxu0
    %v7092 = vadd.f32 0.0, %v7091
    %v7093 = vpop.f32.mrf.mxu0
    %v7094 = vpop.f32.mrf.mxu0
    %v7095 = vadd.f32 0.0, %v7094
    %v7096 = vpop.f32.mrf.mxu0
    %7097 = vmatprep.mubr.bf16.mxu0 0
    %7098 = vmatmul.mubr.bf16.gmra.mxu0 %v6890
    %v7099 = vpop.f32.mrf.mxu0
    %v7100 = vadd.f32 0.0, %v7099
    %v7101 = vpop.f32.mrf.mxu0
    %v7102 = vpop.f32.mrf.mxu0
    %v7103 = vadd.f32 0.0, %v7102
    %v7104 = vpop.f32.mrf.mxu0
    %7105 = vmatprep.mubr.bf16.mxu0 0
    %7106 = vmatmul.mubr.bf16.gmra.mxu0 %v6893
    %v7107 = vpop.f32.mrf.mxu0
    %v7108 = vadd.f32 0.0, %v7107
    %v7109 = vpop.f32.mrf.mxu0
    %v7110 = vpop.f32.mrf.mxu0
    %v7111 = vadd.f32 0.0, %v7110
    %v7112 = vpop.f32.mrf.mxu0
    %7113 = vmatprep.mubr.bf16.mxu0 0
    %7114 = vmatmul.mubr.bf16.gmra.mxu0 %v6896
    %v7115 = vpop.f32.mrf.mxu0
    %v7116 = vadd.f32 0.0, %v7115
    %v7117 = vpop.f32.mrf.mxu0
    %v7118 = vpop.f32.mrf.mxu0
    %v7119 = vadd.f32 0.0, %v7118
    %v7120 = vpop.f32.mrf.mxu0
    %7121 = vmatprep.mubr.bf16.mxu0 0
    %7122 = vmatmul.mubr.bf16.gmra.mxu0 %v6899
    %v7123 = vpop.f32.mrf.mxu0
    %v7124 = vadd.f32 0.0, %v7123
    %v7125 = vpop.f32.mrf.mxu0
    %v7126 = vpop.f32.mrf.mxu0
    %v7127 = vadd.f32 0.0, %v7126
    %v7128 = vpop.f32.mrf.mxu0
    %7129 = vmatprep.mubr.bf16.mxu0 0
    %7130 = vmatmul.mubr.bf16.gmra.mxu0 %v6902
    %v7131 = vpop.f32.mrf.mxu0
    %v7132 = vadd.f32 0.0, %v7131
    %v7133 = vpop.f32.mrf.mxu0
    %v7134 = vpop.f32.mrf.mxu0
    %v7135 = vadd.f32 0.0, %v7134
    %v7136 = vpop.f32.mrf.mxu0
    %7137 = vmatprep.mubr.bf16.mxu0 0
    %7138 = vmatmul.mubr.bf16.gmra.mxu0 %v6905
    %v7139 = vpop.f32.mrf.mxu0
    %v7140 = vadd.f32 0.0, %v7139
    %v7141 = vpop.f32.mrf.mxu0
    %v7142 = vpop.f32.mrf.mxu0
    %v7143 = vadd.f32 0.0, %v7142
    %v7144 = vpop.f32.mrf.mxu0
    %7145 = vmatprep.mubr.bf16.mxu0 0
    %7146 = vmatmul.mubr.bf16.gmra.mxu0 %v6908
    %v7147 = vpop.f32.mrf.mxu0
    %v7148 = vadd.f32 0.0, %v7147
    %v7149 = vpop.f32.mrf.mxu0
    %v7150 = vpop.f32.mrf.mxu0
    %v7151 = vadd.f32 0.0, %v7150
    %v7152 = vpop.f32.mrf.mxu0
    %7153 = vmatprep.mubr.bf16.mxu0 0
    %7154 = vmatmul.mubr.bf16.gmra.mxu0 %v6911
    %v7155 = vpop.f32.mrf.mxu0
    %v7156 = vadd.f32 0.0, %v7155
    %v7157 = vpop.f32.mrf.mxu0
    %v7158 = vpop.f32.mrf.mxu0
    %v7159 = vadd.f32 0.0, %v7158
    %v7160 = vpop.f32.mrf.mxu0
    %7161 = vmatprep.mubr.bf16.mxu0 0
    %7162 = vmatmul.mubr.bf16.gmra.mxu0 %v6914
    %v7163 = vpop.f32.mrf.mxu0
    %v7164 = vadd.f32 0.0, %v7163
    %v7165 = vpop.f32.mrf.mxu0
    %v7166 = vpop.f32.mrf.mxu0
    %v7167 = vadd.f32 0.0, %v7166
    %v7168 = vpop.f32.mrf.mxu0
    %7169 = vmatprep.mubr.bf16.mxu0 0
    %7170 = vmatmul.mubr.bf16.gmra.mxu0 %v6917
    %v7171 = vpop.f32.mrf.mxu0
    %v7172 = vadd.f32 0.0, %v7171
    %v7173 = vpop.f32.mrf.mxu0
    %v7174 = vpop.f32.mrf.mxu0
    %v7175 = vadd.f32 0.0, %v7174
    %v7176 = vpop.f32.mrf.mxu0
    %7177 = vmatprep.mubr.bf16.mxu0 0
    %7178 = vmatmul.mubr.bf16.gmra.mxu0 %v6920
    %v7179 = vpop.f32.mrf.mxu0
    %v7180 = vadd.f32 0.0, %v7179
    %v7181 = vpop.f32.mrf.mxu0
    %v7182 = vpop.f32.mrf.mxu0
    %v7183 = vadd.f32 0.0, %v7182
    %v7184 = vpop.f32.mrf.mxu0
    %7185 = vmatprep.mubr.bf16.mxu0 0
    %7186 = vmatmul.mubr.bf16.gmra.mxu0 %v6923
    %v7187 = vpop.f32.mrf.mxu0
    %v7188 = vadd.f32 0.0, %v7187
    %v7189 = vpop.f32.mrf.mxu0
    %v7190 = vpop.f32.mrf.mxu0
    %v7191 = vadd.f32 0.0, %v7190
    %v7192 = vpop.f32.mrf.mxu0
    %7193 = vmatprep.mubr.bf16.mxu0 0
    %7194 = vmatmul.mubr.bf16.gmra.mxu0 %v6926
    %v7195 = vpop.f32.mrf.mxu0
    %v7196 = vadd.f32 0.0, %v7195
    %v7197 = vpop.f32.mrf.mxu0
    %v7198 = vpop.f32.mrf.mxu0
    %v7199 = vadd.f32 0.0, %v7198
    %v7200 = vpop.f32.mrf.mxu0
    %7201 = vmatprep.mubr.bf16.mxu0 0
    %7202 = vmatmul.mubr.bf16.gmra.mxu0 %v6929
    %v7203 = vpop.f32.mrf.mxu0
    %v7204 = vadd.f32 0.0, %v7203
    %v7205 = vpop.f32.mrf.mxu0
    %v7206 = vpop.f32.mrf.mxu0
    %v7207 = vadd.f32 0.0, %v7206
    %v7208 = vpop.f32.mrf.mxu0
    %7209 = vmatprep.mubr.bf16.mxu0 0
    %7210 = vmatmul.mubr.bf16.gmra.mxu0 %v6932
    %v7211 = vpop.f32.mrf.mxu0
    %v7212 = vadd.f32 0.0, %v7211
    %v7213 = vpop.f32.mrf.mxu0
    %v7214 = vpop.f32.mrf.mxu0
    %v7215 = vadd.f32 0.0, %v7214
    %v7216 = vpop.f32.mrf.mxu0
    %7217 = vmatprep.mubr.bf16.mxu0 0
    %7218 = vmatmul.mubr.bf16.gmra.mxu0 %v6935
    %v7219 = vpop.f32.mrf.mxu0
    %v7220 = vadd.f32 0.0, %v7219
    %v7221 = vpop.f32.mrf.mxu0
    %v7222 = vpop.f32.mrf.mxu0
    %v7223 = vadd.f32 0.0, %v7222
    %v7224 = vpop.f32.mrf.mxu0
    %7225 = vdwg.mxu0
    %v7226 = vadd.f32 %v5811, %v6972
    %v7227 = vadd.f32 %v5812, %v6975
    %v7228 = vadd.f32 %v5813, %v6980
    %v7229 = vadd.f32 %v5814, %v6983
    %v7230 = vadd.f32 %v5815, %v6988
    %v7231 = vadd.f32 %v5816, %v6991
    %v7232 = vadd.f32 %v5817, %v6996
    %v7233 = vadd.f32 %v5818, %v6999
    %v7234 = vadd.f32 %v5819, %v7004
    %v7235 = vadd.f32 %v5820, %v7007
    %v7236 = vadd.f32 %v5821, %v7012
    %v7237 = vadd.f32 %v5822, %v7015
    %v7238 = vadd.f32 %v5823, %v7020
    %v7239 = vadd.f32 %v5824, %v7023
    %v7240 = vadd.f32 %v5825, %v7028
    %v7241 = vadd.f32 %v5826, %v7031
    %v7242 = vadd.f32 %v5827, %v7036
    %v7243 = vadd.f32 %v5828, %v7039
    %v7244 = vadd.f32 %v5829, %v7044
    %v7245 = vadd.f32 %v5830, %v7047
    %v7246 = vadd.f32 %v5831, %v7052
    %v7247 = vadd.f32 %v5832, %v7055
    %v7248 = vadd.f32 %v5833, %v7060
    %v7249 = vadd.f32 %v5834, %v7063
    %v7250 = vadd.f32 %v5835, %v7068
    %v7251 = vadd.f32 %v5836, %v7071
    %v7252 = vadd.f32 %v5837, %v7076
    %v7253 = vadd.f32 %v5838, %v7079
    %v7254 = vadd.f32 %v5839, %v7084
    %v7255 = vadd.f32 %v5840, %v7087
    %v7256 = vadd.f32 %v5841, %v7092
    %v7257 = vadd.f32 %v5842, %v7095
    %v7258 = vadd.f32 %v5843, %v7100
    %v7259 = vadd.f32 %v5844, %v7103
    %v7260 = vadd.f32 %v5845, %v7108
    %v7261 = vadd.f32 %v5846, %v7111
    %v7262 = vadd.f32 %v5847, %v7116
    %v7263 = vadd.f32 %v5848, %v7119
    %v7264 = vadd.f32 %v5849, %v7124
    %v7265 = vadd.f32 %v5850, %v7127
    %v7266 = vadd.f32 %v5851, %v7132
    %v7267 = vadd.f32 %v5852, %v7135
    %v7268 = vadd.f32 %v5853, %v7140
    %v7269 = vadd.f32 %v5854, %v7143
    %v7270 = vadd.f32 %v5855, %v7148
    %v7271 = vadd.f32 %v5856, %v7151
    %v7272 = vadd.f32 %v5857, %v7156
    %v7273 = vadd.f32 %v5858, %v7159
    %v7274 = vadd.f32 %v5859, %v7164
    %v7275 = vadd.f32 %v5860, %v7167
    %v7276 = vadd.f32 %v5861, %v7172
    %v7277 = vadd.f32 %v5862, %v7175
    %v7278 = vadd.f32 %v5863, %v7180
    %v7279 = vadd.f32 %v5864, %v7183
    %v7280 = vadd.f32 %v5865, %v7188
    %v7281 = vadd.f32 %v5866, %v7191
    %v7282 = vadd.f32 %v5867, %v7196
    %v7283 = vadd.f32 %v5868, %v7199
    %v7284 = vadd.f32 %v5869, %v7204
    %v7285 = vadd.f32 %v5870, %v7207
    %v7286 = vadd.f32 %v5871, %v7212
    %v7287 = vadd.f32 %v5872, %v7215
    %v7288 = vadd.f32 %v5873, %v7220
    %v7289 = vadd.f32 %v5874, %v7223
    %v7290 = vld [vmem:[%s1173] sm:$0xe]
    %v7291 = vld [vmem:[%s1173 + $0xc] sm:$0xe]
    %v7292 = vld [vmem:[%s1173 + $0x18] sm:$0xe]
    %v7293 = vld [vmem:[%s1173 + $0x24] sm:$0xe]
    %v7294 = vld [vmem:[%s1173 + $0x30] sm:$0xe]
    %v7295 = vld [vmem:[%s1173 + $0x3c] sm:$0xe]
    %v7296 = vld [vmem:[%s1173 + $0x48] sm:$0xe]
    %v7297 = vld [vmem:[%s1173 + $0x54] sm:$0xe]
    %v7298 = vld [vmem:[%s1173 + $0x60] sm:$0xe]
    %v7299 = vld [vmem:[%s1173 + $0x6c] sm:$0xe]
    %v7300 = vld [vmem:[%s1173 + $0x78] sm:$0xe]
    %v7301 = vld [vmem:[%s1173 + $0x84] sm:$0xe]
    %v7302 = vld [vmem:[%s1173 + $0x90] sm:$0xe]
    %v7303 = vld [vmem:[%s1173 + $0x9c] sm:$0xe]
    %v7304 = vld [vmem:[%s1173 + $0xa8] sm:$0xe]
    %v7305 = vld [vmem:[%s1173 + $0xb4] sm:$0xe]
    %v7306 = vld [vmem:[%s1173 + $0xd8] sm:$0xe]
    %v7307 = vld [vmem:[%s1173 + $0xe4] sm:$0xe]
    %v7308 = vld [vmem:[%s1173 + $0xf0] sm:$0xe]
    %v7309 = vld [vmem:[%s1173 + $0xfc] sm:$0xe]
    %v7310 = vld [vmem:[%s1173 + $0x108] sm:$0xe]
    %v7311 = vld [vmem:[%s1173 + $0x114] sm:$0xe]
    %v7312 = vld [vmem:[%s1173 + $0x120] sm:$0xe]
    %v7313 = vld [vmem:[%s1173 + $0x12c] sm:$0xe]
    %v7314 = vld [vmem:[%s1173 + $0x138] sm:$0xe]
    %v7315 = vld [vmem:[%s1173 + $0x144] sm:$0xe]
    %v7316 = vld [vmem:[%s1173 + $0x150] sm:$0xe]
    %v7317 = vld [vmem:[%s1173 + $0x15c] sm:$0xe]
    %v7318 = vld [vmem:[%s1173 + $0x168] sm:$0xe]
    %v7319 = vld [vmem:[%s1173 + $0x174] sm:$0xe]
    %v7320 = vld [vmem:[%s1173 + $0x180] sm:$0xe]
    %v7321 = vld [vmem:[%s1173 + $0x18c] sm:$0xe]
    %v7418 = vrot.slane %v7290, 5
    %v7419 = vrot.slane %v7418, 4
    %v7420 = vrot.slane %v5876, 5
    %v7421 = vsel %vm4420, %v7419, %v7420
    %v7422 = vrot.slane %v7420, 4
    %v7423 = vrot.slane %v5877, 5
    %v7424 = vsel %vm4420, %v7422, %v7423
    %v7425 = vrot.slane %v7291, 5
    %v7426 = vrot.slane %v7425, 4
    %v7427 = vrot.slane %v5879, 5
    %v7428 = vsel %vm4420, %v7426, %v7427
    %v7429 = vrot.slane %v7427, 4
    %v7430 = vrot.slane %v5880, 5
    %v7431 = vsel %vm4420, %v7429, %v7430
    %v7432 = vrot.slane %v7292, 5
    %v7433 = vrot.slane %v7432, 4
    %v7434 = vrot.slane %v5882, 5
    %v7435 = vsel %vm4420, %v7433, %v7434
    %v7436 = vrot.slane %v7434, 4
    %v7437 = vrot.slane %v5883, 5
    %v7438 = vsel %vm4420, %v7436, %v7437
    %v7439 = vrot.slane %v7293, 5
    %v7440 = vrot.slane %v7439, 4
    %v7441 = vrot.slane %v5885, 5
    %v7442 = vsel %vm4420, %v7440, %v7441
    %v7443 = vrot.slane %v7441, 4
    %v7444 = vrot.slane %v5886, 5
    %v7445 = vsel %vm4420, %v7443, %v7444
    %v7446 = vrot.slane %v7294, 5
    %v7447 = vrot.slane %v7446, 4
    %v7448 = vrot.slane %v5888, 5
    %v7449 = vsel %vm4420, %v7447, %v7448
    %v7450 = vrot.slane %v7448, 4
    %v7451 = vrot.slane %v5889, 5
    %v7452 = vsel %vm4420, %v7450, %v7451
    %v7453 = vrot.slane %v7295, 5
    %v7454 = vrot.slane %v7453, 4
    %v7455 = vrot.slane %v5891, 5
    %v7456 = vsel %vm4420, %v7454, %v7455
    %v7457 = vrot.slane %v7455, 4
    %v7458 = vrot.slane %v5892, 5
    %v7459 = vsel %vm4420, %v7457, %v7458
    %v7460 = vrot.slane %v7296, 5
    %v7461 = vrot.slane %v7460, 4
    %v7462 = vrot.slane %v5894, 5
    %v7463 = vsel %vm4420, %v7461, %v7462
    %v7464 = vrot.slane %v7462, 4
    %v7465 = vrot.slane %v5895, 5
    %v7466 = vsel %vm4420, %v7464, %v7465
    %v7467 = vrot.slane %v7297, 5
    %v7468 = vrot.slane %v7467, 4
    %v7469 = vrot.slane %v5897, 5
    %v7470 = vsel %vm4420, %v7468, %v7469
    %v7471 = vrot.slane %v7469, 4
    %v7472 = vrot.slane %v5898, 5
    %v7473 = vsel %vm4420, %v7471, %v7472
    %v7474 = vrot.slane %v7298, 5
    %v7475 = vrot.slane %v7474, 4
    %v7476 = vrot.slane %v5900, 5
    %v7477 = vsel %vm4420, %v7475, %v7476
    %v7478 = vrot.slane %v7476, 4
    %v7479 = vrot.slane %v5901, 5
    %v7480 = vsel %vm4420, %v7478, %v7479
    %v7481 = vrot.slane %v7299, 5
    %v7482 = vrot.slane %v7481, 4
    %v7483 = vrot.slane %v5903, 5
    %v7484 = vsel %vm4420, %v7482, %v7483
    %v7485 = vrot.slane %v7483, 4
    %v7486 = vrot.slane %v5904, 5
    %v7487 = vsel %vm4420, %v7485, %v7486
    %v7488 = vrot.slane %v7300, 5
    %v7489 = vrot.slane %v7488, 4
    %v7490 = vrot.slane %v5906, 5
    %v7491 = vsel %vm4420, %v7489, %v7490
    %v7492 = vrot.slane %v7490, 4
    %v7493 = vrot.slane %v5907, 5
    %v7494 = vsel %vm4420, %v7492, %v7493
    %v7495 = vrot.slane %v7301, 5
    %v7496 = vrot.slane %v7495, 4
    %v7497 = vrot.slane %v5909, 5
    %v7498 = vsel %vm4420, %v7496, %v7497
    %v7499 = vrot.slane %v7497, 4
    %v7500 = vrot.slane %v5910, 5
    %v7501 = vsel %vm4420, %v7499, %v7500
    %v7502 = vrot.slane %v7302, 5
    %v7503 = vrot.slane %v7502, 4
    %v7504 = vrot.slane %v5912, 5
    %v7505 = vsel %vm4420, %v7503, %v7504
    %v7506 = vrot.slane %v7504, 4
    %v7507 = vrot.slane %v5913, 5
    %v7508 = vsel %vm4420, %v7506, %v7507
    %v7509 = vrot.slane %v7303, 5
    %v7510 = vrot.slane %v7509, 4
    %v7511 = vrot.slane %v5915, 5
    %v7512 = vsel %vm4420, %v7510, %v7511
    %v7513 = vrot.slane %v7511, 4
    %v7514 = vrot.slane %v5916, 5
    %v7515 = vsel %vm4420, %v7513, %v7514
    %v7516 = vrot.slane %v7304, 5
    %v7517 = vrot.slane %v7516, 4
    %v7518 = vrot.slane %v5918, 5
    %v7519 = vsel %vm4420, %v7517, %v7518
    %v7520 = vrot.slane %v7518, 4
    %v7521 = vrot.slane %v5919, 5
    %v7522 = vsel %vm4420, %v7520, %v7521
    %v7523 = vrot.slane %v7305, 5
    %v7524 = vrot.slane %v7523, 4
    %v7525 = vrot.slane %v5921, 5
    %v7526 = vsel %vm4420, %v7524, %v7525
    %v7527 = vrot.slane %v7525, 4
    %v7528 = vrot.slane %v5922, 5
    %v7529 = vsel %vm4420, %v7527, %v7528
    %v7530 = vrot.slane %v7306, 5
    %v7531 = vrot.slane %v7530, 4
    %v7532 = vrot.slane %v5924, 5
    %v7533 = vsel %vm4420, %v7531, %v7532
    %v7534 = vrot.slane %v7532, 4
    %v7535 = vrot.slane %v5925, 5
    %v7536 = vsel %vm4420, %v7534, %v7535
    %v7537 = vrot.slane %v7307, 5
    %v7538 = vrot.slane %v7537, 4
    %v7539 = vrot.slane %v5927, 5
    %v7540 = vsel %vm4420, %v7538, %v7539
    %v7541 = vrot.slane %v7539, 4
    %v7542 = vrot.slane %v5928, 5
    %v7543 = vsel %vm4420, %v7541, %v7542
    %v7544 = vrot.slane %v7308, 5
    %v7545 = vrot.slane %v7544, 4
    %v7546 = vrot.slane %v5930, 5
    %v7547 = vsel %vm4420, %v7545, %v7546
    %v7548 = vrot.slane %v7546, 4
    %v7549 = vrot.slane %v5931, 5
    %v7550 = vsel %vm4420, %v7548, %v7549
    %v7551 = vrot.slane %v7309, 5
    %v7552 = vrot.slane %v7551, 4
    %v7553 = vrot.slane %v5933, 5
    %v7554 = vsel %vm4420, %v7552, %v7553
    %v7555 = vrot.slane %v7553, 4
    %v7556 = vrot.slane %v5934, 5
    %v7557 = vsel %vm4420, %v7555, %v7556
    %v7558 = vrot.slane %v7310, 5
    %v7559 = vrot.slane %v7558, 4
    %v7560 = vrot.slane %v5936, 5
    %v7561 = vsel %vm4420, %v7559, %v7560
    %v7562 = vrot.slane %v7560, 4
    %v7563 = vrot.slane %v5937, 5
    %v7564 = vsel %vm4420, %v7562, %v7563
    %v7565 = vrot.slane %v7311, 5
    %v7566 = vrot.slane %v7565, 4
    %v7567 = vrot.slane %v5939, 5
    %v7568 = vsel %vm4420, %v7566, %v7567
    %v7569 = vrot.slane %v7567, 4
    %v7570 = vrot.slane %v5940, 5
    %v7571 = vsel %vm4420, %v7569, %v7570
    %v7572 = vrot.slane %v7312, 5
    %v7573 = vrot.slane %v7572, 4
    %v7574 = vrot.slane %v5942, 5
    %v7575 = vsel %vm4420, %v7573, %v7574
    %v7576 = vrot.slane %v7574, 4
    %v7577 = vrot.slane %v5943, 5
    %v7578 = vsel %vm4420, %v7576, %v7577
    %v7579 = vrot.slane %v7313, 5
    %v7580 = vrot.slane %v7579, 4
    %v7581 = vrot.slane %v5945, 5
    %v7582 = vsel %vm4420, %v7580, %v7581
    %v7583 = vrot.slane %v7581, 4
    %v7584 = vrot.slane %v5946, 5
    %v7585 = vsel %vm4420, %v7583, %v7584
    %v7586 = vrot.slane %v7314, 5
    %v7587 = vrot.slane %v7586, 4
    %v7588 = vrot.slane %v5948, 5
    %v7589 = vsel %vm4420, %v7587, %v7588
    %v7590 = vrot.slane %v7588, 4
    %v7591 = vrot.slane %v5949, 5
    %v7592 = vsel %vm4420, %v7590, %v7591
    %v7593 = vrot.slane %v7315, 5
    %v7594 = vrot.slane %v7593, 4
    %v7595 = vrot.slane %v5951, 5
    %v7596 = vsel %vm4420, %v7594, %v7595
    %v7597 = vrot.slane %v7595, 4
    %v7598 = vrot.slane %v5952, 5
    %v7599 = vsel %vm4420, %v7597, %v7598
    %v7600 = vrot.slane %v7316, 5
    %v7601 = vrot.slane %v7600, 4
    %v7602 = vrot.slane %v5954, 5
    %v7603 = vsel %vm4420, %v7601, %v7602
    %v7604 = vrot.slane %v7602, 4
    %v7605 = vrot.slane %v5955, 5
    %v7606 = vsel %vm4420, %v7604, %v7605
    %v7607 = vrot.slane %v7317, 5
    %v7608 = vrot.slane %v7607, 4
    %v7609 = vrot.slane %v5957, 5
    %v7610 = vsel %vm4420, %v7608, %v7609
    %v7611 = vrot.slane %v7609, 4
    %v7612 = vrot.slane %v5958, 5
    %v7613 = vsel %vm4420, %v7611, %v7612
    %v7614 = vrot.slane %v7318, 5
    %v7615 = vrot.slane %v7614, 4
    %v7616 = vrot.slane %v5960, 5
    %v7617 = vsel %vm4420, %v7615, %v7616
    %v7618 = vrot.slane %v7616, 4
    %v7619 = vrot.slane %v5961, 5
    %v7620 = vsel %vm4420, %v7618, %v7619
    %v7621 = vrot.slane %v7319, 5
    %v7622 = vrot.slane %v7621, 4
    %v7623 = vrot.slane %v5963, 5
    %v7624 = vsel %vm4420, %v7622, %v7623
    %v7625 = vrot.slane %v7623, 4
    %v7626 = vrot.slane %v5964, 5
    %v7627 = vsel %vm4420, %v7625, %v7626
    %v7628 = vrot.slane %v7320, 5
    %v7629 = vrot.slane %v7628, 4
    %v7630 = vrot.slane %v5966, 5
    %v7631 = vsel %vm4420, %v7629, %v7630
    %v7632 = vrot.slane %v7630, 4
    %v7633 = vrot.slane %v5967, 5
    %v7634 = vsel %vm4420, %v7632, %v7633
    %v7635 = vrot.slane %v7321, 5
    %v7636 = vrot.slane %v7635, 4
    %v7637 = vrot.slane %v5969, 5
    %v7638 = vsel %vm4420, %v7636, %v7637
    %v7639 = vrot.slane %v7637, 4
    %v7640 = vrot.slane %v5970, 5
    %v7641 = vsel %vm4420, %v7639, %v7640
    %v7642 = vunpack.c.l.b16 %v7421
    %v7643 = vunpack.c.l.b16 %v7424
    %v7644 = vunpack.c.l.b16 %v7428
    %v7645 = vunpack.c.l.b16 %v7431
    %v7646 = vunpack.c.l.b16 %v7435
    %v7647 = vunpack.c.l.b16 %v7438
    %v7648 = vunpack.c.l.b16 %v7442
    %v7649 = vunpack.c.l.b16 %v7445
    %v7650 = vunpack.c.l.b16 %v7449
    %v7651 = vunpack.c.l.b16 %v7452
    %v7652 = vunpack.c.l.b16 %v7456
    %v7653 = vunpack.c.l.b16 %v7459
    %v7654 = vunpack.c.l.b16 %v7463
    %v7655 = vunpack.c.l.b16 %v7466
    %v7656 = vunpack.c.l.b16 %v7470
    %v7657 = vunpack.c.l.b16 %v7473
    %v7658 = vunpack.c.l.b16 %v7477
    %v7659 = vunpack.c.l.b16 %v7480
    %v7660 = vunpack.c.l.b16 %v7484
    %v7661 = vunpack.c.l.b16 %v7487
    %v7662 = vunpack.c.l.b16 %v7491
    %v7663 = vunpack.c.l.b16 %v7494
    %v7664 = vunpack.c.l.b16 %v7498
    %v7665 = vunpack.c.l.b16 %v7501
    %v7666 = vunpack.c.l.b16 %v7505
    %v7667 = vunpack.c.l.b16 %v7508
    %v7668 = vunpack.c.l.b16 %v7512
    %v7669 = vunpack.c.l.b16 %v7515
    %v7670 = vunpack.c.l.b16 %v7519
    %v7671 = vunpack.c.l.b16 %v7522
    %v7672 = vunpack.c.l.b16 %v7526
    %v7673 = vunpack.c.l.b16 %v7529
    %v7674 = vunpack.c.l.b16 %v7533
    %v7675 = vunpack.c.l.b16 %v7536
    %v7676 = vunpack.c.l.b16 %v7540
    %v7677 = vunpack.c.l.b16 %v7543
    %v7678 = vunpack.c.l.b16 %v7547
    %v7679 = vunpack.c.l.b16 %v7550
    %v7680 = vunpack.c.l.b16 %v7554
    %v7681 = vunpack.c.l.b16 %v7557
    %v7682 = vunpack.c.l.b16 %v7561
    %v7683 = vunpack.c.l.b16 %v7564
    %v7684 = vunpack.c.l.b16 %v7568
    %v7685 = vunpack.c.l.b16 %v7571
    %v7686 = vunpack.c.l.b16 %v7575
    %v7687 = vunpack.c.l.b16 %v7578
    %v7688 = vunpack.c.l.b16 %v7582
    %v7689 = vunpack.c.l.b16 %v7585
    %v7690 = vunpack.c.l.b16 %v7589
    %v7691 = vunpack.c.l.b16 %v7592
    %v7692 = vunpack.c.l.b16 %v7596
    %v7693 = vunpack.c.l.b16 %v7599
    %v7694 = vunpack.c.l.b16 %v7603
    %v7695 = vunpack.c.l.b16 %v7606
    %v7696 = vunpack.c.l.b16 %v7610
    %v7697 = vunpack.c.l.b16 %v7613
    %v7698 = vunpack.c.l.b16 %v7617
    %v7699 = vunpack.c.l.b16 %v7620
    %v7700 = vunpack.c.l.b16 %v7624
    %v7701 = vunpack.c.l.b16 %v7627
    %v7702 = vunpack.c.l.b16 %v7631
    %v7703 = vunpack.c.l.b16 %v7634
    %v7704 = vunpack.c.l.b16 %v7638
    %v7705 = vunpack.c.l.b16 %v7641
    %v7706 = vpack.c.b16 %v7643, %v7642
    %v7707 = vpack.c.b16 %v7645, %v7644
    %v7708 = vpack.c.b16 %v7647, %v7646
    %v7709 = vpack.c.b16 %v7649, %v7648
    %v7710 = vpack.c.b16 %v7651, %v7650
    %v7711 = vpack.c.b16 %v7653, %v7652
    %v7712 = vpack.c.b16 %v7655, %v7654
    %v7713 = vpack.c.b16 %v7657, %v7656
    %v7714 = vpack.c.b16 %v7659, %v7658
    %v7715 = vpack.c.b16 %v7661, %v7660
    %v7716 = vpack.c.b16 %v7663, %v7662
    %v7717 = vpack.c.b16 %v7665, %v7664
    %v7718 = vpack.c.b16 %v7667, %v7666
    %v7719 = vpack.c.b16 %v7669, %v7668
    %v7720 = vpack.c.b16 %v7671, %v7670
    %v7721 = vpack.c.b16 %v7673, %v7672
    %v7722 = vpack.c.b16 %v7675, %v7674
    %v7723 = vpack.c.b16 %v7677, %v7676
    %v7724 = vpack.c.b16 %v7679, %v7678
    %v7725 = vpack.c.b16 %v7681, %v7680
    %v7726 = vpack.c.b16 %v7683, %v7682
    %v7727 = vpack.c.b16 %v7685, %v7684
    %v7728 = vpack.c.b16 %v7687, %v7686
    %v7729 = vpack.c.b16 %v7689, %v7688
    %v7730 = vpack.c.b16 %v7691, %v7690
    %v7731 = vpack.c.b16 %v7693, %v7692
    %v7732 = vpack.c.b16 %v7695, %v7694
    %v7733 = vpack.c.b16 %v7697, %v7696
    %v7734 = vpack.c.b16 %v7699, %v7698
    %v7735 = vpack.c.b16 %v7701, %v7700
    %v7736 = vpack.c.b16 %v7703, %v7702
    %v7737 = vpack.c.b16 %v7705, %v7704
    %v7740 = vunpack.c.l.b16 %v2409
    %v7741 = vunpack.c.l.b16 %v2410
    %v7742 = vpack.c.b16 %v7741, %v7740
    %v7745 = vsel %vm581, %v7706, 0
    %v7748 = vsel %vm581, %v7707, 0
    %v7751 = vsel %vm581, %v7708, 0
    %v7754 = vsel %vm581, %v7709, 0
    %v7757 = vsel %vm581, %v7710, 0
    %v7760 = vsel %vm581, %v7711, 0
    %v7763 = vsel %vm581, %v7712, 0
    %v7766 = vsel %vm581, %v7713, 0
    %v7769 = vsel %vm581, %v7714, 0
    %v7772 = vsel %vm581, %v7715, 0
    %v7775 = vsel %vm581, %v7716, 0
    %v7778 = vsel %vm581, %v7717, 0
    %v7781 = vsel %vm581, %v7718, 0
    %v7784 = vsel %vm581, %v7719, 0
    %v7787 = vsel %vm581, %v7720, 0
    %v7790 = vsel %vm581, %v7721, 0
    %v7793 = vsel %vm581, %v7722, 0
    %v7796 = vsel %vm581, %v7723, 0
    %v7799 = vsel %vm581, %v7724, 0
    %v7802 = vsel %vm581, %v7725, 0
    %v7805 = vsel %vm581, %v7726, 0
    %v7808 = vsel %vm581, %v7727, 0
    %v7811 = vsel %vm581, %v7728, 0
    %v7814 = vsel %vm581, %v7729, 0
    %v7817 = vsel %vm581, %v7730, 0
    %v7820 = vsel %vm581, %v7731, 0
    %v7823 = vsel %vm581, %v7732, 0
    %v7826 = vsel %vm581, %v7733, 0
    %v7829 = vsel %vm581, %v7734, 0
    %v7832 = vsel %vm581, %v7735, 0
    %v7835 = vsel %vm581, %v7736, 0
    %v7838 = vsel %vm581, %v7737, 0
    %7840 = vmatprep.subr.bf16.mxu0 0
    %7841 = vmatpush1.bf16.msra.mxu0 0
    %7842 = vmatprep.subr.bf16.mxu0 0
    %7843 = vmatpush1.bf16.msra.mxu0 0
    %7844 = vmatprep.subr.bf16.mxu0 0
    %7845 = vmatpush1.bf16.msra.mxu0 0
    %7846 = vmatprep.subr.bf16.mxu0 0
    %7847 = vmatpush1.bf16.msra.mxu0 0
    %7848 = vmatprep.subr.bf16.mxu0 0
    %7849 = vmatpush1.bf16.msra.mxu0 0
    %7850 = vmatprep.subr.bf16.mxu0 0
    %7851 = vmatpush1.bf16.msra.mxu0 0
    %7852 = vmatprep.subr.bf16.mxu0 0
    %7853 = vmatpush1.bf16.msra.mxu0 0
    %7854 = vmatprep.subr.bf16.mxu0 0
    %7855 = vmatpush1.bf16.msra.mxu0 %v7742
    %7856 = vmatprep.subr.bf16.mxu0 0
    %7857 = vmatpush2.bf16.msra.mxu0 0
    %7858 = vmatprep.subr.bf16.mxu0 0
    %7859 = vmatpush2.bf16.msra.mxu0 0
    %7860 = vmatprep.subr.bf16.mxu0 0
    %7861 = vmatpush2.bf16.msra.mxu0 0
    %7862 = vmatprep.subr.bf16.mxu0 0
    %7863 = vmatpush2.bf16.msra.mxu0 0
    %7864 = vmatprep.subr.bf16.mxu0 0
    %7865 = vmatpush2.bf16.msra.mxu0 0
    %7866 = vmatprep.subr.bf16.mxu0 0
    %7867 = vmatpush2.bf16.msra.mxu0 0
    %7868 = vmatprep.subr.bf16.mxu0 0
    %7869 = vmatpush2.bf16.msra.mxu0 0
    %7870 = vmatprep.subr.bf16.mxu0 0
    %7871 = vmatpush2.bf16.msra.mxu0 0
    %7872 = vmatprep.mubr.bf16.mxu0 0
    %7873 = vmatmul.mubr.bf16.gmra.mxu0 %v7745
    %v7874 = vpop.f32.mrf.mxu0
    %v7875 = vadd.f32 0.0, %v7874
    %v7876 = vpop.f32.mrf.mxu0
    %v7877 = vpop.f32.mrf.mxu0
    %v7878 = vadd.f32 0.0, %v7877
    %v7879 = vpop.f32.mrf.mxu0
    %7880 = vmatprep.mubr.bf16.mxu0 0
    %7881 = vmatmul.mubr.bf16.gmra.mxu0 %v7748
    %v7882 = vpop.f32.mrf.mxu0
    %v7883 = vadd.f32 0.0, %v7882
    %v7884 = vpop.f32.mrf.mxu0
    %v7885 = vpop.f32.mrf.mxu0
    %v7886 = vadd.f32 0.0, %v7885
    %v7887 = vpop.f32.mrf.mxu0
    %7888 = vmatprep.mubr.bf16.mxu0 0
    %7889 = vmatmul.mubr.bf16.gmra.mxu0 %v7751
    %v7890 = vpop.f32.mrf.mxu0
    %v7891 = vadd.f32 0.0, %v7890
    %v7892 = vpop.f32.mrf.mxu0
    %v7893 = vpop.f32.mrf.mxu0
    %v7894 = vadd.f32 0.0, %v7893
    %v7895 = vpop.f32.mrf.mxu0
    %7896 = vmatprep.mubr.bf16.mxu0 0
    %7897 = vmatmul.mubr.bf16.gmra.mxu0 %v7754
    %v7898 = vpop.f32.mrf.mxu0
    %v7899 = vadd.f32 0.0, %v7898
    %v7900 = vpop.f32.mrf.mxu0
    %v7901 = vpop.f32.mrf.mxu0
    %v7902 = vadd.f32 0.0, %v7901
    %v7903 = vpop.f32.mrf.mxu0
    %7904 = vmatprep.mubr.bf16.mxu0 0
    %7905 = vmatmul.mubr.bf16.gmra.mxu0 %v7757
    %v7906 = vpop.f32.mrf.mxu0
    %v7907 = vadd.f32 0.0, %v7906
    %v7908 = vpop.f32.mrf.mxu0
    %v7909 = vpop.f32.mrf.mxu0
    %v7910 = vadd.f32 0.0, %v7909
    %v7911 = vpop.f32.mrf.mxu0
    %7912 = vmatprep.mubr.bf16.mxu0 0
    %7913 = vmatmul.mubr.bf16.gmra.mxu0 %v7760
    %v7914 = vpop.f32.mrf.mxu0
    %v7915 = vadd.f32 0.0, %v7914
    %v7916 = vpop.f32.mrf.mxu0
    %v7917 = vpop.f32.mrf.mxu0
    %v7918 = vadd.f32 0.0, %v7917
    %v7919 = vpop.f32.mrf.mxu0
    %7920 = vmatprep.mubr.bf16.mxu0 0
    %7921 = vmatmul.mubr.bf16.gmra.mxu0 %v7763
    %v7922 = vpop.f32.mrf.mxu0
    %v7923 = vadd.f32 0.0, %v7922
    %v7924 = vpop.f32.mrf.mxu0
    %v7925 = vpop.f32.mrf.mxu0
    %v7926 = vadd.f32 0.0, %v7925
    %v7927 = vpop.f32.mrf.mxu0
    %7928 = vmatprep.mubr.bf16.mxu0 0
    %7929 = vmatmul.mubr.bf16.gmra.mxu0 %v7766
    %v7930 = vpop.f32.mrf.mxu0
    %v7931 = vadd.f32 0.0, %v7930
    %v7932 = vpop.f32.mrf.mxu0
    %v7933 = vpop.f32.mrf.mxu0
    %v7934 = vadd.f32 0.0, %v7933
    %v7935 = vpop.f32.mrf.mxu0
    %7936 = vmatprep.mubr.bf16.mxu0 0
    %7937 = vmatmul.mubr.bf16.gmra.mxu0 %v7769
    %v7938 = vpop.f32.mrf.mxu0
    %v7939 = vadd.f32 0.0, %v7938
    %v7940 = vpop.f32.mrf.mxu0
    %v7941 = vpop.f32.mrf.mxu0
    %v7942 = vadd.f32 0.0, %v7941
    %v7943 = vpop.f32.mrf.mxu0
    %7944 = vmatprep.mubr.bf16.mxu0 0
    %7945 = vmatmul.mubr.bf16.gmra.mxu0 %v7772
    %v7946 = vpop.f32.mrf.mxu0
    %v7947 = vadd.f32 0.0, %v7946
    %v7948 = vpop.f32.mrf.mxu0
    %v7949 = vpop.f32.mrf.mxu0
    %v7950 = vadd.f32 0.0, %v7949
    %v7951 = vpop.f32.mrf.mxu0
    %7952 = vmatprep.mubr.bf16.mxu0 0
    %7953 = vmatmul.mubr.bf16.gmra.mxu0 %v7775
    %v7954 = vpop.f32.mrf.mxu0
    %v7955 = vadd.f32 0.0, %v7954
    %v7956 = vpop.f32.mrf.mxu0
    %v7957 = vpop.f32.mrf.mxu0
    %v7958 = vadd.f32 0.0, %v7957
    %v7959 = vpop.f32.mrf.mxu0
    %7960 = vmatprep.mubr.bf16.mxu0 0
    %7961 = vmatmul.mubr.bf16.gmra.mxu0 %v7778
    %v7962 = vpop.f32.mrf.mxu0
    %v7963 = vadd.f32 0.0, %v7962
    %v7964 = vpop.f32.mrf.mxu0
    %v7965 = vpop.f32.mrf.mxu0
    %v7966 = vadd.f32 0.0, %v7965
    %v7967 = vpop.f32.mrf.mxu0
    %7968 = vmatprep.mubr.bf16.mxu0 0
    %7969 = vmatmul.mubr.bf16.gmra.mxu0 %v7781
    %v7970 = vpop.f32.mrf.mxu0
    %v7971 = vadd.f32 0.0, %v7970
    %v7972 = vpop.f32.mrf.mxu0
    %v7973 = vpop.f32.mrf.mxu0
    %v7974 = vadd.f32 0.0, %v7973
    %v7975 = vpop.f32.mrf.mxu0
    %7976 = vmatprep.mubr.bf16.mxu0 0
    %7977 = vmatmul.mubr.bf16.gmra.mxu0 %v7784
    %v7978 = vpop.f32.mrf.mxu0
    %v7979 = vadd.f32 0.0, %v7978
    %v7980 = vpop.f32.mrf.mxu0
    %v7981 = vpop.f32.mrf.mxu0
    %v7982 = vadd.f32 0.0, %v7981
    %v7983 = vpop.f32.mrf.mxu0
    %7984 = vmatprep.mubr.bf16.mxu0 0
    %7985 = vmatmul.mubr.bf16.gmra.mxu0 %v7787
    %v7986 = vpop.f32.mrf.mxu0
    %v7987 = vadd.f32 0.0, %v7986
    %v7988 = vpop.f32.mrf.mxu0
    %v7989 = vpop.f32.mrf.mxu0
    %v7990 = vadd.f32 0.0, %v7989
    %v7991 = vpop.f32.mrf.mxu0
    %7992 = vmatprep.mubr.bf16.mxu0 0
    %7993 = vmatmul.mubr.bf16.gmra.mxu0 %v7790
    %v7994 = vpop.f32.mrf.mxu0
    %v7995 = vadd.f32 0.0, %v7994
    %v7996 = vpop.f32.mrf.mxu0
    %v7997 = vpop.f32.mrf.mxu0
    %v7998 = vadd.f32 0.0, %v7997
    %v7999 = vpop.f32.mrf.mxu0
    %8000 = vmatprep.mubr.bf16.mxu0 0
    %8001 = vmatmul.mubr.bf16.gmra.mxu0 %v7793
    %v8002 = vpop.f32.mrf.mxu0
    %v8003 = vadd.f32 0.0, %v8002
    %v8004 = vpop.f32.mrf.mxu0
    %v8005 = vpop.f32.mrf.mxu0
    %v8006 = vadd.f32 0.0, %v8005
    %v8007 = vpop.f32.mrf.mxu0
    %8008 = vmatprep.mubr.bf16.mxu0 0
    %8009 = vmatmul.mubr.bf16.gmra.mxu0 %v7796
    %v8010 = vpop.f32.mrf.mxu0
    %v8011 = vadd.f32 0.0, %v8010
    %v8012 = vpop.f32.mrf.mxu0
    %v8013 = vpop.f32.mrf.mxu0
    %v8014 = vadd.f32 0.0, %v8013
    %v8015 = vpop.f32.mrf.mxu0
    %8016 = vmatprep.mubr.bf16.mxu0 0
    %8017 = vmatmul.mubr.bf16.gmra.mxu0 %v7799
    %v8018 = vpop.f32.mrf.mxu0
    %v8019 = vadd.f32 0.0, %v8018
    %v8020 = vpop.f32.mrf.mxu0
    %v8021 = vpop.f32.mrf.mxu0
    %v8022 = vadd.f32 0.0, %v8021
    %v8023 = vpop.f32.mrf.mxu0
    %8024 = vmatprep.mubr.bf16.mxu0 0
    %8025 = vmatmul.mubr.bf16.gmra.mxu0 %v7802
    %v8026 = vpop.f32.mrf.mxu0
    %v8027 = vadd.f32 0.0, %v8026
    %v8028 = vpop.f32.mrf.mxu0
    %v8029 = vpop.f32.mrf.mxu0
    %v8030 = vadd.f32 0.0, %v8029
    %v8031 = vpop.f32.mrf.mxu0
    %8032 = vmatprep.mubr.bf16.mxu0 0
    %8033 = vmatmul.mubr.bf16.gmra.mxu0 %v7805
    %v8034 = vpop.f32.mrf.mxu0
    %v8035 = vadd.f32 0.0, %v8034
    %v8036 = vpop.f32.mrf.mxu0
    %v8037 = vpop.f32.mrf.mxu0
    %v8038 = vadd.f32 0.0, %v8037
    %v8039 = vpop.f32.mrf.mxu0
    %8040 = vmatprep.mubr.bf16.mxu0 0
    %8041 = vmatmul.mubr.bf16.gmra.mxu0 %v7808
    %v8042 = vpop.f32.mrf.mxu0
    %v8043 = vadd.f32 0.0, %v8042
    %v8044 = vpop.f32.mrf.mxu0
    %v8045 = vpop.f32.mrf.mxu0
    %v8046 = vadd.f32 0.0, %v8045
    %v8047 = vpop.f32.mrf.mxu0
    %8048 = vmatprep.mubr.bf16.mxu0 0
    %8049 = vmatmul.mubr.bf16.gmra.mxu0 %v7811
    %v8050 = vpop.f32.mrf.mxu0
    %v8051 = vadd.f32 0.0, %v8050
    %v8052 = vpop.f32.mrf.mxu0
    %v8053 = vpop.f32.mrf.mxu0
    %v8054 = vadd.f32 0.0, %v8053
    %v8055 = vpop.f32.mrf.mxu0
    %8056 = vmatprep.mubr.bf16.mxu0 0
    %8057 = vmatmul.mubr.bf16.gmra.mxu0 %v7814
    %v8058 = vpop.f32.mrf.mxu0
    %v8059 = vadd.f32 0.0, %v8058
    %v8060 = vpop.f32.mrf.mxu0
    %v8061 = vpop.f32.mrf.mxu0
    %v8062 = vadd.f32 0.0, %v8061
    %v8063 = vpop.f32.mrf.mxu0
    %8064 = vmatprep.mubr.bf16.mxu0 0
    %8065 = vmatmul.mubr.bf16.gmra.mxu0 %v7817
    %v8066 = vpop.f32.mrf.mxu0
    %v8067 = vadd.f32 0.0, %v8066
    %v8068 = vpop.f32.mrf.mxu0
    %v8069 = vpop.f32.mrf.mxu0
    %v8070 = vadd.f32 0.0, %v8069
    %v8071 = vpop.f32.mrf.mxu0
    %8072 = vmatprep.mubr.bf16.mxu0 0
    %8073 = vmatmul.mubr.bf16.gmra.mxu0 %v7820
    %v8074 = vpop.f32.mrf.mxu0
    %v8075 = vadd.f32 0.0, %v8074
    %v8076 = vpop.f32.mrf.mxu0
    %v8077 = vpop.f32.mrf.mxu0
    %v8078 = vadd.f32 0.0, %v8077
    %v8079 = vpop.f32.mrf.mxu0
    %8080 = vmatprep.mubr.bf16.mxu0 0
    %8081 = vmatmul.mubr.bf16.gmra.mxu0 %v7823
    %v8082 = vpop.f32.mrf.mxu0
    %v8083 = vadd.f32 0.0, %v8082
    %v8084 = vpop.f32.mrf.mxu0
    %v8085 = vpop.f32.mrf.mxu0
    %v8086 = vadd.f32 0.0, %v8085
    %v8087 = vpop.f32.mrf.mxu0
    %8088 = vmatprep.mubr.bf16.mxu0 0
    %8089 = vmatmul.mubr.bf16.gmra.mxu0 %v7826
    %v8090 = vpop.f32.mrf.mxu0
    %v8091 = vadd.f32 0.0, %v8090
    %v8092 = vpop.f32.mrf.mxu0
    %v8093 = vpop.f32.mrf.mxu0
    %v8094 = vadd.f32 0.0, %v8093
    %v8095 = vpop.f32.mrf.mxu0
    %8096 = vmatprep.mubr.bf16.mxu0 0
    %8097 = vmatmul.mubr.bf16.gmra.mxu0 %v7829
    %v8098 = vpop.f32.mrf.mxu0
    %v8099 = vadd.f32 0.0, %v8098
    %v8100 = vpop.f32.mrf.mxu0
    %v8101 = vpop.f32.mrf.mxu0
    %v8102 = vadd.f32 0.0, %v8101
    %v8103 = vpop.f32.mrf.mxu0
    %8104 = vmatprep.mubr.bf16.mxu0 0
    %8105 = vmatmul.mubr.bf16.gmra.mxu0 %v7832
    %v8106 = vpop.f32.mrf.mxu0
    %v8107 = vadd.f32 0.0, %v8106
    %v8108 = vpop.f32.mrf.mxu0
    %v8109 = vpop.f32.mrf.mxu0
    %v8110 = vadd.f32 0.0, %v8109
    %v8111 = vpop.f32.mrf.mxu0
    %8112 = vmatprep.mubr.bf16.mxu0 0
    %8113 = vmatmul.mubr.bf16.gmra.mxu0 %v7835
    %v8114 = vpop.f32.mrf.mxu0
    %v8115 = vadd.f32 0.0, %v8114
    %v8116 = vpop.f32.mrf.mxu0
    %v8117 = vpop.f32.mrf.mxu0
    %v8118 = vadd.f32 0.0, %v8117
    %v8119 = vpop.f32.mrf.mxu0
    %8120 = vmatprep.mubr.bf16.mxu0 0
    %8121 = vmatmul.mubr.bf16.gmra.mxu0 %v7838
    %v8122 = vpop.f32.mrf.mxu0
    %v8123 = vadd.f32 0.0, %v8122
    %v8124 = vpop.f32.mrf.mxu0
    %v8125 = vpop.f32.mrf.mxu0
    %v8126 = vadd.f32 0.0, %v8125
    %v8127 = vpop.f32.mrf.mxu0
    %8128 = vdwg.mxu0
    %v8129 = vadd.f32 %v7226, %v7875
    %v8130 = vadd.f32 %v7227, %v7878
    %v8131 = vadd.f32 %v7228, %v7883
    %v8132 = vadd.f32 %v7229, %v7886
    %v8133 = vadd.f32 %v7230, %v7891
    %v8134 = vadd.f32 %v7231, %v7894
    %v8135 = vadd.f32 %v7232, %v7899
    %v8136 = vadd.f32 %v7233, %v7902
    %v8137 = vadd.f32 %v7234, %v7907
    %v8138 = vadd.f32 %v7235, %v7910
    %v8139 = vadd.f32 %v7236, %v7915
    %v8140 = vadd.f32 %v7237, %v7918
    %v8141 = vadd.f32 %v7238, %v7923
    %v8142 = vadd.f32 %v7239, %v7926
    %v8143 = vadd.f32 %v7240, %v7931
    %v8144 = vadd.f32 %v7241, %v7934
    %v8145 = vadd.f32 %v7242, %v7939
    %v8146 = vadd.f32 %v7243, %v7942
    %v8147 = vadd.f32 %v7244, %v7947
    %v8148 = vadd.f32 %v7245, %v7950
    %v8149 = vadd.f32 %v7246, %v7955
    %v8150 = vadd.f32 %v7247, %v7958
    %v8151 = vadd.f32 %v7248, %v7963
    %v8152 = vadd.f32 %v7249, %v7966
    %v8153 = vadd.f32 %v7250, %v7971
    %v8154 = vadd.f32 %v7251, %v7974
    %v8155 = vadd.f32 %v7252, %v7979
    %v8156 = vadd.f32 %v7253, %v7982
    %v8157 = vadd.f32 %v7254, %v7987
    %v8158 = vadd.f32 %v7255, %v7990
    %v8159 = vadd.f32 %v7256, %v7995
    %v8160 = vadd.f32 %v7257, %v7998
    %v8161 = vadd.f32 %v7258, %v8003
    %v8162 = vadd.f32 %v7259, %v8006
    %v8163 = vadd.f32 %v7260, %v8011
    %v8164 = vadd.f32 %v7261, %v8014
    %v8165 = vadd.f32 %v7262, %v8019
    %v8166 = vadd.f32 %v7263, %v8022
    %v8167 = vadd.f32 %v7264, %v8027
    %v8168 = vadd.f32 %v7265, %v8030
    %v8169 = vadd.f32 %v7266, %v8035
    %v8170 = vadd.f32 %v7267, %v8038
    %v8171 = vadd.f32 %v7268, %v8043
    %v8172 = vadd.f32 %v7269, %v8046
    %v8173 = vadd.f32 %v7270, %v8051
    %v8174 = vadd.f32 %v7271, %v8054
    %v8175 = vadd.f32 %v7272, %v8059
    %v8176 = vadd.f32 %v7273, %v8062
    %v8177 = vadd.f32 %v7274, %v8067
    %v8178 = vadd.f32 %v7275, %v8070
    %v8179 = vadd.f32 %v7276, %v8075
    %v8180 = vadd.f32 %v7277, %v8078
    %v8181 = vadd.f32 %v7278, %v8083
    %v8182 = vadd.f32 %v7279, %v8086
    %v8183 = vadd.f32 %v7280, %v8091
    %v8184 = vadd.f32 %v7281, %v8094
    %v8185 = vadd.f32 %v7282, %v8099
    %v8186 = vadd.f32 %v7283, %v8102
    %v8187 = vadd.f32 %v7284, %v8107
    %v8188 = vadd.f32 %v7285, %v8110
    %v8189 = vadd.f32 %v7286, %v8115
    %v8190 = vadd.f32 %v7287, %v8118
    %v8191 = vadd.f32 %v7288, %v8123
    %v8192 = vadd.f32 %v7289, %v8126
    %s8193 = scalar_lea.vmem [#allocation2], 24
    %v8194 = vld [vmem:[%s8193] sm:$0xf]
    %v8195 = vld [vmem:[%s8193 + $0x4] sm:$0xf]
    %v8196 = vld [vmem:[%s8193 + $0xc] sm:$0xf]
    %v8197 = vld [vmem:[%s8193 + $0x10] sm:$0xf]
    %v8198 = vld [vmem:[%s8193 + $0x18] sm:$0xf]
    %v8199 = vld [vmem:[%s8193 + $0x1c] sm:$0xf]
    %v8200 = vld [vmem:[%s8193 + $0x24] sm:$0xf]
    %v8201 = vld [vmem:[%s8193 + $0x28] sm:$0xf]
    %v8202 = vld [vmem:[%s8193 + $0x30] sm:$0xf]
    %v8203 = vld [vmem:[%s8193 + $0x34] sm:$0xf]
    %v8204 = vld [vmem:[%s8193 + $0x3c] sm:$0xf]
    %v8205 = vld [vmem:[%s8193 + $0x40] sm:$0xf]
    %v8206 = vld [vmem:[%s8193 + $0x48] sm:$0xf]
    %v8207 = vld [vmem:[%s8193 + $0x4c] sm:$0xf]
    %v8208 = vld [vmem:[%s8193 + $0x54] sm:$0xf]
    %v8209 = vld [vmem:[%s8193 + $0x58] sm:$0xf]
    %v8210 = vld [vmem:[%s8193 + $0x60] sm:$0xf]
    %v8211 = vld [vmem:[%s8193 + $0x64] sm:$0xf]
    %v8212 = vld [vmem:[%s8193 + $0x6c] sm:$0xf]
    %v8213 = vld [vmem:[%s8193 + $0x70] sm:$0xf]
    %v8214 = vld [vmem:[%s8193 + $0x78] sm:$0xf]
    %v8215 = vld [vmem:[%s8193 + $0x7c] sm:$0xf]
    %v8216 = vld [vmem:[%s8193 + $0x84] sm:$0xf]
    %v8217 = vld [vmem:[%s8193 + $0x88] sm:$0xf]
    %v8218 = vld [vmem:[%s8193 + $0x90] sm:$0xf]
    %v8219 = vld [vmem:[%s8193 + $0x94] sm:$0xf]
    %v8220 = vld [vmem:[%s8193 + $0x9c] sm:$0xf]
    %v8221 = vld [vmem:[%s8193 + $0xa0] sm:$0xf]
    %v8222 = vld [vmem:[%s8193 + $0xa8] sm:$0xf]
    %v8223 = vld [vmem:[%s8193 + $0xac] sm:$0xf]
    %v8224 = vld [vmem:[%s8193 + $0xb4] sm:$0xf]
    %v8225 = vld [vmem:[%s8193 + $0xb8] sm:$0xf]
    %v8226 = vld [vmem:[%s8193 + $0xd8] sm:$0xf]
    %v8227 = vld [vmem:[%s8193 + $0xdc] sm:$0xf]
    %v8228 = vld [vmem:[%s8193 + $0xe4] sm:$0xf]
    %v8229 = vld [vmem:[%s8193 + $0xe8] sm:$0xf]
    %v8230 = vld [vmem:[%s8193 + $0xf0] sm:$0xf]
    %v8231 = vld [vmem:[%s8193 + $0xf4] sm:$0xf]
    %v8232 = vld [vmem:[%s8193 + $0xfc] sm:$0xf]
    %v8233 = vld [vmem:[%s8193 + $0x100] sm:$0xf]
    %v8234 = vld [vmem:[%s8193 + $0x108] sm:$0xf]
    %v8235 = vld [vmem:[%s8193 + $0x10c] sm:$0xf]
    %v8236 = vld [vmem:[%s8193 + $0x114] sm:$0xf]
    %v8237 = vld [vmem:[%s8193 + $0x118] sm:$0xf]
    %v8238 = vld [vmem:[%s8193 + $0x120] sm:$0xf]
    %v8239 = vld [vmem:[%s8193 + $0x124] sm:$0xf]
    %v8240 = vld [vmem:[%s8193 + $0x12c] sm:$0xf]
    %v8241 = vld [vmem:[%s8193 + $0x130] sm:$0xf]
    %v8242 = vld [vmem:[%s8193 + $0x138] sm:$0xf]
    %v8243 = vld [vmem:[%s8193 + $0x13c] sm:$0xf]
    %v8244 = vld [vmem:[%s8193 + $0x144] sm:$0xf]
    %v8245 = vld [vmem:[%s8193 + $0x148] sm:$0xf]
    %v8246 = vld [vmem:[%s8193 + $0x150] sm:$0xf]
    %v8247 = vld [vmem:[%s8193 + $0x154] sm:$0xf]
    %v8248 = vld [vmem:[%s8193 + $0x15c] sm:$0xf]
    %v8249 = vld [vmem:[%s8193 + $0x160] sm:$0xf]
    %v8250 = vld [vmem:[%s8193 + $0x168] sm:$0xf]
    %v8251 = vld [vmem:[%s8193 + $0x16c] sm:$0xf]
    %v8252 = vld [vmem:[%s8193 + $0x174] sm:$0xf]
    %v8253 = vld [vmem:[%s8193 + $0x178] sm:$0xf]
    %v8254 = vld [vmem:[%s8193 + $0x180] sm:$0xf]
    %v8255 = vld [vmem:[%s8193 + $0x184] sm:$0xf]
    %v8256 = vld [vmem:[%s8193 + $0x18c] sm:$0xf]
    %v8257 = vld [vmem:[%s8193 + $0x190] sm:$0xf]
    %v8322 = vunpack.c.l.b16 %v8194
    %v8323 = vunpack.c.l.b16 %v8195
    %v8324 = vunpack.c.l.b16 %v8196
    %v8325 = vunpack.c.l.b16 %v8197
    %v8326 = vunpack.c.l.b16 %v8198
    %v8327 = vunpack.c.l.b16 %v8199
    %v8328 = vunpack.c.l.b16 %v8200
    %v8329 = vunpack.c.l.b16 %v8201
    %v8330 = vunpack.c.l.b16 %v8202
    %v8331 = vunpack.c.l.b16 %v8203
    %v8332 = vunpack.c.l.b16 %v8204
    %v8333 = vunpack.c.l.b16 %v8205
    %v8334 = vunpack.c.l.b16 %v8206
    %v8335 = vunpack.c.l.b16 %v8207
    %v8336 = vunpack.c.l.b16 %v8208
    %v8337 = vunpack.c.l.b16 %v8209
    %v8338 = vunpack.c.l.b16 %v8210
    %v8339 = vunpack.c.l.b16 %v8211
    %v8340 = vunpack.c.l.b16 %v8212
    %v8341 = vunpack.c.l.b16 %v8213
    %v8342 = vunpack.c.l.b16 %v8214
    %v8343 = vunpack.c.l.b16 %v8215
    %v8344 = vunpack.c.l.b16 %v8216
    %v8345 = vunpack.c.l.b16 %v8217
    %v8346 = vunpack.c.l.b16 %v8218
    %v8347 = vunpack.c.l.b16 %v8219
    %v8348 = vunpack.c.l.b16 %v8220
    %v8349 = vunpack.c.l.b16 %v8221
    %v8350 = vunpack.c.l.b16 %v8222
    %v8351 = vunpack.c.l.b16 %v8223
    %v8352 = vunpack.c.l.b16 %v8224
    %v8353 = vunpack.c.l.b16 %v8225
    %v8354 = vunpack.c.l.b16 %v8226
    %v8355 = vunpack.c.l.b16 %v8227
    %v8356 = vunpack.c.l.b16 %v8228
    %v8357 = vunpack.c.l.b16 %v8229
    %v8358 = vunpack.c.l.b16 %v8230
    %v8359 = vunpack.c.l.b16 %v8231
    %v8360 = vunpack.c.l.b16 %v8232
    %v8361 = vunpack.c.l.b16 %v8233
    %v8362 = vunpack.c.l.b16 %v8234
    %v8363 = vunpack.c.l.b16 %v8235
    %v8364 = vunpack.c.l.b16 %v8236
    %v8365 = vunpack.c.l.b16 %v8237
    %v8366 = vunpack.c.l.b16 %v8238
    %v8367 = vunpack.c.l.b16 %v8239
    %v8368 = vunpack.c.l.b16 %v8240
    %v8369 = vunpack.c.l.b16 %v8241
    %v8370 = vunpack.c.l.b16 %v8242
    %v8371 = vunpack.c.l.b16 %v8243
    %v8372 = vunpack.c.l.b16 %v8244
    %v8373 = vunpack.c.l.b16 %v8245
    %v8374 = vunpack.c.l.b16 %v8246
    %v8375 = vunpack.c.l.b16 %v8247
    %v8376 = vunpack.c.l.b16 %v8248
    %v8377 = vunpack.c.l.b16 %v8249
    %v8378 = vunpack.c.l.b16 %v8250
    %v8379 = vunpack.c.l.b16 %v8251
    %v8380 = vunpack.c.l.b16 %v8252
    %v8381 = vunpack.c.l.b16 %v8253
    %v8382 = vunpack.c.l.b16 %v8254
    %v8383 = vunpack.c.l.b16 %v8255
    %v8384 = vunpack.c.l.b16 %v8256
    %v8385 = vunpack.c.l.b16 %v8257
    %v8386 = vpack.c.b16 %v8323, %v8322
    %v8387 = vpack.c.b16 %v8325, %v8324
    %v8388 = vpack.c.b16 %v8327, %v8326
    %v8389 = vpack.c.b16 %v8329, %v8328
    %v8390 = vpack.c.b16 %v8331, %v8330
    %v8391 = vpack.c.b16 %v8333, %v8332
    %v8392 = vpack.c.b16 %v8335, %v8334
    %v8393 = vpack.c.b16 %v8337, %v8336
    %v8394 = vpack.c.b16 %v8339, %v8338
    %v8395 = vpack.c.b16 %v8341, %v8340
    %v8396 = vpack.c.b16 %v8343, %v8342
    %v8397 = vpack.c.b16 %v8345, %v8344
    %v8398 = vpack.c.b16 %v8347, %v8346
    %v8399 = vpack.c.b16 %v8349, %v8348
    %v8400 = vpack.c.b16 %v8351, %v8350
    %v8401 = vpack.c.b16 %v8353, %v8352
    %v8402 = vpack.c.b16 %v8355, %v8354
    %v8403 = vpack.c.b16 %v8357, %v8356
    %v8404 = vpack.c.b16 %v8359, %v8358
    %v8405 = vpack.c.b16 %v8361, %v8360
    %v8406 = vpack.c.b16 %v8363, %v8362
    %v8407 = vpack.c.b16 %v8365, %v8364
    %v8408 = vpack.c.b16 %v8367, %v8366
    %v8409 = vpack.c.b16 %v8369, %v8368
    %v8410 = vpack.c.b16 %v8371, %v8370
    %v8411 = vpack.c.b16 %v8373, %v8372
    %v8412 = vpack.c.b16 %v8375, %v8374
    %v8413 = vpack.c.b16 %v8377, %v8376
    %v8414 = vpack.c.b16 %v8379, %v8378
    %v8415 = vpack.c.b16 %v8381, %v8380
    %v8416 = vpack.c.b16 %v8383, %v8382
    %v8417 = vpack.c.b16 %v8385, %v8384
    %v8420 = vunpack.c.l.b16 %v2411
    %v8421 = vunpack.c.l.b16 %v2412
    %v8422 = vpack.c.b16 %v8421, %v8420
    %v8425 = vsel %vm581, %v8386, 0
    %v8428 = vsel %vm581, %v8387, 0
    %v8431 = vsel %vm581, %v8388, 0
    %v8434 = vsel %vm581, %v8389, 0
    %v8437 = vsel %vm581, %v8390, 0
    %v8440 = vsel %vm581, %v8391, 0
    %v8443 = vsel %vm581, %v8392, 0
    %v8446 = vsel %vm581, %v8393, 0
    %v8449 = vsel %vm581, %v8394, 0
    %v8452 = vsel %vm581, %v8395, 0
    %v8455 = vsel %vm581, %v8396, 0
    %v8458 = vsel %vm581, %v8397, 0
    %v8461 = vsel %vm581, %v8398, 0
    %v8464 = vsel %vm581, %v8399, 0
    %v8467 = vsel %vm581, %v8400, 0
    %v8470 = vsel %vm581, %v8401, 0
    %v8473 = vsel %vm581, %v8402, 0
    %v8476 = vsel %vm581, %v8403, 0
    %v8479 = vsel %vm581, %v8404, 0
    %v8482 = vsel %vm581, %v8405, 0
    %v8485 = vsel %vm581, %v8406, 0
    %v8488 = vsel %vm581, %v8407, 0
    %v8491 = vsel %vm581, %v8408, 0
    %v8494 = vsel %vm581, %v8409, 0
    %v8497 = vsel %vm581, %v8410, 0
    %v8500 = vsel %vm581, %v8411, 0
    %v8503 = vsel %vm581, %v8412, 0
    %v8506 = vsel %vm581, %v8413, 0
    %v8509 = vsel %vm581, %v8414, 0
    %v8512 = vsel %vm581, %v8415, 0
    %v8515 = vsel %vm581, %v8416, 0
    %v8518 = vsel %vm581, %v8417, 0
    %8520 = vmatprep.subr.bf16.mxu0 0
    %8521 = vmatpush1.bf16.msra.mxu0 0
    %8522 = vmatprep.subr.bf16.mxu0 0
    %8523 = vmatpush1.bf16.msra.mxu0 0
    %8524 = vmatprep.subr.bf16.mxu0 0
    %8525 = vmatpush1.bf16.msra.mxu0 0
    %8526 = vmatprep.subr.bf16.mxu0 0
    %8527 = vmatpush1.bf16.msra.mxu0 0
    %8528 = vmatprep.subr.bf16.mxu0 0
    %8529 = vmatpush1.bf16.msra.mxu0 0
    %8530 = vmatprep.subr.bf16.mxu0 0
    %8531 = vmatpush1.bf16.msra.mxu0 0
    %8532 = vmatprep.subr.bf16.mxu0 0
    %8533 = vmatpush1.bf16.msra.mxu0 0
    %8534 = vmatprep.subr.bf16.mxu0 0
    %8535 = vmatpush1.bf16.msra.mxu0 %v8422
    %8536 = vmatprep.subr.bf16.mxu0 0
    %8537 = vmatpush2.bf16.msra.mxu0 0
    %8538 = vmatprep.subr.bf16.mxu0 0
    %8539 = vmatpush2.bf16.msra.mxu0 0
    %8540 = vmatprep.subr.bf16.mxu0 0
    %8541 = vmatpush2.bf16.msra.mxu0 0
    %8542 = vmatprep.subr.bf16.mxu0 0
    %8543 = vmatpush2.bf16.msra.mxu0 0
    %8544 = vmatprep.subr.bf16.mxu0 0
    %8545 = vmatpush2.bf16.msra.mxu0 0
    %8546 = vmatprep.subr.bf16.mxu0 0
    %8547 = vmatpush2.bf16.msra.mxu0 0
    %8548 = vmatprep.subr.bf16.mxu0 0
    %8549 = vmatpush2.bf16.msra.mxu0 0
    %8550 = vmatprep.subr.bf16.mxu0 0
    %8551 = vmatpush2.bf16.msra.mxu0 0
    %8552 = vmatprep.mubr.bf16.mxu0 0
    %8553 = vmatmul.mubr.bf16.gmra.mxu0 %v8425
    %v8554 = vpop.f32.mrf.mxu0
    %v8555 = vadd.f32 0.0, %v8554
    %v8556 = vpop.f32.mrf.mxu0
    %v8557 = vpop.f32.mrf.mxu0
    %v8558 = vadd.f32 0.0, %v8557
    %v8559 = vpop.f32.mrf.mxu0
    %8560 = vmatprep.mubr.bf16.mxu0 0
    %8561 = vmatmul.mubr.bf16.gmra.mxu0 %v8428
    %v8562 = vpop.f32.mrf.mxu0
    %v8563 = vadd.f32 0.0, %v8562
    %v8564 = vpop.f32.mrf.mxu0
    %v8565 = vpop.f32.mrf.mxu0
    %v8566 = vadd.f32 0.0, %v8565
    %v8567 = vpop.f32.mrf.mxu0
    %8568 = vmatprep.mubr.bf16.mxu0 0
    %8569 = vmatmul.mubr.bf16.gmra.mxu0 %v8431
    %v8570 = vpop.f32.mrf.mxu0
    %v8571 = vadd.f32 0.0, %v8570
    %v8572 = vpop.f32.mrf.mxu0
    %v8573 = vpop.f32.mrf.mxu0
    %v8574 = vadd.f32 0.0, %v8573
    %v8575 = vpop.f32.mrf.mxu0
    %8576 = vmatprep.mubr.bf16.mxu0 0
    %8577 = vmatmul.mubr.bf16.gmra.mxu0 %v8434
    %v8578 = vpop.f32.mrf.mxu0
    %v8579 = vadd.f32 0.0, %v8578
    %v8580 = vpop.f32.mrf.mxu0
    %v8581 = vpop.f32.mrf.mxu0
    %v8582 = vadd.f32 0.0, %v8581
    %v8583 = vpop.f32.mrf.mxu0
    %8584 = vmatprep.mubr.bf16.mxu0 0
    %8585 = vmatmul.mubr.bf16.gmra.mxu0 %v8437
    %v8586 = vpop.f32.mrf.mxu0
    %v8587 = vadd.f32 0.0, %v8586
    %v8588 = vpop.f32.mrf.mxu0
    %v8589 = vpop.f32.mrf.mxu0
    %v8590 = vadd.f32 0.0, %v8589
    %v8591 = vpop.f32.mrf.mxu0
    %8592 = vmatprep.mubr.bf16.mxu0 0
    %8593 = vmatmul.mubr.bf16.gmra.mxu0 %v8440
    %v8594 = vpop.f32.mrf.mxu0
    %v8595 = vadd.f32 0.0, %v8594
    %v8596 = vpop.f32.mrf.mxu0
    %v8597 = vpop.f32.mrf.mxu0
    %v8598 = vadd.f32 0.0, %v8597
    %v8599 = vpop.f32.mrf.mxu0
    %8600 = vmatprep.mubr.bf16.mxu0 0
    %8601 = vmatmul.mubr.bf16.gmra.mxu0 %v8443
    %v8602 = vpop.f32.mrf.mxu0
    %v8603 = vadd.f32 0.0, %v8602
    %v8604 = vpop.f32.mrf.mxu0
    %v8605 = vpop.f32.mrf.mxu0
    %v8606 = vadd.f32 0.0, %v8605
    %v8607 = vpop.f32.mrf.mxu0
    %8608 = vmatprep.mubr.bf16.mxu0 0
    %8609 = vmatmul.mubr.bf16.gmra.mxu0 %v8446
    %v8610 = vpop.f32.mrf.mxu0
    %v8611 = vadd.f32 0.0, %v8610
    %v8612 = vpop.f32.mrf.mxu0
    %v8613 = vpop.f32.mrf.mxu0
    %v8614 = vadd.f32 0.0, %v8613
    %v8615 = vpop.f32.mrf.mxu0
    %8616 = vmatprep.mubr.bf16.mxu0 0
    %8617 = vmatmul.mubr.bf16.gmra.mxu0 %v8449
    %v8618 = vpop.f32.mrf.mxu0
    %v8619 = vadd.f32 0.0, %v8618
    %v8620 = vpop.f32.mrf.mxu0
    %v8621 = vpop.f32.mrf.mxu0
    %v8622 = vadd.f32 0.0, %v8621
    %v8623 = vpop.f32.mrf.mxu0
    %8624 = vmatprep.mubr.bf16.mxu0 0
    %8625 = vmatmul.mubr.bf16.gmra.mxu0 %v8452
    %v8626 = vpop.f32.mrf.mxu0
    %v8627 = vadd.f32 0.0, %v8626
    %v8628 = vpop.f32.mrf.mxu0
    %v8629 = vpop.f32.mrf.mxu0
    %v8630 = vadd.f32 0.0, %v8629
    %v8631 = vpop.f32.mrf.mxu0
    %8632 = vmatprep.mubr.bf16.mxu0 0
    %8633 = vmatmul.mubr.bf16.gmra.mxu0 %v8455
    %v8634 = vpop.f32.mrf.mxu0
    %v8635 = vadd.f32 0.0, %v8634
    %v8636 = vpop.f32.mrf.mxu0
    %v8637 = vpop.f32.mrf.mxu0
    %v8638 = vadd.f32 0.0, %v8637
    %v8639 = vpop.f32.mrf.mxu0
    %8640 = vmatprep.mubr.bf16.mxu0 0
    %8641 = vmatmul.mubr.bf16.gmra.mxu0 %v8458
    %v8642 = vpop.f32.mrf.mxu0
    %v8643 = vadd.f32 0.0, %v8642
    %v8644 = vpop.f32.mrf.mxu0
    %v8645 = vpop.f32.mrf.mxu0
    %v8646 = vadd.f32 0.0, %v8645
    %v8647 = vpop.f32.mrf.mxu0
    %8648 = vmatprep.mubr.bf16.mxu0 0
    %8649 = vmatmul.mubr.bf16.gmra.mxu0 %v8461
    %v8650 = vpop.f32.mrf.mxu0
    %v8651 = vadd.f32 0.0, %v8650
    %v8652 = vpop.f32.mrf.mxu0
    %v8653 = vpop.f32.mrf.mxu0
    %v8654 = vadd.f32 0.0, %v8653
    %v8655 = vpop.f32.mrf.mxu0
    %8656 = vmatprep.mubr.bf16.mxu0 0
    %8657 = vmatmul.mubr.bf16.gmra.mxu0 %v8464
    %v8658 = vpop.f32.mrf.mxu0
    %v8659 = vadd.f32 0.0, %v8658
    %v8660 = vpop.f32.mrf.mxu0
    %v8661 = vpop.f32.mrf.mxu0
    %v8662 = vadd.f32 0.0, %v8661
    %v8663 = vpop.f32.mrf.mxu0
    %8664 = vmatprep.mubr.bf16.mxu0 0
    %8665 = vmatmul.mubr.bf16.gmra.mxu0 %v8467
    %v8666 = vpop.f32.mrf.mxu0
    %v8667 = vadd.f32 0.0, %v8666
    %v8668 = vpop.f32.mrf.mxu0
    %v8669 = vpop.f32.mrf.mxu0
    %v8670 = vadd.f32 0.0, %v8669
    %v8671 = vpop.f32.mrf.mxu0
    %8672 = vmatprep.mubr.bf16.mxu0 0
    %8673 = vmatmul.mubr.bf16.gmra.mxu0 %v8470
    %v8674 = vpop.f32.mrf.mxu0
    %v8675 = vadd.f32 0.0, %v8674
    %v8676 = vpop.f32.mrf.mxu0
    %v8677 = vpop.f32.mrf.mxu0
    %v8678 = vadd.f32 0.0, %v8677
    %v8679 = vpop.f32.mrf.mxu0
    %8680 = vmatprep.mubr.bf16.mxu0 0
    %8681 = vmatmul.mubr.bf16.gmra.mxu0 %v8473
    %v8682 = vpop.f32.mrf.mxu0
    %v8683 = vadd.f32 0.0, %v8682
    %v8684 = vpop.f32.mrf.mxu0
    %v8685 = vpop.f32.mrf.mxu0
    %v8686 = vadd.f32 0.0, %v8685
    %v8687 = vpop.f32.mrf.mxu0
    %8688 = vmatprep.mubr.bf16.mxu0 0
    %8689 = vmatmul.mubr.bf16.gmra.mxu0 %v8476
    %v8690 = vpop.f32.mrf.mxu0
    %v8691 = vadd.f32 0.0, %v8690
    %v8692 = vpop.f32.mrf.mxu0
    %v8693 = vpop.f32.mrf.mxu0
    %v8694 = vadd.f32 0.0, %v8693
    %v8695 = vpop.f32.mrf.mxu0
    %8696 = vmatprep.mubr.bf16.mxu0 0
    %8697 = vmatmul.mubr.bf16.gmra.mxu0 %v8479
    %v8698 = vpop.f32.mrf.mxu0
    %v8699 = vadd.f32 0.0, %v8698
    %v8700 = vpop.f32.mrf.mxu0
    %v8701 = vpop.f32.mrf.mxu0
    %v8702 = vadd.f32 0.0, %v8701
    %v8703 = vpop.f32.mrf.mxu0
    %8704 = vmatprep.mubr.bf16.mxu0 0
    %8705 = vmatmul.mubr.bf16.gmra.mxu0 %v8482
    %v8706 = vpop.f32.mrf.mxu0
    %v8707 = vadd.f32 0.0, %v8706
    %v8708 = vpop.f32.mrf.mxu0
    %v8709 = vpop.f32.mrf.mxu0
    %v8710 = vadd.f32 0.0, %v8709
    %v8711 = vpop.f32.mrf.mxu0
    %8712 = vmatprep.mubr.bf16.mxu0 0
    %8713 = vmatmul.mubr.bf16.gmra.mxu0 %v8485
    %v8714 = vpop.f32.mrf.mxu0
    %v8715 = vadd.f32 0.0, %v8714
    %v8716 = vpop.f32.mrf.mxu0
    %v8717 = vpop.f32.mrf.mxu0
    %v8718 = vadd.f32 0.0, %v8717
    %v8719 = vpop.f32.mrf.mxu0
    %8720 = vmatprep.mubr.bf16.mxu0 0
    %8721 = vmatmul.mubr.bf16.gmra.mxu0 %v8488
    %v8722 = vpop.f32.mrf.mxu0
    %v8723 = vadd.f32 0.0, %v8722
    %v8724 = vpop.f32.mrf.mxu0
    %v8725 = vpop.f32.mrf.mxu0
    %v8726 = vadd.f32 0.0, %v8725
    %v8727 = vpop.f32.mrf.mxu0
    %8728 = vmatprep.mubr.bf16.mxu0 0
    %8729 = vmatmul.mubr.bf16.gmra.mxu0 %v8491
    %v8730 = vpop.f32.mrf.mxu0
    %v8731 = vadd.f32 0.0, %v8730
    %v8732 = vpop.f32.mrf.mxu0
    %v8733 = vpop.f32.mrf.mxu0
    %v8734 = vadd.f32 0.0, %v8733
    %v8735 = vpop.f32.mrf.mxu0
    %8736 = vmatprep.mubr.bf16.mxu0 0
    %8737 = vmatmul.mubr.bf16.gmra.mxu0 %v8494
    %v8738 = vpop.f32.mrf.mxu0
    %v8739 = vadd.f32 0.0, %v8738
    %v8740 = vpop.f32.mrf.mxu0
    %v8741 = vpop.f32.mrf.mxu0
    %v8742 = vadd.f32 0.0, %v8741
    %v8743 = vpop.f32.mrf.mxu0
    %8744 = vmatprep.mubr.bf16.mxu0 0
    %8745 = vmatmul.mubr.bf16.gmra.mxu0 %v8497
    %v8746 = vpop.f32.mrf.mxu0
    %v8747 = vadd.f32 0.0, %v8746
    %v8748 = vpop.f32.mrf.mxu0
    %v8749 = vpop.f32.mrf.mxu0
    %v8750 = vadd.f32 0.0, %v8749
    %v8751 = vpop.f32.mrf.mxu0
    %8752 = vmatprep.mubr.bf16.mxu0 0
    %8753 = vmatmul.mubr.bf16.gmra.mxu0 %v8500
    %v8754 = vpop.f32.mrf.mxu0
    %v8755 = vadd.f32 0.0, %v8754
    %v8756 = vpop.f32.mrf.mxu0
    %v8757 = vpop.f32.mrf.mxu0
    %v8758 = vadd.f32 0.0, %v8757
    %v8759 = vpop.f32.mrf.mxu0
    %8760 = vmatprep.mubr.bf16.mxu0 0
    %8761 = vmatmul.mubr.bf16.gmra.mxu0 %v8503
    %v8762 = vpop.f32.mrf.mxu0
    %v8763 = vadd.f32 0.0, %v8762
    %v8764 = vpop.f32.mrf.mxu0
    %v8765 = vpop.f32.mrf.mxu0
    %v8766 = vadd.f32 0.0, %v8765
    %v8767 = vpop.f32.mrf.mxu0
    %8768 = vmatprep.mubr.bf16.mxu0 0
    %8769 = vmatmul.mubr.bf16.gmra.mxu0 %v8506
    %v8770 = vpop.f32.mrf.mxu0
    %v8771 = vadd.f32 0.0, %v8770
    %v8772 = vpop.f32.mrf.mxu0
    %v8773 = vpop.f32.mrf.mxu0
    %v8774 = vadd.f32 0.0, %v8773
    %v8775 = vpop.f32.mrf.mxu0
    %8776 = vmatprep.mubr.bf16.mxu0 0
    %8777 = vmatmul.mubr.bf16.gmra.mxu0 %v8509
    %v8778 = vpop.f32.mrf.mxu0
    %v8779 = vadd.f32 0.0, %v8778
    %v8780 = vpop.f32.mrf.mxu0
    %v8781 = vpop.f32.mrf.mxu0
    %v8782 = vadd.f32 0.0, %v8781
    %v8783 = vpop.f32.mrf.mxu0
    %8784 = vmatprep.mubr.bf16.mxu0 0
    %8785 = vmatmul.mubr.bf16.gmra.mxu0 %v8512
    %v8786 = vpop.f32.mrf.mxu0
    %v8787 = vadd.f32 0.0, %v8786
    %v8788 = vpop.f32.mrf.mxu0
    %v8789 = vpop.f32.mrf.mxu0
    %v8790 = vadd.f32 0.0, %v8789
    %v8791 = vpop.f32.mrf.mxu0
    %8792 = vmatprep.mubr.bf16.mxu0 0
    %8793 = vmatmul.mubr.bf16.gmra.mxu0 %v8515
    %v8794 = vpop.f32.mrf.mxu0
    %v8795 = vadd.f32 0.0, %v8794
    %v8796 = vpop.f32.mrf.mxu0
    %v8797 = vpop.f32.mrf.mxu0
    %v8798 = vadd.f32 0.0, %v8797
    %v8799 = vpop.f32.mrf.mxu0
    %8800 = vmatprep.mubr.bf16.mxu0 0
    %8801 = vmatmul.mubr.bf16.gmra.mxu0 %v8518
    %v8802 = vpop.f32.mrf.mxu0
    %v8803 = vadd.f32 0.0, %v8802
    %v8804 = vpop.f32.mrf.mxu0
    %v8805 = vpop.f32.mrf.mxu0
    %v8806 = vadd.f32 0.0, %v8805
    %v8807 = vpop.f32.mrf.mxu0
    %8808 = vdwg.mxu0
    %v8809 = vadd.f32 %v8129, %v8555
    %v8810 = vadd.f32 %v8130, %v8558
    %v8811 = vadd.f32 %v8131, %v8563
    %v8812 = vadd.f32 %v8132, %v8566
    %v8813 = vadd.f32 %v8133, %v8571
    %v8814 = vadd.f32 %v8134, %v8574
    %v8815 = vadd.f32 %v8135, %v8579
    %v8816 = vadd.f32 %v8136, %v8582
    %v8817 = vadd.f32 %v8137, %v8587
    %v8818 = vadd.f32 %v8138, %v8590
    %v8819 = vadd.f32 %v8139, %v8595
    %v8820 = vadd.f32 %v8140, %v8598
    %v8821 = vadd.f32 %v8141, %v8603
    %v8822 = vadd.f32 %v8142, %v8606
    %v8823 = vadd.f32 %v8143, %v8611
    %v8824 = vadd.f32 %v8144, %v8614
    %v8825 = vadd.f32 %v8145, %v8619
    %v8826 = vadd.f32 %v8146, %v8622
    %v8827 = vadd.f32 %v8147, %v8627
    %v8828 = vadd.f32 %v8148, %v8630
    %v8829 = vadd.f32 %v8149, %v8635
    %v8830 = vadd.f32 %v8150, %v8638
    %v8831 = vadd.f32 %v8151, %v8643
    %v8832 = vadd.f32 %v8152, %v8646
    %v8833 = vadd.f32 %v8153, %v8651
    %v8834 = vadd.f32 %v8154, %v8654
    %v8835 = vadd.f32 %v8155, %v8659
    %v8836 = vadd.f32 %v8156, %v8662
    %v8837 = vadd.f32 %v8157, %v8667
    %v8838 = vadd.f32 %v8158, %v8670
    %v8839 = vadd.f32 %v8159, %v8675
    %v8840 = vadd.f32 %v8160, %v8678
    %v8841 = vadd.f32 %v8161, %v8683
    %v8842 = vadd.f32 %v8162, %v8686
    %v8843 = vadd.f32 %v8163, %v8691
    %v8844 = vadd.f32 %v8164, %v8694
    %v8845 = vadd.f32 %v8165, %v8699
    %v8846 = vadd.f32 %v8166, %v8702
    %v8847 = vadd.f32 %v8167, %v8707
    %v8848 = vadd.f32 %v8168, %v8710
    %v8849 = vadd.f32 %v8169, %v8715
    %v8850 = vadd.f32 %v8170, %v8718
    %v8851 = vadd.f32 %v8171, %v8723
    %v8852 = vadd.f32 %v8172, %v8726
    %v8853 = vadd.f32 %v8173, %v8731
    %v8854 = vadd.f32 %v8174, %v8734
    %v8855 = vadd.f32 %v8175, %v8739
    %v8856 = vadd.f32 %v8176, %v8742
    %v8857 = vadd.f32 %v8177, %v8747
    %v8858 = vadd.f32 %v8178, %v8750
    %v8859 = vadd.f32 %v8179, %v8755
    %v8860 = vadd.f32 %v8180, %v8758
    %v8861 = vadd.f32 %v8181, %v8763
    %v8862 = vadd.f32 %v8182, %v8766
    %v8863 = vadd.f32 %v8183, %v8771
    %v8864 = vadd.f32 %v8184, %v8774
    %v8865 = vadd.f32 %v8185, %v8779
    %v8866 = vadd.f32 %v8186, %v8782
    %v8867 = vadd.f32 %v8187, %v8787
    %v8868 = vadd.f32 %v8188, %v8790
    %v8869 = vadd.f32 %v8189, %v8795
    %v8870 = vadd.f32 %v8190, %v8798
    %v8871 = vadd.f32 %v8191, %v8803
    %v8872 = vadd.f32 %v8192, %v8806
    %v8873 = vld [vmem:[%s8193] sm:$0xf]
    %v8874 = vld [vmem:[%s8193 + $0x4] sm:$0xf]
    %v8875 = vld [vmem:[%s8193 + $0x8] sm:$0x1]
    %v8876 = vld [vmem:[%s8193 + $0xc] sm:$0xf]
    %v8877 = vld [vmem:[%s8193 + $0x10] sm:$0xf]
    %v8878 = vld [vmem:[%s8193 + $0x14] sm:$0x1]
    %v8879 = vld [vmem:[%s8193 + $0x18] sm:$0xf]
    %v8880 = vld [vmem:[%s8193 + $0x1c] sm:$0xf]
    %v8881 = vld [vmem:[%s8193 + $0x20] sm:$0x1]
    %v8882 = vld [vmem:[%s8193 + $0x24] sm:$0xf]
    %v8883 = vld [vmem:[%s8193 + $0x28] sm:$0xf]
    %v8884 = vld [vmem:[%s8193 + $0x2c] sm:$0x1]
    %v8885 = vld [vmem:[%s8193 + $0x30] sm:$0xf]
    %v8886 = vld [vmem:[%s8193 + $0x34] sm:$0xf]
    %v8887 = vld [vmem:[%s8193 + $0x38] sm:$0x1]
    %v8888 = vld [vmem:[%s8193 + $0x3c] sm:$0xf]
    %v8889 = vld [vmem:[%s8193 + $0x40] sm:$0xf]
    %v8890 = vld [vmem:[%s8193 + $0x44] sm:$0x1]
    %v8891 = vld [vmem:[%s8193 + $0x48] sm:$0xf]
    %v8892 = vld [vmem:[%s8193 + $0x4c] sm:$0xf]
    %v8893 = vld [vmem:[%s8193 + $0x50] sm:$0x1]
    %v8894 = vld [vmem:[%s8193 + $0x54] sm:$0xf]
    %v8895 = vld [vmem:[%s8193 + $0x58] sm:$0xf]
    %v8896 = vld [vmem:[%s8193 + $0x5c] sm:$0x1]
    %v8897 = vld [vmem:[%s8193 + $0x60] sm:$0xf]
    %v8898 = vld [vmem:[%s8193 + $0x64] sm:$0xf]
    %v8899 = vld [vmem:[%s8193 + $0x68] sm:$0x1]
    %v8900 = vld [vmem:[%s8193 + $0x6c] sm:$0xf]
    %v8901 = vld [vmem:[%s8193 + $0x70] sm:$0xf]
    %v8902 = vld [vmem:[%s8193 + $0x74] sm:$0x1]
    %v8903 = vld [vmem:[%s8193 + $0x78] sm:$0xf]
    %v8904 = vld [vmem:[%s8193 + $0x7c] sm:$0xf]
    %v8905 = vld [vmem:[%s8193 + $0x80] sm:$0x1]
    %v8906 = vld [vmem:[%s8193 + $0x84] sm:$0xf]
    %v8907 = vld [vmem:[%s8193 + $0x88] sm:$0xf]
    %v8908 = vld [vmem:[%s8193 + $0x8c] sm:$0x1]
    %v8909 = vld [vmem:[%s8193 + $0x90] sm:$0xf]
    %v8910 = vld [vmem:[%s8193 + $0x94] sm:$0xf]
    %v8911 = vld [vmem:[%s8193 + $0x98] sm:$0x1]
    %v8912 = vld [vmem:[%s8193 + $0x9c] sm:$0xf]
    %v8913 = vld [vmem:[%s8193 + $0xa0] sm:$0xf]
    %v8914 = vld [vmem:[%s8193 + $0xa4] sm:$0x1]
    %v8915 = vld [vmem:[%s8193 + $0xa8] sm:$0xf]
    %v8916 = vld [vmem:[%s8193 + $0xac] sm:$0xf]
    %v8917 = vld [vmem:[%s8193 + $0xb0] sm:$0x1]
    %v8918 = vld [vmem:[%s8193 + $0xb4] sm:$0xf]
    %v8919 = vld [vmem:[%s8193 + $0xb8] sm:$0xf]
    %v8920 = vld [vmem:[%s8193 + $0xbc] sm:$0x1]
    %v8921 = vld [vmem:[%s8193 + $0xd8] sm:$0xf]
    %v8922 = vld [vmem:[%s8193 + $0xdc] sm:$0xf]
    %v8923 = vld [vmem:[%s8193 + $0xe0] sm:$0x1]
    %v8924 = vld [vmem:[%s8193 + $0xe4] sm:$0xf]
    %v8925 = vld [vmem:[%s8193 + $0xe8] sm:$0xf]
    %v8926 = vld [vmem:[%s8193 + $0xec] sm:$0x1]
    %v8927 = vld [vmem:[%s8193 + $0xf0] sm:$0xf]
    %v8928 = vld [vmem:[%s8193 + $0xf4] sm:$0xf]
    %v8929 = vld [vmem:[%s8193 + $0xf8] sm:$0x1]
    %v8930 = vld [vmem:[%s8193 + $0xfc] sm:$0xf]
    %v8931 = vld [vmem:[%s8193 + $0x100] sm:$0xf]
    %v8932 = vld [vmem:[%s8193 + $0x104] sm:$0x1]
    %v8933 = vld [vmem:[%s8193 + $0x108] sm:$0xf]
    %v8934 = vld [vmem:[%s8193 + $0x10c] sm:$0xf]
    %v8935 = vld [vmem:[%s8193 + $0x110] sm:$0x1]
    %v8936 = vld [vmem:[%s8193 + $0x114] sm:$0xf]
    %v8937 = vld [vmem:[%s8193 + $0x118] sm:$0xf]
    %v8938 = vld [vmem:[%s8193 + $0x11c] sm:$0x1]
    %v8939 = vld [vmem:[%s8193 + $0x120] sm:$0xf]
    %v8940 = vld [vmem:[%s8193 + $0x124] sm:$0xf]
    %v8941 = vld [vmem:[%s8193 + $0x128] sm:$0x1]
    %v8942 = vld [vmem:[%s8193 + $0x12c] sm:$0xf]
    %v8943 = vld [vmem:[%s8193 + $0x130] sm:$0xf]
    %v8944 = vld [vmem:[%s8193 + $0x134] sm:$0x1]
    %v8945 = vld [vmem:[%s8193 + $0x138] sm:$0xf]
    %v8946 = vld [vmem:[%s8193 + $0x13c] sm:$0xf]
    %v8947 = vld [vmem:[%s8193 + $0x140] sm:$0x1]
    %v8948 = vld [vmem:[%s8193 + $0x144] sm:$0xf]
    %v8949 = vld [vmem:[%s8193 + $0x148] sm:$0xf]
    %v8950 = vld [vmem:[%s8193 + $0x14c] sm:$0x1]
    %v8951 = vld [vmem:[%s8193 + $0x150] sm:$0xf]
    %v8952 = vld [vmem:[%s8193 + $0x154] sm:$0xf]
    %v8953 = vld [vmem:[%s8193 + $0x158] sm:$0x1]
    %v8954 = vld [vmem:[%s8193 + $0x15c] sm:$0xf]
    %v8955 = vld [vmem:[%s8193 + $0x160] sm:$0xf]
    %v8956 = vld [vmem:[%s8193 + $0x164] sm:$0x1]
    %v8957 = vld [vmem:[%s8193 + $0x168] sm:$0xf]
    %v8958 = vld [vmem:[%s8193 + $0x16c] sm:$0xf]
    %v8959 = vld [vmem:[%s8193 + $0x170] sm:$0x1]
    %v8960 = vld [vmem:[%s8193 + $0x174] sm:$0xf]
    %v8961 = vld [vmem:[%s8193 + $0x178] sm:$0xf]
    %v8962 = vld [vmem:[%s8193 + $0x17c] sm:$0x1]
    %v8963 = vld [vmem:[%s8193 + $0x180] sm:$0xf]
    %v8964 = vld [vmem:[%s8193 + $0x184] sm:$0xf]
    %v8965 = vld [vmem:[%s8193 + $0x188] sm:$0x1]
    %v8966 = vld [vmem:[%s8193 + $0x18c] sm:$0xf]
    %v8967 = vld [vmem:[%s8193 + $0x190] sm:$0xf]
    %v8968 = vld [vmem:[%s8193 + $0x194] sm:$0x1]
    %v8970 = vshrl.u32 %v8873, 16
    %v8972 = vrot.slane %v8970, 4
    %v8973 = vshll.u32 %v8873, 16
    %v8975 = vrot.slane %v8973, 5
    %v8976 = vor.u32 %v8972, %v8975
    %v8977 = vrot.slane %v8976, 4
    %v8979 = vshll.u32 %v8874, 16
    %v8981 = vrot.slane %v8979, 5
    %v8982 = vsel %vm2515, %v8977, %v8981
    %v8983 = vshrl.u32 %v8874, 16
    %v8985 = vrot.slane %v8983, 4
    %v8986 = vor.u32 %v8985, %v8981
    %v8987 = vrot.slane %v8986, 4
    %v8989 = vshll.u32 %v8875, 16
    %v8991 = vrot.slane %v8989, 5
    %v8992 = vsel %vm2515, %v8987, %v8991
    %v8994 = vshrl.u32 %v8876, 16
    %v8996 = vrot.slane %v8994, 4
    %v8997 = vshll.u32 %v8876, 16
    %v8999 = vrot.slane %v8997, 5
    %v9000 = vor.u32 %v8996, %v8999
    %v9001 = vrot.slane %v9000, 4
    %v9003 = vshll.u32 %v8877, 16
    %v9005 = vrot.slane %v9003, 5
    %v9006 = vsel %vm2515, %v9001, %v9005
    %v9007 = vshrl.u32 %v8877, 16
    %v9009 = vrot.slane %v9007, 4
    %v9010 = vor.u32 %v9009, %v9005
    %v9011 = vrot.slane %v9010, 4
    %v9013 = vshll.u32 %v8878, 16
    %v9015 = vrot.slane %v9013, 5
    %v9016 = vsel %vm2515, %v9011, %v9015
    %v9018 = vshrl.u32 %v8879, 16
    %v9020 = vrot.slane %v9018, 4
    %v9021 = vshll.u32 %v8879, 16
    %v9023 = vrot.slane %v9021, 5
    %v9024 = vor.u32 %v9020, %v9023
    %v9025 = vrot.slane %v9024, 4
    %v9027 = vshll.u32 %v8880, 16
    %v9029 = vrot.slane %v9027, 5
    %v9030 = vsel %vm2515, %v9025, %v9029
    %v9031 = vshrl.u32 %v8880, 16
    %v9033 = vrot.slane %v9031, 4
    %v9034 = vor.u32 %v9033, %v9029
    %v9035 = vrot.slane %v9034, 4
    %v9037 = vshll.u32 %v8881, 16
    %v9039 = vrot.slane %v9037, 5
    %v9040 = vsel %vm2515, %v9035, %v9039
    %v9042 = vshrl.u32 %v8882, 16
    %v9044 = vrot.slane %v9042, 4
    %v9045 = vshll.u32 %v8882, 16
    %v9047 = vrot.slane %v9045, 5
    %v9048 = vor.u32 %v9044, %v9047
    %v9049 = vrot.slane %v9048, 4
    %v9051 = vshll.u32 %v8883, 16
    %v9053 = vrot.slane %v9051, 5
    %v9054 = vsel %vm2515, %v9049, %v9053
    %v9055 = vshrl.u32 %v8883, 16
    %v9057 = vrot.slane %v9055, 4
    %v9058 = vor.u32 %v9057, %v9053
    %v9059 = vrot.slane %v9058, 4
    %v9061 = vshll.u32 %v8884, 16
    %v9063 = vrot.slane %v9061, 5
    %v9064 = vsel %vm2515, %v9059, %v9063
    %v9066 = vshrl.u32 %v8885, 16
    %v9068 = vrot.slane %v9066, 4
    %v9069 = vshll.u32 %v8885, 16
    %v9071 = vrot.slane %v9069, 5
    %v9072 = vor.u32 %v9068, %v9071
    %v9073 = vrot.slane %v9072, 4
    %v9075 = vshll.u32 %v8886, 16
    %v9077 = vrot.slane %v9075, 5
    %v9078 = vsel %vm2515, %v9073, %v9077
    %v9079 = vshrl.u32 %v8886, 16
    %v9081 = vrot.slane %v9079, 4
    %v9082 = vor.u32 %v9081, %v9077
    %v9083 = vrot.slane %v9082, 4
    %v9085 = vshll.u32 %v8887, 16
    %v9087 = vrot.slane %v9085, 5
    %v9088 = vsel %vm2515, %v9083, %v9087
    %v9090 = vshrl.u32 %v8888, 16
    %v9092 = vrot.slane %v9090, 4
    %v9093 = vshll.u32 %v8888, 16
    %v9095 = vrot.slane %v9093, 5
    %v9096 = vor.u32 %v9092, %v9095
    %v9097 = vrot.slane %v9096, 4
    %v9099 = vshll.u32 %v8889, 16
    %v9101 = vrot.slane %v9099, 5
    %v9102 = vsel %vm2515, %v9097, %v9101
    %v9103 = vshrl.u32 %v8889, 16
    %v9105 = vrot.slane %v9103, 4
    %v9106 = vor.u32 %v9105, %v9101
    %v9107 = vrot.slane %v9106, 4
    %v9109 = vshll.u32 %v8890, 16
    %v9111 = vrot.slane %v9109, 5
    %v9112 = vsel %vm2515, %v9107, %v9111
    %v9114 = vshrl.u32 %v8891, 16
    %v9116 = vrot.slane %v9114, 4
    %v9117 = vshll.u32 %v8891, 16
    %v9119 = vrot.slane %v9117, 5
    %v9120 = vor.u32 %v9116, %v9119
    %v9121 = vrot.slane %v9120, 4
    %v9123 = vshll.u32 %v8892, 16
    %v9125 = vrot.slane %v9123, 5
    %v9126 = vsel %vm2515, %v9121, %v9125
    %v9127 = vshrl.u32 %v8892, 16
    %v9129 = vrot.slane %v9127, 4
    %v9130 = vor.u32 %v9129, %v9125
    %v9131 = vrot.slane %v9130, 4
    %v9133 = vshll.u32 %v8893, 16
    %v9135 = vrot.slane %v9133, 5
    %v9136 = vsel %vm2515, %v9131, %v9135
    %v9138 = vshrl.u32 %v8894, 16
    %v9140 = vrot.slane %v9138, 4
    %v9141 = vshll.u32 %v8894, 16
    %v9143 = vrot.slane %v9141, 5
    %v9144 = vor.u32 %v9140, %v9143
    %v9145 = vrot.slane %v9144, 4
    %v9147 = vshll.u32 %v8895, 16
    %v9149 = vrot.slane %v9147, 5
    %v9150 = vsel %vm2515, %v9145, %v9149
    %v9151 = vshrl.u32 %v8895, 16
    %v9153 = vrot.slane %v9151, 4
    %v9154 = vor.u32 %v9153, %v9149
    %v9155 = vrot.slane %v9154, 4
    %v9157 = vshll.u32 %v8896, 16
    %v9159 = vrot.slane %v9157, 5
    %v9160 = vsel %vm2515, %v9155, %v9159
    %v9162 = vshrl.u32 %v8897, 16
    %v9164 = vrot.slane %v9162, 4
    %v9165 = vshll.u32 %v8897, 16
    %v9167 = vrot.slane %v9165, 5
    %v9168 = vor.u32 %v9164, %v9167
    %v9169 = vrot.slane %v9168, 4
    %v9171 = vshll.u32 %v8898, 16
    %v9173 = vrot.slane %v9171, 5
    %v9174 = vsel %vm2515, %v9169, %v9173
    %v9175 = vshrl.u32 %v8898, 16
    %v9177 = vrot.slane %v9175, 4
    %v9178 = vor.u32 %v9177, %v9173
    %v9179 = vrot.slane %v9178, 4
    %v9181 = vshll.u32 %v8899, 16
    %v9183 = vrot.slane %v9181, 5
    %v9184 = vsel %vm2515, %v9179, %v9183
    %v9186 = vshrl.u32 %v8900, 16
    %v9188 = vrot.slane %v9186, 4
    %v9189 = vshll.u32 %v8900, 16
    %v9191 = vrot.slane %v9189, 5
    %v9192 = vor.u32 %v9188, %v9191
    %v9193 = vrot.slane %v9192, 4
    %v9195 = vshll.u32 %v8901, 16
    %v9197 = vrot.slane %v9195, 5
    %v9198 = vsel %vm2515, %v9193, %v9197
    %v9199 = vshrl.u32 %v8901, 16
    %v9201 = vrot.slane %v9199, 4
    %v9202 = vor.u32 %v9201, %v9197
    %v9203 = vrot.slane %v9202, 4
    %v9205 = vshll.u32 %v8902, 16
    %v9207 = vrot.slane %v9205, 5
    %v9208 = vsel %vm2515, %v9203, %v9207
    %v9210 = vshrl.u32 %v8903, 16
    %v9212 = vrot.slane %v9210, 4
    %v9213 = vshll.u32 %v8903, 16
    %v9215 = vrot.slane %v9213, 5
    %v9216 = vor.u32 %v9212, %v9215
    %v9217 = vrot.slane %v9216, 4
    %v9219 = vshll.u32 %v8904, 16
    %v9221 = vrot.slane %v9219, 5
    %v9222 = vsel %vm2515, %v9217, %v9221
    %v9223 = vshrl.u32 %v8904, 16
    %v9225 = vrot.slane %v9223, 4
    %v9226 = vor.u32 %v9225, %v9221
    %v9227 = vrot.slane %v9226, 4
    %v9229 = vshll.u32 %v8905, 16
    %v9231 = vrot.slane %v9229, 5
    %v9232 = vsel %vm2515, %v9227, %v9231
    %v9234 = vshrl.u32 %v8906, 16
    %v9236 = vrot.slane %v9234, 4
    %v9237 = vshll.u32 %v8906, 16
    %v9239 = vrot.slane %v9237, 5
    %v9240 = vor.u32 %v9236, %v9239
    %v9241 = vrot.slane %v9240, 4
    %v9243 = vshll.u32 %v8907, 16
    %v9245 = vrot.slane %v9243, 5
    %v9246 = vsel %vm2515, %v9241, %v9245
    %v9247 = vshrl.u32 %v8907, 16
    %v9249 = vrot.slane %v9247, 4
    %v9250 = vor.u32 %v9249, %v9245
    %v9251 = vrot.slane %v9250, 4
    %v9253 = vshll.u32 %v8908, 16
    %v9255 = vrot.slane %v9253, 5
    %v9256 = vsel %vm2515, %v9251, %v9255
    %v9258 = vshrl.u32 %v8909, 16
    %v9260 = vrot.slane %v9258, 4
    %v9261 = vshll.u32 %v8909, 16
    %v9263 = vrot.slane %v9261, 5
    %v9264 = vor.u32 %v9260, %v9263
    %v9265 = vrot.slane %v9264, 4
    %v9267 = vshll.u32 %v8910, 16
    %v9269 = vrot.slane %v9267, 5
    %v9270 = vsel %vm2515, %v9265, %v9269
    %v9271 = vshrl.u32 %v8910, 16
    %v9273 = vrot.slane %v9271, 4
    %v9274 = vor.u32 %v9273, %v9269
    %v9275 = vrot.slane %v9274, 4
    %v9277 = vshll.u32 %v8911, 16
    %v9279 = vrot.slane %v9277, 5
    %v9280 = vsel %vm2515, %v9275, %v9279
    %v9282 = vshrl.u32 %v8912, 16
    %v9284 = vrot.slane %v9282, 4
    %v9285 = vshll.u32 %v8912, 16
    %v9287 = vrot.slane %v9285, 5
    %v9288 = vor.u32 %v9284, %v9287
    %v9289 = vrot.slane %v9288, 4
    %v9291 = vshll.u32 %v8913, 16
    %v9293 = vrot.slane %v9291, 5
    %v9294 = vsel %vm2515, %v9289, %v9293
    %v9295 = vshrl.u32 %v8913, 16
    %v9297 = vrot.slane %v9295, 4
    %v9298 = vor.u32 %v9297, %v9293
    %v9299 = vrot.slane %v9298, 4
    %v9301 = vshll.u32 %v8914, 16
    %v9303 = vrot.slane %v9301, 5
    %v9304 = vsel %vm2515, %v9299, %v9303
    %v9306 = vshrl.u32 %v8915, 16
    %v9308 = vrot.slane %v9306, 4
    %v9309 = vshll.u32 %v8915, 16
    %v9311 = vrot.slane %v9309, 5
    %v9312 = vor.u32 %v9308, %v9311
    %v9313 = vrot.slane %v9312, 4
    %v9315 = vshll.u32 %v8916, 16
    %v9317 = vrot.slane %v9315, 5
    %v9318 = vsel %vm2515, %v9313, %v9317
    %v9319 = vshrl.u32 %v8916, 16
    %v9321 = vrot.slane %v9319, 4
    %v9322 = vor.u32 %v9321, %v9317
    %v9323 = vrot.slane %v9322, 4
    %v9325 = vshll.u32 %v8917, 16
    %v9327 = vrot.slane %v9325, 5
    %v9328 = vsel %vm2515, %v9323, %v9327
    %v9330 = vshrl.u32 %v8918, 16
    %v9332 = vrot.slane %v9330, 4
    %v9333 = vshll.u32 %v8918, 16
    %v9335 = vrot.slane %v9333, 5
    %v9336 = vor.u32 %v9332, %v9335
    %v9337 = vrot.slane %v9336, 4
    %v9339 = vshll.u32 %v8919, 16
    %v9341 = vrot.slane %v9339, 5
    %v9342 = vsel %vm2515, %v9337, %v9341
    %v9343 = vshrl.u32 %v8919, 16
    %v9345 = vrot.slane %v9343, 4
    %v9346 = vor.u32 %v9345, %v9341
    %v9347 = vrot.slane %v9346, 4
    %v9349 = vshll.u32 %v8920, 16
    %v9351 = vrot.slane %v9349, 5
    %v9352 = vsel %vm2515, %v9347, %v9351
    %v9354 = vshrl.u32 %v8921, 16
    %v9356 = vrot.slane %v9354, 4
    %v9357 = vshll.u32 %v8921, 16
    %v9359 = vrot.slane %v9357, 5
    %v9360 = vor.u32 %v9356, %v9359
    %v9361 = vrot.slane %v9360, 4
    %v9363 = vshll.u32 %v8922, 16
    %v9365 = vrot.slane %v9363, 5
    %v9366 = vsel %vm2515, %v9361, %v9365
    %v9367 = vshrl.u32 %v8922, 16
    %v9369 = vrot.slane %v9367, 4
    %v9370 = vor.u32 %v9369, %v9365
    %v9371 = vrot.slane %v9370, 4
    %v9373 = vshll.u32 %v8923, 16
    %v9375 = vrot.slane %v9373, 5
    %v9376 = vsel %vm2515, %v9371, %v9375
    %v9378 = vshrl.u32 %v8924, 16
    %v9380 = vrot.slane %v9378, 4
    %v9381 = vshll.u32 %v8924, 16
    %v9383 = vrot.slane %v9381, 5
    %v9384 = vor.u32 %v9380, %v9383
    %v9385 = vrot.slane %v9384, 4
    %v9387 = vshll.u32 %v8925, 16
    %v9389 = vrot.slane %v9387, 5
    %v9390 = vsel %vm2515, %v9385, %v9389
    %v9391 = vshrl.u32 %v8925, 16
    %v9393 = vrot.slane %v9391, 4
    %v9394 = vor.u32 %v9393, %v9389
    %v9395 = vrot.slane %v9394, 4
    %v9397 = vshll.u32 %v8926, 16
    %v9399 = vrot.slane %v9397, 5
    %v9400 = vsel %vm2515, %v9395, %v9399
    %v9402 = vshrl.u32 %v8927, 16
    %v9404 = vrot.slane %v9402, 4
    %v9405 = vshll.u32 %v8927, 16
    %v9407 = vrot.slane %v9405, 5
    %v9408 = vor.u32 %v9404, %v9407
    %v9409 = vrot.slane %v9408, 4
    %v9411 = vshll.u32 %v8928, 16
    %v9413 = vrot.slane %v9411, 5
    %v9414 = vsel %vm2515, %v9409, %v9413
    %v9415 = vshrl.u32 %v8928, 16
    %v9417 = vrot.slane %v9415, 4
    %v9418 = vor.u32 %v9417, %v9413
    %v9419 = vrot.slane %v9418, 4
    %v9421 = vshll.u32 %v8929, 16
    %v9423 = vrot.slane %v9421, 5
    %v9424 = vsel %vm2515, %v9419, %v9423
    %v9426 = vshrl.u32 %v8930, 16
    %v9428 = vrot.slane %v9426, 4
    %v9429 = vshll.u32 %v8930, 16
    %v9431 = vrot.slane %v9429, 5
    %v9432 = vor.u32 %v9428, %v9431
    %v9433 = vrot.slane %v9432, 4
    %v9435 = vshll.u32 %v8931, 16
    %v9437 = vrot.slane %v9435, 5
    %v9438 = vsel %vm2515, %v9433, %v9437
    %v9439 = vshrl.u32 %v8931, 16
    %v9441 = vrot.slane %v9439, 4
    %v9442 = vor.u32 %v9441, %v9437
    %v9443 = vrot.slane %v9442, 4
    %v9445 = vshll.u32 %v8932, 16
    %v9447 = vrot.slane %v9445, 5
    %v9448 = vsel %vm2515, %v9443, %v9447
    %v9450 = vshrl.u32 %v8933, 16
    %v9452 = vrot.slane %v9450, 4
    %v9453 = vshll.u32 %v8933, 16
    %v9455 = vrot.slane %v9453, 5
    %v9456 = vor.u32 %v9452, %v9455
    %v9457 = vrot.slane %v9456, 4
    %v9459 = vshll.u32 %v8934, 16
    %v9461 = vrot.slane %v9459, 5
    %v9462 = vsel %vm2515, %v9457, %v9461
    %v9463 = vshrl.u32 %v8934, 16
    %v9465 = vrot.slane %v9463, 4
    %v9466 = vor.u32 %v9465, %v9461
    %v9467 = vrot.slane %v9466, 4
    %v9469 = vshll.u32 %v8935, 16
    %v9471 = vrot.slane %v9469, 5
    %v9472 = vsel %vm2515, %v9467, %v9471
    %v9474 = vshrl.u32 %v8936, 16
    %v9476 = vrot.slane %v9474, 4
    %v9477 = vshll.u32 %v8936, 16
    %v9479 = vrot.slane %v9477, 5
    %v9480 = vor.u32 %v9476, %v9479
    %v9481 = vrot.slane %v9480, 4
    %v9483 = vshll.u32 %v8937, 16
    %v9485 = vrot.slane %v9483, 5
    %v9486 = vsel %vm2515, %v9481, %v9485
    %v9487 = vshrl.u32 %v8937, 16
    %v9489 = vrot.slane %v9487, 4
    %v9490 = vor.u32 %v9489, %v9485
    %v9491 = vrot.slane %v9490, 4
    %v9493 = vshll.u32 %v8938, 16
    %v9495 = vrot.slane %v9493, 5
    %v9496 = vsel %vm2515, %v9491, %v9495
    %v9498 = vshrl.u32 %v8939, 16
    %v9500 = vrot.slane %v9498, 4
    %v9501 = vshll.u32 %v8939, 16
    %v9503 = vrot.slane %v9501, 5
    %v9504 = vor.u32 %v9500, %v9503
    %v9505 = vrot.slane %v9504, 4
    %v9507 = vshll.u32 %v8940, 16
    %v9509 = vrot.slane %v9507, 5
    %v9510 = vsel %vm2515, %v9505, %v9509
    %v9511 = vshrl.u32 %v8940, 16
    %v9513 = vrot.slane %v9511, 4
    %v9514 = vor.u32 %v9513, %v9509
    %v9515 = vrot.slane %v9514, 4
    %v9517 = vshll.u32 %v8941, 16
    %v9519 = vrot.slane %v9517, 5
    %v9520 = vsel %vm2515, %v9515, %v9519
    %v9522 = vshrl.u32 %v8942, 16
    %v9524 = vrot.slane %v9522, 4
    %v9525 = vshll.u32 %v8942, 16
    %v9527 = vrot.slane %v9525, 5
    %v9528 = vor.u32 %v9524, %v9527
    %v9529 = vrot.slane %v9528, 4
    %v9531 = vshll.u32 %v8943, 16
    %v9533 = vrot.slane %v9531, 5
    %v9534 = vsel %vm2515, %v9529, %v9533
    %v9535 = vshrl.u32 %v8943, 16
    %v9537 = vrot.slane %v9535, 4
    %v9538 = vor.u32 %v9537, %v9533
    %v9539 = vrot.slane %v9538, 4
    %v9541 = vshll.u32 %v8944, 16
    %v9543 = vrot.slane %v9541, 5
    %v9544 = vsel %vm2515, %v9539, %v9543
    %v9546 = vshrl.u32 %v8945, 16
    %v9548 = vrot.slane %v9546, 4
    %v9549 = vshll.u32 %v8945, 16
    %v9551 = vrot.slane %v9549, 5
    %v9552 = vor.u32 %v9548, %v9551
    %v9553 = vrot.slane %v9552, 4
    %v9555 = vshll.u32 %v8946, 16
    %v9557 = vrot.slane %v9555, 5
    %v9558 = vsel %vm2515, %v9553, %v9557
    %v9559 = vshrl.u32 %v8946, 16
    %v9561 = vrot.slane %v9559, 4
    %v9562 = vor.u32 %v9561, %v9557
    %v9563 = vrot.slane %v9562, 4
    %v9565 = vshll.u32 %v8947, 16
    %v9567 = vrot.slane %v9565, 5
    %v9568 = vsel %vm2515, %v9563, %v9567
    %v9570 = vshrl.u32 %v8948, 16
    %v9572 = vrot.slane %v9570, 4
    %v9573 = vshll.u32 %v8948, 16
    %v9575 = vrot.slane %v9573, 5
    %v9576 = vor.u32 %v9572, %v9575
    %v9577 = vrot.slane %v9576, 4
    %v9579 = vshll.u32 %v8949, 16
    %v9581 = vrot.slane %v9579, 5
    %v9582 = vsel %vm2515, %v9577, %v9581
    %v9583 = vshrl.u32 %v8949, 16
    %v9585 = vrot.slane %v9583, 4
    %v9586 = vor.u32 %v9585, %v9581
    %v9587 = vrot.slane %v9586, 4
    %v9589 = vshll.u32 %v8950, 16
    %v9591 = vrot.slane %v9589, 5
    %v9592 = vsel %vm2515, %v9587, %v9591
    %v9594 = vshrl.u32 %v8951, 16
    %v9596 = vrot.slane %v9594, 4
    %v9597 = vshll.u32 %v8951, 16
    %v9599 = vrot.slane %v9597, 5
    %v9600 = vor.u32 %v9596, %v9599
    %v9601 = vrot.slane %v9600, 4
    %v9603 = vshll.u32 %v8952, 16
    %v9605 = vrot.slane %v9603, 5
    %v9606 = vsel %vm2515, %v9601, %v9605
    %v9607 = vshrl.u32 %v8952, 16
    %v9609 = vrot.slane %v9607, 4
    %v9610 = vor.u32 %v9609, %v9605
    %v9611 = vrot.slane %v9610, 4
    %v9613 = vshll.u32 %v8953, 16
    %v9615 = vrot.slane %v9613, 5
    %v9616 = vsel %vm2515, %v9611, %v9615
    %v9618 = vshrl.u32 %v8954, 16
    %v9620 = vrot.slane %v9618, 4
    %v9621 = vshll.u32 %v8954, 16
    %v9623 = vrot.slane %v9621, 5
    %v9624 = vor.u32 %v9620, %v9623
    %v9625 = vrot.slane %v9624, 4
    %v9627 = vshll.u32 %v8955, 16
    %v9629 = vrot.slane %v9627, 5
    %v9630 = vsel %vm2515, %v9625, %v9629
    %v9631 = vshrl.u32 %v8955, 16
    %v9633 = vrot.slane %v9631, 4
    %v9634 = vor.u32 %v9633, %v9629
    %v9635 = vrot.slane %v9634, 4
    %v9637 = vshll.u32 %v8956, 16
    %v9639 = vrot.slane %v9637, 5
    %v9640 = vsel %vm2515, %v9635, %v9639
    %v9642 = vshrl.u32 %v8957, 16
    %v9644 = vrot.slane %v9642, 4
    %v9645 = vshll.u32 %v8957, 16
    %v9647 = vrot.slane %v9645, 5
    %v9648 = vor.u32 %v9644, %v9647
    %v9649 = vrot.slane %v9648, 4
    %v9651 = vshll.u32 %v8958, 16
    %v9653 = vrot.slane %v9651, 5
    %v9654 = vsel %vm2515, %v9649, %v9653
    %v9655 = vshrl.u32 %v8958, 16
    %v9657 = vrot.slane %v9655, 4
    %v9658 = vor.u32 %v9657, %v9653
    %v9659 = vrot.slane %v9658, 4
    %v9661 = vshll.u32 %v8959, 16
    %v9663 = vrot.slane %v9661, 5
    %v9664 = vsel %vm2515, %v9659, %v9663
    %v9666 = vshrl.u32 %v8960, 16
    %v9668 = vrot.slane %v9666, 4
    %v9669 = vshll.u32 %v8960, 16
    %v9671 = vrot.slane %v9669, 5
    %v9672 = vor.u32 %v9668, %v9671
    %v9673 = vrot.slane %v9672, 4
    %v9675 = vshll.u32 %v8961, 16
    %v9677 = vrot.slane %v9675, 5
    %v9678 = vsel %vm2515, %v9673, %v9677
    %v9679 = vshrl.u32 %v8961, 16
    %v9681 = vrot.slane %v9679, 4
    %v9682 = vor.u32 %v9681, %v9677
    %v9683 = vrot.slane %v9682, 4
    %v9685 = vshll.u32 %v8962, 16
    %v9687 = vrot.slane %v9685, 5
    %v9688 = vsel %vm2515, %v9683, %v9687
    %v9690 = vshrl.u32 %v8963, 16
    %v9692 = vrot.slane %v9690, 4
    %v9693 = vshll.u32 %v8963, 16
    %v9695 = vrot.slane %v9693, 5
    %v9696 = vor.u32 %v9692, %v9695
    %v9697 = vrot.slane %v9696, 4
    %v9699 = vshll.u32 %v8964, 16
    %v9701 = vrot.slane %v9699, 5
    %v9702 = vsel %vm2515, %v9697, %v9701
    %v9703 = vshrl.u32 %v8964, 16
    %v9705 = vrot.slane %v9703, 4
    %v9706 = vor.u32 %v9705, %v9701
    %v9707 = vrot.slane %v9706, 4
    %v9709 = vshll.u32 %v8965, 16
    %v9711 = vrot.slane %v9709, 5
    %v9712 = vsel %vm2515, %v9707, %v9711
    %v9714 = vshrl.u32 %v8966, 16
    %v9716 = vrot.slane %v9714, 4
    %v9717 = vshll.u32 %v8966, 16
    %v9719 = vrot.slane %v9717, 5
    %v9720 = vor.u32 %v9716, %v9719
    %v9721 = vrot.slane %v9720, 4
    %v9723 = vshll.u32 %v8967, 16
    %v9725 = vrot.slane %v9723, 5
    %v9726 = vsel %vm2515, %v9721, %v9725
    %v9727 = vshrl.u32 %v8967, 16
    %v9729 = vrot.slane %v9727, 4
    %v9730 = vor.u32 %v9729, %v9725
    %v9731 = vrot.slane %v9730, 4
    %v9733 = vshll.u32 %v8968, 16
    %v9735 = vrot.slane %v9733, 5
    %v9736 = vsel %vm2515, %v9731, %v9735
    %v9737 = vunpack.c.l.b16 %v8982
    %v9738 = vunpack.c.l.b16 %v8992
    %v9739 = vunpack.c.l.b16 %v9006
    %v9740 = vunpack.c.l.b16 %v9016
    %v9741 = vunpack.c.l.b16 %v9030
    %v9742 = vunpack.c.l.b16 %v9040
    %v9743 = vunpack.c.l.b16 %v9054
    %v9744 = vunpack.c.l.b16 %v9064
    %v9745 = vunpack.c.l.b16 %v9078
    %v9746 = vunpack.c.l.b16 %v9088
    %v9747 = vunpack.c.l.b16 %v9102
    %v9748 = vunpack.c.l.b16 %v9112
    %v9749 = vunpack.c.l.b16 %v9126
    %v9750 = vunpack.c.l.b16 %v9136
    %v9751 = vunpack.c.l.b16 %v9150
    %v9752 = vunpack.c.l.b16 %v9160
    %v9753 = vunpack.c.l.b16 %v9174
    %v9754 = vunpack.c.l.b16 %v9184
    %v9755 = vunpack.c.l.b16 %v9198
    %v9756 = vunpack.c.l.b16 %v9208
    %v9757 = vunpack.c.l.b16 %v9222
    %v9758 = vunpack.c.l.b16 %v9232
    %v9759 = vunpack.c.l.b16 %v9246
    %v9760 = vunpack.c.l.b16 %v9256
    %v9761 = vunpack.c.l.b16 %v9270
    %v9762 = vunpack.c.l.b16 %v9280
    %v9763 = vunpack.c.l.b16 %v9294
    %v9764 = vunpack.c.l.b16 %v9304
    %v9765 = vunpack.c.l.b16 %v9318
    %v9766 = vunpack.c.l.b16 %v9328
    %v9767 = vunpack.c.l.b16 %v9342
    %v9768 = vunpack.c.l.b16 %v9352
    %v9769 = vunpack.c.l.b16 %v9366
    %v9770 = vunpack.c.l.b16 %v9376
    %v9771 = vunpack.c.l.b16 %v9390
    %v9772 = vunpack.c.l.b16 %v9400
    %v9773 = vunpack.c.l.b16 %v9414
    %v9774 = vunpack.c.l.b16 %v9424
    %v9775 = vunpack.c.l.b16 %v9438
    %v9776 = vunpack.c.l.b16 %v9448
    %v9777 = vunpack.c.l.b16 %v9462
    %v9778 = vunpack.c.l.b16 %v9472
    %v9779 = vunpack.c.l.b16 %v9486
    %v9780 = vunpack.c.l.b16 %v9496
    %v9781 = vunpack.c.l.b16 %v9510
    %v9782 = vunpack.c.l.b16 %v9520
    %v9783 = vunpack.c.l.b16 %v9534
    %v9784 = vunpack.c.l.b16 %v9544
    %v9785 = vunpack.c.l.b16 %v9558
    %v9786 = vunpack.c.l.b16 %v9568
    %v9787 = vunpack.c.l.b16 %v9582
    %v9788 = vunpack.c.l.b16 %v9592
    %v9789 = vunpack.c.l.b16 %v9606
    %v9790 = vunpack.c.l.b16 %v9616
    %v9791 = vunpack.c.l.b16 %v9630
    %v9792 = vunpack.c.l.b16 %v9640
    %v9793 = vunpack.c.l.b16 %v9654
    %v9794 = vunpack.c.l.b16 %v9664
    %v9795 = vunpack.c.l.b16 %v9678
    %v9796 = vunpack.c.l.b16 %v9688
    %v9797 = vunpack.c.l.b16 %v9702
    %v9798 = vunpack.c.l.b16 %v9712
    %v9799 = vunpack.c.l.b16 %v9726
    %v9800 = vunpack.c.l.b16 %v9736
    %v9801 = vpack.c.b16 %v9738, %v9737
    %v9802 = vpack.c.b16 %v9740, %v9739
    %v9803 = vpack.c.b16 %v9742, %v9741
    %v9804 = vpack.c.b16 %v9744, %v9743
    %v9805 = vpack.c.b16 %v9746, %v9745
    %v9806 = vpack.c.b16 %v9748, %v9747
    %v9807 = vpack.c.b16 %v9750, %v9749
    %v9808 = vpack.c.b16 %v9752, %v9751
    %v9809 = vpack.c.b16 %v9754, %v9753
    %v9810 = vpack.c.b16 %v9756, %v9755
    %v9811 = vpack.c.b16 %v9758, %v9757
    %v9812 = vpack.c.b16 %v9760, %v9759
    %v9813 = vpack.c.b16 %v9762, %v9761
    %v9814 = vpack.c.b16 %v9764, %v9763
    %v9815 = vpack.c.b16 %v9766, %v9765
    %v9816 = vpack.c.b16 %v9768, %v9767
    %v9817 = vpack.c.b16 %v9770, %v9769
    %v9818 = vpack.c.b16 %v9772, %v9771
    %v9819 = vpack.c.b16 %v9774, %v9773
    %v9820 = vpack.c.b16 %v9776, %v9775
    %v9821 = vpack.c.b16 %v9778, %v9777
    %v9822 = vpack.c.b16 %v9780, %v9779
    %v9823 = vpack.c.b16 %v9782, %v9781
    %v9824 = vpack.c.b16 %v9784, %v9783
    %v9825 = vpack.c.b16 %v9786, %v9785
    %v9826 = vpack.c.b16 %v9788, %v9787
    %v9827 = vpack.c.b16 %v9790, %v9789
    %v9828 = vpack.c.b16 %v9792, %v9791
    %v9829 = vpack.c.b16 %v9794, %v9793
    %v9830 = vpack.c.b16 %v9796, %v9795
    %v9831 = vpack.c.b16 %v9798, %v9797
    %v9832 = vpack.c.b16 %v9800, %v9799
    %v9835 = vunpack.c.l.b16 %v2413
    %v9836 = vunpack.c.l.b16 %v2414
    %v9837 = vpack.c.b16 %v9836, %v9835
    %v9840 = vsel %vm581, %v9801, 0
    %v9843 = vsel %vm581, %v9802, 0
    %v9846 = vsel %vm581, %v9803, 0
    %v9849 = vsel %vm581, %v9804, 0
    %v9852 = vsel %vm581, %v9805, 0
    %v9855 = vsel %vm581, %v9806, 0
    %v9858 = vsel %vm581, %v9807, 0
    %v9861 = vsel %vm581, %v9808, 0
    %v9864 = vsel %vm581, %v9809, 0
    %v9867 = vsel %vm581, %v9810, 0
    %v9870 = vsel %vm581, %v9811, 0
    %v9873 = vsel %vm581, %v9812, 0
    %v9876 = vsel %vm581, %v9813, 0
    %v9879 = vsel %vm581, %v9814, 0
    %v9882 = vsel %vm581, %v9815, 0
    %v9885 = vsel %vm581, %v9816, 0
    %v9888 = vsel %vm581, %v9817, 0
    %v9891 = vsel %vm581, %v9818, 0
    %v9894 = vsel %vm581, %v9819, 0
    %v9897 = vsel %vm581, %v9820, 0
    %v9900 = vsel %vm581, %v9821, 0
    %v9903 = vsel %vm581, %v9822, 0
    %v9906 = vsel %vm581, %v9823, 0
    %v9909 = vsel %vm581, %v9824, 0
    %v9912 = vsel %vm581, %v9825, 0
    %v9915 = vsel %vm581, %v9826, 0
    %v9918 = vsel %vm581, %v9827, 0
    %v9921 = vsel %vm581, %v9828, 0
    %v9924 = vsel %vm581, %v9829, 0
    %v9927 = vsel %vm581, %v9830, 0
    %v9930 = vsel %vm581, %v9831, 0
    %v9933 = vsel %vm581, %v9832, 0
    %9935 = vmatprep.subr.bf16.mxu0 0
    %9936 = vmatpush1.bf16.msra.mxu0 0
    %9937 = vmatprep.subr.bf16.mxu0 0
    %9938 = vmatpush1.bf16.msra.mxu0 0
    %9939 = vmatprep.subr.bf16.mxu0 0
    %9940 = vmatpush1.bf16.msra.mxu0 0
    %9941 = vmatprep.subr.bf16.mxu0 0
    %9942 = vmatpush1.bf16.msra.mxu0 0
    %9943 = vmatprep.subr.bf16.mxu0 0
    %9944 = vmatpush1.bf16.msra.mxu0 0
    %9945 = vmatprep.subr.bf16.mxu0 0
    %9946 = vmatpush1.bf16.msra.mxu0 0
    %9947 = vmatprep.subr.bf16.mxu0 0
    %9948 = vmatpush1.bf16.msra.mxu0 0
    %9949 = vmatprep.subr.bf16.mxu0 0
    %9950 = vmatpush1.bf16.msra.mxu0 %v9837
    %9951 = vmatprep.subr.bf16.mxu0 0
    %9952 = vmatpush2.bf16.msra.mxu0 0
    %9953 = vmatprep.subr.bf16.mxu0 0
    %9954 = vmatpush2.bf16.msra.mxu0 0
    %9955 = vmatprep.subr.bf16.mxu0 0
    %9956 = vmatpush2.bf16.msra.mxu0 0
    %9957 = vmatprep.subr.bf16.mxu0 0
    %9958 = vmatpush2.bf16.msra.mxu0 0
    %9959 = vmatprep.subr.bf16.mxu0 0
    %9960 = vmatpush2.bf16.msra.mxu0 0
    %9961 = vmatprep.subr.bf16.mxu0 0
    %9962 = vmatpush2.bf16.msra.mxu0 0
    %9963 = vmatprep.subr.bf16.mxu0 0
    %9964 = vmatpush2.bf16.msra.mxu0 0
    %9965 = vmatprep.subr.bf16.mxu0 0
    %9966 = vmatpush2.bf16.msra.mxu0 0
    %9967 = vmatprep.mubr.bf16.mxu0 0
    %9968 = vmatmul.mubr.bf16.gmra.mxu0 %v9840
    %v9969 = vpop.f32.mrf.mxu0
    %v9970 = vadd.f32 0.0, %v9969
    %v9971 = vpop.f32.mrf.mxu0
    %v9972 = vpop.f32.mrf.mxu0
    %v9973 = vadd.f32 0.0, %v9972
    %v9974 = vpop.f32.mrf.mxu0
    %9975 = vmatprep.mubr.bf16.mxu0 0
    %9976 = vmatmul.mubr.bf16.gmra.mxu0 %v9843
    %v9977 = vpop.f32.mrf.mxu0
    %v9978 = vadd.f32 0.0, %v9977
    %v9979 = vpop.f32.mrf.mxu0
    %v9980 = vpop.f32.mrf.mxu0
    %v9981 = vadd.f32 0.0, %v9980
    %v9982 = vpop.f32.mrf.mxu0
    %9983 = vmatprep.mubr.bf16.mxu0 0
    %9984 = vmatmul.mubr.bf16.gmra.mxu0 %v9846
    %v9985 = vpop.f32.mrf.mxu0
    %v9986 = vadd.f32 0.0, %v9985
    %v9987 = vpop.f32.mrf.mxu0
    %v9988 = vpop.f32.mrf.mxu0
    %v9989 = vadd.f32 0.0, %v9988
    %v9990 = vpop.f32.mrf.mxu0
    %9991 = vmatprep.mubr.bf16.mxu0 0
    %9992 = vmatmul.mubr.bf16.gmra.mxu0 %v9849
    %v9993 = vpop.f32.mrf.mxu0
    %v9994 = vadd.f32 0.0, %v9993
    %v9995 = vpop.f32.mrf.mxu0
    %v9996 = vpop.f32.mrf.mxu0
    %v9997 = vadd.f32 0.0, %v9996
    %v9998 = vpop.f32.mrf.mxu0
    %9999 = vmatprep.mubr.bf16.mxu0 0
    %10000 = vmatmul.mubr.bf16.gmra.mxu0 %v9852
    %v10001 = vpop.f32.mrf.mxu0
    %v10002 = vadd.f32 0.0, %v10001
    %v10003 = vpop.f32.mrf.mxu0
    %v10004 = vpop.f32.mrf.mxu0
    %v10005 = vadd.f32 0.0, %v10004
    %v10006 = vpop.f32.mrf.mxu0
    %10007 = vmatprep.mubr.bf16.mxu0 0
    %10008 = vmatmul.mubr.bf16.gmra.mxu0 %v9855
    %v10009 = vpop.f32.mrf.mxu0
    %v10010 = vadd.f32 0.0, %v10009
    %v10011 = vpop.f32.mrf.mxu0
    %v10012 = vpop.f32.mrf.mxu0
    %v10013 = vadd.f32 0.0, %v10012
    %v10014 = vpop.f32.mrf.mxu0
    %10015 = vmatprep.mubr.bf16.mxu0 0
    %10016 = vmatmul.mubr.bf16.gmra.mxu0 %v9858
    %v10017 = vpop.f32.mrf.mxu0
    %v10018 = vadd.f32 0.0, %v10017
    %v10019 = vpop.f32.mrf.mxu0
    %v10020 = vpop.f32.mrf.mxu0
    %v10021 = vadd.f32 0.0, %v10020
    %v10022 = vpop.f32.mrf.mxu0
    %10023 = vmatprep.mubr.bf16.mxu0 0
    %10024 = vmatmul.mubr.bf16.gmra.mxu0 %v9861
    %v10025 = vpop.f32.mrf.mxu0
    %v10026 = vadd.f32 0.0, %v10025
    %v10027 = vpop.f32.mrf.mxu0
    %v10028 = vpop.f32.mrf.mxu0
    %v10029 = vadd.f32 0.0, %v10028
    %v10030 = vpop.f32.mrf.mxu0
    %10031 = vmatprep.mubr.bf16.mxu0 0
    %10032 = vmatmul.mubr.bf16.gmra.mxu0 %v9864
    %v10033 = vpop.f32.mrf.mxu0
    %v10034 = vadd.f32 0.0, %v10033
    %v10035 = vpop.f32.mrf.mxu0
    %v10036 = vpop.f32.mrf.mxu0
    %v10037 = vadd.f32 0.0, %v10036
    %v10038 = vpop.f32.mrf.mxu0
    %10039 = vmatprep.mubr.bf16.mxu0 0
    %10040 = vmatmul.mubr.bf16.gmra.mxu0 %v9867
    %v10041 = vpop.f32.mrf.mxu0
    %v10042 = vadd.f32 0.0, %v10041
    %v10043 = vpop.f32.mrf.mxu0
    %v10044 = vpop.f32.mrf.mxu0
    %v10045 = vadd.f32 0.0, %v10044
    %v10046 = vpop.f32.mrf.mxu0
    %10047 = vmatprep.mubr.bf16.mxu0 0
    %10048 = vmatmul.mubr.bf16.gmra.mxu0 %v9870
    %v10049 = vpop.f32.mrf.mxu0
    %v10050 = vadd.f32 0.0, %v10049
    %v10051 = vpop.f32.mrf.mxu0
    %v10052 = vpop.f32.mrf.mxu0
    %v10053 = vadd.f32 0.0, %v10052
    %v10054 = vpop.f32.mrf.mxu0
    %10055 = vmatprep.mubr.bf16.mxu0 0
    %10056 = vmatmul.mubr.bf16.gmra.mxu0 %v9873
    %v10057 = vpop.f32.mrf.mxu0
    %v10058 = vadd.f32 0.0, %v10057
    %v10059 = vpop.f32.mrf.mxu0
    %v10060 = vpop.f32.mrf.mxu0
    %v10061 = vadd.f32 0.0, %v10060
    %v10062 = vpop.f32.mrf.mxu0
    %10063 = vmatprep.mubr.bf16.mxu0 0
    %10064 = vmatmul.mubr.bf16.gmra.mxu0 %v9876
    %v10065 = vpop.f32.mrf.mxu0
    %v10066 = vadd.f32 0.0, %v10065
    %v10067 = vpop.f32.mrf.mxu0
    %v10068 = vpop.f32.mrf.mxu0
    %v10069 = vadd.f32 0.0, %v10068
    %v10070 = vpop.f32.mrf.mxu0
    %10071 = vmatprep.mubr.bf16.mxu0 0
    %10072 = vmatmul.mubr.bf16.gmra.mxu0 %v9879
    %v10073 = vpop.f32.mrf.mxu0
    %v10074 = vadd.f32 0.0, %v10073
    %v10075 = vpop.f32.mrf.mxu0
    %v10076 = vpop.f32.mrf.mxu0
    %v10077 = vadd.f32 0.0, %v10076
    %v10078 = vpop.f32.mrf.mxu0
    %10079 = vmatprep.mubr.bf16.mxu0 0
    %10080 = vmatmul.mubr.bf16.gmra.mxu0 %v9882
    %v10081 = vpop.f32.mrf.mxu0
    %v10082 = vadd.f32 0.0, %v10081
    %v10083 = vpop.f32.mrf.mxu0
    %v10084 = vpop.f32.mrf.mxu0
    %v10085 = vadd.f32 0.0, %v10084
    %v10086 = vpop.f32.mrf.mxu0
    %10087 = vmatprep.mubr.bf16.mxu0 0
    %10088 = vmatmul.mubr.bf16.gmra.mxu0 %v9885
    %v10089 = vpop.f32.mrf.mxu0
    %v10090 = vadd.f32 0.0, %v10089
    %v10091 = vpop.f32.mrf.mxu0
    %v10092 = vpop.f32.mrf.mxu0
    %v10093 = vadd.f32 0.0, %v10092
    %v10094 = vpop.f32.mrf.mxu0
    %10095 = vmatprep.mubr.bf16.mxu0 0
    %10096 = vmatmul.mubr.bf16.gmra.mxu0 %v9888
    %v10097 = vpop.f32.mrf.mxu0
    %v10098 = vadd.f32 0.0, %v10097
    %v10099 = vpop.f32.mrf.mxu0
    %v10100 = vpop.f32.mrf.mxu0
    %v10101 = vadd.f32 0.0, %v10100
    %v10102 = vpop.f32.mrf.mxu0
    %10103 = vmatprep.mubr.bf16.mxu0 0
    %10104 = vmatmul.mubr.bf16.gmra.mxu0 %v9891
    %v10105 = vpop.f32.mrf.mxu0
    %v10106 = vadd.f32 0.0, %v10105
    %v10107 = vpop.f32.mrf.mxu0
    %v10108 = vpop.f32.mrf.mxu0
    %v10109 = vadd.f32 0.0, %v10108
    %v10110 = vpop.f32.mrf.mxu0
    %10111 = vmatprep.mubr.bf16.mxu0 0
    %10112 = vmatmul.mubr.bf16.gmra.mxu0 %v9894
    %v10113 = vpop.f32.mrf.mxu0
    %v10114 = vadd.f32 0.0, %v10113
    %v10115 = vpop.f32.mrf.mxu0
    %v10116 = vpop.f32.mrf.mxu0
    %v10117 = vadd.f32 0.0, %v10116
    %v10118 = vpop.f32.mrf.mxu0
    %10119 = vmatprep.mubr.bf16.mxu0 0
    %10120 = vmatmul.mubr.bf16.gmra.mxu0 %v9897
    %v10121 = vpop.f32.mrf.mxu0
    %v10122 = vadd.f32 0.0, %v10121
    %v10123 = vpop.f32.mrf.mxu0
    %v10124 = vpop.f32.mrf.mxu0
    %v10125 = vadd.f32 0.0, %v10124
    %v10126 = vpop.f32.mrf.mxu0
    %10127 = vmatprep.mubr.bf16.mxu0 0
    %10128 = vmatmul.mubr.bf16.gmra.mxu0 %v9900
    %v10129 = vpop.f32.mrf.mxu0
    %v10130 = vadd.f32 0.0, %v10129
    %v10131 = vpop.f32.mrf.mxu0
    %v10132 = vpop.f32.mrf.mxu0
    %v10133 = vadd.f32 0.0, %v10132
    %v10134 = vpop.f32.mrf.mxu0
    %10135 = vmatprep.mubr.bf16.mxu0 0
    %10136 = vmatmul.mubr.bf16.gmra.mxu0 %v9903
    %v10137 = vpop.f32.mrf.mxu0
    %v10138 = vadd.f32 0.0, %v10137
    %v10139 = vpop.f32.mrf.mxu0
    %v10140 = vpop.f32.mrf.mxu0
    %v10141 = vadd.f32 0.0, %v10140
    %v10142 = vpop.f32.mrf.mxu0
    %10143 = vmatprep.mubr.bf16.mxu0 0
    %10144 = vmatmul.mubr.bf16.gmra.mxu0 %v9906
    %v10145 = vpop.f32.mrf.mxu0
    %v10146 = vadd.f32 0.0, %v10145
    %v10147 = vpop.f32.mrf.mxu0
    %v10148 = vpop.f32.mrf.mxu0
    %v10149 = vadd.f32 0.0, %v10148
    %v10150 = vpop.f32.mrf.mxu0
    %10151 = vmatprep.mubr.bf16.mxu0 0
    %10152 = vmatmul.mubr.bf16.gmra.mxu0 %v9909
    %v10153 = vpop.f32.mrf.mxu0
    %v10154 = vadd.f32 0.0, %v10153
    %v10155 = vpop.f32.mrf.mxu0
    %v10156 = vpop.f32.mrf.mxu0
    %v10157 = vadd.f32 0.0, %v10156
    %v10158 = vpop.f32.mrf.mxu0
    %10159 = vmatprep.mubr.bf16.mxu0 0
    %10160 = vmatmul.mubr.bf16.gmra.mxu0 %v9912
    %v10161 = vpop.f32.mrf.mxu0
    %v10162 = vadd.f32 0.0, %v10161
    %v10163 = vpop.f32.mrf.mxu0
    %v10164 = vpop.f32.mrf.mxu0
    %v10165 = vadd.f32 0.0, %v10164
    %v10166 = vpop.f32.mrf.mxu0
    %10167 = vmatprep.mubr.bf16.mxu0 0
    %10168 = vmatmul.mubr.bf16.gmra.mxu0 %v9915
    %v10169 = vpop.f32.mrf.mxu0
    %v10170 = vadd.f32 0.0, %v10169
    %v10171 = vpop.f32.mrf.mxu0
    %v10172 = vpop.f32.mrf.mxu0
    %v10173 = vadd.f32 0.0, %v10172
    %v10174 = vpop.f32.mrf.mxu0
    %10175 = vmatprep.mubr.bf16.mxu0 0
    %10176 = vmatmul.mubr.bf16.gmra.mxu0 %v9918
    %v10177 = vpop.f32.mrf.mxu0
    %v10178 = vadd.f32 0.0, %v10177
    %v10179 = vpop.f32.mrf.mxu0
    %v10180 = vpop.f32.mrf.mxu0
    %v10181 = vadd.f32 0.0, %v10180
    %v10182 = vpop.f32.mrf.mxu0
    %10183 = vmatprep.mubr.bf16.mxu0 0
    %10184 = vmatmul.mubr.bf16.gmra.mxu0 %v9921
    %v10185 = vpop.f32.mrf.mxu0
    %v10186 = vadd.f32 0.0, %v10185
    %v10187 = vpop.f32.mrf.mxu0
    %v10188 = vpop.f32.mrf.mxu0
    %v10189 = vadd.f32 0.0, %v10188
    %v10190 = vpop.f32.mrf.mxu0
    %10191 = vmatprep.mubr.bf16.mxu0 0
    %10192 = vmatmul.mubr.bf16.gmra.mxu0 %v9924
    %v10193 = vpop.f32.mrf.mxu0
    %v10194 = vadd.f32 0.0, %v10193
    %v10195 = vpop.f32.mrf.mxu0
    %v10196 = vpop.f32.mrf.mxu0
    %v10197 = vadd.f32 0.0, %v10196
    %v10198 = vpop.f32.mrf.mxu0
    %10199 = vmatprep.mubr.bf16.mxu0 0
    %10200 = vmatmul.mubr.bf16.gmra.mxu0 %v9927
    %v10201 = vpop.f32.mrf.mxu0
    %v10202 = vadd.f32 0.0, %v10201
    %v10203 = vpop.f32.mrf.mxu0
    %v10204 = vpop.f32.mrf.mxu0
    %v10205 = vadd.f32 0.0, %v10204
    %v10206 = vpop.f32.mrf.mxu0
    %10207 = vmatprep.mubr.bf16.mxu0 0
    %10208 = vmatmul.mubr.bf16.gmra.mxu0 %v9930
    %v10209 = vpop.f32.mrf.mxu0
    %v10210 = vadd.f32 0.0, %v10209
    %v10211 = vpop.f32.mrf.mxu0
    %v10212 = vpop.f32.mrf.mxu0
    %v10213 = vadd.f32 0.0, %v10212
    %v10214 = vpop.f32.mrf.mxu0
    %10215 = vmatprep.mubr.bf16.mxu0 0
    %10216 = vmatmul.mubr.bf16.gmra.mxu0 %v9933
    %v10217 = vpop.f32.mrf.mxu0
    %v10218 = vadd.f32 0.0, %v10217
    %v10219 = vpop.f32.mrf.mxu0
    %v10220 = vpop.f32.mrf.mxu0
    %v10221 = vadd.f32 0.0, %v10220
    %v10222 = vpop.f32.mrf.mxu0
    %10223 = vdwg.mxu0
    %v10224 = vadd.f32 %v8809, %v9970
    %v10225 = vadd.f32 %v8810, %v9973
    %v10226 = vadd.f32 %v8811, %v9978
    %v10227 = vadd.f32 %v8812, %v9981
    %v10228 = vadd.f32 %v8813, %v9986
    %v10229 = vadd.f32 %v8814, %v9989
    %v10230 = vadd.f32 %v8815, %v9994
    %v10231 = vadd.f32 %v8816, %v9997
    %v10232 = vadd.f32 %v8817, %v10002
    %v10233 = vadd.f32 %v8818, %v10005
    %v10234 = vadd.f32 %v8819, %v10010
    %v10235 = vadd.f32 %v8820, %v10013
    %v10236 = vadd.f32 %v8821, %v10018
    %v10237 = vadd.f32 %v8822, %v10021
    %v10238 = vadd.f32 %v8823, %v10026
    %v10239 = vadd.f32 %v8824, %v10029
    %v10240 = vadd.f32 %v8825, %v10034
    %v10241 = vadd.f32 %v8826, %v10037
    %v10242 = vadd.f32 %v8827, %v10042
    %v10243 = vadd.f32 %v8828, %v10045
    %v10244 = vadd.f32 %v8829, %v10050
    %v10245 = vadd.f32 %v8830, %v10053
    %v10246 = vadd.f32 %v8831, %v10058
    %v10247 = vadd.f32 %v8832, %v10061
    %v10248 = vadd.f32 %v8833, %v10066
    %v10249 = vadd.f32 %v8834, %v10069
    %v10250 = vadd.f32 %v8835, %v10074
    %v10251 = vadd.f32 %v8836, %v10077
    %v10252 = vadd.f32 %v8837, %v10082
    %v10253 = vadd.f32 %v8838, %v10085
    %v10254 = vadd.f32 %v8839, %v10090
    %v10255 = vadd.f32 %v8840, %v10093
    %v10256 = vadd.f32 %v8841, %v10098
    %v10257 = vadd.f32 %v8842, %v10101
    %v10258 = vadd.f32 %v8843, %v10106
    %v10259 = vadd.f32 %v8844, %v10109
    %v10260 = vadd.f32 %v8845, %v10114
    %v10261 = vadd.f32 %v8846, %v10117
    %v10262 = vadd.f32 %v8847, %v10122
    %v10263 = vadd.f32 %v8848, %v10125
    %v10264 = vadd.f32 %v8849, %v10130
    %v10265 = vadd.f32 %v8850, %v10133
    %v10266 = vadd.f32 %v8851, %v10138
    %v10267 = vadd.f32 %v8852, %v10141
    %v10268 = vadd.f32 %v8853, %v10146
    %v10269 = vadd.f32 %v8854, %v10149
    %v10270 = vadd.f32 %v8855, %v10154
    %v10271 = vadd.f32 %v8856, %v10157
    %v10272 = vadd.f32 %v8857, %v10162
    %v10273 = vadd.f32 %v8858, %v10165
    %v10274 = vadd.f32 %v8859, %v10170
    %v10275 = vadd.f32 %v8860, %v10173
    %v10276 = vadd.f32 %v8861, %v10178
    %v10277 = vadd.f32 %v8862, %v10181
    %v10278 = vadd.f32 %v8863, %v10186
    %v10279 = vadd.f32 %v8864, %v10189
    %v10280 = vadd.f32 %v8865, %v10194
    %v10281 = vadd.f32 %v8866, %v10197
    %v10282 = vadd.f32 %v8867, %v10202
    %v10283 = vadd.f32 %v8868, %v10205
    %v10284 = vadd.f32 %v8869, %v10210
    %v10285 = vadd.f32 %v8870, %v10213
    %v10286 = vadd.f32 %v8871, %v10218
    %v10287 = vadd.f32 %v8872, %v10221
    %v10288 = vld [vmem:[%s8193] sm:$0xe]
    %v10289 = vld [vmem:[%s8193 + $0xc] sm:$0xe]
    %v10290 = vld [vmem:[%s8193 + $0x18] sm:$0xe]
    %v10291 = vld [vmem:[%s8193 + $0x24] sm:$0xe]
    %v10292 = vld [vmem:[%s8193 + $0x30] sm:$0xe]
    %v10293 = vld [vmem:[%s8193 + $0x3c] sm:$0xe]
    %v10294 = vld [vmem:[%s8193 + $0x48] sm:$0xe]
    %v10295 = vld [vmem:[%s8193 + $0x54] sm:$0xe]
    %v10296 = vld [vmem:[%s8193 + $0x60] sm:$0xe]
    %v10297 = vld [vmem:[%s8193 + $0x6c] sm:$0xe]
    %v10298 = vld [vmem:[%s8193 + $0x78] sm:$0xe]
    %v10299 = vld [vmem:[%s8193 + $0x84] sm:$0xe]
    %v10300 = vld [vmem:[%s8193 + $0x90] sm:$0xe]
    %v10301 = vld [vmem:[%s8193 + $0x9c] sm:$0xe]
    %v10302 = vld [vmem:[%s8193 + $0xa8] sm:$0xe]
    %v10303 = vld [vmem:[%s8193 + $0xb4] sm:$0xe]
    %v10304 = vld [vmem:[%s8193 + $0xd8] sm:$0xe]
    %v10305 = vld [vmem:[%s8193 + $0xe4] sm:$0xe]
    %v10306 = vld [vmem:[%s8193 + $0xf0] sm:$0xe]
    %v10307 = vld [vmem:[%s8193 + $0xfc] sm:$0xe]
    %v10308 = vld [vmem:[%s8193 + $0x108] sm:$0xe]
    %v10309 = vld [vmem:[%s8193 + $0x114] sm:$0xe]
    %v10310 = vld [vmem:[%s8193 + $0x120] sm:$0xe]
    %v10311 = vld [vmem:[%s8193 + $0x12c] sm:$0xe]
    %v10312 = vld [vmem:[%s8193 + $0x138] sm:$0xe]
    %v10313 = vld [vmem:[%s8193 + $0x144] sm:$0xe]
    %v10314 = vld [vmem:[%s8193 + $0x150] sm:$0xe]
    %v10315 = vld [vmem:[%s8193 + $0x15c] sm:$0xe]
    %v10316 = vld [vmem:[%s8193 + $0x168] sm:$0xe]
    %v10317 = vld [vmem:[%s8193 + $0x174] sm:$0xe]
    %v10318 = vld [vmem:[%s8193 + $0x180] sm:$0xe]
    %v10319 = vld [vmem:[%s8193 + $0x18c] sm:$0xe]
    %v10416 = vrot.slane %v10288, 5
    %v10417 = vrot.slane %v10416, 4
    %v10418 = vrot.slane %v8874, 5
    %v10419 = vsel %vm4420, %v10417, %v10418
    %v10420 = vrot.slane %v10418, 4
    %v10421 = vrot.slane %v8875, 5
    %v10422 = vsel %vm4420, %v10420, %v10421
    %v10423 = vrot.slane %v10289, 5
    %v10424 = vrot.slane %v10423, 4
    %v10425 = vrot.slane %v8877, 5
    %v10426 = vsel %vm4420, %v10424, %v10425
    %v10427 = vrot.slane %v10425, 4
    %v10428 = vrot.slane %v8878, 5
    %v10429 = vsel %vm4420, %v10427, %v10428
    %v10430 = vrot.slane %v10290, 5
    %v10431 = vrot.slane %v10430, 4
    %v10432 = vrot.slane %v8880, 5
    %v10433 = vsel %vm4420, %v10431, %v10432
    %v10434 = vrot.slane %v10432, 4
    %v10435 = vrot.slane %v8881, 5
    %v10436 = vsel %vm4420, %v10434, %v10435
    %v10437 = vrot.slane %v10291, 5
    %v10438 = vrot.slane %v10437, 4
    %v10439 = vrot.slane %v8883, 5
    %v10440 = vsel %vm4420, %v10438, %v10439
    %v10441 = vrot.slane %v10439, 4
    %v10442 = vrot.slane %v8884, 5
    %v10443 = vsel %vm4420, %v10441, %v10442
    %v10444 = vrot.slane %v10292, 5
    %v10445 = vrot.slane %v10444, 4
    %v10446 = vrot.slane %v8886, 5
    %v10447 = vsel %vm4420, %v10445, %v10446
    %v10448 = vrot.slane %v10446, 4
    %v10449 = vrot.slane %v8887, 5
    %v10450 = vsel %vm4420, %v10448, %v10449
    %v10451 = vrot.slane %v10293, 5
    %v10452 = vrot.slane %v10451, 4
    %v10453 = vrot.slane %v8889, 5
    %v10454 = vsel %vm4420, %v10452, %v10453
    %v10455 = vrot.slane %v10453, 4
    %v10456 = vrot.slane %v8890, 5
    %v10457 = vsel %vm4420, %v10455, %v10456
    %v10458 = vrot.slane %v10294, 5
    %v10459 = vrot.slane %v10458, 4
    %v10460 = vrot.slane %v8892, 5
    %v10461 = vsel %vm4420, %v10459, %v10460
    %v10462 = vrot.slane %v10460, 4
    %v10463 = vrot.slane %v8893, 5
    %v10464 = vsel %vm4420, %v10462, %v10463
    %v10465 = vrot.slane %v10295, 5
    %v10466 = vrot.slane %v10465, 4
    %v10467 = vrot.slane %v8895, 5
    %v10468 = vsel %vm4420, %v10466, %v10467
    %v10469 = vrot.slane %v10467, 4
    %v10470 = vrot.slane %v8896, 5
    %v10471 = vsel %vm4420, %v10469, %v10470
    %v10472 = vrot.slane %v10296, 5
    %v10473 = vrot.slane %v10472, 4
    %v10474 = vrot.slane %v8898, 5
    %v10475 = vsel %vm4420, %v10473, %v10474
    %v10476 = vrot.slane %v10474, 4
    %v10477 = vrot.slane %v8899, 5
    %v10478 = vsel %vm4420, %v10476, %v10477
    %v10479 = vrot.slane %v10297, 5
    %v10480 = vrot.slane %v10479, 4
    %v10481 = vrot.slane %v8901, 5
    %v10482 = vsel %vm4420, %v10480, %v10481
    %v10483 = vrot.slane %v10481, 4
    %v10484 = vrot.slane %v8902, 5
    %v10485 = vsel %vm4420, %v10483, %v10484
    %v10486 = vrot.slane %v10298, 5
    %v10487 = vrot.slane %v10486, 4
    %v10488 = vrot.slane %v8904, 5
    %v10489 = vsel %vm4420, %v10487, %v10488
    %v10490 = vrot.slane %v10488, 4
    %v10491 = vrot.slane %v8905, 5
    %v10492 = vsel %vm4420, %v10490, %v10491
    %v10493 = vrot.slane %v10299, 5
    %v10494 = vrot.slane %v10493, 4
    %v10495 = vrot.slane %v8907, 5
    %v10496 = vsel %vm4420, %v10494, %v10495
    %v10497 = vrot.slane %v10495, 4
    %v10498 = vrot.slane %v8908, 5
    %v10499 = vsel %vm4420, %v10497, %v10498
    %v10500 = vrot.slane %v10300, 5
    %v10501 = vrot.slane %v10500, 4
    %v10502 = vrot.slane %v8910, 5
    %v10503 = vsel %vm4420, %v10501, %v10502
    %v10504 = vrot.slane %v10502, 4
    %v10505 = vrot.slane %v8911, 5
    %v10506 = vsel %vm4420, %v10504, %v10505
    %v10507 = vrot.slane %v10301, 5
    %v10508 = vrot.slane %v10507, 4
    %v10509 = vrot.slane %v8913, 5
    %v10510 = vsel %vm4420, %v10508, %v10509
    %v10511 = vrot.slane %v10509, 4
    %v10512 = vrot.slane %v8914, 5
    %v10513 = vsel %vm4420, %v10511, %v10512
    %v10514 = vrot.slane %v10302, 5
    %v10515 = vrot.slane %v10514, 4
    %v10516 = vrot.slane %v8916, 5
    %v10517 = vsel %vm4420, %v10515, %v10516
    %v10518 = vrot.slane %v10516, 4
    %v10519 = vrot.slane %v8917, 5
    %v10520 = vsel %vm4420, %v10518, %v10519
    %v10521 = vrot.slane %v10303, 5
    %v10522 = vrot.slane %v10521, 4
    %v10523 = vrot.slane %v8919, 5
    %v10524 = vsel %vm4420, %v10522, %v10523
    %v10525 = vrot.slane %v10523, 4
    %v10526 = vrot.slane %v8920, 5
    %v10527 = vsel %vm4420, %v10525, %v10526
    %v10528 = vrot.slane %v10304, 5
    %v10529 = vrot.slane %v10528, 4
    %v10530 = vrot.slane %v8922, 5
    %v10531 = vsel %vm4420, %v10529, %v10530
    %v10532 = vrot.slane %v10530, 4
    %v10533 = vrot.slane %v8923, 5
    %v10534 = vsel %vm4420, %v10532, %v10533
    %v10535 = vrot.slane %v10305, 5
    %v10536 = vrot.slane %v10535, 4
    %v10537 = vrot.slane %v8925, 5
    %v10538 = vsel %vm4420, %v10536, %v10537
    %v10539 = vrot.slane %v10537, 4
    %v10540 = vrot.slane %v8926, 5
    %v10541 = vsel %vm4420, %v10539, %v10540
    %v10542 = vrot.slane %v10306, 5
    %v10543 = vrot.slane %v10542, 4
    %v10544 = vrot.slane %v8928, 5
    %v10545 = vsel %vm4420, %v10543, %v10544
    %v10546 = vrot.slane %v10544, 4
    %v10547 = vrot.slane %v8929, 5
    %v10548 = vsel %vm4420, %v10546, %v10547
    %v10549 = vrot.slane %v10307, 5
    %v10550 = vrot.slane %v10549, 4
    %v10551 = vrot.slane %v8931, 5
    %v10552 = vsel %vm4420, %v10550, %v10551
    %v10553 = vrot.slane %v10551, 4
    %v10554 = vrot.slane %v8932, 5
    %v10555 = vsel %vm4420, %v10553, %v10554
    %v10556 = vrot.slane %v10308, 5
    %v10557 = vrot.slane %v10556, 4
    %v10558 = vrot.slane %v8934, 5
    %v10559 = vsel %vm4420, %v10557, %v10558
    %v10560 = vrot.slane %v10558, 4
    %v10561 = vrot.slane %v8935, 5
    %v10562 = vsel %vm4420, %v10560, %v10561
    %v10563 = vrot.slane %v10309, 5
    %v10564 = vrot.slane %v10563, 4
    %v10565 = vrot.slane %v8937, 5
    %v10566 = vsel %vm4420, %v10564, %v10565
    %v10567 = vrot.slane %v10565, 4
    %v10568 = vrot.slane %v8938, 5
    %v10569 = vsel %vm4420, %v10567, %v10568
    %v10570 = vrot.slane %v10310, 5
    %v10571 = vrot.slane %v10570, 4
    %v10572 = vrot.slane %v8940, 5
    %v10573 = vsel %vm4420, %v10571, %v10572
    %v10574 = vrot.slane %v10572, 4
    %v10575 = vrot.slane %v8941, 5
    %v10576 = vsel %vm4420, %v10574, %v10575
    %v10577 = vrot.slane %v10311, 5
    %v10578 = vrot.slane %v10577, 4
    %v10579 = vrot.slane %v8943, 5
    %v10580 = vsel %vm4420, %v10578, %v10579
    %v10581 = vrot.slane %v10579, 4
    %v10582 = vrot.slane %v8944, 5
    %v10583 = vsel %vm4420, %v10581, %v10582
    %v10584 = vrot.slane %v10312, 5
    %v10585 = vrot.slane %v10584, 4
    %v10586 = vrot.slane %v8946, 5
    %v10587 = vsel %vm4420, %v10585, %v10586
    %v10588 = vrot.slane %v10586, 4
    %v10589 = vrot.slane %v8947, 5
    %v10590 = vsel %vm4420, %v10588, %v10589
    %v10591 = vrot.slane %v10313, 5
    %v10592 = vrot.slane %v10591, 4
    %v10593 = vrot.slane %v8949, 5
    %v10594 = vsel %vm4420, %v10592, %v10593
    %v10595 = vrot.slane %v10593, 4
    %v10596 = vrot.slane %v8950, 5
    %v10597 = vsel %vm4420, %v10595, %v10596
    %v10598 = vrot.slane %v10314, 5
    %v10599 = vrot.slane %v10598, 4
    %v10600 = vrot.slane %v8952, 5
    %v10601 = vsel %vm4420, %v10599, %v10600
    %v10602 = vrot.slane %v10600, 4
    %v10603 = vrot.slane %v8953, 5
    %v10604 = vsel %vm4420, %v10602, %v10603
    %v10605 = vrot.slane %v10315, 5
    %v10606 = vrot.slane %v10605, 4
    %v10607 = vrot.slane %v8955, 5
    %v10608 = vsel %vm4420, %v10606, %v10607
    %v10609 = vrot.slane %v10607, 4
    %v10610 = vrot.slane %v8956, 5
    %v10611 = vsel %vm4420, %v10609, %v10610
    %v10612 = vrot.slane %v10316, 5
    %v10613 = vrot.slane %v10612, 4
    %v10614 = vrot.slane %v8958, 5
    %v10615 = vsel %vm4420, %v10613, %v10614
    %v10616 = vrot.slane %v10614, 4
    %v10617 = vrot.slane %v8959, 5
    %v10618 = vsel %vm4420, %v10616, %v10617
    %v10619 = vrot.slane %v10317, 5
    %v10620 = vrot.slane %v10619, 4
    %v10621 = vrot.slane %v8961, 5
    %v10622 = vsel %vm4420, %v10620, %v10621
    %v10623 = vrot.slane %v10621, 4
    %v10624 = vrot.slane %v8962, 5
    %v10625 = vsel %vm4420, %v10623, %v10624
    %v10626 = vrot.slane %v10318, 5
    %v10627 = vrot.slane %v10626, 4
    %v10628 = vrot.slane %v8964, 5
    %v10629 = vsel %vm4420, %v10627, %v10628
    %v10630 = vrot.slane %v10628, 4
    %v10631 = vrot.slane %v8965, 5
    %v10632 = vsel %vm4420, %v10630, %v10631
    %v10633 = vrot.slane %v10319, 5
    %v10634 = vrot.slane %v10633, 4
    %v10635 = vrot.slane %v8967, 5
    %v10636 = vsel %vm4420, %v10634, %v10635
    %v10637 = vrot.slane %v10635, 4
    %v10638 = vrot.slane %v8968, 5
    %v10639 = vsel %vm4420, %v10637, %v10638
    %v10640 = vunpack.c.l.b16 %v10419
    %v10641 = vunpack.c.l.b16 %v10422
    %v10642 = vunpack.c.l.b16 %v10426
    %v10643 = vunpack.c.l.b16 %v10429
    %v10644 = vunpack.c.l.b16 %v10433
    %v10645 = vunpack.c.l.b16 %v10436
    %v10646 = vunpack.c.l.b16 %v10440
    %v10647 = vunpack.c.l.b16 %v10443
    %v10648 = vunpack.c.l.b16 %v10447
    %v10649 = vunpack.c.l.b16 %v10450
    %v10650 = vunpack.c.l.b16 %v10454
    %v10651 = vunpack.c.l.b16 %v10457
    %v10652 = vunpack.c.l.b16 %v10461
    %v10653 = vunpack.c.l.b16 %v10464
    %v10654 = vunpack.c.l.b16 %v10468
    %v10655 = vunpack.c.l.b16 %v10471
    %v10656 = vunpack.c.l.b16 %v10475
    %v10657 = vunpack.c.l.b16 %v10478
    %v10658 = vunpack.c.l.b16 %v10482
    %v10659 = vunpack.c.l.b16 %v10485
    %v10660 = vunpack.c.l.b16 %v10489
    %v10661 = vunpack.c.l.b16 %v10492
    %v10662 = vunpack.c.l.b16 %v10496
    %v10663 = vunpack.c.l.b16 %v10499
    %v10664 = vunpack.c.l.b16 %v10503
    %v10665 = vunpack.c.l.b16 %v10506
    %v10666 = vunpack.c.l.b16 %v10510
    %v10667 = vunpack.c.l.b16 %v10513
    %v10668 = vunpack.c.l.b16 %v10517
    %v10669 = vunpack.c.l.b16 %v10520
    %v10670 = vunpack.c.l.b16 %v10524
    %v10671 = vunpack.c.l.b16 %v10527
    %v10672 = vunpack.c.l.b16 %v10531
    %v10673 = vunpack.c.l.b16 %v10534
    %v10674 = vunpack.c.l.b16 %v10538
    %v10675 = vunpack.c.l.b16 %v10541
    %v10676 = vunpack.c.l.b16 %v10545
    %v10677 = vunpack.c.l.b16 %v10548
    %v10678 = vunpack.c.l.b16 %v10552
    %v10679 = vunpack.c.l.b16 %v10555
    %v10680 = vunpack.c.l.b16 %v10559
    %v10681 = vunpack.c.l.b16 %v10562
    %v10682 = vunpack.c.l.b16 %v10566
    %v10683 = vunpack.c.l.b16 %v10569
    %v10684 = vunpack.c.l.b16 %v10573
    %v10685 = vunpack.c.l.b16 %v10576
    %v10686 = vunpack.c.l.b16 %v10580
    %v10687 = vunpack.c.l.b16 %v10583
    %v10688 = vunpack.c.l.b16 %v10587
    %v10689 = vunpack.c.l.b16 %v10590
    %v10690 = vunpack.c.l.b16 %v10594
    %v10691 = vunpack.c.l.b16 %v10597
    %v10692 = vunpack.c.l.b16 %v10601
    %v10693 = vunpack.c.l.b16 %v10604
    %v10694 = vunpack.c.l.b16 %v10608
    %v10695 = vunpack.c.l.b16 %v10611
    %v10696 = vunpack.c.l.b16 %v10615
    %v10697 = vunpack.c.l.b16 %v10618
    %v10698 = vunpack.c.l.b16 %v10622
    %v10699 = vunpack.c.l.b16 %v10625
    %v10700 = vunpack.c.l.b16 %v10629
    %v10701 = vunpack.c.l.b16 %v10632
    %v10702 = vunpack.c.l.b16 %v10636
    %v10703 = vunpack.c.l.b16 %v10639
    %v10704 = vpack.c.b16 %v10641, %v10640
    %v10705 = vpack.c.b16 %v10643, %v10642
    %v10706 = vpack.c.b16 %v10645, %v10644
    %v10707 = vpack.c.b16 %v10647, %v10646
    %v10708 = vpack.c.b16 %v10649, %v10648
    %v10709 = vpack.c.b16 %v10651, %v10650
    %v10710 = vpack.c.b16 %v10653, %v10652
    %v10711 = vpack.c.b16 %v10655, %v10654
    %v10712 = vpack.c.b16 %v10657, %v10656
    %v10713 = vpack.c.b16 %v10659, %v10658
    %v10714 = vpack.c.b16 %v10661, %v10660
    %v10715 = vpack.c.b16 %v10663, %v10662
    %v10716 = vpack.c.b16 %v10665, %v10664
    %v10717 = vpack.c.b16 %v10667, %v10666
    %v10718 = vpack.c.b16 %v10669, %v10668
    %v10719 = vpack.c.b16 %v10671, %v10670
    %v10720 = vpack.c.b16 %v10673, %v10672
    %v10721 = vpack.c.b16 %v10675, %v10674
    %v10722 = vpack.c.b16 %v10677, %v10676
    %v10723 = vpack.c.b16 %v10679, %v10678
    %v10724 = vpack.c.b16 %v10681, %v10680
    %v10725 = vpack.c.b16 %v10683, %v10682
    %v10726 = vpack.c.b16 %v10685, %v10684
    %v10727 = vpack.c.b16 %v10687, %v10686
    %v10728 = vpack.c.b16 %v10689, %v10688
    %v10729 = vpack.c.b16 %v10691, %v10690
    %v10730 = vpack.c.b16 %v10693, %v10692
    %v10731 = vpack.c.b16 %v10695, %v10694
    %v10732 = vpack.c.b16 %v10697, %v10696
    %v10733 = vpack.c.b16 %v10699, %v10698
    %v10734 = vpack.c.b16 %v10701, %v10700
    %v10735 = vpack.c.b16 %v10703, %v10702
    %v10738 = vunpack.c.l.b16 %v2415
    %v10739 = vunpack.c.l.b16 %v2416
    %v10740 = vpack.c.b16 %v10739, %v10738
    %v10743 = vsel %vm581, %v10704, 0
    %v10746 = vsel %vm581, %v10705, 0
    %v10749 = vsel %vm581, %v10706, 0
    %v10752 = vsel %vm581, %v10707, 0
    %v10755 = vsel %vm581, %v10708, 0
    %v10758 = vsel %vm581, %v10709, 0
    %v10761 = vsel %vm581, %v10710, 0
    %v10764 = vsel %vm581, %v10711, 0
    %v10767 = vsel %vm581, %v10712, 0
    %v10770 = vsel %vm581, %v10713, 0
    %v10773 = vsel %vm581, %v10714, 0
    %v10776 = vsel %vm581, %v10715, 0
    %v10779 = vsel %vm581, %v10716, 0
    %v10782 = vsel %vm581, %v10717, 0
    %v10785 = vsel %vm581, %v10718, 0
    %v10788 = vsel %vm581, %v10719, 0
    %v10791 = vsel %vm581, %v10720, 0
    %v10794 = vsel %vm581, %v10721, 0
    %v10797 = vsel %vm581, %v10722, 0
    %v10800 = vsel %vm581, %v10723, 0
    %v10803 = vsel %vm581, %v10724, 0
    %v10806 = vsel %vm581, %v10725, 0
    %v10809 = vsel %vm581, %v10726, 0
    %v10812 = vsel %vm581, %v10727, 0
    %v10815 = vsel %vm581, %v10728, 0
    %v10818 = vsel %vm581, %v10729, 0
    %v10821 = vsel %vm581, %v10730, 0
    %v10824 = vsel %vm581, %v10731, 0
    %v10827 = vsel %vm581, %v10732, 0
    %v10830 = vsel %vm581, %v10733, 0
    %v10833 = vsel %vm581, %v10734, 0
    %v10836 = vsel %vm581, %v10735, 0
    %10838 = vmatprep.subr.bf16.mxu0 0
    %10839 = vmatpush1.bf16.msra.mxu0 0
    %10840 = vmatprep.subr.bf16.mxu0 0
    %10841 = vmatpush1.bf16.msra.mxu0 0
    %10842 = vmatprep.subr.bf16.mxu0 0
    %10843 = vmatpush1.bf16.msra.mxu0 0
    %10844 = vmatprep.subr.bf16.mxu0 0
    %10845 = vmatpush1.bf16.msra.mxu0 0
    %10846 = vmatprep.subr.bf16.mxu0 0
    %10847 = vmatpush1.bf16.msra.mxu0 0
    %10848 = vmatprep.subr.bf16.mxu0 0
    %10849 = vmatpush1.bf16.msra.mxu0 0
    %10850 = vmatprep.subr.bf16.mxu0 0
    %10851 = vmatpush1.bf16.msra.mxu0 0
    %10852 = vmatprep.subr.bf16.mxu0 0
    %10853 = vmatpush1.bf16.msra.mxu0 %v10740
    %10854 = vmatprep.subr.bf16.mxu0 0
    %10855 = vmatpush2.bf16.msra.mxu0 0
    %10856 = vmatprep.subr.bf16.mxu0 0
    %10857 = vmatpush2.bf16.msra.mxu0 0
    %10858 = vmatprep.subr.bf16.mxu0 0
    %10859 = vmatpush2.bf16.msra.mxu0 0
    %10860 = vmatprep.subr.bf16.mxu0 0
    %10861 = vmatpush2.bf16.msra.mxu0 0
    %10862 = vmatprep.subr.bf16.mxu0 0
    %10863 = vmatpush2.bf16.msra.mxu0 0
    %10864 = vmatprep.subr.bf16.mxu0 0
    %10865 = vmatpush2.bf16.msra.mxu0 0
    %10866 = vmatprep.subr.bf16.mxu0 0
    %10867 = vmatpush2.bf16.msra.mxu0 0
    %10868 = vmatprep.subr.bf16.mxu0 0
    %10869 = vmatpush2.bf16.msra.mxu0 0
    %10870 = vmatprep.mubr.bf16.mxu0 0
    %10871 = vmatmul.mubr.bf16.gmra.mxu0 %v10743
    %v10872 = vpop.f32.mrf.mxu0
    %v10873 = vadd.f32 0.0, %v10872
    %v10874 = vpop.f32.mrf.mxu0
    %v10875 = vpop.f32.mrf.mxu0
    %v10876 = vadd.f32 0.0, %v10875
    %v10877 = vpop.f32.mrf.mxu0
    %10878 = vmatprep.mubr.bf16.mxu0 0
    %10879 = vmatmul.mubr.bf16.gmra.mxu0 %v10746
    %v10880 = vpop.f32.mrf.mxu0
    %v10881 = vadd.f32 0.0, %v10880
    %v10882 = vpop.f32.mrf.mxu0
    %v10883 = vpop.f32.mrf.mxu0
    %v10884 = vadd.f32 0.0, %v10883
    %v10885 = vpop.f32.mrf.mxu0
    %10886 = vmatprep.mubr.bf16.mxu0 0
    %10887 = vmatmul.mubr.bf16.gmra.mxu0 %v10749
    %v10888 = vpop.f32.mrf.mxu0
    %v10889 = vadd.f32 0.0, %v10888
    %v10890 = vpop.f32.mrf.mxu0
    %v10891 = vpop.f32.mrf.mxu0
    %v10892 = vadd.f32 0.0, %v10891
    %v10893 = vpop.f32.mrf.mxu0
    %10894 = vmatprep.mubr.bf16.mxu0 0
    %10895 = vmatmul.mubr.bf16.gmra.mxu0 %v10752
    %v10896 = vpop.f32.mrf.mxu0
    %v10897 = vadd.f32 0.0, %v10896
    %v10898 = vpop.f32.mrf.mxu0
    %v10899 = vpop.f32.mrf.mxu0
    %v10900 = vadd.f32 0.0, %v10899
    %v10901 = vpop.f32.mrf.mxu0
    %10902 = vmatprep.mubr.bf16.mxu0 0
    %10903 = vmatmul.mubr.bf16.gmra.mxu0 %v10755
    %v10904 = vpop.f32.mrf.mxu0
    %v10905 = vadd.f32 0.0, %v10904
    %v10906 = vpop.f32.mrf.mxu0
    %v10907 = vpop.f32.mrf.mxu0
    %v10908 = vadd.f32 0.0, %v10907
    %v10909 = vpop.f32.mrf.mxu0
    %10910 = vmatprep.mubr.bf16.mxu0 0
    %10911 = vmatmul.mubr.bf16.gmra.mxu0 %v10758
    %v10912 = vpop.f32.mrf.mxu0
    %v10913 = vadd.f32 0.0, %v10912
    %v10914 = vpop.f32.mrf.mxu0
    %v10915 = vpop.f32.mrf.mxu0
    %v10916 = vadd.f32 0.0, %v10915
    %v10917 = vpop.f32.mrf.mxu0
    %10918 = vmatprep.mubr.bf16.mxu0 0
    %10919 = vmatmul.mubr.bf16.gmra.mxu0 %v10761
    %v10920 = vpop.f32.mrf.mxu0
    %v10921 = vadd.f32 0.0, %v10920
    %v10922 = vpop.f32.mrf.mxu0
    %v10923 = vpop.f32.mrf.mxu0
    %v10924 = vadd.f32 0.0, %v10923
    %v10925 = vpop.f32.mrf.mxu0
    %10926 = vmatprep.mubr.bf16.mxu0 0
    %10927 = vmatmul.mubr.bf16.gmra.mxu0 %v10764
    %v10928 = vpop.f32.mrf.mxu0
    %v10929 = vadd.f32 0.0, %v10928
    %v10930 = vpop.f32.mrf.mxu0
    %v10931 = vpop.f32.mrf.mxu0
    %v10932 = vadd.f32 0.0, %v10931
    %v10933 = vpop.f32.mrf.mxu0
    %10934 = vmatprep.mubr.bf16.mxu0 0
    %10935 = vmatmul.mubr.bf16.gmra.mxu0 %v10767
    %v10936 = vpop.f32.mrf.mxu0
    %v10937 = vadd.f32 0.0, %v10936
    %v10938 = vpop.f32.mrf.mxu0
    %v10939 = vpop.f32.mrf.mxu0
    %v10940 = vadd.f32 0.0, %v10939
    %v10941 = vpop.f32.mrf.mxu0
    %10942 = vmatprep.mubr.bf16.mxu0 0
    %10943 = vmatmul.mubr.bf16.gmra.mxu0 %v10770
    %v10944 = vpop.f32.mrf.mxu0
    %v10945 = vadd.f32 0.0, %v10944
    %v10946 = vpop.f32.mrf.mxu0
    %v10947 = vpop.f32.mrf.mxu0
    %v10948 = vadd.f32 0.0, %v10947
    %v10949 = vpop.f32.mrf.mxu0
    %10950 = vmatprep.mubr.bf16.mxu0 0
    %10951 = vmatmul.mubr.bf16.gmra.mxu0 %v10773
    %v10952 = vpop.f32.mrf.mxu0
    %v10953 = vadd.f32 0.0, %v10952
    %v10954 = vpop.f32.mrf.mxu0
    %v10955 = vpop.f32.mrf.mxu0
    %v10956 = vadd.f32 0.0, %v10955
    %v10957 = vpop.f32.mrf.mxu0
    %10958 = vmatprep.mubr.bf16.mxu0 0
    %10959 = vmatmul.mubr.bf16.gmra.mxu0 %v10776
    %v10960 = vpop.f32.mrf.mxu0
    %v10961 = vadd.f32 0.0, %v10960
    %v10962 = vpop.f32.mrf.mxu0
    %v10963 = vpop.f32.mrf.mxu0
    %v10964 = vadd.f32 0.0, %v10963
    %v10965 = vpop.f32.mrf.mxu0
    %10966 = vmatprep.mubr.bf16.mxu0 0
    %10967 = vmatmul.mubr.bf16.gmra.mxu0 %v10779
    %v10968 = vpop.f32.mrf.mxu0
    %v10969 = vadd.f32 0.0, %v10968
    %v10970 = vpop.f32.mrf.mxu0
    %v10971 = vpop.f32.mrf.mxu0
    %v10972 = vadd.f32 0.0, %v10971
    %v10973 = vpop.f32.mrf.mxu0
    %10974 = vmatprep.mubr.bf16.mxu0 0
    %10975 = vmatmul.mubr.bf16.gmra.mxu0 %v10782
    %v10976 = vpop.f32.mrf.mxu0
    %v10977 = vadd.f32 0.0, %v10976
    %v10978 = vpop.f32.mrf.mxu0
    %v10979 = vpop.f32.mrf.mxu0
    %v10980 = vadd.f32 0.0, %v10979
    %v10981 = vpop.f32.mrf.mxu0
    %10982 = vmatprep.mubr.bf16.mxu0 0
    %10983 = vmatmul.mubr.bf16.gmra.mxu0 %v10785
    %v10984 = vpop.f32.mrf.mxu0
    %v10985 = vadd.f32 0.0, %v10984
    %v10986 = vpop.f32.mrf.mxu0
    %v10987 = vpop.f32.mrf.mxu0
    %v10988 = vadd.f32 0.0, %v10987
    %v10989 = vpop.f32.mrf.mxu0
    %10990 = vmatprep.mubr.bf16.mxu0 0
    %10991 = vmatmul.mubr.bf16.gmra.mxu0 %v10788
    %v10992 = vpop.f32.mrf.mxu0
    %v10993 = vadd.f32 0.0, %v10992
    %v10994 = vpop.f32.mrf.mxu0
    %v10995 = vpop.f32.mrf.mxu0
    %v10996 = vadd.f32 0.0, %v10995
    %v10997 = vpop.f32.mrf.mxu0
    %10998 = vmatprep.mubr.bf16.mxu0 0
    %10999 = vmatmul.mubr.bf16.gmra.mxu0 %v10791
    %v11000 = vpop.f32.mrf.mxu0
    %v11001 = vadd.f32 0.0, %v11000
    %v11002 = vpop.f32.mrf.mxu0
    %v11003 = vpop.f32.mrf.mxu0
    %v11004 = vadd.f32 0.0, %v11003
    %v11005 = vpop.f32.mrf.mxu0
    %11006 = vmatprep.mubr.bf16.mxu0 0
    %11007 = vmatmul.mubr.bf16.gmra.mxu0 %v10794
    %v11008 = vpop.f32.mrf.mxu0
    %v11009 = vadd.f32 0.0, %v11008
    %v11010 = vpop.f32.mrf.mxu0
    %v11011 = vpop.f32.mrf.mxu0
    %v11012 = vadd.f32 0.0, %v11011
    %v11013 = vpop.f32.mrf.mxu0
    %11014 = vmatprep.mubr.bf16.mxu0 0
    %11015 = vmatmul.mubr.bf16.gmra.mxu0 %v10797
    %v11016 = vpop.f32.mrf.mxu0
    %v11017 = vadd.f32 0.0, %v11016
    %v11018 = vpop.f32.mrf.mxu0
    %v11019 = vpop.f32.mrf.mxu0
    %v11020 = vadd.f32 0.0, %v11019
    %v11021 = vpop.f32.mrf.mxu0
    %11022 = vmatprep.mubr.bf16.mxu0 0
    %11023 = vmatmul.mubr.bf16.gmra.mxu0 %v10800
    %v11024 = vpop.f32.mrf.mxu0
    %v11025 = vadd.f32 0.0, %v11024
    %v11026 = vpop.f32.mrf.mxu0
    %v11027 = vpop.f32.mrf.mxu0
    %v11028 = vadd.f32 0.0, %v11027
    %v11029 = vpop.f32.mrf.mxu0
    %11030 = vmatprep.mubr.bf16.mxu0 0
    %11031 = vmatmul.mubr.bf16.gmra.mxu0 %v10803
    %v11032 = vpop.f32.mrf.mxu0
    %v11033 = vadd.f32 0.0, %v11032
    %v11034 = vpop.f32.mrf.mxu0
    %v11035 = vpop.f32.mrf.mxu0
    %v11036 = vadd.f32 0.0, %v11035
    %v11037 = vpop.f32.mrf.mxu0
    %11038 = vmatprep.mubr.bf16.mxu0 0
    %11039 = vmatmul.mubr.bf16.gmra.mxu0 %v10806
    %v11040 = vpop.f32.mrf.mxu0
    %v11041 = vadd.f32 0.0, %v11040
    %v11042 = vpop.f32.mrf.mxu0
    %v11043 = vpop.f32.mrf.mxu0
    %v11044 = vadd.f32 0.0, %v11043
    %v11045 = vpop.f32.mrf.mxu0
    %11046 = vmatprep.mubr.bf16.mxu0 0
    %11047 = vmatmul.mubr.bf16.gmra.mxu0 %v10809
    %v11048 = vpop.f32.mrf.mxu0
    %v11049 = vadd.f32 0.0, %v11048
    %v11050 = vpop.f32.mrf.mxu0
    %v11051 = vpop.f32.mrf.mxu0
    %v11052 = vadd.f32 0.0, %v11051
    %v11053 = vpop.f32.mrf.mxu0
    %11054 = vmatprep.mubr.bf16.mxu0 0
    %11055 = vmatmul.mubr.bf16.gmra.mxu0 %v10812
    %v11056 = vpop.f32.mrf.mxu0
    %v11057 = vadd.f32 0.0, %v11056
    %v11058 = vpop.f32.mrf.mxu0
    %v11059 = vpop.f32.mrf.mxu0
    %v11060 = vadd.f32 0.0, %v11059
    %v11061 = vpop.f32.mrf.mxu0
    %11062 = vmatprep.mubr.bf16.mxu0 0
    %11063 = vmatmul.mubr.bf16.gmra.mxu0 %v10815
    %v11064 = vpop.f32.mrf.mxu0
    %v11065 = vadd.f32 0.0, %v11064
    %v11066 = vpop.f32.mrf.mxu0
    %v11067 = vpop.f32.mrf.mxu0
    %v11068 = vadd.f32 0.0, %v11067
    %v11069 = vpop.f32.mrf.mxu0
    %11070 = vmatprep.mubr.bf16.mxu0 0
    %11071 = vmatmul.mubr.bf16.gmra.mxu0 %v10818
    %v11072 = vpop.f32.mrf.mxu0
    %v11073 = vadd.f32 0.0, %v11072
    %v11074 = vpop.f32.mrf.mxu0
    %v11075 = vpop.f32.mrf.mxu0
    %v11076 = vadd.f32 0.0, %v11075
    %v11077 = vpop.f32.mrf.mxu0
    %11078 = vmatprep.mubr.bf16.mxu0 0
    %11079 = vmatmul.mubr.bf16.gmra.mxu0 %v10821
    %v11080 = vpop.f32.mrf.mxu0
    %v11081 = vadd.f32 0.0, %v11080
    %v11082 = vpop.f32.mrf.mxu0
    %v11083 = vpop.f32.mrf.mxu0
    %v11084 = vadd.f32 0.0, %v11083
    %v11085 = vpop.f32.mrf.mxu0
    %11086 = vmatprep.mubr.bf16.mxu0 0
    %11087 = vmatmul.mubr.bf16.gmra.mxu0 %v10824
    %v11088 = vpop.f32.mrf.mxu0
    %v11089 = vadd.f32 0.0, %v11088
    %v11090 = vpop.f32.mrf.mxu0
    %v11091 = vpop.f32.mrf.mxu0
    %v11092 = vadd.f32 0.0, %v11091
    %v11093 = vpop.f32.mrf.mxu0
    %11094 = vmatprep.mubr.bf16.mxu0 0
    %11095 = vmatmul.mubr.bf16.gmra.mxu0 %v10827
    %v11096 = vpop.f32.mrf.mxu0
    %v11097 = vadd.f32 0.0, %v11096
    %v11098 = vpop.f32.mrf.mxu0
    %v11099 = vpop.f32.mrf.mxu0
    %v11100 = vadd.f32 0.0, %v11099
    %v11101 = vpop.f32.mrf.mxu0
    %11102 = vmatprep.mubr.bf16.mxu0 0
    %11103 = vmatmul.mubr.bf16.gmra.mxu0 %v10830
    %v11104 = vpop.f32.mrf.mxu0
    %v11105 = vadd.f32 0.0, %v11104
    %v11106 = vpop.f32.mrf.mxu0
    %v11107 = vpop.f32.mrf.mxu0
    %v11108 = vadd.f32 0.0, %v11107
    %v11109 = vpop.f32.mrf.mxu0
    %11110 = vmatprep.mubr.bf16.mxu0 0
    %11111 = vmatmul.mubr.bf16.gmra.mxu0 %v10833
    %v11112 = vpop.f32.mrf.mxu0
    %v11113 = vadd.f32 0.0, %v11112
    %v11114 = vpop.f32.mrf.mxu0
    %v11115 = vpop.f32.mrf.mxu0
    %v11116 = vadd.f32 0.0, %v11115
    %v11117 = vpop.f32.mrf.mxu0
    %11118 = vmatprep.mubr.bf16.mxu0 0
    %11119 = vmatmul.mubr.bf16.gmra.mxu0 %v10836
    %v11120 = vpop.f32.mrf.mxu0
    %v11121 = vadd.f32 0.0, %v11120
    %v11122 = vpop.f32.mrf.mxu0
    %v11123 = vpop.f32.mrf.mxu0
    %v11124 = vadd.f32 0.0, %v11123
    %v11125 = vpop.f32.mrf.mxu0
    %11126 = vdwg.mxu0
    %v11127 = vadd.f32 %v10224, %v10873
    %v11128 = vadd.f32 %v10225, %v10876
    %v11129 = vadd.f32 %v10226, %v10881
    %v11130 = vadd.f32 %v10227, %v10884
    %v11131 = vadd.f32 %v10228, %v10889
    %v11132 = vadd.f32 %v10229, %v10892
    %v11133 = vadd.f32 %v10230, %v10897
    %v11134 = vadd.f32 %v10231, %v10900
    %v11135 = vadd.f32 %v10232, %v10905
    %v11136 = vadd.f32 %v10233, %v10908
    %v11137 = vadd.f32 %v10234, %v10913
    %v11138 = vadd.f32 %v10235, %v10916
    %v11139 = vadd.f32 %v10236, %v10921
    %v11140 = vadd.f32 %v10237, %v10924
    %v11141 = vadd.f32 %v10238, %v10929
    %v11142 = vadd.f32 %v10239, %v10932
    %v11143 = vadd.f32 %v10240, %v10937
    %v11144 = vadd.f32 %v10241, %v10940
    %v11145 = vadd.f32 %v10242, %v10945
    %v11146 = vadd.f32 %v10243, %v10948
    %v11147 = vadd.f32 %v10244, %v10953
    %v11148 = vadd.f32 %v10245, %v10956
    %v11149 = vadd.f32 %v10246, %v10961
    %v11150 = vadd.f32 %v10247, %v10964
    %v11151 = vadd.f32 %v10248, %v10969
    %v11152 = vadd.f32 %v10249, %v10972
    %v11153 = vadd.f32 %v10250, %v10977
    %v11154 = vadd.f32 %v10251, %v10980
    %v11155 = vadd.f32 %v10252, %v10985
    %v11156 = vadd.f32 %v10253, %v10988
    %v11157 = vadd.f32 %v10254, %v10993
    %v11158 = vadd.f32 %v10255, %v10996
    %v11159 = vadd.f32 %v10256, %v11001
    %v11160 = vadd.f32 %v10257, %v11004
    %v11161 = vadd.f32 %v10258, %v11009
    %v11162 = vadd.f32 %v10259, %v11012
    %v11163 = vadd.f32 %v10260, %v11017
    %v11164 = vadd.f32 %v10261, %v11020
    %v11165 = vadd.f32 %v10262, %v11025
    %v11166 = vadd.f32 %v10263, %v11028
    %v11167 = vadd.f32 %v10264, %v11033
    %v11168 = vadd.f32 %v10265, %v11036
    %v11169 = vadd.f32 %v10266, %v11041
    %v11170 = vadd.f32 %v10267, %v11044
    %v11171 = vadd.f32 %v10268, %v11049
    %v11172 = vadd.f32 %v10269, %v11052
    %v11173 = vadd.f32 %v10270, %v11057
    %v11174 = vadd.f32 %v10271, %v11060
    %v11175 = vadd.f32 %v10272, %v11065
    %v11176 = vadd.f32 %v10273, %v11068
    %v11177 = vadd.f32 %v10274, %v11073
    %v11178 = vadd.f32 %v10275, %v11076
    %v11179 = vadd.f32 %v10276, %v11081
    %v11180 = vadd.f32 %v10277, %v11084
    %v11181 = vadd.f32 %v10278, %v11089
    %v11182 = vadd.f32 %v10279, %v11092
    %v11183 = vadd.f32 %v10280, %v11097
    %v11184 = vadd.f32 %v10281, %v11100
    %v11185 = vadd.f32 %v10282, %v11105
    %v11186 = vadd.f32 %v10283, %v11108
    %v11187 = vadd.f32 %v10284, %v11113
    %v11188 = vadd.f32 %v10285, %v11116
    %v11189 = vadd.f32 %v10286, %v11121
    %v11190 = vadd.f32 %v10287, %v11124
    %v11191 = vld [vmem:[%s6] sm:$0x1]
    %v11192 = vld [vmem:[%s7] sm:$0x1]
    %v11193 = vsel %vm581, %v11127, 0.0
    %v11194 = vsel %vm581, %v11128, 0.0
    %v11195 = vadd.f32 %v11193, %v11194
    %v11196 = vsel %vm581, %v11129, 0.0
    %v11197 = vadd.f32 %v11195, %v11196
    %v11198 = vsel %vm581, %v11130, 0.0
    %v11199 = vadd.f32 %v11197, %v11198
    %v11200 = vsel %vm581, %v11131, 0.0
    %v11201 = vadd.f32 %v11199, %v11200
    %v11202 = vsel %vm581, %v11132, 0.0
    %v11203 = vadd.f32 %v11201, %v11202
    %v11204 = vsel %vm581, %v11133, 0.0
    %v11205 = vadd.f32 %v11203, %v11204
    %v11206 = vsel %vm581, %v11134, 0.0
    %v11207 = vadd.f32 %v11205, %v11206
    %v11208 = vsel %vm581, %v11135, 0.0
    %v11209 = vadd.f32 %v11207, %v11208
    %v11210 = vsel %vm581, %v11136, 0.0
    %v11211 = vadd.f32 %v11209, %v11210
    %v11212 = vsel %vm581, %v11137, 0.0
    %v11213 = vadd.f32 %v11211, %v11212
    %v11214 = vsel %vm581, %v11138, 0.0
    %v11215 = vadd.f32 %v11213, %v11214
    %v11216 = vsel %vm581, %v11139, 0.0
    %v11217 = vadd.f32 %v11215, %v11216
    %v11218 = vsel %vm581, %v11140, 0.0
    %v11219 = vadd.f32 %v11217, %v11218
    %v11220 = vsel %vm581, %v11141, 0.0
    %v11221 = vadd.f32 %v11219, %v11220
    %v11222 = vsel %vm581, %v11142, 0.0
    %v11223 = vadd.f32 %v11221, %v11222
    %v11224 = vsel %vm581, %v11143, 0.0
    %v11225 = vadd.f32 %v11223, %v11224
    %v11226 = vsel %vm581, %v11144, 0.0
    %v11227 = vadd.f32 %v11225, %v11226
    %v11228 = vsel %vm581, %v11145, 0.0
    %v11229 = vadd.f32 %v11227, %v11228
    %v11230 = vsel %vm581, %v11146, 0.0
    %v11231 = vadd.f32 %v11229, %v11230
    %v11232 = vsel %vm581, %v11147, 0.0
    %v11233 = vadd.f32 %v11231, %v11232
    %v11234 = vsel %vm581, %v11148, 0.0
    %v11235 = vadd.f32 %v11233, %v11234
    %v11236 = vsel %vm581, %v11149, 0.0
    %v11237 = vadd.f32 %v11235, %v11236
    %v11238 = vsel %vm581, %v11150, 0.0
    %v11239 = vadd.f32 %v11237, %v11238
    %v11240 = vsel %vm581, %v11151, 0.0
    %v11241 = vadd.f32 %v11239, %v11240
    %v11242 = vsel %vm581, %v11152, 0.0
    %v11243 = vadd.f32 %v11241, %v11242
    %v11244 = vsel %vm581, %v11153, 0.0
    %v11245 = vadd.f32 %v11243, %v11244
    %v11246 = vsel %vm581, %v11154, 0.0
    %v11247 = vadd.f32 %v11245, %v11246
    %v11248 = vsel %vm581, %v11155, 0.0
    %v11249 = vadd.f32 %v11247, %v11248
    %v11250 = vsel %vm581, %v11156, 0.0
    %v11251 = vadd.f32 %v11249, %v11250
    %v11252 = vsel %vm581, %v11157, 0.0
    %v11253 = vadd.f32 %v11251, %v11252
    %v11254 = vsel %vm581, %v11158, 0.0
    %v11255 = vadd.f32 %v11253, %v11254
    %v11256 = vsel %vm581, %v11159, 0.0
    %v11257 = vadd.f32 %v11255, %v11256
    %v11258 = vsel %vm581, %v11160, 0.0
    %v11259 = vadd.f32 %v11257, %v11258
    %v11260 = vsel %vm581, %v11161, 0.0
    %v11261 = vadd.f32 %v11259, %v11260
    %v11262 = vsel %vm581, %v11162, 0.0
    %v11263 = vadd.f32 %v11261, %v11262
    %v11264 = vsel %vm581, %v11163, 0.0
    %v11265 = vadd.f32 %v11263, %v11264
    %v11266 = vsel %vm581, %v11164, 0.0
    %v11267 = vadd.f32 %v11265, %v11266
    %v11268 = vsel %vm581, %v11165, 0.0
    %v11269 = vadd.f32 %v11267, %v11268
    %v11270 = vsel %vm581, %v11166, 0.0
    %v11271 = vadd.f32 %v11269, %v11270
    %v11272 = vsel %vm581, %v11167, 0.0
    %v11273 = vadd.f32 %v11271, %v11272
    %v11274 = vsel %vm581, %v11168, 0.0
    %v11275 = vadd.f32 %v11273, %v11274
    %v11276 = vsel %vm581, %v11169, 0.0
    %v11277 = vadd.f32 %v11275, %v11276
    %v11278 = vsel %vm581, %v11170, 0.0
    %v11279 = vadd.f32 %v11277, %v11278
    %v11280 = vsel %vm581, %v11171, 0.0
    %v11281 = vadd.f32 %v11279, %v11280
    %v11282 = vsel %vm581, %v11172, 0.0
    %v11283 = vadd.f32 %v11281, %v11282
    %v11284 = vsel %vm581, %v11173, 0.0
    %v11285 = vadd.f32 %v11283, %v11284
    %v11286 = vsel %vm581, %v11174, 0.0
    %v11287 = vadd.f32 %v11285, %v11286
    %v11288 = vsel %vm581, %v11175, 0.0
    %v11289 = vadd.f32 %v11287, %v11288
    %v11290 = vsel %vm581, %v11176, 0.0
    %v11291 = vadd.f32 %v11289, %v11290
    %v11292 = vsel %vm581, %v11177, 0.0
    %v11293 = vadd.f32 %v11291, %v11292
    %v11294 = vsel %vm581, %v11178, 0.0
    %v11295 = vadd.f32 %v11293, %v11294
    %v11296 = vsel %vm581, %v11179, 0.0
    %v11297 = vadd.f32 %v11295, %v11296
    %v11298 = vsel %vm581, %v11180, 0.0
    %v11299 = vadd.f32 %v11297, %v11298
    %v11300 = vsel %vm581, %v11181, 0.0
    %v11301 = vadd.f32 %v11299, %v11300
    %v11302 = vsel %vm581, %v11182, 0.0
    %v11303 = vadd.f32 %v11301, %v11302
    %v11304 = vsel %vm581, %v11183, 0.0
    %v11305 = vadd.f32 %v11303, %v11304
    %v11306 = vsel %vm581, %v11184, 0.0
    %v11307 = vadd.f32 %v11305, %v11306
    %v11308 = vsel %vm581, %v11185, 0.0
    %v11309 = vadd.f32 %v11307, %v11308
    %v11310 = vsel %vm581, %v11186, 0.0
    %v11311 = vadd.f32 %v11309, %v11310
    %v11312 = vsel %vm581, %v11187, 0.0
    %v11313 = vadd.f32 %v11311, %v11312
    %v11314 = vsel %vm581, %v11188, 0.0
    %v11315 = vadd.f32 %v11313, %v11314
    %v11316 = vsel %vm581, %v11189, 0.0
    %v11317 = vadd.f32 %v11315, %v11316
    %v11318 = vsel %vm581, %v11190, 0.0
    %v11319 = vadd.f32 %v11317, %v11318
    %v11320 = vrot.slane %v11319, 4
    %v11321 = vadd.f32 %v11319, %v11320
    %v11322 = vrot.slane %v11321, 2
    %v11323 = vadd.f32 %v11321, %v11322
    %v11324 = vrot.slane %v11323, 1
    %v11325 = vadd.f32 %v11323, %v11324
    %v11326 = vmul.f32 %v11127, %v11127
    %v11327 = vmul.f32 %v11128, %v11128
    %v11328 = vmul.f32 %v11129, %v11129
    %v11329 = vmul.f32 %v11130, %v11130
    %v11330 = vmul.f32 %v11131, %v11131
    %v11331 = vmul.f32 %v11132, %v11132
    %v11332 = vmul.f32 %v11133, %v11133
    %v11333 = vmul.f32 %v11134, %v11134
    %v11334 = vmul.f32 %v11135, %v11135
    %v11335 = vmul.f32 %v11136, %v11136
    %v11336 = vmul.f32 %v11137, %v11137
    %v11337 = vmul.f32 %v11138, %v11138
    %v11338 = vmul.f32 %v11139, %v11139
    %v11339 = vmul.f32 %v11140, %v11140
    %v11340 = vmul.f32 %v11141, %v11141
    %v11341 = vmul.f32 %v11142, %v11142
    %v11342 = vmul.f32 %v11143, %v11143
    %v11343 = vmul.f32 %v11144, %v11144
    %v11344 = vmul.f32 %v11145, %v11145
    %v11345 = vmul.f32 %v11146, %v11146
    %v11346 = vmul.f32 %v11147, %v11147
    %v11347 = vmul.f32 %v11148, %v11148
    %v11348 = vmul.f32 %v11149, %v11149
    %v11349 = vmul.f32 %v11150, %v11150
    %v11350 = vmul.f32 %v11151, %v11151
    %v11351 = vmul.f32 %v11152, %v11152
    %v11352 = vmul.f32 %v11153, %v11153
    %v11353 = vmul.f32 %v11154, %v11154
    %v11354 = vmul.f32 %v11155, %v11155
    %v11355 = vmul.f32 %v11156, %v11156
    %v11356 = vmul.f32 %v11157, %v11157
    %v11357 = vmul.f32 %v11158, %v11158
    %v11358 = vmul.f32 %v11159, %v11159
    %v11359 = vmul.f32 %v11160, %v11160
    %v11360 = vmul.f32 %v11161, %v11161
    %v11361 = vmul.f32 %v11162, %v11162
    %v11362 = vmul.f32 %v11163, %v11163
    %v11363 = vmul.f32 %v11164, %v11164
    %v11364 = vmul.f32 %v11165, %v11165
    %v11365 = vmul.f32 %v11166, %v11166
    %v11366 = vmul.f32 %v11167, %v11167
    %v11367 = vmul.f32 %v11168, %v11168
    %v11368 = vmul.f32 %v11169, %v11169
    %v11369 = vmul.f32 %v11170, %v11170
    %v11370 = vmul.f32 %v11171, %v11171
    %v11371 = vmul.f32 %v11172, %v11172
    %v11372 = vmul.f32 %v11173, %v11173
    %v11373 = vmul.f32 %v11174, %v11174
    %v11374 = vmul.f32 %v11175, %v11175
    %v11375 = vmul.f32 %v11176, %v11176
    %v11376 = vmul.f32 %v11177, %v11177
    %v11377 = vmul.f32 %v11178, %v11178
    %v11378 = vmul.f32 %v11179, %v11179
    %v11379 = vmul.f32 %v11180, %v11180
    %v11380 = vmul.f32 %v11181, %v11181
    %v11381 = vmul.f32 %v11182, %v11182
    %v11382 = vmul.f32 %v11183, %v11183
    %v11383 = vmul.f32 %v11184, %v11184
    %v11384 = vmul.f32 %v11185, %v11185
    %v11385 = vmul.f32 %v11186, %v11186
    %v11386 = vmul.f32 %v11187, %v11187
    %v11387 = vmul.f32 %v11188, %v11188
    %v11388 = vmul.f32 %v11189, %v11189
    %v11389 = vmul.f32 %v11190, %v11190
    %v11390 = vsel %vm581, %v11326, 0.0
    %v11391 = vsel %vm581, %v11327, 0.0
    %v11392 = vadd.f32 %v11390, %v11391
    %v11393 = vsel %vm581, %v11328, 0.0
    %v11394 = vadd.f32 %v11392, %v11393
    %v11395 = vsel %vm581, %v11329, 0.0
    %v11396 = vadd.f32 %v11394, %v11395
    %v11397 = vsel %vm581, %v11330, 0.0
    %v11398 = vadd.f32 %v11396, %v11397
    %v11399 = vsel %vm581, %v11331, 0.0
    %v11400 = vadd.f32 %v11398, %v11399
    %v11401 = vsel %vm581, %v11332, 0.0
    %v11402 = vadd.f32 %v11400, %v11401
    %v11403 = vsel %vm581, %v11333, 0.0
    %v11404 = vadd.f32 %v11402, %v11403
    %v11405 = vsel %vm581, %v11334, 0.0
    %v11406 = vadd.f32 %v11404, %v11405
    %v11407 = vsel %vm581, %v11335, 0.0
    %v11408 = vadd.f32 %v11406, %v11407
    %v11409 = vsel %vm581, %v11336, 0.0
    %v11410 = vadd.f32 %v11408, %v11409
    %v11411 = vsel %vm581, %v11337, 0.0
    %v11412 = vadd.f32 %v11410, %v11411
    %v11413 = vsel %vm581, %v11338, 0.0
    %v11414 = vadd.f32 %v11412, %v11413
    %v11415 = vsel %vm581, %v11339, 0.0
    %v11416 = vadd.f32 %v11414, %v11415
    %v11417 = vsel %vm581, %v11340, 0.0
    %v11418 = vadd.f32 %v11416, %v11417
    %v11419 = vsel %vm581, %v11341, 0.0
    %v11420 = vadd.f32 %v11418, %v11419
    %v11421 = vsel %vm581, %v11342, 0.0
    %v11422 = vadd.f32 %v11420, %v11421
    %v11423 = vsel %vm581, %v11343, 0.0
    %v11424 = vadd.f32 %v11422, %v11423
    %v11425 = vsel %vm581, %v11344, 0.0
    %v11426 = vadd.f32 %v11424, %v11425
    %v11427 = vsel %vm581, %v11345, 0.0
    %v11428 = vadd.f32 %v11426, %v11427
    %v11429 = vsel %vm581, %v11346, 0.0
    %v11430 = vadd.f32 %v11428, %v11429
    %v11431 = vsel %vm581, %v11347, 0.0
    %v11432 = vadd.f32 %v11430, %v11431
    %v11433 = vsel %vm581, %v11348, 0.0
    %v11434 = vadd.f32 %v11432, %v11433
    %v11435 = vsel %vm581, %v11349, 0.0
    %v11436 = vadd.f32 %v11434, %v11435
    %v11437 = vsel %vm581, %v11350, 0.0
    %v11438 = vadd.f32 %v11436, %v11437
    %v11439 = vsel %vm581, %v11351, 0.0
    %v11440 = vadd.f32 %v11438, %v11439
    %v11441 = vsel %vm581, %v11352, 0.0
    %v11442 = vadd.f32 %v11440, %v11441
    %v11443 = vsel %vm581, %v11353, 0.0
    %v11444 = vadd.f32 %v11442, %v11443
    %v11445 = vsel %vm581, %v11354, 0.0
    %v11446 = vadd.f32 %v11444, %v11445
    %v11447 = vsel %vm581, %v11355, 0.0
    %v11448 = vadd.f32 %v11446, %v11447
    %v11449 = vsel %vm581, %v11356, 0.0
    %v11450 = vadd.f32 %v11448, %v11449
    %v11451 = vsel %vm581, %v11357, 0.0
    %v11452 = vadd.f32 %v11450, %v11451
    %v11453 = vsel %vm581, %v11358, 0.0
    %v11454 = vadd.f32 %v11452, %v11453
    %v11455 = vsel %vm581, %v11359, 0.0
    %v11456 = vadd.f32 %v11454, %v11455
    %v11457 = vsel %vm581, %v11360, 0.0
    %v11458 = vadd.f32 %v11456, %v11457
    %v11459 = vsel %vm581, %v11361, 0.0
    %v11460 = vadd.f32 %v11458, %v11459
    %v11461 = vsel %vm581, %v11362, 0.0
    %v11462 = vadd.f32 %v11460, %v11461
    %v11463 = vsel %vm581, %v11363, 0.0
    %v11464 = vadd.f32 %v11462, %v11463
    %v11465 = vsel %vm581, %v11364, 0.0
    %v11466 = vadd.f32 %v11464, %v11465
    %v11467 = vsel %vm581, %v11365, 0.0
    %v11468 = vadd.f32 %v11466, %v11467
    %v11469 = vsel %vm581, %v11366, 0.0
    %v11470 = vadd.f32 %v11468, %v11469
    %v11471 = vsel %vm581, %v11367, 0.0
    %v11472 = vadd.f32 %v11470, %v11471
    %v11473 = vsel %vm581, %v11368, 0.0
    %v11474 = vadd.f32 %v11472, %v11473
    %v11475 = vsel %vm581, %v11369, 0.0
    %v11476 = vadd.f32 %v11474, %v11475
    %v11477 = vsel %vm581, %v11370, 0.0
    %v11478 = vadd.f32 %v11476, %v11477
    %v11479 = vsel %vm581, %v11371, 0.0
    %v11480 = vadd.f32 %v11478, %v11479
    %v11481 = vsel %vm581, %v11372, 0.0
    %v11482 = vadd.f32 %v11480, %v11481
    %v11483 = vsel %vm581, %v11373, 0.0
    %v11484 = vadd.f32 %v11482, %v11483
    %v11485 = vsel %vm581, %v11374, 0.0
    %v11486 = vadd.f32 %v11484, %v11485
    %v11487 = vsel %vm581, %v11375, 0.0
    %v11488 = vadd.f32 %v11486, %v11487
    %v11489 = vsel %vm581, %v11376, 0.0
    %v11490 = vadd.f32 %v11488, %v11489
    %v11491 = vsel %vm581, %v11377, 0.0
    %v11492 = vadd.f32 %v11490, %v11491
    %v11493 = vsel %vm581, %v11378, 0.0
    %v11494 = vadd.f32 %v11492, %v11493
    %v11495 = vsel %vm581, %v11379, 0.0
    %v11496 = vadd.f32 %v11494, %v11495
    %v11497 = vsel %vm581, %v11380, 0.0
    %v11498 = vadd.f32 %v11496, %v11497
    %v11499 = vsel %vm581, %v11381, 0.0
    %v11500 = vadd.f32 %v11498, %v11499
    %v11501 = vsel %vm581, %v11382, 0.0
    %v11502 = vadd.f32 %v11500, %v11501
    %v11503 = vsel %vm581, %v11383, 0.0
    %v11504 = vadd.f32 %v11502, %v11503
    %v11505 = vsel %vm581, %v11384, 0.0
    %v11506 = vadd.f32 %v11504, %v11505
    %v11507 = vsel %vm581, %v11385, 0.0
    %v11508 = vadd.f32 %v11506, %v11507
    %v11509 = vsel %vm581, %v11386, 0.0
    %v11510 = vadd.f32 %v11508, %v11509
    %v11511 = vsel %vm581, %v11387, 0.0
    %v11512 = vadd.f32 %v11510, %v11511
    %v11513 = vsel %vm581, %v11388, 0.0
    %v11514 = vadd.f32 %v11512, %v11513
    %v11515 = vsel %vm581, %v11389, 0.0
    %v11516 = vadd.f32 %v11514, %v11515
    %v11517 = vrot.slane %v11516, 4
    %v11518 = vadd.f32 %v11516, %v11517
    %v11519 = vrot.slane %v11518, 2
    %v11520 = vadd.f32 %v11518, %v11519
    %v11521 = vrot.slane %v11520, 1
    %v11522 = vadd.f32 %v11520, %v11521
    %v11523 = vmul.f32 %v11325, 0.001953125
    %v11524 = vmul.f32 %v11522, 0.001953125
    %v11525 = vmul.f32 %v11523, %v11523
    %v11526 = vsub.f32 %v11524, %v11525
    %v11527 = vmax.f32 %v11526, 0.0
    %v11528 = vadd.f32 %v11527, 1e-05
    %v11529 = vrsqrt.pop %v11528
    %v11530 = vmul.f32 %v11191, %v11529
    %v11531 = vmul.f32 %v11523, %v11530
    %v11532 = vsub.f32 %v11192, %v11531
    %v11534 = vlaneseq
    %v11535 = vshrl.u32 %v11534, 7
    %v11536 = vsub.s32 0, %v11535
    %v11537 = vrot.slane %v11530, %v11536
    %v11539 = vmul.f32 %v11127, %v11537
    %v11540 = vmul.f32 %v11128, %v11537
    %v11541 = vmul.f32 %v11129, %v11537
    %v11542 = vmul.f32 %v11130, %v11537
    %v11543 = vmul.f32 %v11131, %v11537
    %v11544 = vmul.f32 %v11132, %v11537
    %v11545 = vmul.f32 %v11133, %v11537
    %v11546 = vmul.f32 %v11134, %v11537
    %v11547 = vmul.f32 %v11135, %v11537
    %v11548 = vmul.f32 %v11136, %v11537
    %v11549 = vmul.f32 %v11137, %v11537
    %v11550 = vmul.f32 %v11138, %v11537
    %v11551 = vmul.f32 %v11139, %v11537
    %v11552 = vmul.f32 %v11140, %v11537
    %v11553 = vmul.f32 %v11141, %v11537
    %v11554 = vmul.f32 %v11142, %v11537
    %v11555 = vmul.f32 %v11143, %v11537
    %v11556 = vmul.f32 %v11144, %v11537
    %v11557 = vmul.f32 %v11145, %v11537
    %v11558 = vmul.f32 %v11146, %v11537
    %v11559 = vmul.f32 %v11147, %v11537
    %v11560 = vmul.f32 %v11148, %v11537
    %v11561 = vmul.f32 %v11149, %v11537
    %v11562 = vmul.f32 %v11150, %v11537
    %v11563 = vmul.f32 %v11151, %v11537
    %v11564 = vmul.f32 %v11152, %v11537
    %v11565 = vmul.f32 %v11153, %v11537
    %v11566 = vmul.f32 %v11154, %v11537
    %v11567 = vmul.f32 %v11155, %v11537
    %v11568 = vmul.f32 %v11156, %v11537
    %v11569 = vmul.f32 %v11157, %v11537
    %v11570 = vmul.f32 %v11158, %v11537
    %v11571 = vmul.f32 %v11159, %v11537
    %v11572 = vmul.f32 %v11160, %v11537
    %v11573 = vmul.f32 %v11161, %v11537
    %v11574 = vmul.f32 %v11162, %v11537
    %v11575 = vmul.f32 %v11163, %v11537
    %v11576 = vmul.f32 %v11164, %v11537
    %v11577 = vmul.f32 %v11165, %v11537
    %v11578 = vmul.f32 %v11166, %v11537
    %v11579 = vmul.f32 %v11167, %v11537
    %v11580 = vmul.f32 %v11168, %v11537
    %v11581 = vmul.f32 %v11169, %v11537
    %v11582 = vmul.f32 %v11170, %v11537
    %v11583 = vmul.f32 %v11171, %v11537
    %v11584 = vmul.f32 %v11172, %v11537
    %v11585 = vmul.f32 %v11173, %v11537
    %v11586 = vmul.f32 %v11174, %v11537
    %v11587 = vmul.f32 %v11175, %v11537
    %v11588 = vmul.f32 %v11176, %v11537
    %v11589 = vmul.f32 %v11177, %v11537
    %v11590 = vmul.f32 %v11178, %v11537
    %v11591 = vmul.f32 %v11179, %v11537
    %v11592 = vmul.f32 %v11180, %v11537
    %v11593 = vmul.f32 %v11181, %v11537
    %v11594 = vmul.f32 %v11182, %v11537
    %v11595 = vmul.f32 %v11183, %v11537
    %v11596 = vmul.f32 %v11184, %v11537
    %v11597 = vmul.f32 %v11185, %v11537
    %v11598 = vmul.f32 %v11186, %v11537
    %v11599 = vmul.f32 %v11187, %v11537
    %v11600 = vmul.f32 %v11188, %v11537
    %v11601 = vmul.f32 %v11189, %v11537
    %v11602 = vmul.f32 %v11190, %v11537
    %v11604 = vlaneseq
    %v11605 = vshrl.u32 %v11604, 7
    %v11606 = vsub.s32 0, %v11605
    %v11607 = vrot.slane %v11532, %v11606
    %v11609 = vadd.f32 %v11539, %v11607
    %v11610 = vadd.f32 %v11540, %v11607
    %v11611 = vadd.f32 %v11541, %v11607
    %v11612 = vadd.f32 %v11542, %v11607
    %v11613 = vadd.f32 %v11543, %v11607
    %v11614 = vadd.f32 %v11544, %v11607
    %v11615 = vadd.f32 %v11545, %v11607
    %v11616 = vadd.f32 %v11546, %v11607
    %v11617 = vadd.f32 %v11547, %v11607
    %v11618 = vadd.f32 %v11548, %v11607
    %v11619 = vadd.f32 %v11549, %v11607
    %v11620 = vadd.f32 %v11550, %v11607
    %v11621 = vadd.f32 %v11551, %v11607
    %v11622 = vadd.f32 %v11552, %v11607
    %v11623 = vadd.f32 %v11553, %v11607
    %v11624 = vadd.f32 %v11554, %v11607
    %v11625 = vadd.f32 %v11555, %v11607
    %v11626 = vadd.f32 %v11556, %v11607
    %v11627 = vadd.f32 %v11557, %v11607
    %v11628 = vadd.f32 %v11558, %v11607
    %v11629 = vadd.f32 %v11559, %v11607
    %v11630 = vadd.f32 %v11560, %v11607
    %v11631 = vadd.f32 %v11561, %v11607
    %v11632 = vadd.f32 %v11562, %v11607
    %v11633 = vadd.f32 %v11563, %v11607
    %v11634 = vadd.f32 %v11564, %v11607
    %v11635 = vadd.f32 %v11565, %v11607
    %v11636 = vadd.f32 %v11566, %v11607
    %v11637 = vadd.f32 %v11567, %v11607
    %v11638 = vadd.f32 %v11568, %v11607
    %v11639 = vadd.f32 %v11569, %v11607
    %v11640 = vadd.f32 %v11570, %v11607
    %v11641 = vadd.f32 %v11571, %v11607
    %v11642 = vadd.f32 %v11572, %v11607
    %v11643 = vadd.f32 %v11573, %v11607
    %v11644 = vadd.f32 %v11574, %v11607
    %v11645 = vadd.f32 %v11575, %v11607
    %v11646 = vadd.f32 %v11576, %v11607
    %v11647 = vadd.f32 %v11577, %v11607
    %v11648 = vadd.f32 %v11578, %v11607
    %v11649 = vadd.f32 %v11579, %v11607
    %v11650 = vadd.f32 %v11580, %v11607
    %v11651 = vadd.f32 %v11581, %v11607
    %v11652 = vadd.f32 %v11582, %v11607
    %v11653 = vadd.f32 %v11583, %v11607
    %v11654 = vadd.f32 %v11584, %v11607
    %v11655 = vadd.f32 %v11585, %v11607
    %v11656 = vadd.f32 %v11586, %v11607
    %v11657 = vadd.f32 %v11587, %v11607
    %v11658 = vadd.f32 %v11588, %v11607
    %v11659 = vadd.f32 %v11589, %v11607
    %v11660 = vadd.f32 %v11590, %v11607
    %v11661 = vadd.f32 %v11591, %v11607
    %v11662 = vadd.f32 %v11592, %v11607
    %v11663 = vadd.f32 %v11593, %v11607
    %v11664 = vadd.f32 %v11594, %v11607
    %v11665 = vadd.f32 %v11595, %v11607
    %v11666 = vadd.f32 %v11596, %v11607
    %v11667 = vadd.f32 %v11597, %v11607
    %v11668 = vadd.f32 %v11598, %v11607
    %v11669 = vadd.f32 %v11599, %v11607
    %v11670 = vadd.f32 %v11600, %v11607
    %v11671 = vadd.f32 %v11601, %v11607
    %v11672 = vadd.f32 %v11602, %v11607
    %v11673 = vmax.f32 %v11609, 0.0
    %v11674 = vmax.f32 %v11610, 0.0
    %v11675 = vmax.f32 %v11611, 0.0
    %v11676 = vmax.f32 %v11612, 0.0
    %v11677 = vmax.f32 %v11613, 0.0
    %v11678 = vmax.f32 %v11614, 0.0
    %v11679 = vmax.f32 %v11615, 0.0
    %v11680 = vmax.f32 %v11616, 0.0
    %v11681 = vmax.f32 %v11617, 0.0
    %v11682 = vmax.f32 %v11618, 0.0
    %v11683 = vmax.f32 %v11619, 0.0
    %v11684 = vmax.f32 %v11620, 0.0
    %v11685 = vmax.f32 %v11621, 0.0
    %v11686 = vmax.f32 %v11622, 0.0
    %v11687 = vmax.f32 %v11623, 0.0
    %v11688 = vmax.f32 %v11624, 0.0
    %v11689 = vmax.f32 %v11625, 0.0
    %v11690 = vmax.f32 %v11626, 0.0
    %v11691 = vmax.f32 %v11627, 0.0
    %v11692 = vmax.f32 %v11628, 0.0
    %v11693 = vmax.f32 %v11629, 0.0
    %v11694 = vmax.f32 %v11630, 0.0
    %v11695 = vmax.f32 %v11631, 0.0
    %v11696 = vmax.f32 %v11632, 0.0
    %v11697 = vmax.f32 %v11633, 0.0
    %v11698 = vmax.f32 %v11634, 0.0
    %v11699 = vmax.f32 %v11635, 0.0
    %v11700 = vmax.f32 %v11636, 0.0
    %v11701 = vmax.f32 %v11637, 0.0
    %v11702 = vmax.f32 %v11638, 0.0
    %v11703 = vmax.f32 %v11639, 0.0
    %v11704 = vmax.f32 %v11640, 0.0
    %v11705 = vmax.f32 %v11641, 0.0
    %v11706 = vmax.f32 %v11642, 0.0
    %v11707 = vmax.f32 %v11643, 0.0
    %v11708 = vmax.f32 %v11644, 0.0
    %v11709 = vmax.f32 %v11645, 0.0
    %v11710 = vmax.f32 %v11646, 0.0
    %v11711 = vmax.f32 %v11647, 0.0
    %v11712 = vmax.f32 %v11648, 0.0
    %v11713 = vmax.f32 %v11649, 0.0
    %v11714 = vmax.f32 %v11650, 0.0
    %v11715 = vmax.f32 %v11651, 0.0
    %v11716 = vmax.f32 %v11652, 0.0
    %v11717 = vmax.f32 %v11653, 0.0
    %v11718 = vmax.f32 %v11654, 0.0
    %v11719 = vmax.f32 %v11655, 0.0
    %v11720 = vmax.f32 %v11656, 0.0
    %v11721 = vmax.f32 %v11657, 0.0
    %v11722 = vmax.f32 %v11658, 0.0
    %v11723 = vmax.f32 %v11659, 0.0
    %v11724 = vmax.f32 %v11660, 0.0
    %v11725 = vmax.f32 %v11661, 0.0
    %v11726 = vmax.f32 %v11662, 0.0
    %v11727 = vmax.f32 %v11663, 0.0
    %v11728 = vmax.f32 %v11664, 0.0
    %v11729 = vmax.f32 %v11665, 0.0
    %v11730 = vmax.f32 %v11666, 0.0
    %v11731 = vmax.f32 %v11667, 0.0
    %v11732 = vmax.f32 %v11668, 0.0
    %v11733 = vmax.f32 %v11669, 0.0
    %v11734 = vmax.f32 %v11670, 0.0
    %v11735 = vmax.f32 %v11671, 0.0
    %v11736 = vmax.f32 %v11672, 0.0
    %v11737 = vpack.c.bf16 %v11674, %v11673
    %v11738 = vpack.c.bf16 %v11676, %v11675
    %v11739 = vpack.c.bf16 %v11678, %v11677
    %v11740 = vpack.c.bf16 %v11680, %v11679
    %v11741 = vpack.c.bf16 %v11682, %v11681
    %v11742 = vpack.c.bf16 %v11684, %v11683
    %v11743 = vpack.c.bf16 %v11686, %v11685
    %v11744 = vpack.c.bf16 %v11688, %v11687
    %v11745 = vpack.c.bf16 %v11690, %v11689
    %v11746 = vpack.c.bf16 %v11692, %v11691
    %v11747 = vpack.c.bf16 %v11694, %v11693
    %v11748 = vpack.c.bf16 %v11696, %v11695
    %v11749 = vpack.c.bf16 %v11698, %v11697
    %v11750 = vpack.c.bf16 %v11700, %v11699
    %v11751 = vpack.c.bf16 %v11702, %v11701
    %v11752 = vpack.c.bf16 %v11704, %v11703
    %v11753 = vpack.c.bf16 %v11706, %v11705
    %v11754 = vpack.c.bf16 %v11708, %v11707
    %v11755 = vpack.c.bf16 %v11710, %v11709
    %v11756 = vpack.c.bf16 %v11712, %v11711
    %v11757 = vpack.c.bf16 %v11714, %v11713
    %v11758 = vpack.c.bf16 %v11716, %v11715
    %v11759 = vpack.c.bf16 %v11718, %v11717
    %v11760 = vpack.c.bf16 %v11720, %v11719
    %v11761 = vpack.c.bf16 %v11722, %v11721
    %v11762 = vpack.c.bf16 %v11724, %v11723
    %v11763 = vpack.c.bf16 %v11726, %v11725
    %v11764 = vpack.c.bf16 %v11728, %v11727
    %v11765 = vpack.c.bf16 %v11730, %v11729
    %v11766 = vpack.c.bf16 %v11732, %v11731
    %v11767 = vpack.c.bf16 %v11734, %v11733
    %v11768 = vpack.c.bf16 %v11736, %v11735
    %v11769 = vld [vmem:[%s3] sm:$0xf]
    %v11770 = vld [vmem:[%s3 + $0x4] sm:$0xf]
    %v11773 = vunpack.c.l.b16 %v11769
    %v11774 = vunpack.c.l.b16 %v11770
    %v11775 = vpack.c.b16 %v11774, %v11773
    %v11778 = vsel %vm581, %v11737, 0
    %v11781 = vsel %vm581, %v11738, 0
    %v11784 = vsel %vm581, %v11739, 0
    %v11787 = vsel %vm581, %v11740, 0
    %v11790 = vsel %vm581, %v11741, 0
    %v11793 = vsel %vm581, %v11742, 0
    %v11796 = vsel %vm581, %v11743, 0
    %v11799 = vsel %vm581, %v11744, 0
    %v11802 = vsel %vm581, %v11745, 0
    %v11805 = vsel %vm581, %v11746, 0
    %v11808 = vsel %vm581, %v11747, 0
    %v11811 = vsel %vm581, %v11748, 0
    %v11814 = vsel %vm581, %v11749, 0
    %v11817 = vsel %vm581, %v11750, 0
    %v11820 = vsel %vm581, %v11751, 0
    %v11823 = vsel %vm581, %v11752, 0
    %v11826 = vsel %vm581, %v11753, 0
    %v11829 = vsel %vm581, %v11754, 0
    %v11832 = vsel %vm581, %v11755, 0
    %v11835 = vsel %vm581, %v11756, 0
    %v11838 = vsel %vm581, %v11757, 0
    %v11841 = vsel %vm581, %v11758, 0
    %v11844 = vsel %vm581, %v11759, 0
    %v11847 = vsel %vm581, %v11760, 0
    %v11850 = vsel %vm581, %v11761, 0
    %v11853 = vsel %vm581, %v11762, 0
    %v11856 = vsel %vm581, %v11763, 0
    %v11859 = vsel %vm581, %v11764, 0
    %v11862 = vsel %vm581, %v11765, 0
    %v11865 = vsel %vm581, %v11766, 0
    %v11868 = vsel %vm581, %v11767, 0
    %v11871 = vsel %vm581, %v11768, 0
    %11873 = vmatprep.subr.bf16.mxu0 0
    %11874 = vmatpush1.bf16.msra.mxu0 0
    %11875 = vmatprep.subr.bf16.mxu0 0
    %11876 = vmatpush1.bf16.msra.mxu0 0
    %11877 = vmatprep.subr.bf16.mxu0 0
    %11878 = vmatpush1.bf16.msra.mxu0 0
    %11879 = vmatprep.subr.bf16.mxu0 0
    %11880 = vmatpush1.bf16.msra.mxu0 0
    %11881 = vmatprep.subr.bf16.mxu0 0
    %11882 = vmatpush1.bf16.msra.mxu0 0
    %11883 = vmatprep.subr.bf16.mxu0 0
    %11884 = vmatpush1.bf16.msra.mxu0 0
    %11885 = vmatprep.subr.bf16.mxu0 0
    %11886 = vmatpush1.bf16.msra.mxu0 0
    %11887 = vmatprep.subr.bf16.mxu0 0
    %11888 = vmatpush1.bf16.msra.mxu0 %v11775
    %11889 = vmatprep.subr.bf16.mxu0 0
    %11890 = vmatpush2.bf16.msra.mxu0 0
    %11891 = vmatprep.subr.bf16.mxu0 0
    %11892 = vmatpush2.bf16.msra.mxu0 0
    %11893 = vmatprep.subr.bf16.mxu0 0
    %11894 = vmatpush2.bf16.msra.mxu0 0
    %11895 = vmatprep.subr.bf16.mxu0 0
    %11896 = vmatpush2.bf16.msra.mxu0 0
    %11897 = vmatprep.subr.bf16.mxu0 0
    %11898 = vmatpush2.bf16.msra.mxu0 0
    %11899 = vmatprep.subr.bf16.mxu0 0
    %11900 = vmatpush2.bf16.msra.mxu0 0
    %11901 = vmatprep.subr.bf16.mxu0 0
    %11902 = vmatpush2.bf16.msra.mxu0 0
    %11903 = vmatprep.subr.bf16.mxu0 0
    %11904 = vmatpush2.bf16.msra.mxu0 0
    %11905 = vmatprep.mubr.bf16.mxu0 0
    %11906 = vmatmul.mubr.bf16.gmra.mxu0 %v11778
    %v11907 = vpop.f32.mrf.mxu0
    %v11908 = vadd.f32 0.0, %v11907
    %v11909 = vpop.f32.mrf.mxu0
    %v11910 = vpop.f32.mrf.mxu0
    %v11911 = vadd.f32 0.0, %v11910
    %v11912 = vpop.f32.mrf.mxu0
    %11913 = vmatprep.mubr.bf16.mxu0 0
    %11914 = vmatmul.mubr.bf16.gmra.mxu0 %v11781
    %v11915 = vpop.f32.mrf.mxu0
    %v11916 = vadd.f32 0.0, %v11915
    %v11917 = vpop.f32.mrf.mxu0
    %v11918 = vpop.f32.mrf.mxu0
    %v11919 = vadd.f32 0.0, %v11918
    %v11920 = vpop.f32.mrf.mxu0
    %11921 = vmatprep.mubr.bf16.mxu0 0
    %11922 = vmatmul.mubr.bf16.gmra.mxu0 %v11784
    %v11923 = vpop.f32.mrf.mxu0
    %v11924 = vadd.f32 0.0, %v11923
    %v11925 = vpop.f32.mrf.mxu0
    %v11926 = vpop.f32.mrf.mxu0
    %v11927 = vadd.f32 0.0, %v11926
    %v11928 = vpop.f32.mrf.mxu0
    %11929 = vmatprep.mubr.bf16.mxu0 0
    %11930 = vmatmul.mubr.bf16.gmra.mxu0 %v11787
    %v11931 = vpop.f32.mrf.mxu0
    %v11932 = vadd.f32 0.0, %v11931
    %v11933 = vpop.f32.mrf.mxu0
    %v11934 = vpop.f32.mrf.mxu0
    %v11935 = vadd.f32 0.0, %v11934
    %v11936 = vpop.f32.mrf.mxu0
    %11937 = vmatprep.mubr.bf16.mxu0 0
    %11938 = vmatmul.mubr.bf16.gmra.mxu0 %v11790
    %v11939 = vpop.f32.mrf.mxu0
    %v11940 = vadd.f32 0.0, %v11939
    %v11941 = vpop.f32.mrf.mxu0
    %v11942 = vpop.f32.mrf.mxu0
    %v11943 = vadd.f32 0.0, %v11942
    %v11944 = vpop.f32.mrf.mxu0
    %11945 = vmatprep.mubr.bf16.mxu0 0
    %11946 = vmatmul.mubr.bf16.gmra.mxu0 %v11793
    %v11947 = vpop.f32.mrf.mxu0
    %v11948 = vadd.f32 0.0, %v11947
    %v11949 = vpop.f32.mrf.mxu0
    %v11950 = vpop.f32.mrf.mxu0
    %v11951 = vadd.f32 0.0, %v11950
    %v11952 = vpop.f32.mrf.mxu0
    %11953 = vmatprep.mubr.bf16.mxu0 0
    %11954 = vmatmul.mubr.bf16.gmra.mxu0 %v11796
    %v11955 = vpop.f32.mrf.mxu0
    %v11956 = vadd.f32 0.0, %v11955
    %v11957 = vpop.f32.mrf.mxu0
    %v11958 = vpop.f32.mrf.mxu0
    %v11959 = vadd.f32 0.0, %v11958
    %v11960 = vpop.f32.mrf.mxu0
    %11961 = vmatprep.mubr.bf16.mxu0 0
    %11962 = vmatmul.mubr.bf16.gmra.mxu0 %v11799
    %v11963 = vpop.f32.mrf.mxu0
    %v11964 = vadd.f32 0.0, %v11963
    %v11965 = vpop.f32.mrf.mxu0
    %v11966 = vpop.f32.mrf.mxu0
    %v11967 = vadd.f32 0.0, %v11966
    %v11968 = vpop.f32.mrf.mxu0
    %11969 = vmatprep.mubr.bf16.mxu0 0
    %11970 = vmatmul.mubr.bf16.gmra.mxu0 %v11802
    %v11971 = vpop.f32.mrf.mxu0
    %v11972 = vadd.f32 0.0, %v11971
    %v11973 = vpop.f32.mrf.mxu0
    %v11974 = vpop.f32.mrf.mxu0
    %v11975 = vadd.f32 0.0, %v11974
    %v11976 = vpop.f32.mrf.mxu0
    %11977 = vmatprep.mubr.bf16.mxu0 0
    %11978 = vmatmul.mubr.bf16.gmra.mxu0 %v11805
    %v11979 = vpop.f32.mrf.mxu0
    %v11980 = vadd.f32 0.0, %v11979
    %v11981 = vpop.f32.mrf.mxu0
    %v11982 = vpop.f32.mrf.mxu0
    %v11983 = vadd.f32 0.0, %v11982
    %v11984 = vpop.f32.mrf.mxu0
    %11985 = vmatprep.mubr.bf16.mxu0 0
    %11986 = vmatmul.mubr.bf16.gmra.mxu0 %v11808
    %v11987 = vpop.f32.mrf.mxu0
    %v11988 = vadd.f32 0.0, %v11987
    %v11989 = vpop.f32.mrf.mxu0
    %v11990 = vpop.f32.mrf.mxu0
    %v11991 = vadd.f32 0.0, %v11990
    %v11992 = vpop.f32.mrf.mxu0
    %11993 = vmatprep.mubr.bf16.mxu0 0
    %11994 = vmatmul.mubr.bf16.gmra.mxu0 %v11811
    %v11995 = vpop.f32.mrf.mxu0
    %v11996 = vadd.f32 0.0, %v11995
    %v11997 = vpop.f32.mrf.mxu0
    %v11998 = vpop.f32.mrf.mxu0
    %v11999 = vadd.f32 0.0, %v11998
    %v12000 = vpop.f32.mrf.mxu0
    %12001 = vmatprep.mubr.bf16.mxu0 0
    %12002 = vmatmul.mubr.bf16.gmra.mxu0 %v11814
    %v12003 = vpop.f32.mrf.mxu0
    %v12004 = vadd.f32 0.0, %v12003
    %v12005 = vpop.f32.mrf.mxu0
    %v12006 = vpop.f32.mrf.mxu0
    %v12007 = vadd.f32 0.0, %v12006
    %v12008 = vpop.f32.mrf.mxu0
    %12009 = vmatprep.mubr.bf16.mxu0 0
    %12010 = vmatmul.mubr.bf16.gmra.mxu0 %v11817
    %v12011 = vpop.f32.mrf.mxu0
    %v12012 = vadd.f32 0.0, %v12011
    %v12013 = vpop.f32.mrf.mxu0
    %v12014 = vpop.f32.mrf.mxu0
    %v12015 = vadd.f32 0.0, %v12014
    %v12016 = vpop.f32.mrf.mxu0
    %12017 = vmatprep.mubr.bf16.mxu0 0
    %12018 = vmatmul.mubr.bf16.gmra.mxu0 %v11820
    %v12019 = vpop.f32.mrf.mxu0
    %v12020 = vadd.f32 0.0, %v12019
    %v12021 = vpop.f32.mrf.mxu0
    %v12022 = vpop.f32.mrf.mxu0
    %v12023 = vadd.f32 0.0, %v12022
    %v12024 = vpop.f32.mrf.mxu0
    %12025 = vmatprep.mubr.bf16.mxu0 0
    %12026 = vmatmul.mubr.bf16.gmra.mxu0 %v11823
    %v12027 = vpop.f32.mrf.mxu0
    %v12028 = vadd.f32 0.0, %v12027
    %v12029 = vpop.f32.mrf.mxu0
    %v12030 = vpop.f32.mrf.mxu0
    %v12031 = vadd.f32 0.0, %v12030
    %v12032 = vpop.f32.mrf.mxu0
    %12033 = vmatprep.mubr.bf16.mxu0 0
    %12034 = vmatmul.mubr.bf16.gmra.mxu0 %v11826
    %v12035 = vpop.f32.mrf.mxu0
    %v12036 = vadd.f32 0.0, %v12035
    %v12037 = vpop.f32.mrf.mxu0
    %v12038 = vpop.f32.mrf.mxu0
    %v12039 = vadd.f32 0.0, %v12038
    %v12040 = vpop.f32.mrf.mxu0
    %12041 = vmatprep.mubr.bf16.mxu0 0
    %12042 = vmatmul.mubr.bf16.gmra.mxu0 %v11829
    %v12043 = vpop.f32.mrf.mxu0
    %v12044 = vadd.f32 0.0, %v12043
    %v12045 = vpop.f32.mrf.mxu0
    %v12046 = vpop.f32.mrf.mxu0
    %v12047 = vadd.f32 0.0, %v12046
    %v12048 = vpop.f32.mrf.mxu0
    %12049 = vmatprep.mubr.bf16.mxu0 0
    %12050 = vmatmul.mubr.bf16.gmra.mxu0 %v11832
    %v12051 = vpop.f32.mrf.mxu0
    %v12052 = vadd.f32 0.0, %v12051
    %v12053 = vpop.f32.mrf.mxu0
    %v12054 = vpop.f32.mrf.mxu0
    %v12055 = vadd.f32 0.0, %v12054
    %v12056 = vpop.f32.mrf.mxu0
    %12057 = vmatprep.mubr.bf16.mxu0 0
    %12058 = vmatmul.mubr.bf16.gmra.mxu0 %v11835
    %v12059 = vpop.f32.mrf.mxu0
    %v12060 = vadd.f32 0.0, %v12059
    %v12061 = vpop.f32.mrf.mxu0
    %v12062 = vpop.f32.mrf.mxu0
    %v12063 = vadd.f32 0.0, %v12062
    %v12064 = vpop.f32.mrf.mxu0
    %12065 = vmatprep.mubr.bf16.mxu0 0
    %12066 = vmatmul.mubr.bf16.gmra.mxu0 %v11838
    %v12067 = vpop.f32.mrf.mxu0
    %v12068 = vadd.f32 0.0, %v12067
    %v12069 = vpop.f32.mrf.mxu0
    %v12070 = vpop.f32.mrf.mxu0
    %v12071 = vadd.f32 0.0, %v12070
    %v12072 = vpop.f32.mrf.mxu0
    %12073 = vmatprep.mubr.bf16.mxu0 0
    %12074 = vmatmul.mubr.bf16.gmra.mxu0 %v11841
    %v12075 = vpop.f32.mrf.mxu0
    %v12076 = vadd.f32 0.0, %v12075
    %v12077 = vpop.f32.mrf.mxu0
    %v12078 = vpop.f32.mrf.mxu0
    %v12079 = vadd.f32 0.0, %v12078
    %v12080 = vpop.f32.mrf.mxu0
    %12081 = vmatprep.mubr.bf16.mxu0 0
    %12082 = vmatmul.mubr.bf16.gmra.mxu0 %v11844
    %v12083 = vpop.f32.mrf.mxu0
    %v12084 = vadd.f32 0.0, %v12083
    %v12085 = vpop.f32.mrf.mxu0
    %v12086 = vpop.f32.mrf.mxu0
    %v12087 = vadd.f32 0.0, %v12086
    %v12088 = vpop.f32.mrf.mxu0
    %12089 = vmatprep.mubr.bf16.mxu0 0
    %12090 = vmatmul.mubr.bf16.gmra.mxu0 %v11847
    %v12091 = vpop.f32.mrf.mxu0
    %v12092 = vadd.f32 0.0, %v12091
    %v12093 = vpop.f32.mrf.mxu0
    %v12094 = vpop.f32.mrf.mxu0
    %v12095 = vadd.f32 0.0, %v12094
    %v12096 = vpop.f32.mrf.mxu0
    %12097 = vmatprep.mubr.bf16.mxu0 0
    %12098 = vmatmul.mubr.bf16.gmra.mxu0 %v11850
    %v12099 = vpop.f32.mrf.mxu0
    %v12100 = vadd.f32 0.0, %v12099
    %v12101 = vpop.f32.mrf.mxu0
    %v12102 = vpop.f32.mrf.mxu0
    %v12103 = vadd.f32 0.0, %v12102
    %v12104 = vpop.f32.mrf.mxu0
    %12105 = vmatprep.mubr.bf16.mxu0 0
    %12106 = vmatmul.mubr.bf16.gmra.mxu0 %v11853
    %v12107 = vpop.f32.mrf.mxu0
    %v12108 = vadd.f32 0.0, %v12107
    %v12109 = vpop.f32.mrf.mxu0
    %v12110 = vpop.f32.mrf.mxu0
    %v12111 = vadd.f32 0.0, %v12110
    %v12112 = vpop.f32.mrf.mxu0
    %12113 = vmatprep.mubr.bf16.mxu0 0
    %12114 = vmatmul.mubr.bf16.gmra.mxu0 %v11856
    %v12115 = vpop.f32.mrf.mxu0
    %v12116 = vadd.f32 0.0, %v12115
    %v12117 = vpop.f32.mrf.mxu0
    %v12118 = vpop.f32.mrf.mxu0
    %v12119 = vadd.f32 0.0, %v12118
    %v12120 = vpop.f32.mrf.mxu0
    %12121 = vmatprep.mubr.bf16.mxu0 0
    %12122 = vmatmul.mubr.bf16.gmra.mxu0 %v11859
    %v12123 = vpop.f32.mrf.mxu0
    %v12124 = vadd.f32 0.0, %v12123
    %v12125 = vpop.f32.mrf.mxu0
    %v12126 = vpop.f32.mrf.mxu0
    %v12127 = vadd.f32 0.0, %v12126
    %v12128 = vpop.f32.mrf.mxu0
    %12129 = vmatprep.mubr.bf16.mxu0 0
    %12130 = vmatmul.mubr.bf16.gmra.mxu0 %v11862
    %v12131 = vpop.f32.mrf.mxu0
    %v12132 = vadd.f32 0.0, %v12131
    %v12133 = vpop.f32.mrf.mxu0
    %v12134 = vpop.f32.mrf.mxu0
    %v12135 = vadd.f32 0.0, %v12134
    %v12136 = vpop.f32.mrf.mxu0
    %12137 = vmatprep.mubr.bf16.mxu0 0
    %12138 = vmatmul.mubr.bf16.gmra.mxu0 %v11865
    %v12139 = vpop.f32.mrf.mxu0
    %v12140 = vadd.f32 0.0, %v12139
    %v12141 = vpop.f32.mrf.mxu0
    %v12142 = vpop.f32.mrf.mxu0
    %v12143 = vadd.f32 0.0, %v12142
    %v12144 = vpop.f32.mrf.mxu0
    %12145 = vmatprep.mubr.bf16.mxu0 0
    %12146 = vmatmul.mubr.bf16.gmra.mxu0 %v11868
    %v12147 = vpop.f32.mrf.mxu0
    %v12148 = vadd.f32 0.0, %v12147
    %v12149 = vpop.f32.mrf.mxu0
    %v12150 = vpop.f32.mrf.mxu0
    %v12151 = vadd.f32 0.0, %v12150
    %v12152 = vpop.f32.mrf.mxu0
    %12153 = vmatprep.mubr.bf16.mxu0 0
    %12154 = vmatmul.mubr.bf16.gmra.mxu0 %v11871
    %v12155 = vpop.f32.mrf.mxu0
    %v12156 = vadd.f32 0.0, %v12155
    %v12157 = vpop.f32.mrf.mxu0
    %v12158 = vpop.f32.mrf.mxu0
    %v12159 = vadd.f32 0.0, %v12158
    %v12160 = vpop.f32.mrf.mxu0
    %12161 = vdwg.mxu0
    %v12162 = vld [vmem:[%s8] sm:$0x1]
    %v12163 = vld [vmem:[%s9] sm:$0x1]
    %v12164 = vsel %vm193, %v11908, 0.0
    %v12165 = vsel %vm193, %v11911, 0.0
    %v12166 = vadd.f32 %v12164, %v12165
    %v12167 = vsel %vm193, %v11916, 0.0
    %v12168 = vadd.f32 %v12166, %v12167
    %v12169 = vsel %vm193, %v11919, 0.0
    %v12170 = vadd.f32 %v12168, %v12169
    %v12171 = vsel %vm193, %v11924, 0.0
    %v12172 = vadd.f32 %v12170, %v12171
    %v12173 = vsel %vm193, %v11927, 0.0
    %v12174 = vadd.f32 %v12172, %v12173
    %v12175 = vsel %vm193, %v11932, 0.0
    %v12176 = vadd.f32 %v12174, %v12175
    %v12177 = vsel %vm193, %v11935, 0.0
    %v12178 = vadd.f32 %v12176, %v12177
    %v12179 = vsel %vm193, %v11940, 0.0
    %v12180 = vadd.f32 %v12178, %v12179
    %v12181 = vsel %vm193, %v11943, 0.0
    %v12182 = vadd.f32 %v12180, %v12181
    %v12183 = vsel %vm193, %v11948, 0.0
    %v12184 = vadd.f32 %v12182, %v12183
    %v12185 = vsel %vm193, %v11951, 0.0
    %v12186 = vadd.f32 %v12184, %v12185
    %v12187 = vsel %vm193, %v11956, 0.0
    %v12188 = vadd.f32 %v12186, %v12187
    %v12189 = vsel %vm193, %v11959, 0.0
    %v12190 = vadd.f32 %v12188, %v12189
    %v12191 = vsel %vm193, %v11964, 0.0
    %v12192 = vadd.f32 %v12190, %v12191
    %v12193 = vsel %vm193, %v11967, 0.0
    %v12194 = vadd.f32 %v12192, %v12193
    %v12195 = vsel %vm193, %v11972, 0.0
    %v12196 = vadd.f32 %v12194, %v12195
    %v12197 = vsel %vm193, %v11975, 0.0
    %v12198 = vadd.f32 %v12196, %v12197
    %v12199 = vsel %vm193, %v11980, 0.0
    %v12200 = vadd.f32 %v12198, %v12199
    %v12201 = vsel %vm193, %v11983, 0.0
    %v12202 = vadd.f32 %v12200, %v12201
    %v12203 = vsel %vm193, %v11988, 0.0
    %v12204 = vadd.f32 %v12202, %v12203
    %v12205 = vsel %vm193, %v11991, 0.0
    %v12206 = vadd.f32 %v12204, %v12205
    %v12207 = vsel %vm193, %v11996, 0.0
    %v12208 = vadd.f32 %v12206, %v12207
    %v12209 = vsel %vm193, %v11999, 0.0
    %v12210 = vadd.f32 %v12208, %v12209
    %v12211 = vsel %vm193, %v12004, 0.0
    %v12212 = vadd.f32 %v12210, %v12211
    %v12213 = vsel %vm193, %v12007, 0.0
    %v12214 = vadd.f32 %v12212, %v12213
    %v12215 = vsel %vm193, %v12012, 0.0
    %v12216 = vadd.f32 %v12214, %v12215
    %v12217 = vsel %vm193, %v12015, 0.0
    %v12218 = vadd.f32 %v12216, %v12217
    %v12219 = vsel %vm193, %v12020, 0.0
    %v12220 = vadd.f32 %v12218, %v12219
    %v12221 = vsel %vm193, %v12023, 0.0
    %v12222 = vadd.f32 %v12220, %v12221
    %v12223 = vsel %vm193, %v12028, 0.0
    %v12224 = vadd.f32 %v12222, %v12223
    %v12225 = vsel %vm193, %v12031, 0.0
    %v12226 = vadd.f32 %v12224, %v12225
    %v12227 = vsel %vm193, %v12036, 0.0
    %v12228 = vadd.f32 %v12226, %v12227
    %v12229 = vsel %vm193, %v12039, 0.0
    %v12230 = vadd.f32 %v12228, %v12229
    %v12231 = vsel %vm193, %v12044, 0.0
    %v12232 = vadd.f32 %v12230, %v12231
    %v12233 = vsel %vm193, %v12047, 0.0
    %v12234 = vadd.f32 %v12232, %v12233
    %v12235 = vsel %vm193, %v12052, 0.0
    %v12236 = vadd.f32 %v12234, %v12235
    %v12237 = vsel %vm193, %v12055, 0.0
    %v12238 = vadd.f32 %v12236, %v12237
    %v12239 = vsel %vm193, %v12060, 0.0
    %v12240 = vadd.f32 %v12238, %v12239
    %v12241 = vsel %vm193, %v12063, 0.0
    %v12242 = vadd.f32 %v12240, %v12241
    %v12243 = vsel %vm193, %v12068, 0.0
    %v12244 = vadd.f32 %v12242, %v12243
    %v12245 = vsel %vm193, %v12071, 0.0
    %v12246 = vadd.f32 %v12244, %v12245
    %v12247 = vsel %vm193, %v12076, 0.0
    %v12248 = vadd.f32 %v12246, %v12247
    %v12249 = vsel %vm193, %v12079, 0.0
    %v12250 = vadd.f32 %v12248, %v12249
    %v12251 = vsel %vm193, %v12084, 0.0
    %v12252 = vadd.f32 %v12250, %v12251
    %v12253 = vsel %vm193, %v12087, 0.0
    %v12254 = vadd.f32 %v12252, %v12253
    %v12255 = vsel %vm193, %v12092, 0.0
    %v12256 = vadd.f32 %v12254, %v12255
    %v12257 = vsel %vm193, %v12095, 0.0
    %v12258 = vadd.f32 %v12256, %v12257
    %v12259 = vsel %vm193, %v12100, 0.0
    %v12260 = vadd.f32 %v12258, %v12259
    %v12261 = vsel %vm193, %v12103, 0.0
    %v12262 = vadd.f32 %v12260, %v12261
    %v12263 = vsel %vm193, %v12108, 0.0
    %v12264 = vadd.f32 %v12262, %v12263
    %v12265 = vsel %vm193, %v12111, 0.0
    %v12266 = vadd.f32 %v12264, %v12265
    %v12267 = vsel %vm193, %v12116, 0.0
    %v12268 = vadd.f32 %v12266, %v12267
    %v12269 = vsel %vm193, %v12119, 0.0
    %v12270 = vadd.f32 %v12268, %v12269
    %v12271 = vsel %vm193, %v12124, 0.0
    %v12272 = vadd.f32 %v12270, %v12271
    %v12273 = vsel %vm193, %v12127, 0.0
    %v12274 = vadd.f32 %v12272, %v12273
    %v12275 = vsel %vm193, %v12132, 0.0
    %v12276 = vadd.f32 %v12274, %v12275
    %v12277 = vsel %vm193, %v12135, 0.0
    %v12278 = vadd.f32 %v12276, %v12277
    %v12279 = vsel %vm193, %v12140, 0.0
    %v12280 = vadd.f32 %v12278, %v12279
    %v12281 = vsel %vm193, %v12143, 0.0
    %v12282 = vadd.f32 %v12280, %v12281
    %v12283 = vsel %vm193, %v12148, 0.0
    %v12284 = vadd.f32 %v12282, %v12283
    %v12285 = vsel %vm193, %v12151, 0.0
    %v12286 = vadd.f32 %v12284, %v12285
    %v12287 = vsel %vm193, %v12156, 0.0
    %v12288 = vadd.f32 %v12286, %v12287
    %v12289 = vsel %vm193, %v12159, 0.0
    %v12290 = vadd.f32 %v12288, %v12289
    %v12291 = vrot.slane %v12290, 4
    %v12292 = vadd.f32 %v12290, %v12291
    %v12293 = vrot.slane %v12292, 2
    %v12294 = vadd.f32 %v12292, %v12293
    %v12295 = vrot.slane %v12294, 1
    %v12296 = vadd.f32 %v12294, %v12295
    %v12297 = vmul.f32 %v11908, %v11908
    %v12298 = vmul.f32 %v11911, %v11911
    %v12299 = vmul.f32 %v11916, %v11916
    %v12300 = vmul.f32 %v11919, %v11919
    %v12301 = vmul.f32 %v11924, %v11924
    %v12302 = vmul.f32 %v11927, %v11927
    %v12303 = vmul.f32 %v11932, %v11932
    %v12304 = vmul.f32 %v11935, %v11935
    %v12305 = vmul.f32 %v11940, %v11940
    %v12306 = vmul.f32 %v11943, %v11943
    %v12307 = vmul.f32 %v11948, %v11948
    %v12308 = vmul.f32 %v11951, %v11951
    %v12309 = vmul.f32 %v11956, %v11956
    %v12310 = vmul.f32 %v11959, %v11959
    %v12311 = vmul.f32 %v11964, %v11964
    %v12312 = vmul.f32 %v11967, %v11967
    %v12313 = vmul.f32 %v11972, %v11972
    %v12314 = vmul.f32 %v11975, %v11975
    %v12315 = vmul.f32 %v11980, %v11980
    %v12316 = vmul.f32 %v11983, %v11983
    %v12317 = vmul.f32 %v11988, %v11988
    %v12318 = vmul.f32 %v11991, %v11991
    %v12319 = vmul.f32 %v11996, %v11996
    %v12320 = vmul.f32 %v11999, %v11999
    %v12321 = vmul.f32 %v12004, %v12004
    %v12322 = vmul.f32 %v12007, %v12007
    %v12323 = vmul.f32 %v12012, %v12012
    %v12324 = vmul.f32 %v12015, %v12015
    %v12325 = vmul.f32 %v12020, %v12020
    %v12326 = vmul.f32 %v12023, %v12023
    %v12327 = vmul.f32 %v12028, %v12028
    %v12328 = vmul.f32 %v12031, %v12031
    %v12329 = vmul.f32 %v12036, %v12036
    %v12330 = vmul.f32 %v12039, %v12039
    %v12331 = vmul.f32 %v12044, %v12044
    %v12332 = vmul.f32 %v12047, %v12047
    %v12333 = vmul.f32 %v12052, %v12052
    %v12334 = vmul.f32 %v12055, %v12055
    %v12335 = vmul.f32 %v12060, %v12060
    %v12336 = vmul.f32 %v12063, %v12063
    %v12337 = vmul.f32 %v12068, %v12068
    %v12338 = vmul.f32 %v12071, %v12071
    %v12339 = vmul.f32 %v12076, %v12076
    %v12340 = vmul.f32 %v12079, %v12079
    %v12341 = vmul.f32 %v12084, %v12084
    %v12342 = vmul.f32 %v12087, %v12087
    %v12343 = vmul.f32 %v12092, %v12092
    %v12344 = vmul.f32 %v12095, %v12095
    %v12345 = vmul.f32 %v12100, %v12100
    %v12346 = vmul.f32 %v12103, %v12103
    %v12347 = vmul.f32 %v12108, %v12108
    %v12348 = vmul.f32 %v12111, %v12111
    %v12349 = vmul.f32 %v12116, %v12116
    %v12350 = vmul.f32 %v12119, %v12119
    %v12351 = vmul.f32 %v12124, %v12124
    %v12352 = vmul.f32 %v12127, %v12127
    %v12353 = vmul.f32 %v12132, %v12132
    %v12354 = vmul.f32 %v12135, %v12135
    %v12355 = vmul.f32 %v12140, %v12140
    %v12356 = vmul.f32 %v12143, %v12143
    %v12357 = vmul.f32 %v12148, %v12148
    %v12358 = vmul.f32 %v12151, %v12151
    %v12359 = vmul.f32 %v12156, %v12156
    %v12360 = vmul.f32 %v12159, %v12159
    %v12361 = vsel %vm193, %v12297, 0.0
    %v12362 = vsel %vm193, %v12298, 0.0
    %v12363 = vadd.f32 %v12361, %v12362
    %v12364 = vsel %vm193, %v12299, 0.0
    %v12365 = vadd.f32 %v12363, %v12364
    %v12366 = vsel %vm193, %v12300, 0.0
    %v12367 = vadd.f32 %v12365, %v12366
    %v12368 = vsel %vm193, %v12301, 0.0
    %v12369 = vadd.f32 %v12367, %v12368
    %v12370 = vsel %vm193, %v12302, 0.0
    %v12371 = vadd.f32 %v12369, %v12370
    %v12372 = vsel %vm193, %v12303, 0.0
    %v12373 = vadd.f32 %v12371, %v12372
    %v12374 = vsel %vm193, %v12304, 0.0
    %v12375 = vadd.f32 %v12373, %v12374
    %v12376 = vsel %vm193, %v12305, 0.0
    %v12377 = vadd.f32 %v12375, %v12376
    %v12378 = vsel %vm193, %v12306, 0.0
    %v12379 = vadd.f32 %v12377, %v12378
    %v12380 = vsel %vm193, %v12307, 0.0
    %v12381 = vadd.f32 %v12379, %v12380
    %v12382 = vsel %vm193, %v12308, 0.0
    %v12383 = vadd.f32 %v12381, %v12382
    %v12384 = vsel %vm193, %v12309, 0.0
    %v12385 = vadd.f32 %v12383, %v12384
    %v12386 = vsel %vm193, %v12310, 0.0
    %v12387 = vadd.f32 %v12385, %v12386
    %v12388 = vsel %vm193, %v12311, 0.0
    %v12389 = vadd.f32 %v12387, %v12388
    %v12390 = vsel %vm193, %v12312, 0.0
    %v12391 = vadd.f32 %v12389, %v12390
    %v12392 = vsel %vm193, %v12313, 0.0
    %v12393 = vadd.f32 %v12391, %v12392
    %v12394 = vsel %vm193, %v12314, 0.0
    %v12395 = vadd.f32 %v12393, %v12394
    %v12396 = vsel %vm193, %v12315, 0.0
    %v12397 = vadd.f32 %v12395, %v12396
    %v12398 = vsel %vm193, %v12316, 0.0
    %v12399 = vadd.f32 %v12397, %v12398
    %v12400 = vsel %vm193, %v12317, 0.0
    %v12401 = vadd.f32 %v12399, %v12400
    %v12402 = vsel %vm193, %v12318, 0.0
    %v12403 = vadd.f32 %v12401, %v12402
    %v12404 = vsel %vm193, %v12319, 0.0
    %v12405 = vadd.f32 %v12403, %v12404
    %v12406 = vsel %vm193, %v12320, 0.0
    %v12407 = vadd.f32 %v12405, %v12406
    %v12408 = vsel %vm193, %v12321, 0.0
    %v12409 = vadd.f32 %v12407, %v12408
    %v12410 = vsel %vm193, %v12322, 0.0
    %v12411 = vadd.f32 %v12409, %v12410
    %v12412 = vsel %vm193, %v12323, 0.0
    %v12413 = vadd.f32 %v12411, %v12412
    %v12414 = vsel %vm193, %v12324, 0.0
    %v12415 = vadd.f32 %v12413, %v12414
    %v12416 = vsel %vm193, %v12325, 0.0
    %v12417 = vadd.f32 %v12415, %v12416
    %v12418 = vsel %vm193, %v12326, 0.0
    %v12419 = vadd.f32 %v12417, %v12418
    %v12420 = vsel %vm193, %v12327, 0.0
    %v12421 = vadd.f32 %v12419, %v12420
    %v12422 = vsel %vm193, %v12328, 0.0
    %v12423 = vadd.f32 %v12421, %v12422
    %v12424 = vsel %vm193, %v12329, 0.0
    %v12425 = vadd.f32 %v12423, %v12424
    %v12426 = vsel %vm193, %v12330, 0.0
    %v12427 = vadd.f32 %v12425, %v12426
    %v12428 = vsel %vm193, %v12331, 0.0
    %v12429 = vadd.f32 %v12427, %v12428
    %v12430 = vsel %vm193, %v12332, 0.0
    %v12431 = vadd.f32 %v12429, %v12430
    %v12432 = vsel %vm193, %v12333, 0.0
    %v12433 = vadd.f32 %v12431, %v12432
    %v12434 = vsel %vm193, %v12334, 0.0
    %v12435 = vadd.f32 %v12433, %v12434
    %v12436 = vsel %vm193, %v12335, 0.0
    %v12437 = vadd.f32 %v12435, %v12436
    %v12438 = vsel %vm193, %v12336, 0.0
    %v12439 = vadd.f32 %v12437, %v12438
    %v12440 = vsel %vm193, %v12337, 0.0
    %v12441 = vadd.f32 %v12439, %v12440
    %v12442 = vsel %vm193, %v12338, 0.0
    %v12443 = vadd.f32 %v12441, %v12442
    %v12444 = vsel %vm193, %v12339, 0.0
    %v12445 = vadd.f32 %v12443, %v12444
    %v12446 = vsel %vm193, %v12340, 0.0
    %v12447 = vadd.f32 %v12445, %v12446
    %v12448 = vsel %vm193, %v12341, 0.0
    %v12449 = vadd.f32 %v12447, %v12448
    %v12450 = vsel %vm193, %v12342, 0.0
    %v12451 = vadd.f32 %v12449, %v12450
    %v12452 = vsel %vm193, %v12343, 0.0
    %v12453 = vadd.f32 %v12451, %v12452
    %v12454 = vsel %vm193, %v12344, 0.0
    %v12455 = vadd.f32 %v12453, %v12454
    %v12456 = vsel %vm193, %v12345, 0.0
    %v12457 = vadd.f32 %v12455, %v12456
    %v12458 = vsel %vm193, %v12346, 0.0
    %v12459 = vadd.f32 %v12457, %v12458
    %v12460 = vsel %vm193, %v12347, 0.0
    %v12461 = vadd.f32 %v12459, %v12460
    %v12462 = vsel %vm193, %v12348, 0.0
    %v12463 = vadd.f32 %v12461, %v12462
    %v12464 = vsel %vm193, %v12349, 0.0
    %v12465 = vadd.f32 %v12463, %v12464
    %v12466 = vsel %vm193, %v12350, 0.0
    %v12467 = vadd.f32 %v12465, %v12466
    %v12468 = vsel %vm193, %v12351, 0.0
    %v12469 = vadd.f32 %v12467, %v12468
    %v12470 = vsel %vm193, %v12352, 0.0
    %v12471 = vadd.f32 %v12469, %v12470
    %v12472 = vsel %vm193, %v12353, 0.0
    %v12473 = vadd.f32 %v12471, %v12472
    %v12474 = vsel %vm193, %v12354, 0.0
    %v12475 = vadd.f32 %v12473, %v12474
    %v12476 = vsel %vm193, %v12355, 0.0
    %v12477 = vadd.f32 %v12475, %v12476
    %v12478 = vsel %vm193, %v12356, 0.0
    %v12479 = vadd.f32 %v12477, %v12478
    %v12480 = vsel %vm193, %v12357, 0.0
    %v12481 = vadd.f32 %v12479, %v12480
    %v12482 = vsel %vm193, %v12358, 0.0
    %v12483 = vadd.f32 %v12481, %v12482
    %v12484 = vsel %vm193, %v12359, 0.0
    %v12485 = vadd.f32 %v12483, %v12484
    %v12486 = vsel %vm193, %v12360, 0.0
    %v12487 = vadd.f32 %v12485, %v12486
    %v12488 = vrot.slane %v12487, 4
    %v12489 = vadd.f32 %v12487, %v12488
    %v12490 = vrot.slane %v12489, 2
    %v12491 = vadd.f32 %v12489, %v12490
    %v12492 = vrot.slane %v12491, 1
    %v12493 = vadd.f32 %v12491, %v12492
    %v12494 = vmul.f32 %v12296, 0.001953125
    %v12495 = vmul.f32 %v12493, 0.001953125
    %v12496 = vmul.f32 %v12494, %v12494
    %v12497 = vsub.f32 %v12495, %v12496
    %v12498 = vmax.f32 %v12497, 0.0
    %v12499 = vadd.f32 %v12498, 1e-05
    %v12500 = vrsqrt.pop %v12499
    %v12501 = vmul.f32 %v12162, %v12500
    %v12502 = vmul.f32 %v12494, %v12501
    %v12503 = vsub.f32 %v12163, %v12502
    %v12505 = vlaneseq
    %v12506 = vshrl.u32 %v12505, 7
    %v12507 = vsub.s32 0, %v12506
    %v12508 = vrot.slane %v12501, %v12507
    %v12510 = vmul.f32 %v11908, %v12508
    %v12511 = vmul.f32 %v11911, %v12508
    %v12512 = vmul.f32 %v11916, %v12508
    %v12513 = vmul.f32 %v11919, %v12508
    %v12514 = vmul.f32 %v11924, %v12508
    %v12515 = vmul.f32 %v11927, %v12508
    %v12516 = vmul.f32 %v11932, %v12508
    %v12517 = vmul.f32 %v11935, %v12508
    %v12518 = vmul.f32 %v11940, %v12508
    %v12519 = vmul.f32 %v11943, %v12508
    %v12520 = vmul.f32 %v11948, %v12508
    %v12521 = vmul.f32 %v11951, %v12508
    %v12522 = vmul.f32 %v11956, %v12508
    %v12523 = vmul.f32 %v11959, %v12508
    %v12524 = vmul.f32 %v11964, %v12508
    %v12525 = vmul.f32 %v11967, %v12508
    %v12526 = vmul.f32 %v11972, %v12508
    %v12527 = vmul.f32 %v11975, %v12508
    %v12528 = vmul.f32 %v11980, %v12508
    %v12529 = vmul.f32 %v11983, %v12508
    %v12530 = vmul.f32 %v11988, %v12508
    %v12531 = vmul.f32 %v11991, %v12508
    %v12532 = vmul.f32 %v11996, %v12508
    %v12533 = vmul.f32 %v11999, %v12508
    %v12534 = vmul.f32 %v12004, %v12508
    %v12535 = vmul.f32 %v12007, %v12508
    %v12536 = vmul.f32 %v12012, %v12508
    %v12537 = vmul.f32 %v12015, %v12508
    %v12538 = vmul.f32 %v12020, %v12508
    %v12539 = vmul.f32 %v12023, %v12508
    %v12540 = vmul.f32 %v12028, %v12508
    %v12541 = vmul.f32 %v12031, %v12508
    %v12542 = vmul.f32 %v12036, %v12508
    %v12543 = vmul.f32 %v12039, %v12508
    %v12544 = vmul.f32 %v12044, %v12508
    %v12545 = vmul.f32 %v12047, %v12508
    %v12546 = vmul.f32 %v12052, %v12508
    %v12547 = vmul.f32 %v12055, %v12508
    %v12548 = vmul.f32 %v12060, %v12508
    %v12549 = vmul.f32 %v12063, %v12508
    %v12550 = vmul.f32 %v12068, %v12508
    %v12551 = vmul.f32 %v12071, %v12508
    %v12552 = vmul.f32 %v12076, %v12508
    %v12553 = vmul.f32 %v12079, %v12508
    %v12554 = vmul.f32 %v12084, %v12508
    %v12555 = vmul.f32 %v12087, %v12508
    %v12556 = vmul.f32 %v12092, %v12508
    %v12557 = vmul.f32 %v12095, %v12508
    %v12558 = vmul.f32 %v12100, %v12508
    %v12559 = vmul.f32 %v12103, %v12508
    %v12560 = vmul.f32 %v12108, %v12508
    %v12561 = vmul.f32 %v12111, %v12508
    %v12562 = vmul.f32 %v12116, %v12508
    %v12563 = vmul.f32 %v12119, %v12508
    %v12564 = vmul.f32 %v12124, %v12508
    %v12565 = vmul.f32 %v12127, %v12508
    %v12566 = vmul.f32 %v12132, %v12508
    %v12567 = vmul.f32 %v12135, %v12508
    %v12568 = vmul.f32 %v12140, %v12508
    %v12569 = vmul.f32 %v12143, %v12508
    %v12570 = vmul.f32 %v12148, %v12508
    %v12571 = vmul.f32 %v12151, %v12508
    %v12572 = vmul.f32 %v12156, %v12508
    %v12573 = vmul.f32 %v12159, %v12508
    %v12575 = vlaneseq
    %v12576 = vshrl.u32 %v12575, 7
    %v12577 = vsub.s32 0, %v12576
    %v12578 = vrot.slane %v12503, %v12577
    %v12580 = vadd.f32 %v12510, %v12578
    %v12581 = vadd.f32 %v12511, %v12578
    %v12582 = vadd.f32 %v12512, %v12578
    %v12583 = vadd.f32 %v12513, %v12578
    %v12584 = vadd.f32 %v12514, %v12578
    %v12585 = vadd.f32 %v12515, %v12578
    %v12586 = vadd.f32 %v12516, %v12578
    %v12587 = vadd.f32 %v12517, %v12578
    %v12588 = vadd.f32 %v12518, %v12578
    %v12589 = vadd.f32 %v12519, %v12578
    %v12590 = vadd.f32 %v12520, %v12578
    %v12591 = vadd.f32 %v12521, %v12578
    %v12592 = vadd.f32 %v12522, %v12578
    %v12593 = vadd.f32 %v12523, %v12578
    %v12594 = vadd.f32 %v12524, %v12578
    %v12595 = vadd.f32 %v12525, %v12578
    %v12596 = vadd.f32 %v12526, %v12578
    %v12597 = vadd.f32 %v12527, %v12578
    %v12598 = vadd.f32 %v12528, %v12578
    %v12599 = vadd.f32 %v12529, %v12578
    %v12600 = vadd.f32 %v12530, %v12578
    %v12601 = vadd.f32 %v12531, %v12578
    %v12602 = vadd.f32 %v12532, %v12578
    %v12603 = vadd.f32 %v12533, %v12578
    %v12604 = vadd.f32 %v12534, %v12578
    %v12605 = vadd.f32 %v12535, %v12578
    %v12606 = vadd.f32 %v12536, %v12578
    %v12607 = vadd.f32 %v12537, %v12578
    %v12608 = vadd.f32 %v12538, %v12578
    %v12609 = vadd.f32 %v12539, %v12578
    %v12610 = vadd.f32 %v12540, %v12578
    %v12611 = vadd.f32 %v12541, %v12578
    %v12612 = vadd.f32 %v12542, %v12578
    %v12613 = vadd.f32 %v12543, %v12578
    %v12614 = vadd.f32 %v12544, %v12578
    %v12615 = vadd.f32 %v12545, %v12578
    %v12616 = vadd.f32 %v12546, %v12578
    %v12617 = vadd.f32 %v12547, %v12578
    %v12618 = vadd.f32 %v12548, %v12578
    %v12619 = vadd.f32 %v12549, %v12578
    %v12620 = vadd.f32 %v12550, %v12578
    %v12621 = vadd.f32 %v12551, %v12578
    %v12622 = vadd.f32 %v12552, %v12578
    %v12623 = vadd.f32 %v12553, %v12578
    %v12624 = vadd.f32 %v12554, %v12578
    %v12625 = vadd.f32 %v12555, %v12578
    %v12626 = vadd.f32 %v12556, %v12578
    %v12627 = vadd.f32 %v12557, %v12578
    %v12628 = vadd.f32 %v12558, %v12578
    %v12629 = vadd.f32 %v12559, %v12578
    %v12630 = vadd.f32 %v12560, %v12578
    %v12631 = vadd.f32 %v12561, %v12578
    %v12632 = vadd.f32 %v12562, %v12578
    %v12633 = vadd.f32 %v12563, %v12578
    %v12634 = vadd.f32 %v12564, %v12578
    %v12635 = vadd.f32 %v12565, %v12578
    %v12636 = vadd.f32 %v12566, %v12578
    %v12637 = vadd.f32 %v12567, %v12578
    %v12638 = vadd.f32 %v12568, %v12578
    %v12639 = vadd.f32 %v12569, %v12578
    %v12640 = vadd.f32 %v12570, %v12578
    %v12641 = vadd.f32 %v12571, %v12578
    %v12642 = vadd.f32 %v12572, %v12578
    %v12643 = vadd.f32 %v12573, %v12578
    %v12644 = vadd.f32 %v12580, %v65
    %v12645 = vadd.f32 %v12581, %v66
    %v12646 = vadd.f32 %v12582, %v67
    %v12647 = vadd.f32 %v12583, %v68
    %v12648 = vadd.f32 %v12584, %v69
    %v12649 = vadd.f32 %v12585, %v70
    %v12650 = vadd.f32 %v12586, %v71
    %v12651 = vadd.f32 %v12587, %v72
    %v12652 = vadd.f32 %v12588, %v73
    %v12653 = vadd.f32 %v12589, %v74
    %v12654 = vadd.f32 %v12590, %v75
    %v12655 = vadd.f32 %v12591, %v76
    %v12656 = vadd.f32 %v12592, %v77
    %v12657 = vadd.f32 %v12593, %v78
    %v12658 = vadd.f32 %v12594, %v79
    %v12659 = vadd.f32 %v12595, %v80
    %v12660 = vadd.f32 %v12596, %v81
    %v12661 = vadd.f32 %v12597, %v82
    %v12662 = vadd.f32 %v12598, %v83
    %v12663 = vadd.f32 %v12599, %v84
    %v12664 = vadd.f32 %v12600, %v85
    %v12665 = vadd.f32 %v12601, %v86
    %v12666 = vadd.f32 %v12602, %v87
    %v12667 = vadd.f32 %v12603, %v88
    %v12668 = vadd.f32 %v12604, %v89
    %v12669 = vadd.f32 %v12605, %v90
    %v12670 = vadd.f32 %v12606, %v91
    %v12671 = vadd.f32 %v12607, %v92
    %v12672 = vadd.f32 %v12608, %v93
    %v12673 = vadd.f32 %v12609, %v94
    %v12674 = vadd.f32 %v12610, %v95
    %v12675 = vadd.f32 %v12611, %v96
    %v12676 = vadd.f32 %v12612, %v97
    %v12677 = vadd.f32 %v12613, %v98
    %v12678 = vadd.f32 %v12614, %v99
    %v12679 = vadd.f32 %v12615, %v100
    %v12680 = vadd.f32 %v12616, %v101
    %v12681 = vadd.f32 %v12617, %v102
    %v12682 = vadd.f32 %v12618, %v103
    %v12683 = vadd.f32 %v12619, %v104
    %v12684 = vadd.f32 %v12620, %v105
    %v12685 = vadd.f32 %v12621, %v106
    %v12686 = vadd.f32 %v12622, %v107
    %v12687 = vadd.f32 %v12623, %v108
    %v12688 = vadd.f32 %v12624, %v109
    %v12689 = vadd.f32 %v12625, %v110
    %v12690 = vadd.f32 %v12626, %v111
    %v12691 = vadd.f32 %v12627, %v112
    %v12692 = vadd.f32 %v12628, %v113
    %v12693 = vadd.f32 %v12629, %v114
    %v12694 = vadd.f32 %v12630, %v115
    %v12695 = vadd.f32 %v12631, %v116
    %v12696 = vadd.f32 %v12632, %v117
    %v12697 = vadd.f32 %v12633, %v118
    %v12698 = vadd.f32 %v12634, %v119
    %v12699 = vadd.f32 %v12635, %v120
    %v12700 = vadd.f32 %v12636, %v121
    %v12701 = vadd.f32 %v12637, %v122
    %v12702 = vadd.f32 %v12638, %v123
    %v12703 = vadd.f32 %v12639, %v124
    %v12704 = vadd.f32 %v12640, %v125
    %v12705 = vadd.f32 %v12641, %v126
    %v12706 = vadd.f32 %v12642, %v127
    %v12707 = vadd.f32 %v12643, %v128
    %v12708 = vmax.f32 %v12644, 0.0
    %v12709 = vmax.f32 %v12645, 0.0
    %v12710 = vmax.f32 %v12646, 0.0
    %v12711 = vmax.f32 %v12647, 0.0
    %v12712 = vmax.f32 %v12648, 0.0
    %v12713 = vmax.f32 %v12649, 0.0
    %v12714 = vmax.f32 %v12650, 0.0
    %v12715 = vmax.f32 %v12651, 0.0
    %v12716 = vmax.f32 %v12652, 0.0
    %v12717 = vmax.f32 %v12653, 0.0
    %v12718 = vmax.f32 %v12654, 0.0
    %v12719 = vmax.f32 %v12655, 0.0
    %v12720 = vmax.f32 %v12656, 0.0
    %v12721 = vmax.f32 %v12657, 0.0
    %v12722 = vmax.f32 %v12658, 0.0
    %v12723 = vmax.f32 %v12659, 0.0
    %v12724 = vmax.f32 %v12660, 0.0
    %v12725 = vmax.f32 %v12661, 0.0
    %v12726 = vmax.f32 %v12662, 0.0
    %v12727 = vmax.f32 %v12663, 0.0
    %v12728 = vmax.f32 %v12664, 0.0
    %v12729 = vmax.f32 %v12665, 0.0
    %v12730 = vmax.f32 %v12666, 0.0
    %v12731 = vmax.f32 %v12667, 0.0
    %v12732 = vmax.f32 %v12668, 0.0
    %v12733 = vmax.f32 %v12669, 0.0
    %v12734 = vmax.f32 %v12670, 0.0
    %v12735 = vmax.f32 %v12671, 0.0
    %v12736 = vmax.f32 %v12672, 0.0
    %v12737 = vmax.f32 %v12673, 0.0
    %v12738 = vmax.f32 %v12674, 0.0
    %v12739 = vmax.f32 %v12675, 0.0
    %v12740 = vmax.f32 %v12676, 0.0
    %v12741 = vmax.f32 %v12677, 0.0
    %v12742 = vmax.f32 %v12678, 0.0
    %v12743 = vmax.f32 %v12679, 0.0
    %v12744 = vmax.f32 %v12680, 0.0
    %v12745 = vmax.f32 %v12681, 0.0
    %v12746 = vmax.f32 %v12682, 0.0
    %v12747 = vmax.f32 %v12683, 0.0
    %v12748 = vmax.f32 %v12684, 0.0
    %v12749 = vmax.f32 %v12685, 0.0
    %v12750 = vmax.f32 %v12686, 0.0
    %v12751 = vmax.f32 %v12687, 0.0
    %v12752 = vmax.f32 %v12688, 0.0
    %v12753 = vmax.f32 %v12689, 0.0
    %v12754 = vmax.f32 %v12690, 0.0
    %v12755 = vmax.f32 %v12691, 0.0
    %v12756 = vmax.f32 %v12692, 0.0
    %v12757 = vmax.f32 %v12693, 0.0
    %v12758 = vmax.f32 %v12694, 0.0
    %v12759 = vmax.f32 %v12695, 0.0
    %v12760 = vmax.f32 %v12696, 0.0
    %v12761 = vmax.f32 %v12697, 0.0
    %v12762 = vmax.f32 %v12698, 0.0
    %v12763 = vmax.f32 %v12699, 0.0
    %v12764 = vmax.f32 %v12700, 0.0
    %v12765 = vmax.f32 %v12701, 0.0
    %v12766 = vmax.f32 %v12702, 0.0
    %v12767 = vmax.f32 %v12703, 0.0
    %v12768 = vmax.f32 %v12704, 0.0
    %v12769 = vmax.f32 %v12705, 0.0
    %v12770 = vmax.f32 %v12706, 0.0
    %v12771 = vmax.f32 %v12707, 0.0
    %12772 = vst.msk [vmem:[#allocation8] sm:$0xff] %vm193, %v12708
    %12773 = vst.msk [vmem:[#allocation8 + $0x8] sm:$0xff] %vm193, %v12709
    %12774 = vst.msk [vmem:[#allocation8 + $0x10] sm:$0xff] %vm193, %v12710
    %12775 = vst.msk [vmem:[#allocation8 + $0x18] sm:$0xff] %vm193, %v12711
    %12776 = vst.msk [vmem:[#allocation8 + $0x20] sm:$0xff] %vm193, %v12712
    %12777 = vst.msk [vmem:[#allocation8 + $0x28] sm:$0xff] %vm193, %v12713
    %12778 = vst.msk [vmem:[#allocation8 + $0x30] sm:$0xff] %vm193, %v12714
    %12779 = vst.msk [vmem:[#allocation8 + $0x38] sm:$0xff] %vm193, %v12715
    %12780 = vst.msk [vmem:[#allocation8 + $0x40] sm:$0xff] %vm193, %v12716
    %12781 = vst.msk [vmem:[#allocation8 + $0x48] sm:$0xff] %vm193, %v12717
    %12782 = vst.msk [vmem:[#allocation8 + $0x50] sm:$0xff] %vm193, %v12718
    %12783 = vst.msk [vmem:[#allocation8 + $0x58] sm:$0xff] %vm193, %v12719
    %12784 = vst.msk [vmem:[#allocation8 + $0x60] sm:$0xff] %vm193, %v12720
    %12785 = vst.msk [vmem:[#allocation8 + $0x68] sm:$0xff] %vm193, %v12721
    %12786 = vst.msk [vmem:[#allocation8 + $0x70] sm:$0xff] %vm193, %v12722
    %12787 = vst.msk [vmem:[#allocation8 + $0x78] sm:$0xff] %vm193, %v12723
    %12788 = vst.msk [vmem:[#allocation8 + $0x80] sm:$0xff] %vm193, %v12724
    %12789 = vst.msk [vmem:[#allocation8 + $0x88] sm:$0xff] %vm193, %v12725
    %12790 = vst.msk [vmem:[#allocation8 + $0x90] sm:$0xff] %vm193, %v12726
    %12791 = vst.msk [vmem:[#allocation8 + $0x98] sm:$0xff] %vm193, %v12727
    %12792 = vst.msk [vmem:[#allocation8 + $0xa0] sm:$0xff] %vm193, %v12728
    %12793 = vst.msk [vmem:[#allocation8 + $0xa8] sm:$0xff] %vm193, %v12729
    %12794 = vst.msk [vmem:[#allocation8 + $0xb0] sm:$0xff] %vm193, %v12730
    %12795 = vst.msk [vmem:[#allocation8 + $0xb8] sm:$0xff] %vm193, %v12731
    %12796 = vst.msk [vmem:[#allocation8 + $0xc0] sm:$0xff] %vm193, %v12732
    %12797 = vst.msk [vmem:[#allocation8 + $0xc8] sm:$0xff] %vm193, %v12733
    %12798 = vst.msk [vmem:[#allocation8 + $0xd0] sm:$0xff] %vm193, %v12734
    %12799 = vst.msk [vmem:[#allocation8 + $0xd8] sm:$0xff] %vm193, %v12735
    %12800 = vst.msk [vmem:[#allocation8 + $0xe0] sm:$0xff] %vm193, %v12736
    %12801 = vst.msk [vmem:[#allocation8 + $0xe8] sm:$0xff] %vm193, %v12737
    %12802 = vst.msk [vmem:[#allocation8 + $0xf0] sm:$0xff] %vm193, %v12738
    %12803 = vst.msk [vmem:[#allocation8 + $0xf8] sm:$0xff] %vm193, %v12739
    %12804 = vst.msk [vmem:[#allocation8 + $0x100] sm:$0xff] %vm193, %v12740
    %12805 = vst.msk [vmem:[#allocation8 + $0x108] sm:$0xff] %vm193, %v12741
    %12806 = vst.msk [vmem:[#allocation8 + $0x110] sm:$0xff] %vm193, %v12742
    %12807 = vst.msk [vmem:[#allocation8 + $0x118] sm:$0xff] %vm193, %v12743
    %12808 = vst.msk [vmem:[#allocation8 + $0x120] sm:$0xff] %vm193, %v12744
    %12809 = vst.msk [vmem:[#allocation8 + $0x128] sm:$0xff] %vm193, %v12745
    %12810 = vst.msk [vmem:[#allocation8 + $0x130] sm:$0xff] %vm193, %v12746
    %12811 = vst.msk [vmem:[#allocation8 + $0x138] sm:$0xff] %vm193, %v12747
    %12812 = vst.msk [vmem:[#allocation8 + $0x140] sm:$0xff] %vm193, %v12748
    %12813 = vst.msk [vmem:[#allocation8 + $0x148] sm:$0xff] %vm193, %v12749
    %12814 = vst.msk [vmem:[#allocation8 + $0x150] sm:$0xff] %vm193, %v12750
    %12815 = vst.msk [vmem:[#allocation8 + $0x158] sm:$0xff] %vm193, %v12751
    %12816 = vst.msk [vmem:[#allocation8 + $0x160] sm:$0xff] %vm193, %v12752
    %12817 = vst.msk [vmem:[#allocation8 + $0x168] sm:$0xff] %vm193, %v12753
    %12818 = vst.msk [vmem:[#allocation8 + $0x170] sm:$0xff] %vm193, %v12754
    %12819 = vst.msk [vmem:[#allocation8 + $0x178] sm:$0xff] %vm193, %v12755
    %12820 = vst.msk [vmem:[#allocation8 + $0x180] sm:$0xff] %vm193, %v12756
    %12821 = vst.msk [vmem:[#allocation8 + $0x188] sm:$0xff] %vm193, %v12757
    %12822 = vst.msk [vmem:[#allocation8 + $0x190] sm:$0xff] %vm193, %v12758
    %12823 = vst.msk [vmem:[#allocation8 + $0x198] sm:$0xff] %vm193, %v12759
    %12824 = vst.msk [vmem:[#allocation8 + $0x1a0] sm:$0xff] %vm193, %v12760
    %12825 = vst.msk [vmem:[#allocation8 + $0x1a8] sm:$0xff] %vm193, %v12761
    %12826 = vst.msk [vmem:[#allocation8 + $0x1b0] sm:$0xff] %vm193, %v12762
    %12827 = vst.msk [vmem:[#allocation8 + $0x1b8] sm:$0xff] %vm193, %v12763
    %12828 = vst.msk [vmem:[#allocation8 + $0x1c0] sm:$0xff] %vm193, %v12764
    %12829 = vst.msk [vmem:[#allocation8 + $0x1c8] sm:$0xff] %vm193, %v12765
    %12830 = vst.msk [vmem:[#allocation8 + $0x1d0] sm:$0xff] %vm193, %v12766
    %12831 = vst.msk [vmem:[#allocation8 + $0x1d8] sm:$0xff] %vm193, %v12767
    %12832 = vst.msk [vmem:[#allocation8 + $0x1e0] sm:$0xff] %vm193, %v12768
    %12833 = vst.msk [vmem:[#allocation8 + $0x1e8] sm:$0xff] %vm193, %v12769
    %12834 = vst.msk [vmem:[#allocation8 + $0x1f0] sm:$0xff] %vm193, %v12770
    %12835 = vst.msk [vmem:[#allocation8 + $0x1f8] sm:$0xff] %vm193, %v12771
    // Predicated region
    $region50: #{tpu_custom_call.1} parent=1 // pred_check
      _
    $region51: #{tpu_custom_call.1} parent=1 // pred_check_branch
      %12837 = sbr.rel (0) target = $region53
    $region52: #{tpu_custom_call.1} parent=1 // pred_region
      %s12839 = ssub.s32 8192, 8192
      %12840 = vsyncadd [#allocation5], %s12839
      %s12841 = sshll.u32 [#allocation8], 4
      %s12842 = int_to_ptr.vmem [resolvable:$true] %s12841
      %12847 = dma.vmem_to_hbm [thread:$0]  %s12842, 8192, %s10, [#allocation5], 128, 128, 8
    $region53: #{tpu_custom_call.1} parent=1 // pred_fallthru
      _
    // Predicated region
    $region54: #{tpu_custom_call.1} parent=1 // pred_check
      _
    $region55: #{tpu_custom_call.1} parent=1 // pred_check_branch
      %12849 = sbr.rel (0) target = $region57
    $region56: #{tpu_custom_call.1} parent=1 // pred_region
      %12850 = dma.done [#allocation5], 8192
    $region57: #{tpu_custom_call.1} parent=1 // pred_fallthru
      _
    %12851 = vsyncpa [#allocation4], 1
    %12852 = vsyncpa [#allocation7], 1
    %12853 = vsyncpa [#allocation5], 1

</llo_original>
